<compile_context>
chip_gen: v7x
topology: tpu7x:2x2x1
jax: 0.10.0
libtpu: 0.0.40
codegen_flags: <defaults>
</compile_context>

<pallas_src>
import jax
import jax.numpy as jnp
from jax.experimental import pallas as pl
from jax.experimental.pallas import tpu as pltpu

F32 = jnp.float32
BF16 = jnp.bfloat16


# ----------------------------------------------------------------------------
# Fused whole-network kernel (one image per grid step).
# Note on op order: PyTorch does
#   block1: relu(pool(relu(conv)))  == pool(relu(conv))   (relu idempotent)
#   block2: relu(pool(conv))        == pool(relu(conv))   (relu monotone)
#   block3: pool(relu(conv))
# so a single conv+bias+relu+pool sequence reproduces all three blocks.
# ----------------------------------------------------------------------------
def fused_cnn_kernel(p1_ref, w1_ref, b1_ref, w2_ref, b2_ref, w3_ref, b3_ref,
                     fw1_ref, fb1_ref, fw2_ref, fb2_ref,
                     o_ref,
                     wpool1, pad2, patch2, wpool2, pad3, patch3, wpool3, feat):
    # -------- Block 1: conv1 (im2col done in wrapper) + bias + ReLU + pool ----
    # p1_ref: (1024, 128) bf16 (K padded 75->128), w1_ref: (128, 32) bf16
    h = jnp.dot(p1_ref[...], w1_ref[...], preferred_element_type=F32)   # (1024, 32)
    a = jnp.maximum(h + b1_ref[...], 0.0)                               # bias + ReLU
    a = a.reshape(16, 2, 32, 32)                                        # (H/2, 2, W, C)
    a = jnp.maximum(a[:, 0], a[:, 1])                                   # H-pool (16,32,32)
    wpool1[...] = a
    a = jnp.maximum(wpool1[:, pl.ds(0, 16, 2), :],
                    wpool1[:, pl.ds(1, 16, 2), :])                      # W-pool (16,16,32)
    pad2[...] = jnp.zeros_like(pad2)
    pad2[2:18, 2:18, :] = a                                             # padded conv2 input

    # -------- Block 2: in-kernel im2col -> one (256,800)x(800,64) matmul ------
    for kh in range(5):
        for kw in range(5):
            t = kh * 5 + kw
            patch2[:, t * 32:(t + 1) * 32] = (
                pad2[kh:kh + 16, kw:kw + 16, :].reshape(256, 32).astype(BF16))
    h = jnp.dot(patch2[...], w2_ref[...], preferred_element_type=F32)   # (256, 64)
    a = jnp.maximum(h + b2_ref[...], 0.0)
    a = a.reshape(8, 2, 16, 64)
    a = jnp.maximum(a[:, 0], a[:, 1])                                   # H-pool (8,16,64)
    wpool2[...] = a
    a = jnp.maximum(wpool2[:, pl.ds(0, 8, 2), :],
                    wpool2[:, pl.ds(1, 8, 2), :])                       # W-pool (8,8,64)
    pad3[...] = jnp.zeros_like(pad3)
    pad3[2:10, 2:10, :] = a                                             # padded conv3 input

    # -------- Block 3: in-kernel im2col -> one (64,1600)x(1600,128) matmul ----
    for kh in range(5):
        for kw in range(5):
            t = kh * 5 + kw
            patch3[:, t * 64:(t + 1) * 64] = (
                pad3[kh:kh + 8, kw:kw + 8, :].reshape(64, 64).astype(BF16))
    h = jnp.dot(patch3[...], w3_ref[...], preferred_element_type=F32)   # (64, 128)
    a = jnp.maximum(h + b3_ref[...], 0.0)
    a = a.reshape(4, 2, 8, 128)
    a = jnp.maximum(a[:, 0], a[:, 1])                                   # H-pool (4,8,128)
    wpool3[...] = a
    # W-pool fused with HWC flatten: 16 lane-tile-aligned (1,128) stores.
    for hh in range(4):
        for ww in range(4):
            v = jnp.maximum(wpool3[hh, 2 * ww:2 * ww + 1, :],
                            wpool3[hh, 2 * ww + 1:2 * ww + 2, :])       # (1, 128)
            idx = hh * 4 + ww
            feat[:, idx * 128:(idx + 1) * 128] = v.astype(BF16)

    # -------- MLP head: ReLU(feat @ W1 + b1) @ W2 + b2 (out padded to 128) ----
    z = jnp.dot(feat[...], fw1_ref[...], preferred_element_type=F32) + fb1_ref[...]
    z = jnp.maximum(z, 0.0).astype(BF16)                                # (1, 64)
    o_ref[...] = jnp.dot(z, fw2_ref[...], preferred_element_type=F32) + fb2_ref[...]


# ----------------------------------------------------------------------------
# Wrapper
# ----------------------------------------------------------------------------
def _im2col_conv1(x_nhwc):
    """(B,32,32,3) f32 -> (B,1024,128) bf16 patches (K = 25*3 = 75, zero-padded to 128)."""
    B = x_nhwc.shape[0]
    xp = jnp.pad(x_nhwc, ((0, 0), (2, 2), (2, 2), (0, 0)))
    cols = [xp[:, kh:kh + 32, kw:kw + 32, :] for kh in range(5) for kw in range(5)]
    p = jnp.concatenate(cols, axis=-1).reshape(B, 32 * 32, 75)
    p = jnp.pad(p, ((0, 0), (0, 0), (0, 128 - 75)))
    return p.astype(BF16)


def _full_spec(shape):
    zeros = (0,) * len(shape)
    return pl.BlockSpec(shape, lambda i, z=zeros: z)


@jax.jit
def example_model_forward(params, x_nchw):
    """x_nchw: (B, 3, 32, 32) float32, same convention as the PyTorch module."""
    x = jnp.transpose(x_nchw, (0, 2, 3, 1)).astype(F32)          # NCHW -> NHWC
    B = x.shape[0]
    num_classes = params["fc2_b"].shape[0]

    patches1 = _im2col_conv1(x)                                  # (B, 1024, 128) bf16

    # Weight prep: im2col-flattened, bf16 operands; fc2 padded to 128 output lanes.
    w1 = jnp.pad(params["w1"].reshape(75, 32), ((0, 53), (0, 0))).astype(BF16)
    w2 = params["w2"].reshape(800, 64).astype(BF16)
    w3 = params["w3"].reshape(1600, 128).astype(BF16)
    fw1 = params["fc1_w"].astype(BF16)                           # (2048, 64)
    fw2 = jnp.pad(params["fc2_w"], ((0, 0), (0, 128 - num_classes))).astype(BF16)
    b1 = params["b1"].reshape(1, 32)
    b2 = params["b2"].reshape(1, 64)
    b3 = params["b3"].reshape(1, 128)
    fb1 = params["fc1_b"].reshape(1, 64)
    fb2 = jnp.pad(params["fc2_b"], (0, 128 - num_classes)).reshape(1, 128)

    out = pl.pallas_call(
        fused_cnn_kernel,
        out_shape=jax.ShapeDtypeStruct((B, 1, 128), F32),
        grid=(B,),
        in_specs=[
            pl.BlockSpec((None, 1024, 128), lambda i: (i, 0, 0)),   # conv1 patches
            _full_spec((128, 32)), _full_spec((1, 32)),             # conv1 w, b
            _full_spec((800, 64)), _full_spec((1, 64)),             # conv2 w, b
            _full_spec((1600, 128)), _full_spec((1, 128)),          # conv3 w, b
            _full_spec((2048, 64)), _full_spec((1, 64)),            # fc1 w, b
            _full_spec((64, 128)), _full_spec((1, 128)),            # fc2 w, b (padded)
        ],
        out_specs=pl.BlockSpec((None, 1, 128), lambda i: (i, 0, 0)),
        scratch_shapes=[
            pltpu.VMEM((16, 32, 32), F32),    # wpool1 : H-pooled block1 act
            pltpu.VMEM((20, 20, 32), F32),    # pad2   : zero-padded conv2 input
            pltpu.VMEM((256, 800), BF16),     # patch2 : conv2 im2col matrix
            pltpu.VMEM((8, 16, 64), F32),     # wpool2
            pltpu.VMEM((12, 12, 64), F32),    # pad3
            pltpu.VMEM((64, 1600), BF16),     # patch3
            pltpu.VMEM((4, 8, 128), F32),     # wpool3
            pltpu.VMEM((1, 2048), BF16),      # feat   : HWC-flattened features
        ],
        compiler_params=pltpu.CompilerParams(
            dimension_semantics=("parallel",),
            vmem_limit_bytes=32 * 1024 * 1024),
    )(patches1, w1, b1, w2, b2, w3, b3, fw1, fb1, fw2, fb2)

    return out[:, 0, :num_classes]


# ----------------------------------------------------------------------------
# Deterministic synthetic parameters (PyTorch layouts, permuted for NHWC/HWC)
# ----------------------------------------------------------------------------
def init_params(key, image_channels=3, num_classes=10):
    ks = jax.random.split(key, 10)

    def conv_w(k, cout, cin):
        w_oihw = jax.random.normal(k, (cout, cin, 5, 5), F32) * 0.05
        return jnp.transpose(w_oihw, (2, 3, 1, 0))        # OIHW -> HWIO

    p = {}
    p["w1"] = conv_w(ks[0], 32, image_channels)
    p["b1"] = jax.random.normal(ks[1], (32,), F32) * 0.05
    p["w2"] = conv_w(ks[2], 64, 32)
    p["b2"] = jax.random.normal(ks[3], (64,), F32) * 0.05
    p["w3"] = conv_w(ks[4], 128, 64)
    p["b3"] = jax.random.normal(ks[5], (128,), F32) * 0.05
    # FC1 in PyTorch acts on a CHW flatten of (128,4,4); permute to HWC flatten.
    fc1_oCHW = jax.random.normal(ks[6], (64, 128, 4, 4), F32) * 0.02
    p["fc1_w"] = jnp.transpose(fc1_oCHW, (2, 3, 1, 0)).reshape(128 * 4 * 4, 64)
    p["fc1_b"] = jax.random.normal(ks[7], (64,), F32) * 0.02
    fc2 = jax.random.normal(ks[8], (num_classes, 64), F32) * 0.02
    p["fc2_w"] = jnp.transpose(fc2, (1, 0))
    p["fc2_b"] = jax.random.normal(ks[9], (num_classes,), F32) * 0.02
    return p


# Pure-JAX reference: PyTorch op order, mirroring the kernel's bf16-operand /
# f32-accumulation precision choices so the comparison is apples-to-apples.
def reference_forward(params, x_nchw):
    x = jnp.transpose(x_nchw, (0, 2, 3, 1)).astype(F32)

    def conv(x, w, b):
        y = jax.lax.conv_general_dilated(
            x.astype(BF16), w.astype(BF16), (1, 1), ((2, 2), (2, 2)),
            dimension_numbers=("NHWC", "HWIO", "NHWC"),
            preferred_element_type=F32)
        return y + b[None, None, None, :]

    def pool(x):
        return jax.lax.reduce_window(x, -jnp.inf, jax.lax.max,
                                     (1, 2, 2, 1), (1, 2, 2, 1), "VALID")

    x = jnp.maximum(pool(jnp.maximum(conv(x, params["w1"], params["b1"]), 0.0)), 0.0)
    x = jnp.maximum(pool(conv(x, params["w2"], params["b2"])), 0.0)
    x = pool(jnp.maximum(conv(x, params["w3"], params["b3"]), 0.0))
    feat = x.reshape(x.shape[0], -1)            # HWC flatten (fc1_w permuted to match)
    h = jnp.maximum(jnp.dot(feat.astype(BF16), params["fc1_w"].astype(BF16),
                            preferred_element_type=F32) + params["fc1_b"], 0.0)
    return jnp.dot(h.astype(BF16), params["fc2_w"].astype(BF16),
                   preferred_element_type=F32) + params["fc2_b"]


if __name__ == "__main__":
    key = jax.random.PRNGKey(0)
    pkey, xkey = jax.random.split(key)
    params = init_params(pkey, image_channels=3, num_classes=10)
    # 32x32 spatial / 3 channels are required by the module (Linear expects 128*4*4).
    x = jax.random.normal(xkey, (2, 3, 32, 32), F32)

    out = example_model_forward(params, x)
    out = jax.block_until_ready(out)
    assert out.shape == (2, 10), out.shape

    ref = reference_forward(params, x)
    err = jnp.max(jnp.abs(out - ref))
    assert jnp.allclose(out, ref, rtol=1e-2, atol=1e-2), f"max abs err {err}"

    print("KERNEL_OK")
</pallas_src>

<mosaic_0001>
module attributes {stable_mosaic.version = 11 : i64} {
  func.func @fused_cnn_kernel(%arg0: i32, %arg1: memref<1x1024x128xbf16, #tpu.memory_space<vmem>>, %arg2: memref<128x32xbf16, #tpu.memory_space<vmem>>, %arg3: memref<1x32xf32, #tpu.memory_space<vmem>>, %arg4: memref<800x64xbf16, #tpu.memory_space<vmem>>, %arg5: memref<1x64xf32, #tpu.memory_space<vmem>>, %arg6: memref<1600x128xbf16, #tpu.memory_space<vmem>>, %arg7: memref<1x128xf32, #tpu.memory_space<vmem>>, %arg8: memref<2048x64xbf16, #tpu.memory_space<vmem>>, %arg9: memref<1x64xf32, #tpu.memory_space<vmem>>, %arg10: memref<64x128xbf16, #tpu.memory_space<vmem>>, %arg11: memref<1x128xf32, #tpu.memory_space<vmem>>, %arg12: memref<1x1x128xf32, #tpu.memory_space<vmem>>, %arg13: memref<16x32x32xf32, #tpu.memory_space<vmem>>, %arg14: memref<20x20x32xf32, #tpu.memory_space<vmem>>, %arg15: memref<256x800xbf16, #tpu.memory_space<vmem>>, %arg16: memref<8x16x64xf32, #tpu.memory_space<vmem>>, %arg17: memref<12x12x64xf32, #tpu.memory_space<vmem>>, %arg18: memref<64x1600xbf16, #tpu.memory_space<vmem>>, %arg19: memref<4x8x128xf32, #tpu.memory_space<vmem>>, %arg20: memref<1x2048xbf16, #tpu.memory_space<vmem>>) attributes {dimension_semantics = [#tpu.dimension_semantics<parallel>], iteration_bounds = array<i64: 2>, scalar_prefetch = 0 : i64, scratch_operands = 8 : i64, tpu.core_type = #tpu.core_type<tc>, window_params = [{transform_indices = @transform_0, window_bounds = array<i64: 1, 1024, 128>}, {pipeline_mode = #tpu.pipeline_mode<synchronous>, transform_indices = @transform_1, window_bounds = array<i64: 128, 32>}, {pipeline_mode = #tpu.pipeline_mode<synchronous>, transform_indices = @transform_2, window_bounds = array<i64: 1, 32>}, {pipeline_mode = #tpu.pipeline_mode<synchronous>, transform_indices = @transform_3, window_bounds = array<i64: 800, 64>}, {pipeline_mode = #tpu.pipeline_mode<synchronous>, transform_indices = @transform_4, window_bounds = array<i64: 1, 64>}, {pipeline_mode = #tpu.pipeline_mode<synchronous>, transform_indices = @transform_5, window_bounds = array<i64: 1600, 128>}, {pipeline_mode = #tpu.pipeline_mode<synchronous>, transform_indices = @transform_6, window_bounds = array<i64: 1, 128>}, {pipeline_mode = #tpu.pipeline_mode<synchronous>, transform_indices = @transform_7, window_bounds = array<i64: 2048, 64>}, {pipeline_mode = #tpu.pipeline_mode<synchronous>, transform_indices = @transform_8, window_bounds = array<i64: 1, 64>}, {pipeline_mode = #tpu.pipeline_mode<synchronous>, transform_indices = @transform_9, window_bounds = array<i64: 64, 128>}, {pipeline_mode = #tpu.pipeline_mode<synchronous>, transform_indices = @transform_10, window_bounds = array<i64: 1, 128>}, {transform_indices = @transform_11, window_bounds = array<i64: 1, 1, 128>}]} {
    %c0 = arith.constant 0 : index
    %c0_0 = arith.constant 0 : index
    %c0_1 = arith.constant 0 : index
    %0 = vector.load %arg1[%c0, %c0_0, %c0_1] : memref<1x1024x128xbf16, #tpu.memory_space<vmem>>, vector<1x1024x128xbf16>
    %1 = vector.shape_cast %0 : vector<1x1024x128xbf16> to vector<1024x128xbf16>
    %c0_2 = arith.constant 0 : index
    %c0_3 = arith.constant 0 : index
    %2 = vector.load %arg2[%c0_2, %c0_3] : memref<128x32xbf16, #tpu.memory_space<vmem>>, vector<128x32xbf16>
    %cst = arith.constant dense<0.000000e+00> : vector<1024x32xf32>
    %3 = tpu.matmul %1, %2, %cst {dimension_numbers = #tpu.dot_dimension_numbers<[1], [0], [0], [1], [0, 0, 1, 1], [], []>} : vector<1024x128xbf16>, vector<128x32xbf16>, vector<1024x32xf32> -> vector<1024x32xf32>
    %c0_4 = arith.constant 0 : index
    %c0_5 = arith.constant 0 : index
    %4 = vector.load %arg3[%c0_4, %c0_5] : memref<1x32xf32, #tpu.memory_space<vmem>>, vector<1x32xf32>
    %5 = vector.broadcast %4 : vector<1x32xf32> to vector<1024x32xf32>
    %6 = arith.addf %3, %5 : vector<1024x32xf32>
    %cst_6 = arith.constant 0.000000e+00 : f32
    %7 = vector.broadcast %cst_6 : f32 to vector<1024x32xf32>
    %8 = arith.maximumf %6, %7 : vector<1024x32xf32>
    %9 = vector.shape_cast %8 : vector<1024x32xf32> to vector<16x2x32x32xf32>
    %10 = vector.extract_strided_slice %9 {offsets = [0, 0, 0, 0], sizes = [16, 1, 32, 32], strides = [1, 1, 1, 1]} : vector<16x2x32x32xf32> to vector<16x1x32x32xf32>
    %11 = vector.shape_cast %10 : vector<16x1x32x32xf32> to vector<16x32x32xf32>
    %12 = vector.extract_strided_slice %9 {offsets = [0, 1, 0, 0], sizes = [16, 1, 32, 32], strides = [1, 1, 1, 1]} : vector<16x2x32x32xf32> to vector<16x1x32x32xf32>
    %13 = vector.shape_cast %12 : vector<16x1x32x32xf32> to vector<16x32x32xf32>
    %14 = arith.maximumf %11, %13 : vector<16x32x32xf32>
    %c0_7 = arith.constant 0 : index
    %c0_8 = arith.constant 0 : index
    %c0_9 = arith.constant 0 : index
    %15 = vector.load %arg13[%c0_7, %c0_8, %c0_9] : memref<16x32x32xf32, #tpu.memory_space<vmem>>, vector<16x32x32xf32>
    tpu.vector_store %arg13[%c0_7, %c0_8, %c0_9], %14 {strides = array<i32>} : memref<16x32x32xf32, #tpu.memory_space<vmem>>, vector<16x32x32xf32>,
    %c0_10 = arith.constant 0 : index
    %c0_11 = arith.constant 0 : index
    %c0_12 = arith.constant 0 : index
    %16 = tpu.strided_load %arg13[%c0_10, %c0_11, %c0_12] {strides = array<i32: 1, 2, 1>} : memref<16x32x32xf32, #tpu.memory_space<vmem>>, vector<16x16x32xf32>
    %c0_13 = arith.constant 0 : index
    %c1 = arith.constant 1 : index
    %c0_14 = arith.constant 0 : index
    %17 = tpu.strided_load %arg13[%c0_13, %c1, %c0_14] {strides = array<i32: 1, 2, 1>} : memref<16x32x32xf32, #tpu.memory_space<vmem>>, vector<16x16x32xf32>
    %18 = arith.maximumf %16, %17 : vector<16x16x32xf32>
    %cst_15 = arith.constant 0.000000e+00 : f32
    %19 = vector.broadcast %cst_15 : f32 to vector<20x20x32xf32>
    %c0_16 = arith.constant 0 : index
    %c0_17 = arith.constant 0 : index
    %c0_18 = arith.constant 0 : index
    %20 = vector.load %arg14[%c0_16, %c0_17, %c0_18] : memref<20x20x32xf32, #tpu.memory_space<vmem>>, vector<20x20x32xf32>
    tpu.vector_store %arg14[%c0_16, %c0_17, %c0_18], %19 {strides = array<i32>} : memref<20x20x32xf32, #tpu.memory_space<vmem>>, vector<20x20x32xf32>,
    %c2 = arith.constant 2 : index
    %c2_19 = arith.constant 2 : index
    %c0_20 = arith.constant 0 : index
    %21 = vector.load %arg14[%c2, %c2_19, %c0_20] : memref<20x20x32xf32, #tpu.memory_space<vmem>>, vector<16x16x32xf32>
    tpu.vector_store %arg14[%c2, %c2_19, %c0_20], %18 {strides = array<i32>} : memref<20x20x32xf32, #tpu.memory_space<vmem>>, vector<16x16x32xf32>,
    %c0_21 = arith.constant 0 : index
    %c0_22 = arith.constant 0 : index
    %c0_23 = arith.constant 0 : index
    %22 = vector.load %arg14[%c0_21, %c0_22, %c0_23] : memref<20x20x32xf32, #tpu.memory_space<vmem>>, vector<16x16x32xf32>
    %23 = vector.shape_cast %22 : vector<16x16x32xf32> to vector<256x32xf32>
    %24 = arith.truncf %23 : vector<256x32xf32> to vector<256x32xbf16>
    %c0_24 = arith.constant 0 : index
    %c0_25 = arith.constant 0 : index
    %25 = vector.load %arg15[%c0_24, %c0_25] : memref<256x800xbf16, #tpu.memory_space<vmem>>, vector<256x32xbf16>
    tpu.vector_store %arg15[%c0_24, %c0_25], %24 {strides = array<i32>} : memref<256x800xbf16, #tpu.memory_space<vmem>>, vector<256x32xbf16>,
    %c0_26 = arith.constant 0 : index
    %c1_27 = arith.constant 1 : index
    %c0_28 = arith.constant 0 : index
    %26 = vector.load %arg14[%c0_26, %c1_27, %c0_28] : memref<20x20x32xf32, #tpu.memory_space<vmem>>, vector<16x16x32xf32>
    %27 = vector.shape_cast %26 : vector<16x16x32xf32> to vector<256x32xf32>
    %28 = arith.truncf %27 : vector<256x32xf32> to vector<256x32xbf16>
    %c0_29 = arith.constant 0 : index
    %c32 = arith.constant 32 : index
    %29 = vector.load %arg15[%c0_29, %c32] : memref<256x800xbf16, #tpu.memory_space<vmem>>, vector<256x32xbf16>
    tpu.vector_store %arg15[%c0_29, %c32], %28 {strides = array<i32>} : memref<256x800xbf16, #tpu.memory_space<vmem>>, vector<256x32xbf16>,
    %c0_30 = arith.constant 0 : index
    %c2_31 = arith.constant 2 : index
    %c0_32 = arith.constant 0 : index
    %30 = vector.load %arg14[%c0_30, %c2_31, %c0_32] : memref<20x20x32xf32, #tpu.memory_space<vmem>>, vector<16x16x32xf32>
    %31 = vector.shape_cast %30 : vector<16x16x32xf32> to vector<256x32xf32>
    %32 = arith.truncf %31 : vector<256x32xf32> to vector<256x32xbf16>
    %c0_33 = arith.constant 0 : index
    %c64 = arith.constant 64 : index
    %33 = vector.load %arg15[%c0_33, %c64] : memref<256x800xbf16, #tpu.memory_space<vmem>>, vector<256x32xbf16>
    tpu.vector_store %arg15[%c0_33, %c64], %32 {strides = array<i32>} : memref<256x800xbf16, #tpu.memory_space<vmem>>, vector<256x32xbf16>,
    %c0_34 = arith.constant 0 : index
    %c3 = arith.constant 3 : index
    %c0_35 = arith.constant 0 : index
    %34 = vector.load %arg14[%c0_34, %c3, %c0_35] : memref<20x20x32xf32, #tpu.memory_space<vmem>>, vector<16x16x32xf32>
    %35 = vector.shape_cast %34 : vector<16x16x32xf32> to vector<256x32xf32>
    %36 = arith.truncf %35 : vector<256x32xf32> to vector<256x32xbf16>
    %c0_36 = arith.constant 0 : index
    %c96 = arith.constant 96 : index
    %37 = vector.load %arg15[%c0_36, %c96] : memref<256x800xbf16, #tpu.memory_space<vmem>>, vector<256x32xbf16>
    tpu.vector_store %arg15[%c0_36, %c96], %36 {strides = array<i32>} : memref<256x800xbf16, #tpu.memory_space<vmem>>, vector<256x32xbf16>,
    %c0_37 = arith.constant 0 : index
    %c4 = arith.constant 4 : index
    %c0_38 = arith.constant 0 : index
    %38 = vector.load %arg14[%c0_37, %c4, %c0_38] : memref<20x20x32xf32, #tpu.memory_space<vmem>>, vector<16x16x32xf32>
    %39 = vector.shape_cast %38 : vector<16x16x32xf32> to vector<256x32xf32>
    %40 = arith.truncf %39 : vector<256x32xf32> to vector<256x32xbf16>
    %c0_39 = arith.constant 0 : index
    %c128 = arith.constant 128 : index
    %41 = vector.load %arg15[%c0_39, %c128] : memref<256x800xbf16, #tpu.memory_space<vmem>>, vector<256x32xbf16>
    tpu.vector_store %arg15[%c0_39, %c128], %40 {strides = array<i32>} : memref<256x800xbf16, #tpu.memory_space<vmem>>, vector<256x32xbf16>,
    %c1_40 = arith.constant 1 : index
    %c0_41 = arith.constant 0 : index
    %c0_42 = arith.constant 0 : index
    %42 = vector.load %arg14[%c1_40, %c0_41, %c0_42] : memref<20x20x32xf32, #tpu.memory_space<vmem>>, vector<16x16x32xf32>
    %43 = vector.shape_cast %42 : vector<16x16x32xf32> to vector<256x32xf32>
    %44 = arith.truncf %43 : vector<256x32xf32> to vector<256x32xbf16>
    %c0_43 = arith.constant 0 : index
    %c160 = arith.constant 160 : index
    %45 = vector.load %arg15[%c0_43, %c160] : memref<256x800xbf16, #tpu.memory_space<vmem>>, vector<256x32xbf16>
    tpu.vector_store %arg15[%c0_43, %c160], %44 {strides = array<i32>} : memref<256x800xbf16, #tpu.memory_space<vmem>>, vector<256x32xbf16>,
    %c1_44 = arith.constant 1 : index
    %c1_45 = arith.constant 1 : index
    %c0_46 = arith.constant 0 : index
    %46 = vector.load %arg14[%c1_44, %c1_45, %c0_46] : memref<20x20x32xf32, #tpu.memory_space<vmem>>, vector<16x16x32xf32>
    %47 = vector.shape_cast %46 : vector<16x16x32xf32> to vector<256x32xf32>
    %48 = arith.truncf %47 : vector<256x32xf32> to vector<256x32xbf16>
    %c0_47 = arith.constant 0 : index
    %c192 = arith.constant 192 : index
    %49 = vector.load %arg15[%c0_47, %c192] : memref<256x800xbf16, #tpu.memory_space<vmem>>, vector<256x32xbf16>
    tpu.vector_store %arg15[%c0_47, %c192], %48 {strides = array<i32>} : memref<256x800xbf16, #tpu.memory_space<vmem>>, vector<256x32xbf16>,
    %c1_48 = arith.constant 1 : index
    %c2_49 = arith.constant 2 : index
    %c0_50 = arith.constant 0 : index
    %50 = vector.load %arg14[%c1_48, %c2_49, %c0_50] : memref<20x20x32xf32, #tpu.memory_space<vmem>>, vector<16x16x32xf32>
    %51 = vector.shape_cast %50 : vector<16x16x32xf32> to vector<256x32xf32>
    %52 = arith.truncf %51 : vector<256x32xf32> to vector<256x32xbf16>
    %c0_51 = arith.constant 0 : index
    %c224 = arith.constant 224 : index
    %53 = vector.load %arg15[%c0_51, %c224] : memref<256x800xbf16, #tpu.memory_space<vmem>>, vector<256x32xbf16>
    tpu.vector_store %arg15[%c0_51, %c224], %52 {strides = array<i32>} : memref<256x800xbf16, #tpu.memory_space<vmem>>, vector<256x32xbf16>,
    %c1_52 = arith.constant 1 : index
    %c3_53 = arith.constant 3 : index
    %c0_54 = arith.constant 0 : index
    %54 = vector.load %arg14[%c1_52, %c3_53, %c0_54] : memref<20x20x32xf32, #tpu.memory_space<vmem>>, vector<16x16x32xf32>
    %55 = vector.shape_cast %54 : vector<16x16x32xf32> to vector<256x32xf32>
    %56 = arith.truncf %55 : vector<256x32xf32> to vector<256x32xbf16>
    %c0_55 = arith.constant 0 : index
    %c256 = arith.constant 256 : index
    %57 = vector.load %arg15[%c0_55, %c256] : memref<256x800xbf16, #tpu.memory_space<vmem>>, vector<256x32xbf16>
    tpu.vector_store %arg15[%c0_55, %c256], %56 {strides = array<i32>} : memref<256x800xbf16, #tpu.memory_space<vmem>>, vector<256x32xbf16>,
    %c1_56 = arith.constant 1 : index
    %c4_57 = arith.constant 4 : index
    %c0_58 = arith.constant 0 : index
    %58 = vector.load %arg14[%c1_56, %c4_57, %c0_58] : memref<20x20x32xf32, #tpu.memory_space<vmem>>, vector<16x16x32xf32>
    %59 = vector.shape_cast %58 : vector<16x16x32xf32> to vector<256x32xf32>
    %60 = arith.truncf %59 : vector<256x32xf32> to vector<256x32xbf16>
    %c0_59 = arith.constant 0 : index
    %c288 = arith.constant 288 : index
    %61 = vector.load %arg15[%c0_59, %c288] : memref<256x800xbf16, #tpu.memory_space<vmem>>, vector<256x32xbf16>
    tpu.vector_store %arg15[%c0_59, %c288], %60 {strides = array<i32>} : memref<256x800xbf16, #tpu.memory_space<vmem>>, vector<256x32xbf16>,
    %c2_60 = arith.constant 2 : index
    %c0_61 = arith.constant 0 : index
    %c0_62 = arith.constant 0 : index
    %62 = vector.load %arg14[%c2_60, %c0_61, %c0_62] : memref<20x20x32xf32, #tpu.memory_space<vmem>>, vector<16x16x32xf32>
    %63 = vector.shape_cast %62 : vector<16x16x32xf32> to vector<256x32xf32>
    %64 = arith.truncf %63 : vector<256x32xf32> to vector<256x32xbf16>
    %c0_63 = arith.constant 0 : index
    %c320 = arith.constant 320 : index
    %65 = vector.load %arg15[%c0_63, %c320] : memref<256x800xbf16, #tpu.memory_space<vmem>>, vector<256x32xbf16>
    tpu.vector_store %arg15[%c0_63, %c320], %64 {strides = array<i32>} : memref<256x800xbf16, #tpu.memory_space<vmem>>, vector<256x32xbf16>,
    %c2_64 = arith.constant 2 : index
    %c1_65 = arith.constant 1 : index
    %c0_66 = arith.constant 0 : index
    %66 = vector.load %arg14[%c2_64, %c1_65, %c0_66] : memref<20x20x32xf32, #tpu.memory_space<vmem>>, vector<16x16x32xf32>
    %67 = vector.shape_cast %66 : vector<16x16x32xf32> to vector<256x32xf32>
    %68 = arith.truncf %67 : vector<256x32xf32> to vector<256x32xbf16>
    %c0_67 = arith.constant 0 : index
    %c352 = arith.constant 352 : index
    %69 = vector.load %arg15[%c0_67, %c352] : memref<256x800xbf16, #tpu.memory_space<vmem>>, vector<256x32xbf16>
    tpu.vector_store %arg15[%c0_67, %c352], %68 {strides = array<i32>} : memref<256x800xbf16, #tpu.memory_space<vmem>>, vector<256x32xbf16>,
    %c2_68 = arith.constant 2 : index
    %c2_69 = arith.constant 2 : index
    %c0_70 = arith.constant 0 : index
    %70 = vector.load %arg14[%c2_68, %c2_69, %c0_70] : memref<20x20x32xf32, #tpu.memory_space<vmem>>, vector<16x16x32xf32>
    %71 = vector.shape_cast %70 : vector<16x16x32xf32> to vector<256x32xf32>
    %72 = arith.truncf %71 : vector<256x32xf32> to vector<256x32xbf16>
    %c0_71 = arith.constant 0 : index
    %c384 = arith.constant 384 : index
    %73 = vector.load %arg15[%c0_71, %c384] : memref<256x800xbf16, #tpu.memory_space<vmem>>, vector<256x32xbf16>
    tpu.vector_store %arg15[%c0_71, %c384], %72 {strides = array<i32>} : memref<256x800xbf16, #tpu.memory_space<vmem>>, vector<256x32xbf16>,
    %c2_72 = arith.constant 2 : index
    %c3_73 = arith.constant 3 : index
    %c0_74 = arith.constant 0 : index
    %74 = vector.load %arg14[%c2_72, %c3_73, %c0_74] : memref<20x20x32xf32, #tpu.memory_space<vmem>>, vector<16x16x32xf32>
    %75 = vector.shape_cast %74 : vector<16x16x32xf32> to vector<256x32xf32>
    %76 = arith.truncf %75 : vector<256x32xf32> to vector<256x32xbf16>
    %c0_75 = arith.constant 0 : index
    %c416 = arith.constant 416 : index
    %77 = vector.load %arg15[%c0_75, %c416] : memref<256x800xbf16, #tpu.memory_space<vmem>>, vector<256x32xbf16>
    tpu.vector_store %arg15[%c0_75, %c416], %76 {strides = array<i32>} : memref<256x800xbf16, #tpu.memory_space<vmem>>, vector<256x32xbf16>,
    %c2_76 = arith.constant 2 : index
    %c4_77 = arith.constant 4 : index
    %c0_78 = arith.constant 0 : index
    %78 = vector.load %arg14[%c2_76, %c4_77, %c0_78] : memref<20x20x32xf32, #tpu.memory_space<vmem>>, vector<16x16x32xf32>
    %79 = vector.shape_cast %78 : vector<16x16x32xf32> to vector<256x32xf32>
    %80 = arith.truncf %79 : vector<256x32xf32> to vector<256x32xbf16>
    %c0_79 = arith.constant 0 : index
    %c448 = arith.constant 448 : index
    %81 = vector.load %arg15[%c0_79, %c448] : memref<256x800xbf16, #tpu.memory_space<vmem>>, vector<256x32xbf16>
    tpu.vector_store %arg15[%c0_79, %c448], %80 {strides = array<i32>} : memref<256x800xbf16, #tpu.memory_space<vmem>>, vector<256x32xbf16>,
    %c3_80 = arith.constant 3 : index
    %c0_81 = arith.constant 0 : index
    %c0_82 = arith.constant 0 : index
    %82 = vector.load %arg14[%c3_80, %c0_81, %c0_82] : memref<20x20x32xf32, #tpu.memory_space<vmem>>, vector<16x16x32xf32>
    %83 = vector.shape_cast %82 : vector<16x16x32xf32> to vector<256x32xf32>
    %84 = arith.truncf %83 : vector<256x32xf32> to vector<256x32xbf16>
    %c0_83 = arith.constant 0 : index
    %c480 = arith.constant 480 : index
    %85 = vector.load %arg15[%c0_83, %c480] : memref<256x800xbf16, #tpu.memory_space<vmem>>, vector<256x32xbf16>
    tpu.vector_store %arg15[%c0_83, %c480], %84 {strides = array<i32>} : memref<256x800xbf16, #tpu.memory_space<vmem>>, vector<256x32xbf16>,
    %c3_84 = arith.constant 3 : index
    %c1_85 = arith.constant 1 : index
    %c0_86 = arith.constant 0 : index
    %86 = vector.load %arg14[%c3_84, %c1_85, %c0_86] : memref<20x20x32xf32, #tpu.memory_space<vmem>>, vector<16x16x32xf32>
    %87 = vector.shape_cast %86 : vector<16x16x32xf32> to vector<256x32xf32>
    %88 = arith.truncf %87 : vector<256x32xf32> to vector<256x32xbf16>
    %c0_87 = arith.constant 0 : index
    %c512 = arith.constant 512 : index
    %89 = vector.load %arg15[%c0_87, %c512] : memref<256x800xbf16, #tpu.memory_space<vmem>>, vector<256x32xbf16>
    tpu.vector_store %arg15[%c0_87, %c512], %88 {strides = array<i32>} : memref<256x800xbf16, #tpu.memory_space<vmem>>, vector<256x32xbf16>,
    %c3_88 = arith.constant 3 : index
    %c2_89 = arith.constant 2 : index
    %c0_90 = arith.constant 0 : index
    %90 = vector.load %arg14[%c3_88, %c2_89, %c0_90] : memref<20x20x32xf32, #tpu.memory_space<vmem>>, vector<16x16x32xf32>
    %91 = vector.shape_cast %90 : vector<16x16x32xf32> to vector<256x32xf32>
    %92 = arith.truncf %91 : vector<256x32xf32> to vector<256x32xbf16>
    %c0_91 = arith.constant 0 : index
    %c544 = arith.constant 544 : index
    %93 = vector.load %arg15[%c0_91, %c544] : memref<256x800xbf16, #tpu.memory_space<vmem>>, vector<256x32xbf16>
    tpu.vector_store %arg15[%c0_91, %c544], %92 {strides = array<i32>} : memref<256x800xbf16, #tpu.memory_space<vmem>>, vector<256x32xbf16>,
    %c3_92 = arith.constant 3 : index
    %c3_93 = arith.constant 3 : index
    %c0_94 = arith.constant 0 : index
    %94 = vector.load %arg14[%c3_92, %c3_93, %c0_94] : memref<20x20x32xf32, #tpu.memory_space<vmem>>, vector<16x16x32xf32>
    %95 = vector.shape_cast %94 : vector<16x16x32xf32> to vector<256x32xf32>
    %96 = arith.truncf %95 : vector<256x32xf32> to vector<256x32xbf16>
    %c0_95 = arith.constant 0 : index
    %c576 = arith.constant 576 : index
    %97 = vector.load %arg15[%c0_95, %c576] : memref<256x800xbf16, #tpu.memory_space<vmem>>, vector<256x32xbf16>
    tpu.vector_store %arg15[%c0_95, %c576], %96 {strides = array<i32>} : memref<256x800xbf16, #tpu.memory_space<vmem>>, vector<256x32xbf16>,
    %c3_96 = arith.constant 3 : index
    %c4_97 = arith.constant 4 : index
    %c0_98 = arith.constant 0 : index
    %98 = vector.load %arg14[%c3_96, %c4_97, %c0_98] : memref<20x20x32xf32, #tpu.memory_space<vmem>>, vector<16x16x32xf32>
    %99 = vector.shape_cast %98 : vector<16x16x32xf32> to vector<256x32xf32>
    %100 = arith.truncf %99 : vector<256x32xf32> to vector<256x32xbf16>
    %c0_99 = arith.constant 0 : index
    %c608 = arith.constant 608 : index
    %101 = vector.load %arg15[%c0_99, %c608] : memref<256x800xbf16, #tpu.memory_space<vmem>>, vector<256x32xbf16>
    tpu.vector_store %arg15[%c0_99, %c608], %100 {strides = array<i32>} : memref<256x800xbf16, #tpu.memory_space<vmem>>, vector<256x32xbf16>,
    %c4_100 = arith.constant 4 : index
    %c0_101 = arith.constant 0 : index
    %c0_102 = arith.constant 0 : index
    %102 = vector.load %arg14[%c4_100, %c0_101, %c0_102] : memref<20x20x32xf32, #tpu.memory_space<vmem>>, vector<16x16x32xf32>
    %103 = vector.shape_cast %102 : vector<16x16x32xf32> to vector<256x32xf32>
    %104 = arith.truncf %103 : vector<256x32xf32> to vector<256x32xbf16>
    %c0_103 = arith.constant 0 : index
    %c640 = arith.constant 640 : index
    %105 = vector.load %arg15[%c0_103, %c640] : memref<256x800xbf16, #tpu.memory_space<vmem>>, vector<256x32xbf16>
    tpu.vector_store %arg15[%c0_103, %c640], %104 {strides = array<i32>} : memref<256x800xbf16, #tpu.memory_space<vmem>>, vector<256x32xbf16>,
    %c4_104 = arith.constant 4 : index
    %c1_105 = arith.constant 1 : index
    %c0_106 = arith.constant 0 : index
    %106 = vector.load %arg14[%c4_104, %c1_105, %c0_106] : memref<20x20x32xf32, #tpu.memory_space<vmem>>, vector<16x16x32xf32>
    %107 = vector.shape_cast %106 : vector<16x16x32xf32> to vector<256x32xf32>
    %108 = arith.truncf %107 : vector<256x32xf32> to vector<256x32xbf16>
    %c0_107 = arith.constant 0 : index
    %c672 = arith.constant 672 : index
    %109 = vector.load %arg15[%c0_107, %c672] : memref<256x800xbf16, #tpu.memory_space<vmem>>, vector<256x32xbf16>
    tpu.vector_store %arg15[%c0_107, %c672], %108 {strides = array<i32>} : memref<256x800xbf16, #tpu.memory_space<vmem>>, vector<256x32xbf16>,
    %c4_108 = arith.constant 4 : index
    %c2_109 = arith.constant 2 : index
    %c0_110 = arith.constant 0 : index
    %110 = vector.load %arg14[%c4_108, %c2_109, %c0_110] : memref<20x20x32xf32, #tpu.memory_space<vmem>>, vector<16x16x32xf32>
    %111 = vector.shape_cast %110 : vector<16x16x32xf32> to vector<256x32xf32>
    %112 = arith.truncf %111 : vector<256x32xf32> to vector<256x32xbf16>
    %c0_111 = arith.constant 0 : index
    %c704 = arith.constant 704 : index
    %113 = vector.load %arg15[%c0_111, %c704] : memref<256x800xbf16, #tpu.memory_space<vmem>>, vector<256x32xbf16>
    tpu.vector_store %arg15[%c0_111, %c704], %112 {strides = array<i32>} : memref<256x800xbf16, #tpu.memory_space<vmem>>, vector<256x32xbf16>,
    %c4_112 = arith.constant 4 : index
    %c3_113 = arith.constant 3 : index
    %c0_114 = arith.constant 0 : index
    %114 = vector.load %arg14[%c4_112, %c3_113, %c0_114] : memref<20x20x32xf32, #tpu.memory_space<vmem>>, vector<16x16x32xf32>
    %115 = vector.shape_cast %114 : vector<16x16x32xf32> to vector<256x32xf32>
    %116 = arith.truncf %115 : vector<256x32xf32> to vector<256x32xbf16>
    %c0_115 = arith.constant 0 : index
    %c736 = arith.constant 736 : index
    %117 = vector.load %arg15[%c0_115, %c736] : memref<256x800xbf16, #tpu.memory_space<vmem>>, vector<256x32xbf16>
    tpu.vector_store %arg15[%c0_115, %c736], %116 {strides = array<i32>} : memref<256x800xbf16, #tpu.memory_space<vmem>>, vector<256x32xbf16>,
    %c4_116 = arith.constant 4 : index
    %c4_117 = arith.constant 4 : index
    %c0_118 = arith.constant 0 : index
    %118 = vector.load %arg14[%c4_116, %c4_117, %c0_118] : memref<20x20x32xf32, #tpu.memory_space<vmem>>, vector<16x16x32xf32>
    %119 = vector.shape_cast %118 : vector<16x16x32xf32> to vector<256x32xf32>
    %120 = arith.truncf %119 : vector<256x32xf32> to vector<256x32xbf16>
    %c0_119 = arith.constant 0 : index
    %c768 = arith.constant 768 : index
    %121 = vector.load %arg15[%c0_119, %c768] : memref<256x800xbf16, #tpu.memory_space<vmem>>, vector<256x32xbf16>
    tpu.vector_store %arg15[%c0_119, %c768], %120 {strides = array<i32>} : memref<256x800xbf16, #tpu.memory_space<vmem>>, vector<256x32xbf16>,
    %c0_120 = arith.constant 0 : index
    %c0_121 = arith.constant 0 : index
    %122 = vector.load %arg15[%c0_120, %c0_121] : memref<256x800xbf16, #tpu.memory_space<vmem>>, vector<256x800xbf16>
    %c0_122 = arith.constant 0 : index
    %c0_123 = arith.constant 0 : index
    %123 = vector.load %arg4[%c0_122, %c0_123] : memref<800x64xbf16, #tpu.memory_space<vmem>>, vector<800x64xbf16>
    %cst_124 = arith.constant dense<0.000000e+00> : vector<256x64xf32>
    %124 = tpu.matmul %122, %123, %cst_124 {dimension_numbers = #tpu.dot_dimension_numbers<[1], [0], [0], [1], [0, 0, 1, 1], [], []>} : vector<256x800xbf16>, vector<800x64xbf16>, vector<256x64xf32> -> vector<256x64xf32>
    %c0_125 = arith.constant 0 : index
    %c0_126 = arith.constant 0 : index
    %125 = vector.load %arg5[%c0_125, %c0_126] : memref<1x64xf32, #tpu.memory_space<vmem>>, vector<1x64xf32>
    %126 = vector.broadcast %125 : vector<1x64xf32> to vector<256x64xf32>
    %127 = arith.addf %124, %126 : vector<256x64xf32>
    %cst_127 = arith.constant 0.000000e+00 : f32
    %128 = vector.broadcast %cst_127 : f32 to vector<256x64xf32>
    %129 = arith.maximumf %127, %128 : vector<256x64xf32>
    %130 = vector.shape_cast %129 : vector<256x64xf32> to vector<8x2x16x64xf32>
    %131 = vector.extract_strided_slice %130 {offsets = [0, 0, 0, 0], sizes = [8, 1, 16, 64], strides = [1, 1, 1, 1]} : vector<8x2x16x64xf32> to vector<8x1x16x64xf32>
    %132 = vector.shape_cast %131 : vector<8x1x16x64xf32> to vector<8x16x64xf32>
    %133 = vector.extract_strided_slice %130 {offsets = [0, 1, 0, 0], sizes = [8, 1, 16, 64], strides = [1, 1, 1, 1]} : vector<8x2x16x64xf32> to vector<8x1x16x64xf32>
    %134 = vector.shape_cast %133 : vector<8x1x16x64xf32> to vector<8x16x64xf32>
    %135 = arith.maximumf %132, %134 : vector<8x16x64xf32>
    %c0_128 = arith.constant 0 : index
    %c0_129 = arith.constant 0 : index
    %c0_130 = arith.constant 0 : index
    %136 = vector.load %arg16[%c0_128, %c0_129, %c0_130] : memref<8x16x64xf32, #tpu.memory_space<vmem>>, vector<8x16x64xf32>
    tpu.vector_store %arg16[%c0_128, %c0_129, %c0_130], %135 {strides = array<i32>} : memref<8x16x64xf32, #tpu.memory_space<vmem>>, vector<8x16x64xf32>,
    %c0_131 = arith.constant 0 : index
    %c0_132 = arith.constant 0 : index
    %c0_133 = arith.constant 0 : index
    %137 = tpu.strided_load %arg16[%c0_131, %c0_132, %c0_133] {strides = array<i32: 1, 2, 1>} : memref<8x16x64xf32, #tpu.memory_space<vmem>>, vector<8x8x64xf32>
    %c0_134 = arith.constant 0 : index
    %c1_135 = arith.constant 1 : index
    %c0_136 = arith.constant 0 : index
    %138 = tpu.strided_load %arg16[%c0_134, %c1_135, %c0_136] {strides = array<i32: 1, 2, 1>} : memref<8x16x64xf32, #tpu.memory_space<vmem>>, vector<8x8x64xf32>
    %139 = arith.maximumf %137, %138 : vector<8x8x64xf32>
    %cst_137 = arith.constant 0.000000e+00 : f32
    %140 = vector.broadcast %cst_137 : f32 to vector<12x12x64xf32>
    %c0_138 = arith.constant 0 : index
    %c0_139 = arith.constant 0 : index
    %c0_140 = arith.constant 0 : index
    %141 = vector.load %arg17[%c0_138, %c0_139, %c0_140] : memref<12x12x64xf32, #tpu.memory_space<vmem>>, vector<12x12x64xf32>
    tpu.vector_store %arg17[%c0_138, %c0_139, %c0_140], %140 {strides = array<i32>} : memref<12x12x64xf32, #tpu.memory_space<vmem>>, vector<12x12x64xf32>,
    %c2_141 = arith.constant 2 : index
    %c2_142 = arith.constant 2 : index
    %c0_143 = arith.constant 0 : index
    %142 = vector.load %arg17[%c2_141, %c2_142, %c0_143] : memref<12x12x64xf32, #tpu.memory_space<vmem>>, vector<8x8x64xf32>
    tpu.vector_store %arg17[%c2_141, %c2_142, %c0_143], %139 {strides = array<i32>} : memref<12x12x64xf32, #tpu.memory_space<vmem>>, vector<8x8x64xf32>,
    %c0_144 = arith.constant 0 : index
    %c0_145 = arith.constant 0 : index
    %c0_146 = arith.constant 0 : index
    %143 = vector.load %arg17[%c0_144, %c0_145, %c0_146] : memref<12x12x64xf32, #tpu.memory_space<vmem>>, vector<8x8x64xf32>
    %144 = vector.shape_cast %143 : vector<8x8x64xf32> to vector<64x64xf32>
    %145 = arith.truncf %144 : vector<64x64xf32> to vector<64x64xbf16>
    %c0_147 = arith.constant 0 : index
    %c0_148 = arith.constant 0 : index
    %146 = vector.load %arg18[%c0_147, %c0_148] : memref<64x1600xbf16, #tpu.memory_space<vmem>>, vector<64x64xbf16>
    tpu.vector_store %arg18[%c0_147, %c0_148], %145 {strides = array<i32>} : memref<64x1600xbf16, #tpu.memory_space<vmem>>, vector<64x64xbf16>,
    %c0_149 = arith.constant 0 : index
    %c1_150 = arith.constant 1 : index
    %c0_151 = arith.constant 0 : index
    %147 = vector.load %arg17[%c0_149, %c1_150, %c0_151] : memref<12x12x64xf32, #tpu.memory_space<vmem>>, vector<8x8x64xf32>
    %148 = vector.shape_cast %147 : vector<8x8x64xf32> to vector<64x64xf32>
    %149 = arith.truncf %148 : vector<64x64xf32> to vector<64x64xbf16>
    %c0_152 = arith.constant 0 : index
    %c64_153 = arith.constant 64 : index
    %150 = vector.load %arg18[%c0_152, %c64_153] : memref<64x1600xbf16, #tpu.memory_space<vmem>>, vector<64x64xbf16>
    tpu.vector_store %arg18[%c0_152, %c64_153], %149 {strides = array<i32>} : memref<64x1600xbf16, #tpu.memory_space<vmem>>, vector<64x64xbf16>,
    %c0_154 = arith.constant 0 : index
    %c2_155 = arith.constant 2 : index
    %c0_156 = arith.constant 0 : index
    %151 = vector.load %arg17[%c0_154, %c2_155, %c0_156] : memref<12x12x64xf32, #tpu.memory_space<vmem>>, vector<8x8x64xf32>
    %152 = vector.shape_cast %151 : vector<8x8x64xf32> to vector<64x64xf32>
    %153 = arith.truncf %152 : vector<64x64xf32> to vector<64x64xbf16>
    %c0_157 = arith.constant 0 : index
    %c128_158 = arith.constant 128 : index
    %154 = vector.load %arg18[%c0_157, %c128_158] : memref<64x1600xbf16, #tpu.memory_space<vmem>>, vector<64x64xbf16>
    tpu.vector_store %arg18[%c0_157, %c128_158], %153 {strides = array<i32>} : memref<64x1600xbf16, #tpu.memory_space<vmem>>, vector<64x64xbf16>,
    %c0_159 = arith.constant 0 : index
    %c3_160 = arith.constant 3 : index
    %c0_161 = arith.constant 0 : index
    %155 = vector.load %arg17[%c0_159, %c3_160, %c0_161] : memref<12x12x64xf32, #tpu.memory_space<vmem>>, vector<8x8x64xf32>
    %156 = vector.shape_cast %155 : vector<8x8x64xf32> to vector<64x64xf32>
    %157 = arith.truncf %156 : vector<64x64xf32> to vector<64x64xbf16>
    %c0_162 = arith.constant 0 : index
    %c192_163 = arith.constant 192 : index
    %158 = vector.load %arg18[%c0_162, %c192_163] : memref<64x1600xbf16, #tpu.memory_space<vmem>>, vector<64x64xbf16>
    tpu.vector_store %arg18[%c0_162, %c192_163], %157 {strides = array<i32>} : memref<64x1600xbf16, #tpu.memory_space<vmem>>, vector<64x64xbf16>,
    %c0_164 = arith.constant 0 : index
    %c4_165 = arith.constant 4 : index
    %c0_166 = arith.constant 0 : index
    %159 = vector.load %arg17[%c0_164, %c4_165, %c0_166] : memref<12x12x64xf32, #tpu.memory_space<vmem>>, vector<8x8x64xf32>
    %160 = vector.shape_cast %159 : vector<8x8x64xf32> to vector<64x64xf32>
    %161 = arith.truncf %160 : vector<64x64xf32> to vector<64x64xbf16>
    %c0_167 = arith.constant 0 : index
    %c256_168 = arith.constant 256 : index
    %162 = vector.load %arg18[%c0_167, %c256_168] : memref<64x1600xbf16, #tpu.memory_space<vmem>>, vector<64x64xbf16>
    tpu.vector_store %arg18[%c0_167, %c256_168], %161 {strides = array<i32>} : memref<64x1600xbf16, #tpu.memory_space<vmem>>, vector<64x64xbf16>,
    %c1_169 = arith.constant 1 : index
    %c0_170 = arith.constant 0 : index
    %c0_171 = arith.constant 0 : index
    %163 = vector.load %arg17[%c1_169, %c0_170, %c0_171] : memref<12x12x64xf32, #tpu.memory_space<vmem>>, vector<8x8x64xf32>
    %164 = vector.shape_cast %163 : vector<8x8x64xf32> to vector<64x64xf32>
    %165 = arith.truncf %164 : vector<64x64xf32> to vector<64x64xbf16>
    %c0_172 = arith.constant 0 : index
    %c320_173 = arith.constant 320 : index
    %166 = vector.load %arg18[%c0_172, %c320_173] : memref<64x1600xbf16, #tpu.memory_space<vmem>>, vector<64x64xbf16>
    tpu.vector_store %arg18[%c0_172, %c320_173], %165 {strides = array<i32>} : memref<64x1600xbf16, #tpu.memory_space<vmem>>, vector<64x64xbf16>,
    %c1_174 = arith.constant 1 : index
    %c1_175 = arith.constant 1 : index
    %c0_176 = arith.constant 0 : index
    %167 = vector.load %arg17[%c1_174, %c1_175, %c0_176] : memref<12x12x64xf32, #tpu.memory_space<vmem>>, vector<8x8x64xf32>
    %168 = vector.shape_cast %167 : vector<8x8x64xf32> to vector<64x64xf32>
    %169 = arith.truncf %168 : vector<64x64xf32> to vector<64x64xbf16>
    %c0_177 = arith.constant 0 : index
    %c384_178 = arith.constant 384 : index
    %170 = vector.load %arg18[%c0_177, %c384_178] : memref<64x1600xbf16, #tpu.memory_space<vmem>>, vector<64x64xbf16>
    tpu.vector_store %arg18[%c0_177, %c384_178], %169 {strides = array<i32>} : memref<64x1600xbf16, #tpu.memory_space<vmem>>, vector<64x64xbf16>,
    %c1_179 = arith.constant 1 : index
    %c2_180 = arith.constant 2 : index
    %c0_181 = arith.constant 0 : index
    %171 = vector.load %arg17[%c1_179, %c2_180, %c0_181] : memref<12x12x64xf32, #tpu.memory_space<vmem>>, vector<8x8x64xf32>
    %172 = vector.shape_cast %171 : vector<8x8x64xf32> to vector<64x64xf32>
    %173 = arith.truncf %172 : vector<64x64xf32> to vector<64x64xbf16>
    %c0_182 = arith.constant 0 : index
    %c448_183 = arith.constant 448 : index
    %174 = vector.load %arg18[%c0_182, %c448_183] : memref<64x1600xbf16, #tpu.memory_space<vmem>>, vector<64x64xbf16>
    tpu.vector_store %arg18[%c0_182, %c448_183], %173 {strides = array<i32>} : memref<64x1600xbf16, #tpu.memory_space<vmem>>, vector<64x64xbf16>,
    %c1_184 = arith.constant 1 : index
    %c3_185 = arith.constant 3 : index
    %c0_186 = arith.constant 0 : index
    %175 = vector.load %arg17[%c1_184, %c3_185, %c0_186] : memref<12x12x64xf32, #tpu.memory_space<vmem>>, vector<8x8x64xf32>
    %176 = vector.shape_cast %175 : vector<8x8x64xf32> to vector<64x64xf32>
    %177 = arith.truncf %176 : vector<64x64xf32> to vector<64x64xbf16>
    %c0_187 = arith.constant 0 : index
    %c512_188 = arith.constant 512 : index
    %178 = vector.load %arg18[%c0_187, %c512_188] : memref<64x1600xbf16, #tpu.memory_space<vmem>>, vector<64x64xbf16>
    tpu.vector_store %arg18[%c0_187, %c512_188], %177 {strides = array<i32>} : memref<64x1600xbf16, #tpu.memory_space<vmem>>, vector<64x64xbf16>,
    %c1_189 = arith.constant 1 : index
    %c4_190 = arith.constant 4 : index
    %c0_191 = arith.constant 0 : index
    %179 = vector.load %arg17[%c1_189, %c4_190, %c0_191] : memref<12x12x64xf32, #tpu.memory_space<vmem>>, vector<8x8x64xf32>
    %180 = vector.shape_cast %179 : vector<8x8x64xf32> to vector<64x64xf32>
    %181 = arith.truncf %180 : vector<64x64xf32> to vector<64x64xbf16>
    %c0_192 = arith.constant 0 : index
    %c576_193 = arith.constant 576 : index
    %182 = vector.load %arg18[%c0_192, %c576_193] : memref<64x1600xbf16, #tpu.memory_space<vmem>>, vector<64x64xbf16>
    tpu.vector_store %arg18[%c0_192, %c576_193], %181 {strides = array<i32>} : memref<64x1600xbf16, #tpu.memory_space<vmem>>, vector<64x64xbf16>,
    %c2_194 = arith.constant 2 : index
    %c0_195 = arith.constant 0 : index
    %c0_196 = arith.constant 0 : index
    %183 = vector.load %arg17[%c2_194, %c0_195, %c0_196] : memref<12x12x64xf32, #tpu.memory_space<vmem>>, vector<8x8x64xf32>
    %184 = vector.shape_cast %183 : vector<8x8x64xf32> to vector<64x64xf32>
    %185 = arith.truncf %184 : vector<64x64xf32> to vector<64x64xbf16>
    %c0_197 = arith.constant 0 : index
    %c640_198 = arith.constant 640 : index
    %186 = vector.load %arg18[%c0_197, %c640_198] : memref<64x1600xbf16, #tpu.memory_space<vmem>>, vector<64x64xbf16>
    tpu.vector_store %arg18[%c0_197, %c640_198], %185 {strides = array<i32>} : memref<64x1600xbf16, #tpu.memory_space<vmem>>, vector<64x64xbf16>,
    %c2_199 = arith.constant 2 : index
    %c1_200 = arith.constant 1 : index
    %c0_201 = arith.constant 0 : index
    %187 = vector.load %arg17[%c2_199, %c1_200, %c0_201] : memref<12x12x64xf32, #tpu.memory_space<vmem>>, vector<8x8x64xf32>
    %188 = vector.shape_cast %187 : vector<8x8x64xf32> to vector<64x64xf32>
    %189 = arith.truncf %188 : vector<64x64xf32> to vector<64x64xbf16>
    %c0_202 = arith.constant 0 : index
    %c704_203 = arith.constant 704 : index
    %190 = vector.load %arg18[%c0_202, %c704_203] : memref<64x1600xbf16, #tpu.memory_space<vmem>>, vector<64x64xbf16>
    tpu.vector_store %arg18[%c0_202, %c704_203], %189 {strides = array<i32>} : memref<64x1600xbf16, #tpu.memory_space<vmem>>, vector<64x64xbf16>,
    %c2_204 = arith.constant 2 : index
    %c2_205 = arith.constant 2 : index
    %c0_206 = arith.constant 0 : index
    %191 = vector.load %arg17[%c2_204, %c2_205, %c0_206] : memref<12x12x64xf32, #tpu.memory_space<vmem>>, vector<8x8x64xf32>
    %192 = vector.shape_cast %191 : vector<8x8x64xf32> to vector<64x64xf32>
    %193 = arith.truncf %192 : vector<64x64xf32> to vector<64x64xbf16>
    %c0_207 = arith.constant 0 : index
    %c768_208 = arith.constant 768 : index
    %194 = vector.load %arg18[%c0_207, %c768_208] : memref<64x1600xbf16, #tpu.memory_space<vmem>>, vector<64x64xbf16>
    tpu.vector_store %arg18[%c0_207, %c768_208], %193 {strides = array<i32>} : memref<64x1600xbf16, #tpu.memory_space<vmem>>, vector<64x64xbf16>,
    %c2_209 = arith.constant 2 : index
    %c3_210 = arith.constant 3 : index
    %c0_211 = arith.constant 0 : index
    %195 = vector.load %arg17[%c2_209, %c3_210, %c0_211] : memref<12x12x64xf32, #tpu.memory_space<vmem>>, vector<8x8x64xf32>
    %196 = vector.shape_cast %195 : vector<8x8x64xf32> to vector<64x64xf32>
    %197 = arith.truncf %196 : vector<64x64xf32> to vector<64x64xbf16>
    %c0_212 = arith.constant 0 : index
    %c832 = arith.constant 832 : index
    %198 = vector.load %arg18[%c0_212, %c832] : memref<64x1600xbf16, #tpu.memory_space<vmem>>, vector<64x64xbf16>
    tpu.vector_store %arg18[%c0_212, %c832], %197 {strides = array<i32>} : memref<64x1600xbf16, #tpu.memory_space<vmem>>, vector<64x64xbf16>,
    %c2_213 = arith.constant 2 : index
    %c4_214 = arith.constant 4 : index
    %c0_215 = arith.constant 0 : index
    %199 = vector.load %arg17[%c2_213, %c4_214, %c0_215] : memref<12x12x64xf32, #tpu.memory_space<vmem>>, vector<8x8x64xf32>
    %200 = vector.shape_cast %199 : vector<8x8x64xf32> to vector<64x64xf32>
    %201 = arith.truncf %200 : vector<64x64xf32> to vector<64x64xbf16>
    %c0_216 = arith.constant 0 : index
    %c896 = arith.constant 896 : index
    %202 = vector.load %arg18[%c0_216, %c896] : memref<64x1600xbf16, #tpu.memory_space<vmem>>, vector<64x64xbf16>
    tpu.vector_store %arg18[%c0_216, %c896], %201 {strides = array<i32>} : memref<64x1600xbf16, #tpu.memory_space<vmem>>, vector<64x64xbf16>,
    %c3_217 = arith.constant 3 : index
    %c0_218 = arith.constant 0 : index
    %c0_219 = arith.constant 0 : index
    %203 = vector.load %arg17[%c3_217, %c0_218, %c0_219] : memref<12x12x64xf32, #tpu.memory_space<vmem>>, vector<8x8x64xf32>
    %204 = vector.shape_cast %203 : vector<8x8x64xf32> to vector<64x64xf32>
    %205 = arith.truncf %204 : vector<64x64xf32> to vector<64x64xbf16>
    %c0_220 = arith.constant 0 : index
    %c960 = arith.constant 960 : index
    %206 = vector.load %arg18[%c0_220, %c960] : memref<64x1600xbf16, #tpu.memory_space<vmem>>, vector<64x64xbf16>
    tpu.vector_store %arg18[%c0_220, %c960], %205 {strides = array<i32>} : memref<64x1600xbf16, #tpu.memory_space<vmem>>, vector<64x64xbf16>,
    %c3_221 = arith.constant 3 : index
    %c1_222 = arith.constant 1 : index
    %c0_223 = arith.constant 0 : index
    %207 = vector.load %arg17[%c3_221, %c1_222, %c0_223] : memref<12x12x64xf32, #tpu.memory_space<vmem>>, vector<8x8x64xf32>
    %208 = vector.shape_cast %207 : vector<8x8x64xf32> to vector<64x64xf32>
    %209 = arith.truncf %208 : vector<64x64xf32> to vector<64x64xbf16>
    %c0_224 = arith.constant 0 : index
    %c1024 = arith.constant 1024 : index
    %210 = vector.load %arg18[%c0_224, %c1024] : memref<64x1600xbf16, #tpu.memory_space<vmem>>, vector<64x64xbf16>
    tpu.vector_store %arg18[%c0_224, %c1024], %209 {strides = array<i32>} : memref<64x1600xbf16, #tpu.memory_space<vmem>>, vector<64x64xbf16>,
    %c3_225 = arith.constant 3 : index
    %c2_226 = arith.constant 2 : index
    %c0_227 = arith.constant 0 : index
    %211 = vector.load %arg17[%c3_225, %c2_226, %c0_227] : memref<12x12x64xf32, #tpu.memory_space<vmem>>, vector<8x8x64xf32>
    %212 = vector.shape_cast %211 : vector<8x8x64xf32> to vector<64x64xf32>
    %213 = arith.truncf %212 : vector<64x64xf32> to vector<64x64xbf16>
    %c0_228 = arith.constant 0 : index
    %c1088 = arith.constant 1088 : index
    %214 = vector.load %arg18[%c0_228, %c1088] : memref<64x1600xbf16, #tpu.memory_space<vmem>>, vector<64x64xbf16>
    tpu.vector_store %arg18[%c0_228, %c1088], %213 {strides = array<i32>} : memref<64x1600xbf16, #tpu.memory_space<vmem>>, vector<64x64xbf16>,
    %c3_229 = arith.constant 3 : index
    %c3_230 = arith.constant 3 : index
    %c0_231 = arith.constant 0 : index
    %215 = vector.load %arg17[%c3_229, %c3_230, %c0_231] : memref<12x12x64xf32, #tpu.memory_space<vmem>>, vector<8x8x64xf32>
    %216 = vector.shape_cast %215 : vector<8x8x64xf32> to vector<64x64xf32>
    %217 = arith.truncf %216 : vector<64x64xf32> to vector<64x64xbf16>
    %c0_232 = arith.constant 0 : index
    %c1152 = arith.constant 1152 : index
    %218 = vector.load %arg18[%c0_232, %c1152] : memref<64x1600xbf16, #tpu.memory_space<vmem>>, vector<64x64xbf16>
    tpu.vector_store %arg18[%c0_232, %c1152], %217 {strides = array<i32>} : memref<64x1600xbf16, #tpu.memory_space<vmem>>, vector<64x64xbf16>,
    %c3_233 = arith.constant 3 : index
    %c4_234 = arith.constant 4 : index
    %c0_235 = arith.constant 0 : index
    %219 = vector.load %arg17[%c3_233, %c4_234, %c0_235] : memref<12x12x64xf32, #tpu.memory_space<vmem>>, vector<8x8x64xf32>
    %220 = vector.shape_cast %219 : vector<8x8x64xf32> to vector<64x64xf32>
    %221 = arith.truncf %220 : vector<64x64xf32> to vector<64x64xbf16>
    %c0_236 = arith.constant 0 : index
    %c1216 = arith.constant 1216 : index
    %222 = vector.load %arg18[%c0_236, %c1216] : memref<64x1600xbf16, #tpu.memory_space<vmem>>, vector<64x64xbf16>
    tpu.vector_store %arg18[%c0_236, %c1216], %221 {strides = array<i32>} : memref<64x1600xbf16, #tpu.memory_space<vmem>>, vector<64x64xbf16>,
    %c4_237 = arith.constant 4 : index
    %c0_238 = arith.constant 0 : index
    %c0_239 = arith.constant 0 : index
    %223 = vector.load %arg17[%c4_237, %c0_238, %c0_239] : memref<12x12x64xf32, #tpu.memory_space<vmem>>, vector<8x8x64xf32>
    %224 = vector.shape_cast %223 : vector<8x8x64xf32> to vector<64x64xf32>
    %225 = arith.truncf %224 : vector<64x64xf32> to vector<64x64xbf16>
    %c0_240 = arith.constant 0 : index
    %c1280 = arith.constant 1280 : index
    %226 = vector.load %arg18[%c0_240, %c1280] : memref<64x1600xbf16, #tpu.memory_space<vmem>>, vector<64x64xbf16>
    tpu.vector_store %arg18[%c0_240, %c1280], %225 {strides = array<i32>} : memref<64x1600xbf16, #tpu.memory_space<vmem>>, vector<64x64xbf16>,
    %c4_241 = arith.constant 4 : index
    %c1_242 = arith.constant 1 : index
    %c0_243 = arith.constant 0 : index
    %227 = vector.load %arg17[%c4_241, %c1_242, %c0_243] : memref<12x12x64xf32, #tpu.memory_space<vmem>>, vector<8x8x64xf32>
    %228 = vector.shape_cast %227 : vector<8x8x64xf32> to vector<64x64xf32>
    %229 = arith.truncf %228 : vector<64x64xf32> to vector<64x64xbf16>
    %c0_244 = arith.constant 0 : index
    %c1344 = arith.constant 1344 : index
    %230 = vector.load %arg18[%c0_244, %c1344] : memref<64x1600xbf16, #tpu.memory_space<vmem>>, vector<64x64xbf16>
    tpu.vector_store %arg18[%c0_244, %c1344], %229 {strides = array<i32>} : memref<64x1600xbf16, #tpu.memory_space<vmem>>, vector<64x64xbf16>,
    %c4_245 = arith.constant 4 : index
    %c2_246 = arith.constant 2 : index
    %c0_247 = arith.constant 0 : index
    %231 = vector.load %arg17[%c4_245, %c2_246, %c0_247] : memref<12x12x64xf32, #tpu.memory_space<vmem>>, vector<8x8x64xf32>
    %232 = vector.shape_cast %231 : vector<8x8x64xf32> to vector<64x64xf32>
    %233 = arith.truncf %232 : vector<64x64xf32> to vector<64x64xbf16>
    %c0_248 = arith.constant 0 : index
    %c1408 = arith.constant 1408 : index
    %234 = vector.load %arg18[%c0_248, %c1408] : memref<64x1600xbf16, #tpu.memory_space<vmem>>, vector<64x64xbf16>
    tpu.vector_store %arg18[%c0_248, %c1408], %233 {strides = array<i32>} : memref<64x1600xbf16, #tpu.memory_space<vmem>>, vector<64x64xbf16>,
    %c4_249 = arith.constant 4 : index
    %c3_250 = arith.constant 3 : index
    %c0_251 = arith.constant 0 : index
    %235 = vector.load %arg17[%c4_249, %c3_250, %c0_251] : memref<12x12x64xf32, #tpu.memory_space<vmem>>, vector<8x8x64xf32>
    %236 = vector.shape_cast %235 : vector<8x8x64xf32> to vector<64x64xf32>
    %237 = arith.truncf %236 : vector<64x64xf32> to vector<64x64xbf16>
    %c0_252 = arith.constant 0 : index
    %c1472 = arith.constant 1472 : index
    %238 = vector.load %arg18[%c0_252, %c1472] : memref<64x1600xbf16, #tpu.memory_space<vmem>>, vector<64x64xbf16>
    tpu.vector_store %arg18[%c0_252, %c1472], %237 {strides = array<i32>} : memref<64x1600xbf16, #tpu.memory_space<vmem>>, vector<64x64xbf16>,
    %c4_253 = arith.constant 4 : index
    %c4_254 = arith.constant 4 : index
    %c0_255 = arith.constant 0 : index
    %239 = vector.load %arg17[%c4_253, %c4_254, %c0_255] : memref<12x12x64xf32, #tpu.memory_space<vmem>>, vector<8x8x64xf32>
    %240 = vector.shape_cast %239 : vector<8x8x64xf32> to vector<64x64xf32>
    %241 = arith.truncf %240 : vector<64x64xf32> to vector<64x64xbf16>
    %c0_256 = arith.constant 0 : index
    %c1536 = arith.constant 1536 : index
    %242 = vector.load %arg18[%c0_256, %c1536] : memref<64x1600xbf16, #tpu.memory_space<vmem>>, vector<64x64xbf16>
    tpu.vector_store %arg18[%c0_256, %c1536], %241 {strides = array<i32>} : memref<64x1600xbf16, #tpu.memory_space<vmem>>, vector<64x64xbf16>,
    %c0_257 = arith.constant 0 : index
    %c0_258 = arith.constant 0 : index
    %243 = vector.load %arg18[%c0_257, %c0_258] : memref<64x1600xbf16, #tpu.memory_space<vmem>>, vector<64x1600xbf16>
    %c0_259 = arith.constant 0 : index
    %c0_260 = arith.constant 0 : index
    %244 = vector.load %arg6[%c0_259, %c0_260] : memref<1600x128xbf16, #tpu.memory_space<vmem>>, vector<1600x128xbf16>
    %cst_261 = arith.constant dense<0.000000e+00> : vector<64x128xf32>
    %245 = tpu.matmul %243, %244, %cst_261 {dimension_numbers = #tpu.dot_dimension_numbers<[1], [0], [0], [1], [0, 0, 1, 1], [], []>} : vector<64x1600xbf16>, vector<1600x128xbf16>, vector<64x128xf32> -> vector<64x128xf32>
    %c0_262 = arith.constant 0 : index
    %c0_263 = arith.constant 0 : index
    %246 = vector.load %arg7[%c0_262, %c0_263] : memref<1x128xf32, #tpu.memory_space<vmem>>, vector<1x128xf32>
    %247 = vector.broadcast %246 : vector<1x128xf32> to vector<64x128xf32>
    %248 = arith.addf %245, %247 : vector<64x128xf32>
    %cst_264 = arith.constant 0.000000e+00 : f32
    %249 = vector.broadcast %cst_264 : f32 to vector<64x128xf32>
    %250 = arith.maximumf %248, %249 : vector<64x128xf32>
    %251 = vector.shape_cast %250 : vector<64x128xf32> to vector<4x2x8x128xf32>
    %252 = vector.extract_strided_slice %251 {offsets = [0, 0, 0, 0], sizes = [4, 1, 8, 128], strides = [1, 1, 1, 1]} : vector<4x2x8x128xf32> to vector<4x1x8x128xf32>
    %253 = vector.shape_cast %252 : vector<4x1x8x128xf32> to vector<4x8x128xf32>
    %254 = vector.extract_strided_slice %251 {offsets = [0, 1, 0, 0], sizes = [4, 1, 8, 128], strides = [1, 1, 1, 1]} : vector<4x2x8x128xf32> to vector<4x1x8x128xf32>
    %255 = vector.shape_cast %254 : vector<4x1x8x128xf32> to vector<4x8x128xf32>
    %256 = arith.maximumf %253, %255 : vector<4x8x128xf32>
    %c0_265 = arith.constant 0 : index
    %c0_266 = arith.constant 0 : index
    %c0_267 = arith.constant 0 : index
    %257 = vector.load %arg19[%c0_265, %c0_266, %c0_267] : memref<4x8x128xf32, #tpu.memory_space<vmem>>, vector<4x8x128xf32>
    tpu.vector_store %arg19[%c0_265, %c0_266, %c0_267], %256 {strides = array<i32>} : memref<4x8x128xf32, #tpu.memory_space<vmem>>, vector<4x8x128xf32>,
    %c0_268 = arith.constant 0 : index
    %c0_269 = arith.constant 0 : index
    %c0_270 = arith.constant 0 : index
    %258 = vector.load %arg19[%c0_268, %c0_269, %c0_270] : memref<4x8x128xf32, #tpu.memory_space<vmem>>, vector<1x1x128xf32>
    %259 = vector.shape_cast %258 : vector<1x1x128xf32> to vector<1x128xf32>
    %c0_271 = arith.constant 0 : index
    %c1_272 = arith.constant 1 : index
    %c0_273 = arith.constant 0 : index
    %260 = vector.load %arg19[%c0_271, %c1_272, %c0_273] : memref<4x8x128xf32, #tpu.memory_space<vmem>>, vector<1x1x128xf32>
    %261 = vector.shape_cast %260 : vector<1x1x128xf32> to vector<1x128xf32>
    %262 = arith.maximumf %259, %261 : vector<1x128xf32>
    %263 = arith.truncf %262 : vector<1x128xf32> to vector<1x128xbf16>
    %c0_274 = arith.constant 0 : index
    %c0_275 = arith.constant 0 : index
    %264 = vector.load %arg20[%c0_274, %c0_275] : memref<1x2048xbf16, #tpu.memory_space<vmem>>, vector<1x128xbf16>
    tpu.vector_store %arg20[%c0_274, %c0_275], %263 {strides = array<i32>} : memref<1x2048xbf16, #tpu.memory_space<vmem>>, vector<1x128xbf16>,
    %c0_276 = arith.constant 0 : index
    %c2_277 = arith.constant 2 : index
    %c0_278 = arith.constant 0 : index
    %265 = vector.load %arg19[%c0_276, %c2_277, %c0_278] : memref<4x8x128xf32, #tpu.memory_space<vmem>>, vector<1x1x128xf32>
    %266 = vector.shape_cast %265 : vector<1x1x128xf32> to vector<1x128xf32>
    %c0_279 = arith.constant 0 : index
    %c3_280 = arith.constant 3 : index
    %c0_281 = arith.constant 0 : index
    %267 = vector.load %arg19[%c0_279, %c3_280, %c0_281] : memref<4x8x128xf32, #tpu.memory_space<vmem>>, vector<1x1x128xf32>
    %268 = vector.shape_cast %267 : vector<1x1x128xf32> to vector<1x128xf32>
    %269 = arith.maximumf %266, %268 : vector<1x128xf32>
    %270 = arith.truncf %269 : vector<1x128xf32> to vector<1x128xbf16>
    %c0_282 = arith.constant 0 : index
    %c128_283 = arith.constant 128 : index
    %271 = vector.load %arg20[%c0_282, %c128_283] : memref<1x2048xbf16, #tpu.memory_space<vmem>>, vector<1x128xbf16>
    tpu.vector_store %arg20[%c0_282, %c128_283], %270 {strides = array<i32>} : memref<1x2048xbf16, #tpu.memory_space<vmem>>, vector<1x128xbf16>,
    %c0_284 = arith.constant 0 : index
    %c4_285 = arith.constant 4 : index
    %c0_286 = arith.constant 0 : index
    %272 = vector.load %arg19[%c0_284, %c4_285, %c0_286] : memref<4x8x128xf32, #tpu.memory_space<vmem>>, vector<1x1x128xf32>
    %273 = vector.shape_cast %272 : vector<1x1x128xf32> to vector<1x128xf32>
    %c0_287 = arith.constant 0 : index
    %c5 = arith.constant 5 : index
    %c0_288 = arith.constant 0 : index
    %274 = vector.load %arg19[%c0_287, %c5, %c0_288] : memref<4x8x128xf32, #tpu.memory_space<vmem>>, vector<1x1x128xf32>
    %275 = vector.shape_cast %274 : vector<1x1x128xf32> to vector<1x128xf32>
    %276 = arith.maximumf %273, %275 : vector<1x128xf32>
    %277 = arith.truncf %276 : vector<1x128xf32> to vector<1x128xbf16>
    %c0_289 = arith.constant 0 : index
    %c256_290 = arith.constant 256 : index
    %278 = vector.load %arg20[%c0_289, %c256_290] : memref<1x2048xbf16, #tpu.memory_space<vmem>>, vector<1x128xbf16>
    tpu.vector_store %arg20[%c0_289, %c256_290], %277 {strides = array<i32>} : memref<1x2048xbf16, #tpu.memory_space<vmem>>, vector<1x128xbf16>,
    %c0_291 = arith.constant 0 : index
    %c6 = arith.constant 6 : index
    %c0_292 = arith.constant 0 : index
    %279 = vector.load %arg19[%c0_291, %c6, %c0_292] : memref<4x8x128xf32, #tpu.memory_space<vmem>>, vector<1x1x128xf32>
    %280 = vector.shape_cast %279 : vector<1x1x128xf32> to vector<1x128xf32>
    %c0_293 = arith.constant 0 : index
    %c7 = arith.constant 7 : index
    %c0_294 = arith.constant 0 : index
    %281 = vector.load %arg19[%c0_293, %c7, %c0_294] : memref<4x8x128xf32, #tpu.memory_space<vmem>>, vector<1x1x128xf32>
    %282 = vector.shape_cast %281 : vector<1x1x128xf32> to vector<1x128xf32>
    %283 = arith.maximumf %280, %282 : vector<1x128xf32>
    %284 = arith.truncf %283 : vector<1x128xf32> to vector<1x128xbf16>
    %c0_295 = arith.constant 0 : index
    %c384_296 = arith.constant 384 : index
    %285 = vector.load %arg20[%c0_295, %c384_296] : memref<1x2048xbf16, #tpu.memory_space<vmem>>, vector<1x128xbf16>
    tpu.vector_store %arg20[%c0_295, %c384_296], %284 {strides = array<i32>} : memref<1x2048xbf16, #tpu.memory_space<vmem>>, vector<1x128xbf16>,
    %c1_297 = arith.constant 1 : index
    %c0_298 = arith.constant 0 : index
    %c0_299 = arith.constant 0 : index
    %286 = vector.load %arg19[%c1_297, %c0_298, %c0_299] : memref<4x8x128xf32, #tpu.memory_space<vmem>>, vector<1x1x128xf32>
    %287 = vector.shape_cast %286 : vector<1x1x128xf32> to vector<1x128xf32>
    %c1_300 = arith.constant 1 : index
    %c1_301 = arith.constant 1 : index
    %c0_302 = arith.constant 0 : index
    %288 = vector.load %arg19[%c1_300, %c1_301, %c0_302] : memref<4x8x128xf32, #tpu.memory_space<vmem>>, vector<1x1x128xf32>
    %289 = vector.shape_cast %288 : vector<1x1x128xf32> to vector<1x128xf32>
    %290 = arith.maximumf %287, %289 : vector<1x128xf32>
    %291 = arith.truncf %290 : vector<1x128xf32> to vector<1x128xbf16>
    %c0_303 = arith.constant 0 : index
    %c512_304 = arith.constant 512 : index
    %292 = vector.load %arg20[%c0_303, %c512_304] : memref<1x2048xbf16, #tpu.memory_space<vmem>>, vector<1x128xbf16>
    tpu.vector_store %arg20[%c0_303, %c512_304], %291 {strides = array<i32>} : memref<1x2048xbf16, #tpu.memory_space<vmem>>, vector<1x128xbf16>,
    %c1_305 = arith.constant 1 : index
    %c2_306 = arith.constant 2 : index
    %c0_307 = arith.constant 0 : index
    %293 = vector.load %arg19[%c1_305, %c2_306, %c0_307] : memref<4x8x128xf32, #tpu.memory_space<vmem>>, vector<1x1x128xf32>
    %294 = vector.shape_cast %293 : vector<1x1x128xf32> to vector<1x128xf32>
    %c1_308 = arith.constant 1 : index
    %c3_309 = arith.constant 3 : index
    %c0_310 = arith.constant 0 : index
    %295 = vector.load %arg19[%c1_308, %c3_309, %c0_310] : memref<4x8x128xf32, #tpu.memory_space<vmem>>, vector<1x1x128xf32>
    %296 = vector.shape_cast %295 : vector<1x1x128xf32> to vector<1x128xf32>
    %297 = arith.maximumf %294, %296 : vector<1x128xf32>
    %298 = arith.truncf %297 : vector<1x128xf32> to vector<1x128xbf16>
    %c0_311 = arith.constant 0 : index
    %c640_312 = arith.constant 640 : index
    %299 = vector.load %arg20[%c0_311, %c640_312] : memref<1x2048xbf16, #tpu.memory_space<vmem>>, vector<1x128xbf16>
    tpu.vector_store %arg20[%c0_311, %c640_312], %298 {strides = array<i32>} : memref<1x2048xbf16, #tpu.memory_space<vmem>>, vector<1x128xbf16>,
    %c1_313 = arith.constant 1 : index
    %c4_314 = arith.constant 4 : index
    %c0_315 = arith.constant 0 : index
    %300 = vector.load %arg19[%c1_313, %c4_314, %c0_315] : memref<4x8x128xf32, #tpu.memory_space<vmem>>, vector<1x1x128xf32>
    %301 = vector.shape_cast %300 : vector<1x1x128xf32> to vector<1x128xf32>
    %c1_316 = arith.constant 1 : index
    %c5_317 = arith.constant 5 : index
    %c0_318 = arith.constant 0 : index
    %302 = vector.load %arg19[%c1_316, %c5_317, %c0_318] : memref<4x8x128xf32, #tpu.memory_space<vmem>>, vector<1x1x128xf32>
    %303 = vector.shape_cast %302 : vector<1x1x128xf32> to vector<1x128xf32>
    %304 = arith.maximumf %301, %303 : vector<1x128xf32>
    %305 = arith.truncf %304 : vector<1x128xf32> to vector<1x128xbf16>
    %c0_319 = arith.constant 0 : index
    %c768_320 = arith.constant 768 : index
    %306 = vector.load %arg20[%c0_319, %c768_320] : memref<1x2048xbf16, #tpu.memory_space<vmem>>, vector<1x128xbf16>
    tpu.vector_store %arg20[%c0_319, %c768_320], %305 {strides = array<i32>} : memref<1x2048xbf16, #tpu.memory_space<vmem>>, vector<1x128xbf16>,
    %c1_321 = arith.constant 1 : index
    %c6_322 = arith.constant 6 : index
    %c0_323 = arith.constant 0 : index
    %307 = vector.load %arg19[%c1_321, %c6_322, %c0_323] : memref<4x8x128xf32, #tpu.memory_space<vmem>>, vector<1x1x128xf32>
    %308 = vector.shape_cast %307 : vector<1x1x128xf32> to vector<1x128xf32>
    %c1_324 = arith.constant 1 : index
    %c7_325 = arith.constant 7 : index
    %c0_326 = arith.constant 0 : index
    %309 = vector.load %arg19[%c1_324, %c7_325, %c0_326] : memref<4x8x128xf32, #tpu.memory_space<vmem>>, vector<1x1x128xf32>
    %310 = vector.shape_cast %309 : vector<1x1x128xf32> to vector<1x128xf32>
    %311 = arith.maximumf %308, %310 : vector<1x128xf32>
    %312 = arith.truncf %311 : vector<1x128xf32> to vector<1x128xbf16>
    %c0_327 = arith.constant 0 : index
    %c896_328 = arith.constant 896 : index
    %313 = vector.load %arg20[%c0_327, %c896_328] : memref<1x2048xbf16, #tpu.memory_space<vmem>>, vector<1x128xbf16>
    tpu.vector_store %arg20[%c0_327, %c896_328], %312 {strides = array<i32>} : memref<1x2048xbf16, #tpu.memory_space<vmem>>, vector<1x128xbf16>,
    %c2_329 = arith.constant 2 : index
    %c0_330 = arith.constant 0 : index
    %c0_331 = arith.constant 0 : index
    %314 = vector.load %arg19[%c2_329, %c0_330, %c0_331] : memref<4x8x128xf32, #tpu.memory_space<vmem>>, vector<1x1x128xf32>
    %315 = vector.shape_cast %314 : vector<1x1x128xf32> to vector<1x128xf32>
    %c2_332 = arith.constant 2 : index
    %c1_333 = arith.constant 1 : index
    %c0_334 = arith.constant 0 : index
    %316 = vector.load %arg19[%c2_332, %c1_333, %c0_334] : memref<4x8x128xf32, #tpu.memory_space<vmem>>, vector<1x1x128xf32>
    %317 = vector.shape_cast %316 : vector<1x1x128xf32> to vector<1x128xf32>
    %318 = arith.maximumf %315, %317 : vector<1x128xf32>
    %319 = arith.truncf %318 : vector<1x128xf32> to vector<1x128xbf16>
    %c0_335 = arith.constant 0 : index
    %c1024_336 = arith.constant 1024 : index
    %320 = vector.load %arg20[%c0_335, %c1024_336] : memref<1x2048xbf16, #tpu.memory_space<vmem>>, vector<1x128xbf16>
    tpu.vector_store %arg20[%c0_335, %c1024_336], %319 {strides = array<i32>} : memref<1x2048xbf16, #tpu.memory_space<vmem>>, vector<1x128xbf16>,
    %c2_337 = arith.constant 2 : index
    %c2_338 = arith.constant 2 : index
    %c0_339 = arith.constant 0 : index
    %321 = vector.load %arg19[%c2_337, %c2_338, %c0_339] : memref<4x8x128xf32, #tpu.memory_space<vmem>>, vector<1x1x128xf32>
    %322 = vector.shape_cast %321 : vector<1x1x128xf32> to vector<1x128xf32>
    %c2_340 = arith.constant 2 : index
    %c3_341 = arith.constant 3 : index
    %c0_342 = arith.constant 0 : index
    %323 = vector.load %arg19[%c2_340, %c3_341, %c0_342] : memref<4x8x128xf32, #tpu.memory_space<vmem>>, vector<1x1x128xf32>
    %324 = vector.shape_cast %323 : vector<1x1x128xf32> to vector<1x128xf32>
    %325 = arith.maximumf %322, %324 : vector<1x128xf32>
    %326 = arith.truncf %325 : vector<1x128xf32> to vector<1x128xbf16>
    %c0_343 = arith.constant 0 : index
    %c1152_344 = arith.constant 1152 : index
    %327 = vector.load %arg20[%c0_343, %c1152_344] : memref<1x2048xbf16, #tpu.memory_space<vmem>>, vector<1x128xbf16>
    tpu.vector_store %arg20[%c0_343, %c1152_344], %326 {strides = array<i32>} : memref<1x2048xbf16, #tpu.memory_space<vmem>>, vector<1x128xbf16>,
    %c2_345 = arith.constant 2 : index
    %c4_346 = arith.constant 4 : index
    %c0_347 = arith.constant 0 : index
    %328 = vector.load %arg19[%c2_345, %c4_346, %c0_347] : memref<4x8x128xf32, #tpu.memory_space<vmem>>, vector<1x1x128xf32>
    %329 = vector.shape_cast %328 : vector<1x1x128xf32> to vector<1x128xf32>
    %c2_348 = arith.constant 2 : index
    %c5_349 = arith.constant 5 : index
    %c0_350 = arith.constant 0 : index
    %330 = vector.load %arg19[%c2_348, %c5_349, %c0_350] : memref<4x8x128xf32, #tpu.memory_space<vmem>>, vector<1x1x128xf32>
    %331 = vector.shape_cast %330 : vector<1x1x128xf32> to vector<1x128xf32>
    %332 = arith.maximumf %329, %331 : vector<1x128xf32>
    %333 = arith.truncf %332 : vector<1x128xf32> to vector<1x128xbf16>
    %c0_351 = arith.constant 0 : index
    %c1280_352 = arith.constant 1280 : index
    %334 = vector.load %arg20[%c0_351, %c1280_352] : memref<1x2048xbf16, #tpu.memory_space<vmem>>, vector<1x128xbf16>
    tpu.vector_store %arg20[%c0_351, %c1280_352], %333 {strides = array<i32>} : memref<1x2048xbf16, #tpu.memory_space<vmem>>, vector<1x128xbf16>,
    %c2_353 = arith.constant 2 : index
    %c6_354 = arith.constant 6 : index
    %c0_355 = arith.constant 0 : index
    %335 = vector.load %arg19[%c2_353, %c6_354, %c0_355] : memref<4x8x128xf32, #tpu.memory_space<vmem>>, vector<1x1x128xf32>
    %336 = vector.shape_cast %335 : vector<1x1x128xf32> to vector<1x128xf32>
    %c2_356 = arith.constant 2 : index
    %c7_357 = arith.constant 7 : index
    %c0_358 = arith.constant 0 : index
    %337 = vector.load %arg19[%c2_356, %c7_357, %c0_358] : memref<4x8x128xf32, #tpu.memory_space<vmem>>, vector<1x1x128xf32>
    %338 = vector.shape_cast %337 : vector<1x1x128xf32> to vector<1x128xf32>
    %339 = arith.maximumf %336, %338 : vector<1x128xf32>
    %340 = arith.truncf %339 : vector<1x128xf32> to vector<1x128xbf16>
    %c0_359 = arith.constant 0 : index
    %c1408_360 = arith.constant 1408 : index
    %341 = vector.load %arg20[%c0_359, %c1408_360] : memref<1x2048xbf16, #tpu.memory_space<vmem>>, vector<1x128xbf16>
    tpu.vector_store %arg20[%c0_359, %c1408_360], %340 {strides = array<i32>} : memref<1x2048xbf16, #tpu.memory_space<vmem>>, vector<1x128xbf16>,
    %c3_361 = arith.constant 3 : index
    %c0_362 = arith.constant 0 : index
    %c0_363 = arith.constant 0 : index
    %342 = vector.load %arg19[%c3_361, %c0_362, %c0_363] : memref<4x8x128xf32, #tpu.memory_space<vmem>>, vector<1x1x128xf32>
    %343 = vector.shape_cast %342 : vector<1x1x128xf32> to vector<1x128xf32>
    %c3_364 = arith.constant 3 : index
    %c1_365 = arith.constant 1 : index
    %c0_366 = arith.constant 0 : index
    %344 = vector.load %arg19[%c3_364, %c1_365, %c0_366] : memref<4x8x128xf32, #tpu.memory_space<vmem>>, vector<1x1x128xf32>
    %345 = vector.shape_cast %344 : vector<1x1x128xf32> to vector<1x128xf32>
    %346 = arith.maximumf %343, %345 : vector<1x128xf32>
    %347 = arith.truncf %346 : vector<1x128xf32> to vector<1x128xbf16>
    %c0_367 = arith.constant 0 : index
    %c1536_368 = arith.constant 1536 : index
    %348 = vector.load %arg20[%c0_367, %c1536_368] : memref<1x2048xbf16, #tpu.memory_space<vmem>>, vector<1x128xbf16>
    tpu.vector_store %arg20[%c0_367, %c1536_368], %347 {strides = array<i32>} : memref<1x2048xbf16, #tpu.memory_space<vmem>>, vector<1x128xbf16>,
    %c3_369 = arith.constant 3 : index
    %c2_370 = arith.constant 2 : index
    %c0_371 = arith.constant 0 : index
    %349 = vector.load %arg19[%c3_369, %c2_370, %c0_371] : memref<4x8x128xf32, #tpu.memory_space<vmem>>, vector<1x1x128xf32>
    %350 = vector.shape_cast %349 : vector<1x1x128xf32> to vector<1x128xf32>
    %c3_372 = arith.constant 3 : index
    %c3_373 = arith.constant 3 : index
    %c0_374 = arith.constant 0 : index
    %351 = vector.load %arg19[%c3_372, %c3_373, %c0_374] : memref<4x8x128xf32, #tpu.memory_space<vmem>>, vector<1x1x128xf32>
    %352 = vector.shape_cast %351 : vector<1x1x128xf32> to vector<1x128xf32>
    %353 = arith.maximumf %350, %352 : vector<1x128xf32>
    %354 = arith.truncf %353 : vector<1x128xf32> to vector<1x128xbf16>
    %c0_375 = arith.constant 0 : index
    %c1664 = arith.constant 1664 : index
    %355 = vector.load %arg20[%c0_375, %c1664] : memref<1x2048xbf16, #tpu.memory_space<vmem>>, vector<1x128xbf16>
    tpu.vector_store %arg20[%c0_375, %c1664], %354 {strides = array<i32>} : memref<1x2048xbf16, #tpu.memory_space<vmem>>, vector<1x128xbf16>,
    %c3_376 = arith.constant 3 : index
    %c4_377 = arith.constant 4 : index
    %c0_378 = arith.constant 0 : index
    %356 = vector.load %arg19[%c3_376, %c4_377, %c0_378] : memref<4x8x128xf32, #tpu.memory_space<vmem>>, vector<1x1x128xf32>
    %357 = vector.shape_cast %356 : vector<1x1x128xf32> to vector<1x128xf32>
    %c3_379 = arith.constant 3 : index
    %c5_380 = arith.constant 5 : index
    %c0_381 = arith.constant 0 : index
    %358 = vector.load %arg19[%c3_379, %c5_380, %c0_381] : memref<4x8x128xf32, #tpu.memory_space<vmem>>, vector<1x1x128xf32>
    %359 = vector.shape_cast %358 : vector<1x1x128xf32> to vector<1x128xf32>
    %360 = arith.maximumf %357, %359 : vector<1x128xf32>
    %361 = arith.truncf %360 : vector<1x128xf32> to vector<1x128xbf16>
    %c0_382 = arith.constant 0 : index
    %c1792 = arith.constant 1792 : index
    %362 = vector.load %arg20[%c0_382, %c1792] : memref<1x2048xbf16, #tpu.memory_space<vmem>>, vector<1x128xbf16>
    tpu.vector_store %arg20[%c0_382, %c1792], %361 {strides = array<i32>} : memref<1x2048xbf16, #tpu.memory_space<vmem>>, vector<1x128xbf16>,
    %c3_383 = arith.constant 3 : index
    %c6_384 = arith.constant 6 : index
    %c0_385 = arith.constant 0 : index
    %363 = vector.load %arg19[%c3_383, %c6_384, %c0_385] : memref<4x8x128xf32, #tpu.memory_space<vmem>>, vector<1x1x128xf32>
    %364 = vector.shape_cast %363 : vector<1x1x128xf32> to vector<1x128xf32>
    %c3_386 = arith.constant 3 : index
    %c7_387 = arith.constant 7 : index
    %c0_388 = arith.constant 0 : index
    %365 = vector.load %arg19[%c3_386, %c7_387, %c0_388] : memref<4x8x128xf32, #tpu.memory_space<vmem>>, vector<1x1x128xf32>
    %366 = vector.shape_cast %365 : vector<1x1x128xf32> to vector<1x128xf32>
    %367 = arith.maximumf %364, %366 : vector<1x128xf32>
    %368 = arith.truncf %367 : vector<1x128xf32> to vector<1x128xbf16>
    %c0_389 = arith.constant 0 : index
    %c1920 = arith.constant 1920 : index
    %369 = vector.load %arg20[%c0_389, %c1920] : memref<1x2048xbf16, #tpu.memory_space<vmem>>, vector<1x128xbf16>
    tpu.vector_store %arg20[%c0_389, %c1920], %368 {strides = array<i32>} : memref<1x2048xbf16, #tpu.memory_space<vmem>>, vector<1x128xbf16>,
    %c0_390 = arith.constant 0 : index
    %c0_391 = arith.constant 0 : index
    %370 = vector.load %arg20[%c0_390, %c0_391] : memref<1x2048xbf16, #tpu.memory_space<vmem>>, vector<1x2048xbf16>
    %c0_392 = arith.constant 0 : index
    %c0_393 = arith.constant 0 : index
    %371 = vector.load %arg8[%c0_392, %c0_393] : memref<2048x64xbf16, #tpu.memory_space<vmem>>, vector<2048x64xbf16>
    %cst_394 = arith.constant dense<0.000000e+00> : vector<1x64xf32>
    %372 = tpu.matmul %370, %371, %cst_394 {dimension_numbers = #tpu.dot_dimension_numbers<[1], [0], [0], [1], [0, 0, 1, 1], [], []>} : vector<1x2048xbf16>, vector<2048x64xbf16>, vector<1x64xf32> -> vector<1x64xf32>
    %c0_395 = arith.constant 0 : index
    %c0_396 = arith.constant 0 : index
    %373 = vector.load %arg9[%c0_395, %c0_396] : memref<1x64xf32, #tpu.memory_space<vmem>>, vector<1x64xf32>
    %374 = arith.addf %372, %373 : vector<1x64xf32>
    %cst_397 = arith.constant 0.000000e+00 : f32
    %375 = vector.broadcast %cst_397 : f32 to vector<1x64xf32>
    %376 = arith.maximumf %374, %375 : vector<1x64xf32>
    %377 = arith.truncf %376 : vector<1x64xf32> to vector<1x64xbf16>
    %c0_398 = arith.constant 0 : index
    %c0_399 = arith.constant 0 : index
    %378 = vector.load %arg10[%c0_398, %c0_399] : memref<64x128xbf16, #tpu.memory_space<vmem>>, vector<64x128xbf16>
    %cst_400 = arith.constant dense<0.000000e+00> : vector<1x128xf32>
    %379 = tpu.matmul %377, %378, %cst_400 {dimension_numbers = #tpu.dot_dimension_numbers<[1], [0], [0], [1], [0, 0, 1, 1], [], []>} : vector<1x64xbf16>, vector<64x128xbf16>, vector<1x128xf32> -> vector<1x128xf32>
    %c0_401 = arith.constant 0 : index
    %c0_402 = arith.constant 0 : index
    %380 = vector.load %arg11[%c0_401, %c0_402] : memref<1x128xf32, #tpu.memory_space<vmem>>, vector<1x128xf32>
    %381 = arith.addf %379, %380 : vector<1x128xf32>
    %c0_403 = arith.constant 0 : index
    %c0_404 = arith.constant 0 : index
    %c0_405 = arith.constant 0 : index
    %382 = vector.load %arg12[%c0_403, %c0_404, %c0_405] : memref<1x1x128xf32, #tpu.memory_space<vmem>>, vector<1x1x128xf32>
    %383 = vector.shape_cast %382 : vector<1x1x128xf32> to vector<1x128xf32>
    %384 = vector.shape_cast %381 : vector<1x128xf32> to vector<1x1x128xf32>
    tpu.vector_store %arg12[%c0_403, %c0_404, %c0_405], %384 {strides = array<i32>} : memref<1x1x128xf32, #tpu.memory_space<vmem>>, vector<1x1x128xf32>,
    return
  }
  func.func @transform_0(%arg0: i32) -> (i32, i32, i32) {
    %c0_i32 = arith.constant 0 : i32
    %c0_i32_0 = arith.constant 0 : i32
    %c0_i32_1 = arith.constant 0 : i32
    return %arg0, %c0_i32, %c0_i32_0 : i32, i32, i32
  }
  func.func @transform_1(%arg0: i32) -> (i32, i32) {
    %c0_i32 = arith.constant 0 : i32
    %c0_i32_0 = arith.constant 0 : i32
    %c0_i32_1 = arith.constant 0 : i32
    return %c0_i32, %c0_i32_0 : i32, i32
  }
  func.func @transform_2(%arg0: i32) -> (i32, i32) {
    %c0_i32 = arith.constant 0 : i32
    %c0_i32_0 = arith.constant 0 : i32
    %c0_i32_1 = arith.constant 0 : i32
    return %c0_i32, %c0_i32_0 : i32, i32
  }
  func.func @transform_3(%arg0: i32) -> (i32, i32) {
    %c0_i32 = arith.constant 0 : i32
    %c0_i32_0 = arith.constant 0 : i32
    %c0_i32_1 = arith.constant 0 : i32
    return %c0_i32, %c0_i32_0 : i32, i32
  }
  func.func @transform_4(%arg0: i32) -> (i32, i32) {
    %c0_i32 = arith.constant 0 : i32
    %c0_i32_0 = arith.constant 0 : i32
    %c0_i32_1 = arith.constant 0 : i32
    return %c0_i32, %c0_i32_0 : i32, i32
  }
  func.func @transform_5(%arg0: i32) -> (i32, i32) {
    %c0_i32 = arith.constant 0 : i32
    %c0_i32_0 = arith.constant 0 : i32
    %c0_i32_1 = arith.constant 0 : i32
    return %c0_i32, %c0_i32_0 : i32, i32
  }
  func.func @transform_6(%arg0: i32) -> (i32, i32) {
    %c0_i32 = arith.constant 0 : i32
    %c0_i32_0 = arith.constant 0 : i32
    %c0_i32_1 = arith.constant 0 : i32
    return %c0_i32, %c0_i32_0 : i32, i32
  }
  func.func @transform_7(%arg0: i32) -> (i32, i32) {
    %c0_i32 = arith.constant 0 : i32
    %c0_i32_0 = arith.constant 0 : i32
    %c0_i32_1 = arith.constant 0 : i32
    return %c0_i32, %c0_i32_0 : i32, i32
  }
  func.func @transform_8(%arg0: i32) -> (i32, i32) {
    %c0_i32 = arith.constant 0 : i32
    %c0_i32_0 = arith.constant 0 : i32
    %c0_i32_1 = arith.constant 0 : i32
    return %c0_i32, %c0_i32_0 : i32, i32
  }
  func.func @transform_9(%arg0: i32) -> (i32, i32) {
    %c0_i32 = arith.constant 0 : i32
    %c0_i32_0 = arith.constant 0 : i32
    %c0_i32_1 = arith.constant 0 : i32
    return %c0_i32, %c0_i32_0 : i32, i32
  }
  func.func @transform_10(%arg0: i32) -> (i32, i32) {
    %c0_i32 = arith.constant 0 : i32
    %c0_i32_0 = arith.constant 0 : i32
    %c0_i32_1 = arith.constant 0 : i32
    return %c0_i32, %c0_i32_0 : i32, i32
  }
  func.func @transform_11(%arg0: i32) -> (i32, i32, i32) {
    %c0_i32 = arith.constant 0 : i32
    %c0_i32_0 = arith.constant 0 : i32
    %c0_i32_1 = arith.constant 0 : i32
    return %arg0, %c0_i32, %c0_i32_0 : i32, i32, i32
  }
}

</mosaic_0001>

<llo_original>
// kernel: example_model_forward.1
$region0: #{example_model_forward.1}
  #allocation0 [shape = 'u32[]', space=smem, size = 0x4, offset = 0x4, fixed_abs, tag = 'smem constant byte address 0x4 - core index']
  #allocation1 [shape = 'u32[144,128]{1,0:T(1,128)}', space=vmem, size = 0x12000, scoped, tag = 'internal scratch']
  #allocation2 [shape = 'f32[16,32,32]{2,1,0:T(8,128)}', space=vmem, size = 0x40000, scoped, tag = 'scratch operand']
  #allocation3 [shape = 'f32[20,20,32]{2,1,0:T(8,128)}', space=vmem, size = 0x3c000, scoped, tag = 'scratch operand']
  #allocation4 [shape = 'bf16[256,800]{1,0:T(16,128)(2,1)}', space=vmem, size = 0x70000, scoped, tag = 'scratch operand']
  #allocation5 [shape = 'f32[8,16,64]{2,1,0:T(8,128)}', space=vmem, size = 0x10000, scoped, tag = 'scratch operand']
  #allocation6 [shape = 'f32[12,12,64]{2,1,0:T(8,128)}', space=vmem, size = 0x18000, scoped, tag = 'scratch operand']
  #allocation7 [shape = 'bf16[64,1600]{1,0:T(16,128)(2,1)}', space=vmem, size = 0x34000, scoped, tag = 'scratch operand']
  #allocation8 [shape = 'f32[4,8,128]{2,1,0:T(8,128)}', space=vmem, size = 0x4000, scoped, tag = 'scratch operand']
  #allocation9 [shape = 'bf16[1,2048]{1,0:T(2,128)(2,1)}', space=vmem, size = 0x2000, scoped, tag = 'scratch operand']
  %s0 = inlined_call_operand.vmem [shape: bf16[2,1024,128], index: 0, kind: input, shape index: {}]
  %s1 = inlined_call_operand.vmem [shape: bf16[128,32], index: 1, kind: input, shape index: {}]
  %s2 = inlined_call_operand.vmem [shape: f32[1,32], index: 2, kind: input, shape index: {}]
  %s3 = inlined_call_operand.vmem [shape: bf16[800,64], index: 3, kind: input, shape index: {}]
  %s4 = inlined_call_operand.vmem [shape: f32[1,64], index: 4, kind: input, shape index: {}]
  %s5 = inlined_call_operand.vmem [shape: bf16[1600,128], index: 5, kind: input, shape index: {}]
  %s6 = inlined_call_operand.vmem [shape: f32[1,128], index: 6, kind: input, shape index: {}]
  %s7 = inlined_call_operand.vmem [shape: bf16[2048,64], index: 7, kind: input, shape index: {}]
  %s8 = inlined_call_operand.vmem [shape: f32[1,64], index: 8, kind: input, shape index: {}]
  %s9 = inlined_call_operand.vmem [shape: bf16[64,128], index: 9, kind: input, shape index: {}]
  %s10 = inlined_call_operand.vmem [shape: f32[1,128], index: 10, kind: input, shape index: {}]
  %s11 = inlined_call_operand.hbm [shape: f32[2,1,128], index: 11, kind: output, shape index: {}]
  %s12 = sld [smem:[#allocation0]]
  $region77: #{example_model_forward.1} parent=0
    _
  %s14 = ssub.s32 1, %s12
  %s15 = scalar_select 0, %s14, %s12
  $region1: #{example_model_forward.1} parent=0
    #allocation10 [shape = 'u8[1024]{0}', space=vmem, size = 0x400, scoped, tag = 'output window, operand 0']
    #allocation11 [shape = 's32[2]{0}', space=sflag, size = 0x8, scoped, tag = 'scoped memory for example_model_forward.1']
    %16 = vsyncpa [#allocation11], 0
    %s17 = scalar_lea.sflag [#allocation11], 1
    %18 = vsyncpa %s17, 0
    loop: start=0, step=1, limit=4
    $region2: #{example_model_forward.1} parent=1 // loop_pre_header
      _
    $region3: #{example_model_forward.1} parent=1 // loop_header
      %s20 = sphi 0, %s24
      %p21 = scmp.ge.s32.totalorder %s20, 4
      %s30 = sphi 0, %s32
      %s33 = sphi 0, %s30
      %s34 = sphi 0, %s33
      %s50 = sphi 0, %s34
      %s54 = sphi 0, %s54
      %s56 = sphi 0, %s54
      %s57 = sphi 0, %s56
      %s71 = sphi 0, %s57
      %s75 = sphi 0, %s75
      %s77 = sphi 0, %s75
      %s78 = sphi 0, %s77
      %s92 = sphi 0, %s78
      %s96 = sphi 0, %s96
      %s98 = sphi 0, %s96
      %s99 = sphi 0, %s98
      %s113 = sphi 0, %s99
      %s117 = sphi 0, %s117
      %s119 = sphi 0, %s117
      %s120 = sphi 0, %s119
      %s134 = sphi 0, %s120
      %s138 = sphi 0, %s138
      %s140 = sphi 0, %s138
      %s141 = sphi 0, %s140
      %s155 = sphi 0, %s141
      %s159 = sphi 0, %s159
      %s161 = sphi 0, %s159
      %s162 = sphi 0, %s161
      %s176 = sphi 0, %s162
      %s180 = sphi 0, %s180
      %s182 = sphi 0, %s180
      %s183 = sphi 0, %s182
      %s197 = sphi 0, %s183
      %s201 = sphi 0, %s201
      %s203 = sphi 0, %s201
      %s204 = sphi 0, %s203
      %s218 = sphi 0, %s204
      %s222 = sphi 0, %s222
      %s224 = sphi 0, %s222
      %s225 = sphi 0, %s224
      %s239 = sphi 0, %s225
      %s243 = sphi 0, %s243
      %s245 = sphi 0, %s243
      %s246 = sphi 0, %s245
      %s260 = sphi 0, %s246
      %s266 = sphi 0, %s268
      %s269 = sphi 0, %s266
      %s270 = sphi 0, %s269
      %s286 = sphi 0, %s270
    $region4: #{example_model_forward.1} parent=1 // loop_header_branch
      %23 = sbr.rel (%p21) target = $region8
    $region5: #{example_model_forward.1} parent=1 // loop_body
      %s25 = ssub.s32 %s20, 1
      %s26 = ssub.s32 %s20, 2
      %s27 = sadd.s32 %s20, 1
      %s28 = ssub.s32 %s20, %s27
      %p29 = scmp.eq.s32.totalorder %s28, 0
      %s31 = sadd.s32 %s30, 1
      %s32 = scalar_select %p29, %s30, %s31
      %p35 = pneg %p29
      %p36 = scmp.eq.s32.totalorder %s20, 1
      %p37 = por %p35, %p36
      %p38 = scmp.ne.s32.totalorder %s30, %s33
      %p39 = scmp.eq.s32.totalorder %s20, 0
      %p40 = por %p38, %p39
      %p41 = scmp.ne.s32.totalorder %s30, %s33
      %p42 = scmp.eq.s32.totalorder %s25, 1
      %p43 = por %p41, %p42
      %p44 = scmp.ne.s32.totalorder %s33, %s34
      %p45 = scmp.eq.s32.totalorder %s25, 0
      %p46 = por %p44, %p45
      %p47 = scmp.ne.s32.totalorder %s33, %s34
      %p48 = scmp.eq.s32.totalorder %s26, 1
      %p49 = por %p47, %p48
      %p51 = scmp.ne.s32.totalorder %s34, %s50
      %p52 = scmp.eq.s32.totalorder %s26, 0
      %p53 = por %p51, %p52
      %s55 = sadd.s32 %s54, 1
      %p58 = scmp.eq.s32.totalorder %s20, 1
      %p59 = scmp.ne.s32.totalorder %s54, %s56
      %p60 = scmp.eq.s32.totalorder %s20, 0
      %p61 = por %p59, %p60
      %p62 = scmp.ne.s32.totalorder %s54, %s56
      %p63 = scmp.eq.s32.totalorder %s25, 1
      %p64 = por %p62, %p63
      %p65 = scmp.ne.s32.totalorder %s56, %s57
      %p66 = scmp.eq.s32.totalorder %s25, 0
      %p67 = por %p65, %p66
      %p68 = scmp.ne.s32.totalorder %s56, %s57
      %p69 = scmp.eq.s32.totalorder %s26, 1
      %p70 = por %p68, %p69
      %p72 = scmp.ne.s32.totalorder %s57, %s71
      %p73 = scmp.eq.s32.totalorder %s26, 0
      %p74 = por %p72, %p73
      %s76 = sadd.s32 %s75, 1
      %p79 = scmp.eq.s32.totalorder %s20, 1
      %p80 = scmp.ne.s32.totalorder %s75, %s77
      %p81 = scmp.eq.s32.totalorder %s20, 0
      %p82 = por %p80, %p81
      %p83 = scmp.ne.s32.totalorder %s75, %s77
      %p84 = scmp.eq.s32.totalorder %s25, 1
      %p85 = por %p83, %p84
      %p86 = scmp.ne.s32.totalorder %s77, %s78
      %p87 = scmp.eq.s32.totalorder %s25, 0
      %p88 = por %p86, %p87
      %p89 = scmp.ne.s32.totalorder %s77, %s78
      %p90 = scmp.eq.s32.totalorder %s26, 1
      %p91 = por %p89, %p90
      %p93 = scmp.ne.s32.totalorder %s78, %s92
      %p94 = scmp.eq.s32.totalorder %s26, 0
      %p95 = por %p93, %p94
      %s97 = sadd.s32 %s96, 1
      %p100 = scmp.eq.s32.totalorder %s20, 1
      %p101 = scmp.ne.s32.totalorder %s96, %s98
      %p102 = scmp.eq.s32.totalorder %s20, 0
      %p103 = por %p101, %p102
      %p104 = scmp.ne.s32.totalorder %s96, %s98
      %p105 = scmp.eq.s32.totalorder %s25, 1
      %p106 = por %p104, %p105
      %p107 = scmp.ne.s32.totalorder %s98, %s99
      %p108 = scmp.eq.s32.totalorder %s25, 0
      %p109 = por %p107, %p108
      %p110 = scmp.ne.s32.totalorder %s98, %s99
      %p111 = scmp.eq.s32.totalorder %s26, 1
      %p112 = por %p110, %p111
      %p114 = scmp.ne.s32.totalorder %s99, %s113
      %p115 = scmp.eq.s32.totalorder %s26, 0
      %p116 = por %p114, %p115
      %s118 = sadd.s32 %s117, 1
      %p121 = scmp.eq.s32.totalorder %s20, 1
      %p122 = scmp.ne.s32.totalorder %s117, %s119
      %p123 = scmp.eq.s32.totalorder %s20, 0
      %p124 = por %p122, %p123
      %p125 = scmp.ne.s32.totalorder %s117, %s119
      %p126 = scmp.eq.s32.totalorder %s25, 1
      %p127 = por %p125, %p126
      %p128 = scmp.ne.s32.totalorder %s119, %s120
      %p129 = scmp.eq.s32.totalorder %s25, 0
      %p130 = por %p128, %p129
      %p131 = scmp.ne.s32.totalorder %s119, %s120
      %p132 = scmp.eq.s32.totalorder %s26, 1
      %p133 = por %p131, %p132
      %p135 = scmp.ne.s32.totalorder %s120, %s134
      %p136 = scmp.eq.s32.totalorder %s26, 0
      %p137 = por %p135, %p136
      %s139 = sadd.s32 %s138, 1
      %p142 = scmp.eq.s32.totalorder %s20, 1
      %p143 = scmp.ne.s32.totalorder %s138, %s140
      %p144 = scmp.eq.s32.totalorder %s20, 0
      %p145 = por %p143, %p144
      %p146 = scmp.ne.s32.totalorder %s138, %s140
      %p147 = scmp.eq.s32.totalorder %s25, 1
      %p148 = por %p146, %p147
      %p149 = scmp.ne.s32.totalorder %s140, %s141
      %p150 = scmp.eq.s32.totalorder %s25, 0
      %p151 = por %p149, %p150
      %p152 = scmp.ne.s32.totalorder %s140, %s141
      %p153 = scmp.eq.s32.totalorder %s26, 1
      %p154 = por %p152, %p153
      %p156 = scmp.ne.s32.totalorder %s141, %s155
      %p157 = scmp.eq.s32.totalorder %s26, 0
      %p158 = por %p156, %p157
      %s160 = sadd.s32 %s159, 1
      %p163 = scmp.eq.s32.totalorder %s20, 1
      %p164 = scmp.ne.s32.totalorder %s159, %s161
      %p165 = scmp.eq.s32.totalorder %s20, 0
      %p166 = por %p164, %p165
      %p167 = scmp.ne.s32.totalorder %s159, %s161
      %p168 = scmp.eq.s32.totalorder %s25, 1
      %p169 = por %p167, %p168
      %p170 = scmp.ne.s32.totalorder %s161, %s162
      %p171 = scmp.eq.s32.totalorder %s25, 0
      %p172 = por %p170, %p171
      %p173 = scmp.ne.s32.totalorder %s161, %s162
      %p174 = scmp.eq.s32.totalorder %s26, 1
      %p175 = por %p173, %p174
      %p177 = scmp.ne.s32.totalorder %s162, %s176
      %p178 = scmp.eq.s32.totalorder %s26, 0
      %p179 = por %p177, %p178
      %s181 = sadd.s32 %s180, 1
      %p184 = scmp.eq.s32.totalorder %s20, 1
      %p185 = scmp.ne.s32.totalorder %s180, %s182
      %p186 = scmp.eq.s32.totalorder %s20, 0
      %p187 = por %p185, %p186
      %p188 = scmp.ne.s32.totalorder %s180, %s182
      %p189 = scmp.eq.s32.totalorder %s25, 1
      %p190 = por %p188, %p189
      %p191 = scmp.ne.s32.totalorder %s182, %s183
      %p192 = scmp.eq.s32.totalorder %s25, 0
      %p193 = por %p191, %p192
      %p194 = scmp.ne.s32.totalorder %s182, %s183
      %p195 = scmp.eq.s32.totalorder %s26, 1
      %p196 = por %p194, %p195
      %p198 = scmp.ne.s32.totalorder %s183, %s197
      %p199 = scmp.eq.s32.totalorder %s26, 0
      %p200 = por %p198, %p199
      %s202 = sadd.s32 %s201, 1
      %p205 = scmp.eq.s32.totalorder %s20, 1
      %p206 = scmp.ne.s32.totalorder %s201, %s203
      %p207 = scmp.eq.s32.totalorder %s20, 0
      %p208 = por %p206, %p207
      %p209 = scmp.ne.s32.totalorder %s201, %s203
      %p210 = scmp.eq.s32.totalorder %s25, 1
      %p211 = por %p209, %p210
      %p212 = scmp.ne.s32.totalorder %s203, %s204
      %p213 = scmp.eq.s32.totalorder %s25, 0
      %p214 = por %p212, %p213
      %p215 = scmp.ne.s32.totalorder %s203, %s204
      %p216 = scmp.eq.s32.totalorder %s26, 1
      %p217 = por %p215, %p216
      %p219 = scmp.ne.s32.totalorder %s204, %s218
      %p220 = scmp.eq.s32.totalorder %s26, 0
      %p221 = por %p219, %p220
      %s223 = sadd.s32 %s222, 1
      %p226 = scmp.eq.s32.totalorder %s20, 1
      %p227 = scmp.ne.s32.totalorder %s222, %s224
      %p228 = scmp.eq.s32.totalorder %s20, 0
      %p229 = por %p227, %p228
      %p230 = scmp.ne.s32.totalorder %s222, %s224
      %p231 = scmp.eq.s32.totalorder %s25, 1
      %p232 = por %p230, %p231
      %p233 = scmp.ne.s32.totalorder %s224, %s225
      %p234 = scmp.eq.s32.totalorder %s25, 0
      %p235 = por %p233, %p234
      %p236 = scmp.ne.s32.totalorder %s224, %s225
      %p237 = scmp.eq.s32.totalorder %s26, 1
      %p238 = por %p236, %p237
      %p240 = scmp.ne.s32.totalorder %s225, %s239
      %p241 = scmp.eq.s32.totalorder %s26, 0
      %p242 = por %p240, %p241
      %s244 = sadd.s32 %s243, 1
      %p247 = scmp.eq.s32.totalorder %s20, 1
      %p248 = scmp.ne.s32.totalorder %s243, %s245
      %p249 = scmp.eq.s32.totalorder %s20, 0
      %p250 = por %p248, %p249
      %p251 = scmp.ne.s32.totalorder %s243, %s245
      %p252 = scmp.eq.s32.totalorder %s25, 1
      %p253 = por %p251, %p252
      %p254 = scmp.ne.s32.totalorder %s245, %s246
      %p255 = scmp.eq.s32.totalorder %s25, 0
      %p256 = por %p254, %p255
      %p257 = scmp.ne.s32.totalorder %s245, %s246
      %p258 = scmp.eq.s32.totalorder %s26, 1
      %p259 = por %p257, %p258
      %p261 = scmp.ne.s32.totalorder %s246, %s260
      %p262 = scmp.eq.s32.totalorder %s26, 0
      %p263 = por %p261, %p262
      %s264 = ssub.s32 %s20, %s27
      %p265 = scmp.eq.s32.totalorder %s264, 0
      %s267 = sadd.s32 %s266, 1
      %s268 = scalar_select %p265, %s266, %s267
      %p271 = pneg %p265
      %p272 = scmp.eq.s32.totalorder %s20, 1
      %p273 = por %p271, %p272
      %p274 = scmp.ne.s32.totalorder %s266, %s269
      %p275 = scmp.eq.s32.totalorder %s20, 0
      %p276 = por %p274, %p275
      %p277 = scmp.ne.s32.totalorder %s266, %s269
      %p278 = scmp.eq.s32.totalorder %s25, 1
      %p279 = por %p277, %p278
      %p280 = scmp.ne.s32.totalorder %s269, %s270
      %p281 = scmp.eq.s32.totalorder %s25, 0
      %p282 = por %p280, %p281
      %p283 = scmp.ne.s32.totalorder %s269, %s270
      %p284 = scmp.eq.s32.totalorder %s26, 1
      %p285 = por %p283, %p284
      %p287 = scmp.ne.s32.totalorder %s270, %s286
      %p288 = scmp.eq.s32.totalorder %s26, 0
      %p289 = por %p287, %p288
      %p290 = scmp.le.s32.totalorder 1, %s20
      %p291 = scmp.lt.s32.totalorder %s20, 3
      %p292 = pnand %p290, %p291
      %p293 = pneg %p292
      // Predicated region
      $region9: #{example_model_forward.1} parent=5 // pred_check
        _
      $region10: #{example_model_forward.1} parent=5 // pred_check_branch
        %295 = sbr.rel (%p292) target = $region12
      $region11: #{example_model_forward.1} parent=5 // pred_region
        %s296 = ssub.s32 %s20, 1
        // Predicated region
        $region13: #{example_model_forward.1} parent=11 // pred_check
          %p297 = pneg %p67
        $region14: #{example_model_forward.1} parent=11 // pred_check_branch
          %299 = sbr.rel (%p297) target = $region16
        $region15: #{example_model_forward.1} parent=11 // pred_region
          _
        $region16: #{example_model_forward.1} parent=11 // pred_fallthru
          _
        // Predicated region
        $region17: #{example_model_forward.1} parent=11 // pred_check
          %p300 = pneg %p88
        $region18: #{example_model_forward.1} parent=11 // pred_check_branch
          %302 = sbr.rel (%p300) target = $region20
        $region19: #{example_model_forward.1} parent=11 // pred_region
          _
        $region20: #{example_model_forward.1} parent=11 // pred_fallthru
          _
        // Predicated region
        $region21: #{example_model_forward.1} parent=11 // pred_check
          %p303 = pneg %p109
        $region22: #{example_model_forward.1} parent=11 // pred_check_branch
          %305 = sbr.rel (%p303) target = $region24
        $region23: #{example_model_forward.1} parent=11 // pred_region
          _
        $region24: #{example_model_forward.1} parent=11 // pred_fallthru
          _
        // Predicated region
        $region25: #{example_model_forward.1} parent=11 // pred_check
          %p306 = pneg %p130
        $region26: #{example_model_forward.1} parent=11 // pred_check_branch
          %308 = sbr.rel (%p306) target = $region28
        $region27: #{example_model_forward.1} parent=11 // pred_region
          _
        $region28: #{example_model_forward.1} parent=11 // pred_fallthru
          _
        // Predicated region
        $region29: #{example_model_forward.1} parent=11 // pred_check
          %p309 = pneg %p151
        $region30: #{example_model_forward.1} parent=11 // pred_check_branch
          %311 = sbr.rel (%p309) target = $region32
        $region31: #{example_model_forward.1} parent=11 // pred_region
          _
        $region32: #{example_model_forward.1} parent=11 // pred_fallthru
          _
        // Predicated region
        $region33: #{example_model_forward.1} parent=11 // pred_check
          %p312 = pneg %p172
        $region34: #{example_model_forward.1} parent=11 // pred_check_branch
          %314 = sbr.rel (%p312) target = $region36
        $region35: #{example_model_forward.1} parent=11 // pred_region
          _
        $region36: #{example_model_forward.1} parent=11 // pred_fallthru
          _
        // Predicated region
        $region37: #{example_model_forward.1} parent=11 // pred_check
          %p315 = pneg %p193
        $region38: #{example_model_forward.1} parent=11 // pred_check_branch
          %317 = sbr.rel (%p315) target = $region40
        $region39: #{example_model_forward.1} parent=11 // pred_region
          _
        $region40: #{example_model_forward.1} parent=11 // pred_fallthru
          _
        // Predicated region
        $region41: #{example_model_forward.1} parent=11 // pred_check
          %p318 = pneg %p214
        $region42: #{example_model_forward.1} parent=11 // pred_check_branch
          %320 = sbr.rel (%p318) target = $region44
        $region43: #{example_model_forward.1} parent=11 // pred_region
          _
        $region44: #{example_model_forward.1} parent=11 // pred_fallthru
          _
        // Predicated region
        $region45: #{example_model_forward.1} parent=11 // pred_check
          %p321 = pneg %p235
        $region46: #{example_model_forward.1} parent=11 // pred_check_branch
          %323 = sbr.rel (%p321) target = $region48
        $region47: #{example_model_forward.1} parent=11 // pred_region
          _
        $region48: #{example_model_forward.1} parent=11 // pred_fallthru
          _
        // Predicated region
        $region49: #{example_model_forward.1} parent=11 // pred_check
          %p324 = pneg %p256
        $region50: #{example_model_forward.1} parent=11 // pred_check_branch
          %326 = sbr.rel (%p324) target = $region52
        $region51: #{example_model_forward.1} parent=11 // pred_region
          _
        $region52: #{example_model_forward.1} parent=11 // pred_fallthru
          _
      $region12: #{example_model_forward.1} parent=5 // pred_fallthru
        _
      %p327 = scmp.lt.s32.totalorder %s20, 2
      // Predicated region
      $region53: #{example_model_forward.1} parent=5 // pred_check
        %p328 = pneg %p327
      $region54: #{example_model_forward.1} parent=5 // pred_check_branch
        %330 = sbr.rel (%p328) target = $region56
      $region55: #{example_model_forward.1} parent=5 // pred_region
        // Predicated region
        $region57: #{example_model_forward.1} parent=55 // pred_check
          %p331 = pneg %p40
        $region58: #{example_model_forward.1} parent=55 // pred_check_branch
          %333 = sbr.rel (%p331) target = $region60
        $region59: #{example_model_forward.1} parent=55 // pred_region
          %p334 = scmp.lt.s32.totalorder %s20, 1
          %s335 = scalar_select %p334, %s20, 1
          %s336 = smul.addr %s335, 128
          %s337 = smul.addr %s336, 4
          %s338 = scalar_lea.vmem %s0, %s337
        $region60: #{example_model_forward.1} parent=55 // pred_fallthru
          _
      $region56: #{example_model_forward.1} parent=5 // pred_fallthru
        _
      %p339 = scmp.le.s32.totalorder 1, %s20
      %p340 = scmp.lt.s32.totalorder %s20, 3
      %p341 = pnand %p339, %p340
      %p342 = pneg %p341
      // Predicated region
      $region61: #{example_model_forward.1} parent=5 // pred_check
        _
      $region62: #{example_model_forward.1} parent=5 // pred_check_branch
        %344 = sbr.rel (%p341) target = $region64
      $region63: #{example_model_forward.1} parent=5 // pred_region
        %s345 = ssub.s32 %s20, 1
        %p346 = scmp.lt.s32.totalorder %s25, 1
        %s347 = scalar_select %p346, %s25, 1
        %s348 = smul.addr %s347, 128
        %s349 = smul.addr %s348, 4
        %s350 = scalar_lea.vmem %s0, %s349
        %p351 = pneg %p46
        %p352 = pneg %p43
        %p353 = pneg %p67
        %p354 = pneg %p64
        %p355 = pneg %p88
        %p356 = pneg %p85
        %p357 = pneg %p109
        %p358 = pneg %p106
        %p359 = pneg %p130
        %p360 = pneg %p127
        %p361 = pneg %p151
        %p362 = pneg %p148
        %p363 = pneg %p172
        %p364 = pneg %p169
        %p365 = pneg %p193
        %p366 = pneg %p190
        %p367 = pneg %p214
        %p368 = pneg %p211
        %p369 = pneg %p235
        %p370 = pneg %p232
        %p371 = pneg %p256
        %p372 = pneg %p253
        %p373 = pneg %p282
        %p374 = pneg %p279
        %s375 = sand.u32 %s269, 1
        %s376 = scalar_lea.sflag [#allocation11], %s375
        %s377 = sand.u32 %s269, 1
        %s378 = scalar_lea.vmem [#allocation10], %s377
        %p379 = scmp.lt.s32.totalorder %s25, 1
        %s380 = scalar_select %p379, %s25, 1
        %s381 = smul.addr %s380, 128
        %s382 = smul.addr %s381, 4
        %s383 = scalar_lea.vmem %s0, %s382
        %v385 = vld [vmem:[%s383] sm:$0xf]
        %v386 = vld [vmem:[%s383 + $0x4] sm:$0xf]
        %v387 = vld [vmem:[%s383 + $0x8] sm:$0xf]
        %v388 = vld [vmem:[%s383 + $0xc] sm:$0xf]
        %v389 = vld [vmem:[%s383 + $0x10] sm:$0xf]
        %v390 = vld [vmem:[%s383 + $0x14] sm:$0xf]
        %v391 = vld [vmem:[%s383 + $0x18] sm:$0xf]
        %v392 = vld [vmem:[%s383 + $0x1c] sm:$0xf]
        %v393 = vld [vmem:[%s383 + $0x20] sm:$0xf]
        %v394 = vld [vmem:[%s383 + $0x24] sm:$0xf]
        %v395 = vld [vmem:[%s383 + $0x28] sm:$0xf]
        %v396 = vld [vmem:[%s383 + $0x2c] sm:$0xf]
        %v397 = vld [vmem:[%s383 + $0x30] sm:$0xf]
        %v398 = vld [vmem:[%s383 + $0x34] sm:$0xf]
        %v399 = vld [vmem:[%s383 + $0x38] sm:$0xf]
        %v400 = vld [vmem:[%s383 + $0x3c] sm:$0xf]
        %v401 = vld [vmem:[%s383 + $0x40] sm:$0xf]
        %v402 = vld [vmem:[%s383 + $0x44] sm:$0xf]
        %v403 = vld [vmem:[%s383 + $0x48] sm:$0xf]
        %v404 = vld [vmem:[%s383 + $0x4c] sm:$0xf]
        %v405 = vld [vmem:[%s383 + $0x50] sm:$0xf]
        %v406 = vld [vmem:[%s383 + $0x54] sm:$0xf]
        %v407 = vld [vmem:[%s383 + $0x58] sm:$0xf]
        %v408 = vld [vmem:[%s383 + $0x5c] sm:$0xf]
        %v409 = vld [vmem:[%s383 + $0x60] sm:$0xf]
        %v410 = vld [vmem:[%s383 + $0x64] sm:$0xf]
        %v411 = vld [vmem:[%s383 + $0x68] sm:$0xf]
        %v412 = vld [vmem:[%s383 + $0x6c] sm:$0xf]
        %v413 = vld [vmem:[%s383 + $0x70] sm:$0xf]
        %v414 = vld [vmem:[%s383 + $0x74] sm:$0xf]
        %v415 = vld [vmem:[%s383 + $0x78] sm:$0xf]
        %v416 = vld [vmem:[%s383 + $0x7c] sm:$0xf]
        %v417 = vld [vmem:[%s383 + $0x80] sm:$0xf]
        %v418 = vld [vmem:[%s383 + $0x84] sm:$0xf]
        %v419 = vld [vmem:[%s383 + $0x88] sm:$0xf]
        %v420 = vld [vmem:[%s383 + $0x8c] sm:$0xf]
        %v421 = vld [vmem:[%s383 + $0x90] sm:$0xf]
        %v422 = vld [vmem:[%s383 + $0x94] sm:$0xf]
        %v423 = vld [vmem:[%s383 + $0x98] sm:$0xf]
        %v424 = vld [vmem:[%s383 + $0x9c] sm:$0xf]
        %v425 = vld [vmem:[%s383 + $0xa0] sm:$0xf]
        %v426 = vld [vmem:[%s383 + $0xa4] sm:$0xf]
        %v427 = vld [vmem:[%s383 + $0xa8] sm:$0xf]
        %v428 = vld [vmem:[%s383 + $0xac] sm:$0xf]
        %v429 = vld [vmem:[%s383 + $0xb0] sm:$0xf]
        %v430 = vld [vmem:[%s383 + $0xb4] sm:$0xf]
        %v431 = vld [vmem:[%s383 + $0xb8] sm:$0xf]
        %v432 = vld [vmem:[%s383 + $0xbc] sm:$0xf]
        %v433 = vld [vmem:[%s383 + $0xc0] sm:$0xf]
        %v434 = vld [vmem:[%s383 + $0xc4] sm:$0xf]
        %v435 = vld [vmem:[%s383 + $0xc8] sm:$0xf]
        %v436 = vld [vmem:[%s383 + $0xcc] sm:$0xf]
        %v437 = vld [vmem:[%s383 + $0xd0] sm:$0xf]
        %v438 = vld [vmem:[%s383 + $0xd4] sm:$0xf]
        %v439 = vld [vmem:[%s383 + $0xd8] sm:$0xf]
        %v440 = vld [vmem:[%s383 + $0xdc] sm:$0xf]
        %v441 = vld [vmem:[%s383 + $0xe0] sm:$0xf]
        %v442 = vld [vmem:[%s383 + $0xe4] sm:$0xf]
        %v443 = vld [vmem:[%s383 + $0xe8] sm:$0xf]
        %v444 = vld [vmem:[%s383 + $0xec] sm:$0xf]
        %v445 = vld [vmem:[%s383 + $0xf0] sm:$0xf]
        %v446 = vld [vmem:[%s383 + $0xf4] sm:$0xf]
        %v447 = vld [vmem:[%s383 + $0xf8] sm:$0xf]
        %v448 = vld [vmem:[%s383 + $0xfc] sm:$0xf]
        %v449 = vld [vmem:[%s383 + $0x100] sm:$0xf]
        %v450 = vld [vmem:[%s383 + $0x104] sm:$0xf]
        %v451 = vld [vmem:[%s383 + $0x108] sm:$0xf]
        %v452 = vld [vmem:[%s383 + $0x10c] sm:$0xf]
        %v453 = vld [vmem:[%s383 + $0x110] sm:$0xf]
        %v454 = vld [vmem:[%s383 + $0x114] sm:$0xf]
        %v455 = vld [vmem:[%s383 + $0x118] sm:$0xf]
        %v456 = vld [vmem:[%s383 + $0x11c] sm:$0xf]
        %v457 = vld [vmem:[%s383 + $0x120] sm:$0xf]
        %v458 = vld [vmem:[%s383 + $0x124] sm:$0xf]
        %v459 = vld [vmem:[%s383 + $0x128] sm:$0xf]
        %v460 = vld [vmem:[%s383 + $0x12c] sm:$0xf]
        %v461 = vld [vmem:[%s383 + $0x130] sm:$0xf]
        %v462 = vld [vmem:[%s383 + $0x134] sm:$0xf]
        %v463 = vld [vmem:[%s383 + $0x138] sm:$0xf]
        %v464 = vld [vmem:[%s383 + $0x13c] sm:$0xf]
        %v465 = vld [vmem:[%s383 + $0x140] sm:$0xf]
        %v466 = vld [vmem:[%s383 + $0x144] sm:$0xf]
        %v467 = vld [vmem:[%s383 + $0x148] sm:$0xf]
        %v468 = vld [vmem:[%s383 + $0x14c] sm:$0xf]
        %v469 = vld [vmem:[%s383 + $0x150] sm:$0xf]
        %v470 = vld [vmem:[%s383 + $0x154] sm:$0xf]
        %v471 = vld [vmem:[%s383 + $0x158] sm:$0xf]
        %v472 = vld [vmem:[%s383 + $0x15c] sm:$0xf]
        %v473 = vld [vmem:[%s383 + $0x160] sm:$0xf]
        %v474 = vld [vmem:[%s383 + $0x164] sm:$0xf]
        %v475 = vld [vmem:[%s383 + $0x168] sm:$0xf]
        %v476 = vld [vmem:[%s383 + $0x16c] sm:$0xf]
        %v477 = vld [vmem:[%s383 + $0x170] sm:$0xf]
        %v478 = vld [vmem:[%s383 + $0x174] sm:$0xf]
        %v479 = vld [vmem:[%s383 + $0x178] sm:$0xf]
        %v480 = vld [vmem:[%s383 + $0x17c] sm:$0xf]
        %v481 = vld [vmem:[%s383 + $0x180] sm:$0xf]
        %v482 = vld [vmem:[%s383 + $0x184] sm:$0xf]
        %v483 = vld [vmem:[%s383 + $0x188] sm:$0xf]
        %v484 = vld [vmem:[%s383 + $0x18c] sm:$0xf]
        %v485 = vld [vmem:[%s383 + $0x190] sm:$0xf]
        %v486 = vld [vmem:[%s383 + $0x194] sm:$0xf]
        %v487 = vld [vmem:[%s383 + $0x198] sm:$0xf]
        %v488 = vld [vmem:[%s383 + $0x19c] sm:$0xf]
        %v489 = vld [vmem:[%s383 + $0x1a0] sm:$0xf]
        %v490 = vld [vmem:[%s383 + $0x1a4] sm:$0xf]
        %v491 = vld [vmem:[%s383 + $0x1a8] sm:$0xf]
        %v492 = vld [vmem:[%s383 + $0x1ac] sm:$0xf]
        %v493 = vld [vmem:[%s383 + $0x1b0] sm:$0xf]
        %v494 = vld [vmem:[%s383 + $0x1b4] sm:$0xf]
        %v495 = vld [vmem:[%s383 + $0x1b8] sm:$0xf]
        %v496 = vld [vmem:[%s383 + $0x1bc] sm:$0xf]
        %v497 = vld [vmem:[%s383 + $0x1c0] sm:$0xf]
        %v498 = vld [vmem:[%s383 + $0x1c4] sm:$0xf]
        %v499 = vld [vmem:[%s383 + $0x1c8] sm:$0xf]
        %v500 = vld [vmem:[%s383 + $0x1cc] sm:$0xf]
        %v501 = vld [vmem:[%s383 + $0x1d0] sm:$0xf]
        %v502 = vld [vmem:[%s383 + $0x1d4] sm:$0xf]
        %v503 = vld [vmem:[%s383 + $0x1d8] sm:$0xf]
        %v504 = vld [vmem:[%s383 + $0x1dc] sm:$0xf]
        %v505 = vld [vmem:[%s383 + $0x1e0] sm:$0xf]
        %v506 = vld [vmem:[%s383 + $0x1e4] sm:$0xf]
        %v507 = vld [vmem:[%s383 + $0x1e8] sm:$0xf]
        %v508 = vld [vmem:[%s383 + $0x1ec] sm:$0xf]
        %v509 = vld [vmem:[%s383 + $0x1f0] sm:$0xf]
        %v510 = vld [vmem:[%s383 + $0x1f4] sm:$0xf]
        %v511 = vld [vmem:[%s383 + $0x1f8] sm:$0xf]
        %v512 = vld [vmem:[%s383 + $0x1fc] sm:$0xf]
        %v513 = vld [vmem:[%s1] sm:$0xf]
        %v514 = vld [vmem:[%s1 + $0x4] sm:$0xf]
        %v515 = vld [vmem:[%s1 + $0x8] sm:$0xf]
        %v516 = vld [vmem:[%s1 + $0xc] sm:$0xf]
        %v517 = vld [vmem:[%s1 + $0x10] sm:$0xf]
        %v518 = vld [vmem:[%s1 + $0x14] sm:$0xf]
        %v519 = vld [vmem:[%s1 + $0x18] sm:$0xf]
        %v520 = vld [vmem:[%s1 + $0x1c] sm:$0xf]
        %v521 = vld [vmem:[%s1 + $0x20] sm:$0xf]
        %v522 = vld [vmem:[%s1 + $0x24] sm:$0xf]
        %v523 = vld [vmem:[%s1 + $0x28] sm:$0xf]
        %v524 = vld [vmem:[%s1 + $0x2c] sm:$0xf]
        %v525 = vld [vmem:[%s1 + $0x30] sm:$0xf]
        %v526 = vld [vmem:[%s1 + $0x34] sm:$0xf]
        %v527 = vld [vmem:[%s1 + $0x38] sm:$0xf]
        %v528 = vld [vmem:[%s1 + $0x3c] sm:$0xf]
        %v529 = vld [vmem:[%s2] sm:$0x1]
        %v531 = vlaneseq
        %v532 = vshrl.u32 %v531, 7
        %v533 = vsub.s32 0, %v532
        %v534 = vrot.slane %v529, %v533
        %v664 = vunpack.c.l.b16 %v385
        %v665 = vunpack.c.l.b16 %v386
        %v666 = vunpack.c.l.b16 %v387
        %v667 = vunpack.c.l.b16 %v388
        %v668 = vunpack.c.l.b16 %v389
        %v669 = vunpack.c.l.b16 %v390
        %v670 = vunpack.c.l.b16 %v391
        %v671 = vunpack.c.l.b16 %v392
        %v672 = vunpack.c.l.b16 %v393
        %v673 = vunpack.c.l.b16 %v394
        %v674 = vunpack.c.l.b16 %v395
        %v675 = vunpack.c.l.b16 %v396
        %v676 = vunpack.c.l.b16 %v397
        %v677 = vunpack.c.l.b16 %v398
        %v678 = vunpack.c.l.b16 %v399
        %v679 = vunpack.c.l.b16 %v400
        %v680 = vunpack.c.l.b16 %v401
        %v681 = vunpack.c.l.b16 %v402
        %v682 = vunpack.c.l.b16 %v403
        %v683 = vunpack.c.l.b16 %v404
        %v684 = vunpack.c.l.b16 %v405
        %v685 = vunpack.c.l.b16 %v406
        %v686 = vunpack.c.l.b16 %v407
        %v687 = vunpack.c.l.b16 %v408
        %v688 = vunpack.c.l.b16 %v409
        %v689 = vunpack.c.l.b16 %v410
        %v690 = vunpack.c.l.b16 %v411
        %v691 = vunpack.c.l.b16 %v412
        %v692 = vunpack.c.l.b16 %v413
        %v693 = vunpack.c.l.b16 %v414
        %v694 = vunpack.c.l.b16 %v415
        %v695 = vunpack.c.l.b16 %v416
        %v696 = vunpack.c.l.b16 %v417
        %v697 = vunpack.c.l.b16 %v418
        %v698 = vunpack.c.l.b16 %v419
        %v699 = vunpack.c.l.b16 %v420
        %v700 = vunpack.c.l.b16 %v421
        %v701 = vunpack.c.l.b16 %v422
        %v702 = vunpack.c.l.b16 %v423
        %v703 = vunpack.c.l.b16 %v424
        %v704 = vunpack.c.l.b16 %v425
        %v705 = vunpack.c.l.b16 %v426
        %v706 = vunpack.c.l.b16 %v427
        %v707 = vunpack.c.l.b16 %v428
        %v708 = vunpack.c.l.b16 %v429
        %v709 = vunpack.c.l.b16 %v430
        %v710 = vunpack.c.l.b16 %v431
        %v711 = vunpack.c.l.b16 %v432
        %v712 = vunpack.c.l.b16 %v433
        %v713 = vunpack.c.l.b16 %v434
        %v714 = vunpack.c.l.b16 %v435
        %v715 = vunpack.c.l.b16 %v436
        %v716 = vunpack.c.l.b16 %v437
        %v717 = vunpack.c.l.b16 %v438
        %v718 = vunpack.c.l.b16 %v439
        %v719 = vunpack.c.l.b16 %v440
        %v720 = vunpack.c.l.b16 %v441
        %v721 = vunpack.c.l.b16 %v442
        %v722 = vunpack.c.l.b16 %v443
        %v723 = vunpack.c.l.b16 %v444
        %v724 = vunpack.c.l.b16 %v445
        %v725 = vunpack.c.l.b16 %v446
        %v726 = vunpack.c.l.b16 %v447
        %v727 = vunpack.c.l.b16 %v448
        %v728 = vunpack.c.l.b16 %v449
        %v729 = vunpack.c.l.b16 %v450
        %v730 = vunpack.c.l.b16 %v451
        %v731 = vunpack.c.l.b16 %v452
        %v732 = vunpack.c.l.b16 %v453
        %v733 = vunpack.c.l.b16 %v454
        %v734 = vunpack.c.l.b16 %v455
        %v735 = vunpack.c.l.b16 %v456
        %v736 = vunpack.c.l.b16 %v457
        %v737 = vunpack.c.l.b16 %v458
        %v738 = vunpack.c.l.b16 %v459
        %v739 = vunpack.c.l.b16 %v460
        %v740 = vunpack.c.l.b16 %v461
        %v741 = vunpack.c.l.b16 %v462
        %v742 = vunpack.c.l.b16 %v463
        %v743 = vunpack.c.l.b16 %v464
        %v744 = vunpack.c.l.b16 %v465
        %v745 = vunpack.c.l.b16 %v466
        %v746 = vunpack.c.l.b16 %v467
        %v747 = vunpack.c.l.b16 %v468
        %v748 = vunpack.c.l.b16 %v469
        %v749 = vunpack.c.l.b16 %v470
        %v750 = vunpack.c.l.b16 %v471
        %v751 = vunpack.c.l.b16 %v472
        %v752 = vunpack.c.l.b16 %v473
        %v753 = vunpack.c.l.b16 %v474
        %v754 = vunpack.c.l.b16 %v475
        %v755 = vunpack.c.l.b16 %v476
        %v756 = vunpack.c.l.b16 %v477
        %v757 = vunpack.c.l.b16 %v478
        %v758 = vunpack.c.l.b16 %v479
        %v759 = vunpack.c.l.b16 %v480
        %v760 = vunpack.c.l.b16 %v481
        %v761 = vunpack.c.l.b16 %v482
        %v762 = vunpack.c.l.b16 %v483
        %v763 = vunpack.c.l.b16 %v484
        %v764 = vunpack.c.l.b16 %v485
        %v765 = vunpack.c.l.b16 %v486
        %v766 = vunpack.c.l.b16 %v487
        %v767 = vunpack.c.l.b16 %v488
        %v768 = vunpack.c.l.b16 %v489
        %v769 = vunpack.c.l.b16 %v490
        %v770 = vunpack.c.l.b16 %v491
        %v771 = vunpack.c.l.b16 %v492
        %v772 = vunpack.c.l.b16 %v493
        %v773 = vunpack.c.l.b16 %v494
        %v774 = vunpack.c.l.b16 %v495
        %v775 = vunpack.c.l.b16 %v496
        %v776 = vunpack.c.l.b16 %v497
        %v777 = vunpack.c.l.b16 %v498
        %v778 = vunpack.c.l.b16 %v499
        %v779 = vunpack.c.l.b16 %v500
        %v780 = vunpack.c.l.b16 %v501
        %v781 = vunpack.c.l.b16 %v502
        %v782 = vunpack.c.l.b16 %v503
        %v783 = vunpack.c.l.b16 %v504
        %v784 = vunpack.c.l.b16 %v505
        %v785 = vunpack.c.l.b16 %v506
        %v786 = vunpack.c.l.b16 %v507
        %v787 = vunpack.c.l.b16 %v508
        %v788 = vunpack.c.l.b16 %v509
        %v789 = vunpack.c.l.b16 %v510
        %v790 = vunpack.c.l.b16 %v511
        %v791 = vunpack.c.l.b16 %v512
        %v792 = vpack.c.b16 %v665, %v664
        %v793 = vpack.c.b16 %v667, %v666
        %v794 = vpack.c.b16 %v669, %v668
        %v795 = vpack.c.b16 %v671, %v670
        %v796 = vpack.c.b16 %v673, %v672
        %v797 = vpack.c.b16 %v675, %v674
        %v798 = vpack.c.b16 %v677, %v676
        %v799 = vpack.c.b16 %v679, %v678
        %v800 = vpack.c.b16 %v681, %v680
        %v801 = vpack.c.b16 %v683, %v682
        %v802 = vpack.c.b16 %v685, %v684
        %v803 = vpack.c.b16 %v687, %v686
        %v804 = vpack.c.b16 %v689, %v688
        %v805 = vpack.c.b16 %v691, %v690
        %v806 = vpack.c.b16 %v693, %v692
        %v807 = vpack.c.b16 %v695, %v694
        %v808 = vpack.c.b16 %v697, %v696
        %v809 = vpack.c.b16 %v699, %v698
        %v810 = vpack.c.b16 %v701, %v700
        %v811 = vpack.c.b16 %v703, %v702
        %v812 = vpack.c.b16 %v705, %v704
        %v813 = vpack.c.b16 %v707, %v706
        %v814 = vpack.c.b16 %v709, %v708
        %v815 = vpack.c.b16 %v711, %v710
        %v816 = vpack.c.b16 %v713, %v712
        %v817 = vpack.c.b16 %v715, %v714
        %v818 = vpack.c.b16 %v717, %v716
        %v819 = vpack.c.b16 %v719, %v718
        %v820 = vpack.c.b16 %v721, %v720
        %v821 = vpack.c.b16 %v723, %v722
        %v822 = vpack.c.b16 %v725, %v724
        %v823 = vpack.c.b16 %v727, %v726
        %v824 = vpack.c.b16 %v729, %v728
        %v825 = vpack.c.b16 %v731, %v730
        %v826 = vpack.c.b16 %v733, %v732
        %v827 = vpack.c.b16 %v735, %v734
        %v828 = vpack.c.b16 %v737, %v736
        %v829 = vpack.c.b16 %v739, %v738
        %v830 = vpack.c.b16 %v741, %v740
        %v831 = vpack.c.b16 %v743, %v742
        %v832 = vpack.c.b16 %v745, %v744
        %v833 = vpack.c.b16 %v747, %v746
        %v834 = vpack.c.b16 %v749, %v748
        %v835 = vpack.c.b16 %v751, %v750
        %v836 = vpack.c.b16 %v753, %v752
        %v837 = vpack.c.b16 %v755, %v754
        %v838 = vpack.c.b16 %v757, %v756
        %v839 = vpack.c.b16 %v759, %v758
        %v840 = vpack.c.b16 %v761, %v760
        %v841 = vpack.c.b16 %v763, %v762
        %v842 = vpack.c.b16 %v765, %v764
        %v843 = vpack.c.b16 %v767, %v766
        %v844 = vpack.c.b16 %v769, %v768
        %v845 = vpack.c.b16 %v771, %v770
        %v846 = vpack.c.b16 %v773, %v772
        %v847 = vpack.c.b16 %v775, %v774
        %v848 = vpack.c.b16 %v777, %v776
        %v849 = vpack.c.b16 %v779, %v778
        %v850 = vpack.c.b16 %v781, %v780
        %v851 = vpack.c.b16 %v783, %v782
        %v852 = vpack.c.b16 %v785, %v784
        %v853 = vpack.c.b16 %v787, %v786
        %v854 = vpack.c.b16 %v789, %v788
        %v855 = vpack.c.b16 %v791, %v790
        %v936 = vunpack.c.l.b16 %v513
        %v937 = vunpack.c.l.b16 %v514
        %v938 = vunpack.c.l.b16 %v515
        %v939 = vunpack.c.l.b16 %v516
        %v940 = vunpack.c.l.b16 %v517
        %v941 = vunpack.c.l.b16 %v518
        %v942 = vunpack.c.l.b16 %v519
        %v943 = vunpack.c.l.b16 %v520
        %v944 = vunpack.c.l.b16 %v521
        %v945 = vunpack.c.l.b16 %v522
        %v946 = vunpack.c.l.b16 %v523
        %v947 = vunpack.c.l.b16 %v524
        %v948 = vunpack.c.l.b16 %v525
        %v949 = vunpack.c.l.b16 %v526
        %v950 = vunpack.c.l.b16 %v527
        %v951 = vunpack.c.l.b16 %v528
        %v952 = vpack.c.b16 %v937, %v936
        %v953 = vpack.c.b16 %v939, %v938
        %v954 = vpack.c.b16 %v941, %v940
        %v955 = vpack.c.b16 %v943, %v942
        %v956 = vpack.c.b16 %v945, %v944
        %v957 = vpack.c.b16 %v947, %v946
        %v958 = vpack.c.b16 %v949, %v948
        %v959 = vpack.c.b16 %v951, %v950
        %968 = vmatprep.subr.bf16.mxu0 0
        %969 = vmatpush1.bf16.msra.mxu0 %v952
        %970 = vmatprep.subr.bf16.mxu0 0
        %971 = vmatpush1.bf16.msra.mxu0 %v953
        %972 = vmatprep.subr.bf16.mxu0 0
        %973 = vmatpush1.bf16.msra.mxu0 %v954
        %974 = vmatprep.subr.bf16.mxu0 0
        %975 = vmatpush1.bf16.msra.mxu0 %v955
        %976 = vmatprep.subr.bf16.mxu0 0
        %977 = vmatpush1.bf16.msra.mxu0 %v956
        %978 = vmatprep.subr.bf16.mxu0 0
        %979 = vmatpush1.bf16.msra.mxu0 %v957
        %980 = vmatprep.subr.bf16.mxu0 0
        %981 = vmatpush1.bf16.msra.mxu0 %v958
        %982 = vmatprep.subr.bf16.mxu0 0
        %983 = vmatpush1.bf16.msra.mxu0 %v959
        %984 = vmatprep.subr.bf16.mxu0 0
        %985 = vmatpush1.bf16.msra.mxu0 0
        %986 = vmatprep.subr.bf16.mxu0 0
        %987 = vmatpush1.bf16.msra.mxu0 0
        %988 = vmatprep.subr.bf16.mxu0 0
        %989 = vmatpush1.bf16.msra.mxu0 0
        %990 = vmatprep.subr.bf16.mxu0 0
        %991 = vmatpush1.bf16.msra.mxu0 0
        %992 = vmatprep.subr.bf16.mxu0 0
        %993 = vmatpush1.bf16.msra.mxu0 0
        %994 = vmatprep.subr.bf16.mxu0 0
        %995 = vmatpush1.bf16.msra.mxu0 0
        %996 = vmatprep.subr.bf16.mxu0 0
        %997 = vmatpush1.bf16.msra.mxu0 0
        %998 = vmatprep.subr.bf16.mxu0 0
        %999 = vmatpush1.bf16.msra.mxu0 0
        %1000 = vmatprep.mubr.bf16.mxu0 0
        %1001 = vmatmul.mubr.bf16.gmra.mrb[0].mxu0 %v792
        %v1002 = vpop.f32.mrb[0].mxu0
        %v1003 = vadd.f32 %v534, %v1002
        %v1004 = vpop.f32.mrb[0].mxu0
        %v1005 = vpop.f32.mrb[0].mxu0
        %v1006 = vadd.f32 %v534, %v1005
        %v1007 = vpop.f32.mrb[0].mxu0
        %1008 = vmatprep.mubr.bf16.mxu0 0
        %1009 = vmatmul.mubr.bf16.gmra.mrb[0].mxu0 %v793
        %v1010 = vpop.f32.mrb[0].mxu0
        %v1011 = vadd.f32 %v534, %v1010
        %v1012 = vpop.f32.mrb[0].mxu0
        %v1013 = vpop.f32.mrb[0].mxu0
        %v1014 = vadd.f32 %v534, %v1013
        %v1015 = vpop.f32.mrb[0].mxu0
        %1016 = vmatprep.mubr.bf16.mxu0 0
        %1017 = vmatmul.mubr.bf16.gmra.mrb[0].mxu0 %v794
        %v1018 = vpop.f32.mrb[0].mxu0
        %v1019 = vadd.f32 %v534, %v1018
        %v1020 = vpop.f32.mrb[0].mxu0
        %v1021 = vpop.f32.mrb[0].mxu0
        %v1022 = vadd.f32 %v534, %v1021
        %v1023 = vpop.f32.mrb[0].mxu0
        %1024 = vmatprep.mubr.bf16.mxu0 0
        %1025 = vmatmul.mubr.bf16.gmra.mrb[0].mxu0 %v795
        %v1026 = vpop.f32.mrb[0].mxu0
        %v1027 = vadd.f32 %v534, %v1026
        %v1028 = vpop.f32.mrb[0].mxu0
        %v1029 = vpop.f32.mrb[0].mxu0
        %v1030 = vadd.f32 %v534, %v1029
        %v1031 = vpop.f32.mrb[0].mxu0
        %1032 = vmatprep.mubr.bf16.mxu0 0
        %1033 = vmatmul.mubr.bf16.gmra.mrb[0].mxu0 %v796
        %v1034 = vpop.f32.mrb[0].mxu0
        %v1035 = vadd.f32 %v534, %v1034
        %v1036 = vpop.f32.mrb[0].mxu0
        %v1037 = vpop.f32.mrb[0].mxu0
        %v1038 = vadd.f32 %v534, %v1037
        %v1039 = vpop.f32.mrb[0].mxu0
        %1040 = vmatprep.mubr.bf16.mxu0 0
        %1041 = vmatmul.mubr.bf16.gmra.mrb[0].mxu0 %v797
        %v1042 = vpop.f32.mrb[0].mxu0
        %v1043 = vadd.f32 %v534, %v1042
        %v1044 = vpop.f32.mrb[0].mxu0
        %v1045 = vpop.f32.mrb[0].mxu0
        %v1046 = vadd.f32 %v534, %v1045
        %v1047 = vpop.f32.mrb[0].mxu0
        %1048 = vmatprep.mubr.bf16.mxu0 0
        %1049 = vmatmul.mubr.bf16.gmra.mrb[0].mxu0 %v798
        %v1050 = vpop.f32.mrb[0].mxu0
        %v1051 = vadd.f32 %v534, %v1050
        %v1052 = vpop.f32.mrb[0].mxu0
        %v1053 = vpop.f32.mrb[0].mxu0
        %v1054 = vadd.f32 %v534, %v1053
        %v1055 = vpop.f32.mrb[0].mxu0
        %1056 = vmatprep.mubr.bf16.mxu0 0
        %1057 = vmatmul.mubr.bf16.gmra.mrb[0].mxu0 %v799
        %v1058 = vpop.f32.mrb[0].mxu0
        %v1059 = vadd.f32 %v534, %v1058
        %v1060 = vpop.f32.mrb[0].mxu0
        %v1061 = vpop.f32.mrb[0].mxu0
        %v1062 = vadd.f32 %v534, %v1061
        %v1063 = vpop.f32.mrb[0].mxu0
        %1064 = vmatprep.mubr.bf16.mxu0 0
        %1065 = vmatmul.mubr.bf16.gmra.mrb[0].mxu0 %v800
        %v1066 = vpop.f32.mrb[0].mxu0
        %v1067 = vadd.f32 %v534, %v1066
        %v1068 = vpop.f32.mrb[0].mxu0
        %v1069 = vpop.f32.mrb[0].mxu0
        %v1070 = vadd.f32 %v534, %v1069
        %v1071 = vpop.f32.mrb[0].mxu0
        %1072 = vmatprep.mubr.bf16.mxu0 0
        %1073 = vmatmul.mubr.bf16.gmra.mrb[0].mxu0 %v801
        %v1074 = vpop.f32.mrb[0].mxu0
        %v1075 = vadd.f32 %v534, %v1074
        %v1076 = vpop.f32.mrb[0].mxu0
        %v1077 = vpop.f32.mrb[0].mxu0
        %v1078 = vadd.f32 %v534, %v1077
        %v1079 = vpop.f32.mrb[0].mxu0
        %1080 = vmatprep.mubr.bf16.mxu0 0
        %1081 = vmatmul.mubr.bf16.gmra.mrb[0].mxu0 %v802
        %v1082 = vpop.f32.mrb[0].mxu0
        %v1083 = vadd.f32 %v534, %v1082
        %v1084 = vpop.f32.mrb[0].mxu0
        %v1085 = vpop.f32.mrb[0].mxu0
        %v1086 = vadd.f32 %v534, %v1085
        %v1087 = vpop.f32.mrb[0].mxu0
        %1088 = vmatprep.mubr.bf16.mxu0 0
        %1089 = vmatmul.mubr.bf16.gmra.mrb[0].mxu0 %v803
        %v1090 = vpop.f32.mrb[0].mxu0
        %v1091 = vadd.f32 %v534, %v1090
        %v1092 = vpop.f32.mrb[0].mxu0
        %v1093 = vpop.f32.mrb[0].mxu0
        %v1094 = vadd.f32 %v534, %v1093
        %v1095 = vpop.f32.mrb[0].mxu0
        %1096 = vmatprep.mubr.bf16.mxu0 0
        %1097 = vmatmul.mubr.bf16.gmra.mrb[0].mxu0 %v804
        %v1098 = vpop.f32.mrb[0].mxu0
        %v1099 = vadd.f32 %v534, %v1098
        %v1100 = vpop.f32.mrb[0].mxu0
        %v1101 = vpop.f32.mrb[0].mxu0
        %v1102 = vadd.f32 %v534, %v1101
        %v1103 = vpop.f32.mrb[0].mxu0
        %1104 = vmatprep.mubr.bf16.mxu0 0
        %1105 = vmatmul.mubr.bf16.gmra.mrb[0].mxu0 %v805
        %v1106 = vpop.f32.mrb[0].mxu0
        %v1107 = vadd.f32 %v534, %v1106
        %v1108 = vpop.f32.mrb[0].mxu0
        %v1109 = vpop.f32.mrb[0].mxu0
        %v1110 = vadd.f32 %v534, %v1109
        %v1111 = vpop.f32.mrb[0].mxu0
        %1112 = vmatprep.mubr.bf16.mxu0 0
        %1113 = vmatmul.mubr.bf16.gmra.mrb[0].mxu0 %v806
        %v1114 = vpop.f32.mrb[0].mxu0
        %v1115 = vadd.f32 %v534, %v1114
        %v1116 = vpop.f32.mrb[0].mxu0
        %v1117 = vpop.f32.mrb[0].mxu0
        %v1118 = vadd.f32 %v534, %v1117
        %v1119 = vpop.f32.mrb[0].mxu0
        %1120 = vmatprep.mubr.bf16.mxu0 0
        %1121 = vmatmul.mubr.bf16.gmra.mrb[0].mxu0 %v807
        %v1122 = vpop.f32.mrb[0].mxu0
        %v1123 = vadd.f32 %v534, %v1122
        %v1124 = vpop.f32.mrb[0].mxu0
        %v1125 = vpop.f32.mrb[0].mxu0
        %v1126 = vadd.f32 %v534, %v1125
        %v1127 = vpop.f32.mrb[0].mxu0
        %1128 = vmatprep.mubr.bf16.mxu0 0
        %1129 = vmatmul.mubr.bf16.gmra.mrb[0].mxu0 %v808
        %v1130 = vpop.f32.mrb[0].mxu0
        %v1131 = vadd.f32 %v534, %v1130
        %v1132 = vpop.f32.mrb[0].mxu0
        %v1133 = vpop.f32.mrb[0].mxu0
        %v1134 = vadd.f32 %v534, %v1133
        %v1135 = vpop.f32.mrb[0].mxu0
        %1136 = vmatprep.mubr.bf16.mxu0 0
        %1137 = vmatmul.mubr.bf16.gmra.mrb[0].mxu0 %v809
        %v1138 = vpop.f32.mrb[0].mxu0
        %v1139 = vadd.f32 %v534, %v1138
        %v1140 = vpop.f32.mrb[0].mxu0
        %v1141 = vpop.f32.mrb[0].mxu0
        %v1142 = vadd.f32 %v534, %v1141
        %v1143 = vpop.f32.mrb[0].mxu0
        %1144 = vmatprep.mubr.bf16.mxu0 0
        %1145 = vmatmul.mubr.bf16.gmra.mrb[0].mxu0 %v810
        %v1146 = vpop.f32.mrb[0].mxu0
        %v1147 = vadd.f32 %v534, %v1146
        %v1148 = vpop.f32.mrb[0].mxu0
        %v1149 = vpop.f32.mrb[0].mxu0
        %v1150 = vadd.f32 %v534, %v1149
        %v1151 = vpop.f32.mrb[0].mxu0
        %1152 = vmatprep.mubr.bf16.mxu0 0
        %1153 = vmatmul.mubr.bf16.gmra.mrb[0].mxu0 %v811
        %v1154 = vpop.f32.mrb[0].mxu0
        %v1155 = vadd.f32 %v534, %v1154
        %v1156 = vpop.f32.mrb[0].mxu0
        %v1157 = vpop.f32.mrb[0].mxu0
        %v1158 = vadd.f32 %v534, %v1157
        %v1159 = vpop.f32.mrb[0].mxu0
        %1160 = vmatprep.mubr.bf16.mxu0 0
        %1161 = vmatmul.mubr.bf16.gmra.mrb[0].mxu0 %v812
        %v1162 = vpop.f32.mrb[0].mxu0
        %v1163 = vadd.f32 %v534, %v1162
        %v1164 = vpop.f32.mrb[0].mxu0
        %v1165 = vpop.f32.mrb[0].mxu0
        %v1166 = vadd.f32 %v534, %v1165
        %v1167 = vpop.f32.mrb[0].mxu0
        %1168 = vmatprep.mubr.bf16.mxu0 0
        %1169 = vmatmul.mubr.bf16.gmra.mrb[0].mxu0 %v813
        %v1170 = vpop.f32.mrb[0].mxu0
        %v1171 = vadd.f32 %v534, %v1170
        %v1172 = vpop.f32.mrb[0].mxu0
        %v1173 = vpop.f32.mrb[0].mxu0
        %v1174 = vadd.f32 %v534, %v1173
        %v1175 = vpop.f32.mrb[0].mxu0
        %1176 = vmatprep.mubr.bf16.mxu0 0
        %1177 = vmatmul.mubr.bf16.gmra.mrb[0].mxu0 %v814
        %v1178 = vpop.f32.mrb[0].mxu0
        %v1179 = vadd.f32 %v534, %v1178
        %v1180 = vpop.f32.mrb[0].mxu0
        %v1181 = vpop.f32.mrb[0].mxu0
        %v1182 = vadd.f32 %v534, %v1181
        %v1183 = vpop.f32.mrb[0].mxu0
        %1184 = vmatprep.mubr.bf16.mxu0 0
        %1185 = vmatmul.mubr.bf16.gmra.mrb[0].mxu0 %v815
        %v1186 = vpop.f32.mrb[0].mxu0
        %v1187 = vadd.f32 %v534, %v1186
        %v1188 = vpop.f32.mrb[0].mxu0
        %v1189 = vpop.f32.mrb[0].mxu0
        %v1190 = vadd.f32 %v534, %v1189
        %v1191 = vpop.f32.mrb[0].mxu0
        %1192 = vmatprep.mubr.bf16.mxu0 0
        %1193 = vmatmul.mubr.bf16.gmra.mrb[0].mxu0 %v816
        %v1194 = vpop.f32.mrb[0].mxu0
        %v1195 = vadd.f32 %v534, %v1194
        %v1196 = vpop.f32.mrb[0].mxu0
        %v1197 = vpop.f32.mrb[0].mxu0
        %v1198 = vadd.f32 %v534, %v1197
        %v1199 = vpop.f32.mrb[0].mxu0
        %1200 = vmatprep.mubr.bf16.mxu0 0
        %1201 = vmatmul.mubr.bf16.gmra.mrb[0].mxu0 %v817
        %v1202 = vpop.f32.mrb[0].mxu0
        %v1203 = vadd.f32 %v534, %v1202
        %v1204 = vpop.f32.mrb[0].mxu0
        %v1205 = vpop.f32.mrb[0].mxu0
        %v1206 = vadd.f32 %v534, %v1205
        %v1207 = vpop.f32.mrb[0].mxu0
        %1208 = vmatprep.mubr.bf16.mxu0 0
        %1209 = vmatmul.mubr.bf16.gmra.mrb[0].mxu0 %v818
        %v1210 = vpop.f32.mrb[0].mxu0
        %v1211 = vadd.f32 %v534, %v1210
        %v1212 = vpop.f32.mrb[0].mxu0
        %v1213 = vpop.f32.mrb[0].mxu0
        %v1214 = vadd.f32 %v534, %v1213
        %v1215 = vpop.f32.mrb[0].mxu0
        %1216 = vmatprep.mubr.bf16.mxu0 0
        %1217 = vmatmul.mubr.bf16.gmra.mrb[0].mxu0 %v819
        %v1218 = vpop.f32.mrb[0].mxu0
        %v1219 = vadd.f32 %v534, %v1218
        %v1220 = vpop.f32.mrb[0].mxu0
        %v1221 = vpop.f32.mrb[0].mxu0
        %v1222 = vadd.f32 %v534, %v1221
        %v1223 = vpop.f32.mrb[0].mxu0
        %1224 = vmatprep.mubr.bf16.mxu0 0
        %1225 = vmatmul.mubr.bf16.gmra.mrb[0].mxu0 %v820
        %v1226 = vpop.f32.mrb[0].mxu0
        %v1227 = vadd.f32 %v534, %v1226
        %v1228 = vpop.f32.mrb[0].mxu0
        %v1229 = vpop.f32.mrb[0].mxu0
        %v1230 = vadd.f32 %v534, %v1229
        %v1231 = vpop.f32.mrb[0].mxu0
        %1232 = vmatprep.mubr.bf16.mxu0 0
        %1233 = vmatmul.mubr.bf16.gmra.mrb[0].mxu0 %v821
        %v1234 = vpop.f32.mrb[0].mxu0
        %v1235 = vadd.f32 %v534, %v1234
        %v1236 = vpop.f32.mrb[0].mxu0
        %v1237 = vpop.f32.mrb[0].mxu0
        %v1238 = vadd.f32 %v534, %v1237
        %v1239 = vpop.f32.mrb[0].mxu0
        %1240 = vmatprep.mubr.bf16.mxu0 0
        %1241 = vmatmul.mubr.bf16.gmra.mrb[0].mxu0 %v822
        %v1242 = vpop.f32.mrb[0].mxu0
        %v1243 = vadd.f32 %v534, %v1242
        %v1244 = vpop.f32.mrb[0].mxu0
        %v1245 = vpop.f32.mrb[0].mxu0
        %v1246 = vadd.f32 %v534, %v1245
        %v1247 = vpop.f32.mrb[0].mxu0
        %1248 = vmatprep.mubr.bf16.mxu0 0
        %1249 = vmatmul.mubr.bf16.gmra.mrb[0].mxu0 %v823
        %v1250 = vpop.f32.mrb[0].mxu0
        %v1251 = vadd.f32 %v534, %v1250
        %v1252 = vpop.f32.mrb[0].mxu0
        %v1253 = vpop.f32.mrb[0].mxu0
        %v1254 = vadd.f32 %v534, %v1253
        %v1255 = vpop.f32.mrb[0].mxu0
        %1256 = vmatprep.mubr.bf16.mxu0 0
        %1257 = vmatmul.mubr.bf16.gmra.mrb[0].mxu0 %v824
        %v1258 = vpop.f32.mrb[0].mxu0
        %v1259 = vadd.f32 %v534, %v1258
        %v1260 = vpop.f32.mrb[0].mxu0
        %v1261 = vpop.f32.mrb[0].mxu0
        %v1262 = vadd.f32 %v534, %v1261
        %v1263 = vpop.f32.mrb[0].mxu0
        %1264 = vmatprep.mubr.bf16.mxu0 0
        %1265 = vmatmul.mubr.bf16.gmra.mrb[0].mxu0 %v825
        %v1266 = vpop.f32.mrb[0].mxu0
        %v1267 = vadd.f32 %v534, %v1266
        %v1268 = vpop.f32.mrb[0].mxu0
        %v1269 = vpop.f32.mrb[0].mxu0
        %v1270 = vadd.f32 %v534, %v1269
        %v1271 = vpop.f32.mrb[0].mxu0
        %1272 = vmatprep.mubr.bf16.mxu0 0
        %1273 = vmatmul.mubr.bf16.gmra.mrb[0].mxu0 %v826
        %v1274 = vpop.f32.mrb[0].mxu0
        %v1275 = vadd.f32 %v534, %v1274
        %v1276 = vpop.f32.mrb[0].mxu0
        %v1277 = vpop.f32.mrb[0].mxu0
        %v1278 = vadd.f32 %v534, %v1277
        %v1279 = vpop.f32.mrb[0].mxu0
        %1280 = vmatprep.mubr.bf16.mxu0 0
        %1281 = vmatmul.mubr.bf16.gmra.mrb[0].mxu0 %v827
        %v1282 = vpop.f32.mrb[0].mxu0
        %v1283 = vadd.f32 %v534, %v1282
        %v1284 = vpop.f32.mrb[0].mxu0
        %v1285 = vpop.f32.mrb[0].mxu0
        %v1286 = vadd.f32 %v534, %v1285
        %v1287 = vpop.f32.mrb[0].mxu0
        %1288 = vmatprep.mubr.bf16.mxu0 0
        %1289 = vmatmul.mubr.bf16.gmra.mrb[0].mxu0 %v828
        %v1290 = vpop.f32.mrb[0].mxu0
        %v1291 = vadd.f32 %v534, %v1290
        %v1292 = vpop.f32.mrb[0].mxu0
        %v1293 = vpop.f32.mrb[0].mxu0
        %v1294 = vadd.f32 %v534, %v1293
        %v1295 = vpop.f32.mrb[0].mxu0
        %1296 = vmatprep.mubr.bf16.mxu0 0
        %1297 = vmatmul.mubr.bf16.gmra.mrb[0].mxu0 %v829
        %v1298 = vpop.f32.mrb[0].mxu0
        %v1299 = vadd.f32 %v534, %v1298
        %v1300 = vpop.f32.mrb[0].mxu0
        %v1301 = vpop.f32.mrb[0].mxu0
        %v1302 = vadd.f32 %v534, %v1301
        %v1303 = vpop.f32.mrb[0].mxu0
        %1304 = vmatprep.mubr.bf16.mxu0 0
        %1305 = vmatmul.mubr.bf16.gmra.mrb[0].mxu0 %v830
        %v1306 = vpop.f32.mrb[0].mxu0
        %v1307 = vadd.f32 %v534, %v1306
        %v1308 = vpop.f32.mrb[0].mxu0
        %v1309 = vpop.f32.mrb[0].mxu0
        %v1310 = vadd.f32 %v534, %v1309
        %v1311 = vpop.f32.mrb[0].mxu0
        %1312 = vmatprep.mubr.bf16.mxu0 0
        %1313 = vmatmul.mubr.bf16.gmra.mrb[0].mxu0 %v831
        %v1314 = vpop.f32.mrb[0].mxu0
        %v1315 = vadd.f32 %v534, %v1314
        %v1316 = vpop.f32.mrb[0].mxu0
        %v1317 = vpop.f32.mrb[0].mxu0
        %v1318 = vadd.f32 %v534, %v1317
        %v1319 = vpop.f32.mrb[0].mxu0
        %1320 = vmatprep.mubr.bf16.mxu0 0
        %1321 = vmatmul.mubr.bf16.gmra.mrb[0].mxu0 %v832
        %v1322 = vpop.f32.mrb[0].mxu0
        %v1323 = vadd.f32 %v534, %v1322
        %v1324 = vpop.f32.mrb[0].mxu0
        %v1325 = vpop.f32.mrb[0].mxu0
        %v1326 = vadd.f32 %v534, %v1325
        %v1327 = vpop.f32.mrb[0].mxu0
        %1328 = vmatprep.mubr.bf16.mxu0 0
        %1329 = vmatmul.mubr.bf16.gmra.mrb[0].mxu0 %v833
        %v1330 = vpop.f32.mrb[0].mxu0
        %v1331 = vadd.f32 %v534, %v1330
        %v1332 = vpop.f32.mrb[0].mxu0
        %v1333 = vpop.f32.mrb[0].mxu0
        %v1334 = vadd.f32 %v534, %v1333
        %v1335 = vpop.f32.mrb[0].mxu0
        %1336 = vmatprep.mubr.bf16.mxu0 0
        %1337 = vmatmul.mubr.bf16.gmra.mrb[0].mxu0 %v834
        %v1338 = vpop.f32.mrb[0].mxu0
        %v1339 = vadd.f32 %v534, %v1338
        %v1340 = vpop.f32.mrb[0].mxu0
        %v1341 = vpop.f32.mrb[0].mxu0
        %v1342 = vadd.f32 %v534, %v1341
        %v1343 = vpop.f32.mrb[0].mxu0
        %1344 = vmatprep.mubr.bf16.mxu0 0
        %1345 = vmatmul.mubr.bf16.gmra.mrb[0].mxu0 %v835
        %v1346 = vpop.f32.mrb[0].mxu0
        %v1347 = vadd.f32 %v534, %v1346
        %v1348 = vpop.f32.mrb[0].mxu0
        %v1349 = vpop.f32.mrb[0].mxu0
        %v1350 = vadd.f32 %v534, %v1349
        %v1351 = vpop.f32.mrb[0].mxu0
        %1352 = vmatprep.mubr.bf16.mxu0 0
        %1353 = vmatmul.mubr.bf16.gmra.mrb[0].mxu0 %v836
        %v1354 = vpop.f32.mrb[0].mxu0
        %v1355 = vadd.f32 %v534, %v1354
        %v1356 = vpop.f32.mrb[0].mxu0
        %v1357 = vpop.f32.mrb[0].mxu0
        %v1358 = vadd.f32 %v534, %v1357
        %v1359 = vpop.f32.mrb[0].mxu0
        %1360 = vmatprep.mubr.bf16.mxu0 0
        %1361 = vmatmul.mubr.bf16.gmra.mrb[0].mxu0 %v837
        %v1362 = vpop.f32.mrb[0].mxu0
        %v1363 = vadd.f32 %v534, %v1362
        %v1364 = vpop.f32.mrb[0].mxu0
        %v1365 = vpop.f32.mrb[0].mxu0
        %v1366 = vadd.f32 %v534, %v1365
        %v1367 = vpop.f32.mrb[0].mxu0
        %1368 = vmatprep.mubr.bf16.mxu0 0
        %1369 = vmatmul.mubr.bf16.gmra.mrb[0].mxu0 %v838
        %v1370 = vpop.f32.mrb[0].mxu0
        %v1371 = vadd.f32 %v534, %v1370
        %v1372 = vpop.f32.mrb[0].mxu0
        %v1373 = vpop.f32.mrb[0].mxu0
        %v1374 = vadd.f32 %v534, %v1373
        %v1375 = vpop.f32.mrb[0].mxu0
        %1376 = vmatprep.mubr.bf16.mxu0 0
        %1377 = vmatmul.mubr.bf16.gmra.mrb[0].mxu0 %v839
        %v1378 = vpop.f32.mrb[0].mxu0
        %v1379 = vadd.f32 %v534, %v1378
        %v1380 = vpop.f32.mrb[0].mxu0
        %v1381 = vpop.f32.mrb[0].mxu0
        %v1382 = vadd.f32 %v534, %v1381
        %v1383 = vpop.f32.mrb[0].mxu0
        %1384 = vmatprep.mubr.bf16.mxu0 0
        %1385 = vmatmul.mubr.bf16.gmra.mrb[0].mxu0 %v840
        %v1386 = vpop.f32.mrb[0].mxu0
        %v1387 = vadd.f32 %v534, %v1386
        %v1388 = vpop.f32.mrb[0].mxu0
        %v1389 = vpop.f32.mrb[0].mxu0
        %v1390 = vadd.f32 %v534, %v1389
        %v1391 = vpop.f32.mrb[0].mxu0
        %1392 = vmatprep.mubr.bf16.mxu0 0
        %1393 = vmatmul.mubr.bf16.gmra.mrb[0].mxu0 %v841
        %v1394 = vpop.f32.mrb[0].mxu0
        %v1395 = vadd.f32 %v534, %v1394
        %v1396 = vpop.f32.mrb[0].mxu0
        %v1397 = vpop.f32.mrb[0].mxu0
        %v1398 = vadd.f32 %v534, %v1397
        %v1399 = vpop.f32.mrb[0].mxu0
        %1400 = vmatprep.mubr.bf16.mxu0 0
        %1401 = vmatmul.mubr.bf16.gmra.mrb[0].mxu0 %v842
        %v1402 = vpop.f32.mrb[0].mxu0
        %v1403 = vadd.f32 %v534, %v1402
        %v1404 = vpop.f32.mrb[0].mxu0
        %v1405 = vpop.f32.mrb[0].mxu0
        %v1406 = vadd.f32 %v534, %v1405
        %v1407 = vpop.f32.mrb[0].mxu0
        %1408 = vmatprep.mubr.bf16.mxu0 0
        %1409 = vmatmul.mubr.bf16.gmra.mrb[0].mxu0 %v843
        %v1410 = vpop.f32.mrb[0].mxu0
        %v1411 = vadd.f32 %v534, %v1410
        %v1412 = vpop.f32.mrb[0].mxu0
        %v1413 = vpop.f32.mrb[0].mxu0
        %v1414 = vadd.f32 %v534, %v1413
        %v1415 = vpop.f32.mrb[0].mxu0
        %1416 = vmatprep.mubr.bf16.mxu0 0
        %1417 = vmatmul.mubr.bf16.gmra.mrb[0].mxu0 %v844
        %v1418 = vpop.f32.mrb[0].mxu0
        %v1419 = vadd.f32 %v534, %v1418
        %v1420 = vpop.f32.mrb[0].mxu0
        %v1421 = vpop.f32.mrb[0].mxu0
        %v1422 = vadd.f32 %v534, %v1421
        %v1423 = vpop.f32.mrb[0].mxu0
        %1424 = vmatprep.mubr.bf16.mxu0 0
        %1425 = vmatmul.mubr.bf16.gmra.mrb[0].mxu0 %v845
        %v1426 = vpop.f32.mrb[0].mxu0
        %v1427 = vadd.f32 %v534, %v1426
        %v1428 = vpop.f32.mrb[0].mxu0
        %v1429 = vpop.f32.mrb[0].mxu0
        %v1430 = vadd.f32 %v534, %v1429
        %v1431 = vpop.f32.mrb[0].mxu0
        %1432 = vmatprep.mubr.bf16.mxu0 0
        %1433 = vmatmul.mubr.bf16.gmra.mrb[0].mxu0 %v846
        %v1434 = vpop.f32.mrb[0].mxu0
        %v1435 = vadd.f32 %v534, %v1434
        %v1436 = vpop.f32.mrb[0].mxu0
        %v1437 = vpop.f32.mrb[0].mxu0
        %v1438 = vadd.f32 %v534, %v1437
        %v1439 = vpop.f32.mrb[0].mxu0
        %1440 = vmatprep.mubr.bf16.mxu0 0
        %1441 = vmatmul.mubr.bf16.gmra.mrb[0].mxu0 %v847
        %v1442 = vpop.f32.mrb[0].mxu0
        %v1443 = vadd.f32 %v534, %v1442
        %v1444 = vpop.f32.mrb[0].mxu0
        %v1445 = vpop.f32.mrb[0].mxu0
        %v1446 = vadd.f32 %v534, %v1445
        %v1447 = vpop.f32.mrb[0].mxu0
        %1448 = vmatprep.mubr.bf16.mxu0 0
        %1449 = vmatmul.mubr.bf16.gmra.mrb[0].mxu0 %v848
        %v1450 = vpop.f32.mrb[0].mxu0
        %v1451 = vadd.f32 %v534, %v1450
        %v1452 = vpop.f32.mrb[0].mxu0
        %v1453 = vpop.f32.mrb[0].mxu0
        %v1454 = vadd.f32 %v534, %v1453
        %v1455 = vpop.f32.mrb[0].mxu0
        %1456 = vmatprep.mubr.bf16.mxu0 0
        %1457 = vmatmul.mubr.bf16.gmra.mrb[0].mxu0 %v849
        %v1458 = vpop.f32.mrb[0].mxu0
        %v1459 = vadd.f32 %v534, %v1458
        %v1460 = vpop.f32.mrb[0].mxu0
        %v1461 = vpop.f32.mrb[0].mxu0
        %v1462 = vadd.f32 %v534, %v1461
        %v1463 = vpop.f32.mrb[0].mxu0
        %1464 = vmatprep.mubr.bf16.mxu0 0
        %1465 = vmatmul.mubr.bf16.gmra.mrb[0].mxu0 %v850
        %v1466 = vpop.f32.mrb[0].mxu0
        %v1467 = vadd.f32 %v534, %v1466
        %v1468 = vpop.f32.mrb[0].mxu0
        %v1469 = vpop.f32.mrb[0].mxu0
        %v1470 = vadd.f32 %v534, %v1469
        %v1471 = vpop.f32.mrb[0].mxu0
        %1472 = vmatprep.mubr.bf16.mxu0 0
        %1473 = vmatmul.mubr.bf16.gmra.mrb[0].mxu0 %v851
        %v1474 = vpop.f32.mrb[0].mxu0
        %v1475 = vadd.f32 %v534, %v1474
        %v1476 = vpop.f32.mrb[0].mxu0
        %v1477 = vpop.f32.mrb[0].mxu0
        %v1478 = vadd.f32 %v534, %v1477
        %v1479 = vpop.f32.mrb[0].mxu0
        %1480 = vmatprep.mubr.bf16.mxu0 0
        %1481 = vmatmul.mubr.bf16.gmra.mrb[0].mxu0 %v852
        %v1482 = vpop.f32.mrb[0].mxu0
        %v1483 = vadd.f32 %v534, %v1482
        %v1484 = vpop.f32.mrb[0].mxu0
        %v1485 = vpop.f32.mrb[0].mxu0
        %v1486 = vadd.f32 %v534, %v1485
        %v1487 = vpop.f32.mrb[0].mxu0
        %1488 = vmatprep.mubr.bf16.mxu0 0
        %1489 = vmatmul.mubr.bf16.gmra.mrb[0].mxu0 %v853
        %v1490 = vpop.f32.mrb[0].mxu0
        %v1491 = vadd.f32 %v534, %v1490
        %v1492 = vpop.f32.mrb[0].mxu0
        %v1493 = vpop.f32.mrb[0].mxu0
        %v1494 = vadd.f32 %v534, %v1493
        %v1495 = vpop.f32.mrb[0].mxu0
        %1496 = vmatprep.mubr.bf16.mxu0 0
        %1497 = vmatmul.mubr.bf16.gmra.mrb[0].mxu0 %v854
        %v1498 = vpop.f32.mrb[0].mxu0
        %v1499 = vadd.f32 %v534, %v1498
        %v1500 = vpop.f32.mrb[0].mxu0
        %v1501 = vpop.f32.mrb[0].mxu0
        %v1502 = vadd.f32 %v534, %v1501
        %v1503 = vpop.f32.mrb[0].mxu0
        %1504 = vmatprep.mubr.bf16.mxu0 0
        %1505 = vmatmul.mubr.bf16.gmra.mrb[0].mxu0 %v855
        %v1506 = vpop.f32.mrb[0].mxu0
        %v1507 = vadd.f32 %v534, %v1506
        %v1508 = vpop.f32.mrb[0].mxu0
        %v1509 = vpop.f32.mrb[0].mxu0
        %v1510 = vadd.f32 %v534, %v1509
        %v1511 = vpop.f32.mrb[0].mxu0
        %1512 = vdwg.mxu0
        %v1513 = vmax.f32 %v1003, 0.0
        %v1514 = vmax.f32 %v1006, 0.0
        %v1515 = vmax.f32 %v1011, 0.0
        %v1516 = vmax.f32 %v1014, 0.0
        %v1517 = vmax.f32 %v1019, 0.0
        %v1518 = vmax.f32 %v1022, 0.0
        %v1519 = vmax.f32 %v1027, 0.0
        %v1520 = vmax.f32 %v1030, 0.0
        %v1521 = vmax.f32 %v1035, 0.0
        %v1522 = vmax.f32 %v1038, 0.0
        %v1523 = vmax.f32 %v1043, 0.0
        %v1524 = vmax.f32 %v1046, 0.0
        %v1525 = vmax.f32 %v1051, 0.0
        %v1526 = vmax.f32 %v1054, 0.0
        %v1527 = vmax.f32 %v1059, 0.0
        %v1528 = vmax.f32 %v1062, 0.0
        %v1529 = vmax.f32 %v1067, 0.0
        %v1530 = vmax.f32 %v1070, 0.0
        %v1531 = vmax.f32 %v1075, 0.0
        %v1532 = vmax.f32 %v1078, 0.0
        %v1533 = vmax.f32 %v1083, 0.0
        %v1534 = vmax.f32 %v1086, 0.0
        %v1535 = vmax.f32 %v1091, 0.0
        %v1536 = vmax.f32 %v1094, 0.0
        %v1537 = vmax.f32 %v1099, 0.0
        %v1538 = vmax.f32 %v1102, 0.0
        %v1539 = vmax.f32 %v1107, 0.0
        %v1540 = vmax.f32 %v1110, 0.0
        %v1541 = vmax.f32 %v1115, 0.0
        %v1542 = vmax.f32 %v1118, 0.0
        %v1543 = vmax.f32 %v1123, 0.0
        %v1544 = vmax.f32 %v1126, 0.0
        %v1545 = vmax.f32 %v1131, 0.0
        %v1546 = vmax.f32 %v1134, 0.0
        %v1547 = vmax.f32 %v1139, 0.0
        %v1548 = vmax.f32 %v1142, 0.0
        %v1549 = vmax.f32 %v1147, 0.0
        %v1550 = vmax.f32 %v1150, 0.0
        %v1551 = vmax.f32 %v1155, 0.0
        %v1552 = vmax.f32 %v1158, 0.0
        %v1553 = vmax.f32 %v1163, 0.0
        %v1554 = vmax.f32 %v1166, 0.0
        %v1555 = vmax.f32 %v1171, 0.0
        %v1556 = vmax.f32 %v1174, 0.0
        %v1557 = vmax.f32 %v1179, 0.0
        %v1558 = vmax.f32 %v1182, 0.0
        %v1559 = vmax.f32 %v1187, 0.0
        %v1560 = vmax.f32 %v1190, 0.0
        %v1561 = vmax.f32 %v1195, 0.0
        %v1562 = vmax.f32 %v1198, 0.0
        %v1563 = vmax.f32 %v1203, 0.0
        %v1564 = vmax.f32 %v1206, 0.0
        %v1565 = vmax.f32 %v1211, 0.0
        %v1566 = vmax.f32 %v1214, 0.0
        %v1567 = vmax.f32 %v1219, 0.0
        %v1568 = vmax.f32 %v1222, 0.0
        %v1569 = vmax.f32 %v1227, 0.0
        %v1570 = vmax.f32 %v1230, 0.0
        %v1571 = vmax.f32 %v1235, 0.0
        %v1572 = vmax.f32 %v1238, 0.0
        %v1573 = vmax.f32 %v1243, 0.0
        %v1574 = vmax.f32 %v1246, 0.0
        %v1575 = vmax.f32 %v1251, 0.0
        %v1576 = vmax.f32 %v1254, 0.0
        %v1577 = vmax.f32 %v1259, 0.0
        %v1578 = vmax.f32 %v1262, 0.0
        %v1579 = vmax.f32 %v1267, 0.0
        %v1580 = vmax.f32 %v1270, 0.0
        %v1581 = vmax.f32 %v1275, 0.0
        %v1582 = vmax.f32 %v1278, 0.0
        %v1583 = vmax.f32 %v1283, 0.0
        %v1584 = vmax.f32 %v1286, 0.0
        %v1585 = vmax.f32 %v1291, 0.0
        %v1586 = vmax.f32 %v1294, 0.0
        %v1587 = vmax.f32 %v1299, 0.0
        %v1588 = vmax.f32 %v1302, 0.0
        %v1589 = vmax.f32 %v1307, 0.0
        %v1590 = vmax.f32 %v1310, 0.0
        %v1591 = vmax.f32 %v1315, 0.0
        %v1592 = vmax.f32 %v1318, 0.0
        %v1593 = vmax.f32 %v1323, 0.0
        %v1594 = vmax.f32 %v1326, 0.0
        %v1595 = vmax.f32 %v1331, 0.0
        %v1596 = vmax.f32 %v1334, 0.0
        %v1597 = vmax.f32 %v1339, 0.0
        %v1598 = vmax.f32 %v1342, 0.0
        %v1599 = vmax.f32 %v1347, 0.0
        %v1600 = vmax.f32 %v1350, 0.0
        %v1601 = vmax.f32 %v1355, 0.0
        %v1602 = vmax.f32 %v1358, 0.0
        %v1603 = vmax.f32 %v1363, 0.0
        %v1604 = vmax.f32 %v1366, 0.0
        %v1605 = vmax.f32 %v1371, 0.0
        %v1606 = vmax.f32 %v1374, 0.0
        %v1607 = vmax.f32 %v1379, 0.0
        %v1608 = vmax.f32 %v1382, 0.0
        %v1609 = vmax.f32 %v1387, 0.0
        %v1610 = vmax.f32 %v1390, 0.0
        %v1611 = vmax.f32 %v1395, 0.0
        %v1612 = vmax.f32 %v1398, 0.0
        %v1613 = vmax.f32 %v1403, 0.0
        %v1614 = vmax.f32 %v1406, 0.0
        %v1615 = vmax.f32 %v1411, 0.0
        %v1616 = vmax.f32 %v1414, 0.0
        %v1617 = vmax.f32 %v1419, 0.0
        %v1618 = vmax.f32 %v1422, 0.0
        %v1619 = vmax.f32 %v1427, 0.0
        %v1620 = vmax.f32 %v1430, 0.0
        %v1621 = vmax.f32 %v1435, 0.0
        %v1622 = vmax.f32 %v1438, 0.0
        %v1623 = vmax.f32 %v1443, 0.0
        %v1624 = vmax.f32 %v1446, 0.0
        %v1625 = vmax.f32 %v1451, 0.0
        %v1626 = vmax.f32 %v1454, 0.0
        %v1627 = vmax.f32 %v1459, 0.0
        %v1628 = vmax.f32 %v1462, 0.0
        %v1629 = vmax.f32 %v1467, 0.0
        %v1630 = vmax.f32 %v1470, 0.0
        %v1631 = vmax.f32 %v1475, 0.0
        %v1632 = vmax.f32 %v1478, 0.0
        %v1633 = vmax.f32 %v1483, 0.0
        %v1634 = vmax.f32 %v1486, 0.0
        %v1635 = vmax.f32 %v1491, 0.0
        %v1636 = vmax.f32 %v1494, 0.0
        %v1637 = vmax.f32 %v1499, 0.0
        %v1638 = vmax.f32 %v1502, 0.0
        %v1639 = vmax.f32 %v1507, 0.0
        %v1640 = vmax.f32 %v1510, 0.0
        %v1641 = vmax.f32 %v1513, %v1517
        %v1642 = vmax.f32 %v1514, %v1518
        %v1643 = vmax.f32 %v1515, %v1519
        %v1644 = vmax.f32 %v1516, %v1520
        %v1645 = vmax.f32 %v1521, %v1525
        %v1646 = vmax.f32 %v1522, %v1526
        %v1647 = vmax.f32 %v1523, %v1527
        %v1648 = vmax.f32 %v1524, %v1528
        %v1649 = vmax.f32 %v1529, %v1533
        %v1650 = vmax.f32 %v1530, %v1534
        %v1651 = vmax.f32 %v1531, %v1535
        %v1652 = vmax.f32 %v1532, %v1536
        %v1653 = vmax.f32 %v1537, %v1541
        %v1654 = vmax.f32 %v1538, %v1542
        %v1655 = vmax.f32 %v1539, %v1543
        %v1656 = vmax.f32 %v1540, %v1544
        %v1657 = vmax.f32 %v1545, %v1549
        %v1658 = vmax.f32 %v1546, %v1550
        %v1659 = vmax.f32 %v1547, %v1551
        %v1660 = vmax.f32 %v1548, %v1552
        %v1661 = vmax.f32 %v1553, %v1557
        %v1662 = vmax.f32 %v1554, %v1558
        %v1663 = vmax.f32 %v1555, %v1559
        %v1664 = vmax.f32 %v1556, %v1560
        %v1665 = vmax.f32 %v1561, %v1565
        %v1666 = vmax.f32 %v1562, %v1566
        %v1667 = vmax.f32 %v1563, %v1567
        %v1668 = vmax.f32 %v1564, %v1568
        %v1669 = vmax.f32 %v1569, %v1573
        %v1670 = vmax.f32 %v1570, %v1574
        %v1671 = vmax.f32 %v1571, %v1575
        %v1672 = vmax.f32 %v1572, %v1576
        %v1673 = vmax.f32 %v1577, %v1581
        %v1674 = vmax.f32 %v1578, %v1582
        %v1675 = vmax.f32 %v1579, %v1583
        %v1676 = vmax.f32 %v1580, %v1584
        %v1677 = vmax.f32 %v1585, %v1589
        %v1678 = vmax.f32 %v1586, %v1590
        %v1679 = vmax.f32 %v1587, %v1591
        %v1680 = vmax.f32 %v1588, %v1592
        %v1681 = vmax.f32 %v1593, %v1597
        %v1682 = vmax.f32 %v1594, %v1598
        %v1683 = vmax.f32 %v1595, %v1599
        %v1684 = vmax.f32 %v1596, %v1600
        %v1685 = vmax.f32 %v1601, %v1605
        %v1686 = vmax.f32 %v1602, %v1606
        %v1687 = vmax.f32 %v1603, %v1607
        %v1688 = vmax.f32 %v1604, %v1608
        %v1689 = vmax.f32 %v1609, %v1613
        %v1690 = vmax.f32 %v1610, %v1614
        %v1691 = vmax.f32 %v1611, %v1615
        %v1692 = vmax.f32 %v1612, %v1616
        %v1693 = vmax.f32 %v1617, %v1621
        %v1694 = vmax.f32 %v1618, %v1622
        %v1695 = vmax.f32 %v1619, %v1623
        %v1696 = vmax.f32 %v1620, %v1624
        %v1697 = vmax.f32 %v1625, %v1629
        %v1698 = vmax.f32 %v1626, %v1630
        %v1699 = vmax.f32 %v1627, %v1631
        %v1700 = vmax.f32 %v1628, %v1632
        %v1701 = vmax.f32 %v1633, %v1637
        %v1702 = vmax.f32 %v1634, %v1638
        %v1703 = vmax.f32 %v1635, %v1639
        %v1704 = vmax.f32 %v1636, %v1640
        %vm1705 = vcmask 261120
        %1706 = vst.msk [vmem:[#allocation2] sm:$0xff] %vm1705, %v1641
        %1707 = vst.msk [vmem:[#allocation2 + $0x8] sm:$0xff] %vm1705, %v1642
        %1708 = vst.msk [vmem:[#allocation2 + $0x10] sm:$0xff] %vm1705, %v1643
        %1709 = vst.msk [vmem:[#allocation2 + $0x18] sm:$0xff] %vm1705, %v1644
        %1710 = vst.msk [vmem:[#allocation2 + $0x20] sm:$0xff] %vm1705, %v1645
        %1711 = vst.msk [vmem:[#allocation2 + $0x28] sm:$0xff] %vm1705, %v1646
        %1712 = vst.msk [vmem:[#allocation2 + $0x30] sm:$0xff] %vm1705, %v1647
        %1713 = vst.msk [vmem:[#allocation2 + $0x38] sm:$0xff] %vm1705, %v1648
        %1714 = vst.msk [vmem:[#allocation2 + $0x40] sm:$0xff] %vm1705, %v1649
        %1715 = vst.msk [vmem:[#allocation2 + $0x48] sm:$0xff] %vm1705, %v1650
        %1716 = vst.msk [vmem:[#allocation2 + $0x50] sm:$0xff] %vm1705, %v1651
        %1717 = vst.msk [vmem:[#allocation2 + $0x58] sm:$0xff] %vm1705, %v1652
        %1718 = vst.msk [vmem:[#allocation2 + $0x60] sm:$0xff] %vm1705, %v1653
        %1719 = vst.msk [vmem:[#allocation2 + $0x68] sm:$0xff] %vm1705, %v1654
        %1720 = vst.msk [vmem:[#allocation2 + $0x70] sm:$0xff] %vm1705, %v1655
        %1721 = vst.msk [vmem:[#allocation2 + $0x78] sm:$0xff] %vm1705, %v1656
        %1722 = vst.msk [vmem:[#allocation2 + $0x80] sm:$0xff] %vm1705, %v1657
        %1723 = vst.msk [vmem:[#allocation2 + $0x88] sm:$0xff] %vm1705, %v1658
        %1724 = vst.msk [vmem:[#allocation2 + $0x90] sm:$0xff] %vm1705, %v1659
        %1725 = vst.msk [vmem:[#allocation2 + $0x98] sm:$0xff] %vm1705, %v1660
        %1726 = vst.msk [vmem:[#allocation2 + $0xa0] sm:$0xff] %vm1705, %v1661
        %1727 = vst.msk [vmem:[#allocation2 + $0xa8] sm:$0xff] %vm1705, %v1662
        %1728 = vst.msk [vmem:[#allocation2 + $0xb0] sm:$0xff] %vm1705, %v1663
        %1729 = vst.msk [vmem:[#allocation2 + $0xb8] sm:$0xff] %vm1705, %v1664
        %1730 = vst.msk [vmem:[#allocation2 + $0xc0] sm:$0xff] %vm1705, %v1665
        %1731 = vst.msk [vmem:[#allocation2 + $0xc8] sm:$0xff] %vm1705, %v1666
        %1732 = vst.msk [vmem:[#allocation2 + $0xd0] sm:$0xff] %vm1705, %v1667
        %1733 = vst.msk [vmem:[#allocation2 + $0xd8] sm:$0xff] %vm1705, %v1668
        %1734 = vst.msk [vmem:[#allocation2 + $0xe0] sm:$0xff] %vm1705, %v1669
        %1735 = vst.msk [vmem:[#allocation2 + $0xe8] sm:$0xff] %vm1705, %v1670
        %1736 = vst.msk [vmem:[#allocation2 + $0xf0] sm:$0xff] %vm1705, %v1671
        %1737 = vst.msk [vmem:[#allocation2 + $0xf8] sm:$0xff] %vm1705, %v1672
        %1738 = vst.msk [vmem:[#allocation2 + $0x100] sm:$0xff] %vm1705, %v1673
        %1739 = vst.msk [vmem:[#allocation2 + $0x108] sm:$0xff] %vm1705, %v1674
        %1740 = vst.msk [vmem:[#allocation2 + $0x110] sm:$0xff] %vm1705, %v1675
        %1741 = vst.msk [vmem:[#allocation2 + $0x118] sm:$0xff] %vm1705, %v1676
        %1742 = vst.msk [vmem:[#allocation2 + $0x120] sm:$0xff] %vm1705, %v1677
        %1743 = vst.msk [vmem:[#allocation2 + $0x128] sm:$0xff] %vm1705, %v1678
        %1744 = vst.msk [vmem:[#allocation2 + $0x130] sm:$0xff] %vm1705, %v1679
        %1745 = vst.msk [vmem:[#allocation2 + $0x138] sm:$0xff] %vm1705, %v1680
        %1746 = vst.msk [vmem:[#allocation2 + $0x140] sm:$0xff] %vm1705, %v1681
        %1747 = vst.msk [vmem:[#allocation2 + $0x148] sm:$0xff] %vm1705, %v1682
        %1748 = vst.msk [vmem:[#allocation2 + $0x150] sm:$0xff] %vm1705, %v1683
        %1749 = vst.msk [vmem:[#allocation2 + $0x158] sm:$0xff] %vm1705, %v1684
        %1750 = vst.msk [vmem:[#allocation2 + $0x160] sm:$0xff] %vm1705, %v1685
        %1751 = vst.msk [vmem:[#allocation2 + $0x168] sm:$0xff] %vm1705, %v1686
        %1752 = vst.msk [vmem:[#allocation2 + $0x170] sm:$0xff] %vm1705, %v1687
        %1753 = vst.msk [vmem:[#allocation2 + $0x178] sm:$0xff] %vm1705, %v1688
        %1754 = vst.msk [vmem:[#allocation2 + $0x180] sm:$0xff] %vm1705, %v1689
        %1755 = vst.msk [vmem:[#allocation2 + $0x188] sm:$0xff] %vm1705, %v1690
        %1756 = vst.msk [vmem:[#allocation2 + $0x190] sm:$0xff] %vm1705, %v1691
        %1757 = vst.msk [vmem:[#allocation2 + $0x198] sm:$0xff] %vm1705, %v1692
        %1758 = vst.msk [vmem:[#allocation2 + $0x1a0] sm:$0xff] %vm1705, %v1693
        %1759 = vst.msk [vmem:[#allocation2 + $0x1a8] sm:$0xff] %vm1705, %v1694
        %1760 = vst.msk [vmem:[#allocation2 + $0x1b0] sm:$0xff] %vm1705, %v1695
        %1761 = vst.msk [vmem:[#allocation2 + $0x1b8] sm:$0xff] %vm1705, %v1696
        %1762 = vst.msk [vmem:[#allocation2 + $0x1c0] sm:$0xff] %vm1705, %v1697
        %1763 = vst.msk [vmem:[#allocation2 + $0x1c8] sm:$0xff] %vm1705, %v1698
        %1764 = vst.msk [vmem:[#allocation2 + $0x1d0] sm:$0xff] %vm1705, %v1699
        %1765 = vst.msk [vmem:[#allocation2 + $0x1d8] sm:$0xff] %vm1705, %v1700
        %1766 = vst.msk [vmem:[#allocation2 + $0x1e0] sm:$0xff] %vm1705, %v1701
        %1767 = vst.msk [vmem:[#allocation2 + $0x1e8] sm:$0xff] %vm1705, %v1702
        %1768 = vst.msk [vmem:[#allocation2 + $0x1f0] sm:$0xff] %vm1705, %v1703
        %1769 = vst.msk [vmem:[#allocation2 + $0x1f8] sm:$0xff] %vm1705, %v1704
        %v1770 = vld [vmem:[#allocation2] ss:$2 sm:$0xff]
        %s1771 = scalar_lea.vmem [#allocation2], 16
        %v1772 = vld [vmem:[%s1771] ss:$2 sm:$0xff]
        %s1773 = scalar_lea.vmem [#allocation2], 32
        %v1774 = vld [vmem:[%s1773] ss:$2 sm:$0xff]
        %s1775 = scalar_lea.vmem [#allocation2], 48
        %v1776 = vld [vmem:[%s1775] ss:$2 sm:$0xff]
        %s1777 = scalar_lea.vmem [#allocation2], 64
        %v1778 = vld [vmem:[%s1777] ss:$2 sm:$0xff]
        %s1779 = scalar_lea.vmem [#allocation2], 80
        %v1780 = vld [vmem:[%s1779] ss:$2 sm:$0xff]
        %s1781 = scalar_lea.vmem [#allocation2], 96
        %v1782 = vld [vmem:[%s1781] ss:$2 sm:$0xff]
        %s1783 = scalar_lea.vmem [#allocation2], 112
        %v1784 = vld [vmem:[%s1783] ss:$2 sm:$0xff]
        %s1785 = scalar_lea.vmem [#allocation2], 128
        %v1786 = vld [vmem:[%s1785] ss:$2 sm:$0xff]
        %s1787 = scalar_lea.vmem [#allocation2], 144
        %v1788 = vld [vmem:[%s1787] ss:$2 sm:$0xff]
        %s1789 = scalar_lea.vmem [#allocation2], 160
        %v1790 = vld [vmem:[%s1789] ss:$2 sm:$0xff]
        %s1791 = scalar_lea.vmem [#allocation2], 176
        %v1792 = vld [vmem:[%s1791] ss:$2 sm:$0xff]
        %s1793 = scalar_lea.vmem [#allocation2], 192
        %v1794 = vld [vmem:[%s1793] ss:$2 sm:$0xff]
        %s1795 = scalar_lea.vmem [#allocation2], 208
        %v1796 = vld [vmem:[%s1795] ss:$2 sm:$0xff]
        %s1797 = scalar_lea.vmem [#allocation2], 224
        %v1798 = vld [vmem:[%s1797] ss:$2 sm:$0xff]
        %s1799 = scalar_lea.vmem [#allocation2], 240
        %v1800 = vld [vmem:[%s1799] ss:$2 sm:$0xff]
        %s1801 = scalar_lea.vmem [#allocation2], 256
        %v1802 = vld [vmem:[%s1801] ss:$2 sm:$0xff]
        %s1803 = scalar_lea.vmem [#allocation2], 272
        %v1804 = vld [vmem:[%s1803] ss:$2 sm:$0xff]
        %s1805 = scalar_lea.vmem [#allocation2], 288
        %v1806 = vld [vmem:[%s1805] ss:$2 sm:$0xff]
        %s1807 = scalar_lea.vmem [#allocation2], 304
        %v1808 = vld [vmem:[%s1807] ss:$2 sm:$0xff]
        %s1809 = scalar_lea.vmem [#allocation2], 320
        %v1810 = vld [vmem:[%s1809] ss:$2 sm:$0xff]
        %s1811 = scalar_lea.vmem [#allocation2], 336
        %v1812 = vld [vmem:[%s1811] ss:$2 sm:$0xff]
        %s1813 = scalar_lea.vmem [#allocation2], 352
        %v1814 = vld [vmem:[%s1813] ss:$2 sm:$0xff]
        %s1815 = scalar_lea.vmem [#allocation2], 368
        %v1816 = vld [vmem:[%s1815] ss:$2 sm:$0xff]
        %s1817 = scalar_lea.vmem [#allocation2], 384
        %v1818 = vld [vmem:[%s1817] ss:$2 sm:$0xff]
        %s1819 = scalar_lea.vmem [#allocation2], 400
        %v1820 = vld [vmem:[%s1819] ss:$2 sm:$0xff]
        %s1821 = scalar_lea.vmem [#allocation2], 416
        %v1822 = vld [vmem:[%s1821] ss:$2 sm:$0xff]
        %s1823 = scalar_lea.vmem [#allocation2], 432
        %v1824 = vld [vmem:[%s1823] ss:$2 sm:$0xff]
        %s1825 = scalar_lea.vmem [#allocation2], 448
        %v1826 = vld [vmem:[%s1825] ss:$2 sm:$0xff]
        %s1827 = scalar_lea.vmem [#allocation2], 464
        %v1828 = vld [vmem:[%s1827] ss:$2 sm:$0xff]
        %s1829 = scalar_lea.vmem [#allocation2], 480
        %v1830 = vld [vmem:[%s1829] ss:$2 sm:$0xff]
        %s1831 = scalar_lea.vmem [#allocation2], 496
        %v1832 = vld [vmem:[%s1831] ss:$2 sm:$0xff]
        %s1833 = scalar_lea.vmem [#allocation2], 1
        %v1834 = vld [vmem:[%s1833] ss:$2 sm:$0xff]
        %s1835 = scalar_lea.vmem [#allocation2], 17
        %v1836 = vld [vmem:[%s1835] ss:$2 sm:$0xff]
        %s1837 = scalar_lea.vmem [#allocation2], 33
        %v1838 = vld [vmem:[%s1837] ss:$2 sm:$0xff]
        %s1839 = scalar_lea.vmem [#allocation2], 49
        %v1840 = vld [vmem:[%s1839] ss:$2 sm:$0xff]
        %s1841 = scalar_lea.vmem [#allocation2], 65
        %v1842 = vld [vmem:[%s1841] ss:$2 sm:$0xff]
        %s1843 = scalar_lea.vmem [#allocation2], 81
        %v1844 = vld [vmem:[%s1843] ss:$2 sm:$0xff]
        %s1845 = scalar_lea.vmem [#allocation2], 97
        %v1846 = vld [vmem:[%s1845] ss:$2 sm:$0xff]
        %s1847 = scalar_lea.vmem [#allocation2], 113
        %v1848 = vld [vmem:[%s1847] ss:$2 sm:$0xff]
        %s1849 = scalar_lea.vmem [#allocation2], 129
        %v1850 = vld [vmem:[%s1849] ss:$2 sm:$0xff]
        %s1851 = scalar_lea.vmem [#allocation2], 145
        %v1852 = vld [vmem:[%s1851] ss:$2 sm:$0xff]
        %s1853 = scalar_lea.vmem [#allocation2], 161
        %v1854 = vld [vmem:[%s1853] ss:$2 sm:$0xff]
        %s1855 = scalar_lea.vmem [#allocation2], 177
        %v1856 = vld [vmem:[%s1855] ss:$2 sm:$0xff]
        %s1857 = scalar_lea.vmem [#allocation2], 193
        %v1858 = vld [vmem:[%s1857] ss:$2 sm:$0xff]
        %s1859 = scalar_lea.vmem [#allocation2], 209
        %v1860 = vld [vmem:[%s1859] ss:$2 sm:$0xff]
        %s1861 = scalar_lea.vmem [#allocation2], 225
        %v1862 = vld [vmem:[%s1861] ss:$2 sm:$0xff]
        %s1863 = scalar_lea.vmem [#allocation2], 241
        %v1864 = vld [vmem:[%s1863] ss:$2 sm:$0xff]
        %s1865 = scalar_lea.vmem [#allocation2], 257
        %v1866 = vld [vmem:[%s1865] ss:$2 sm:$0xff]
        %s1867 = scalar_lea.vmem [#allocation2], 273
        %v1868 = vld [vmem:[%s1867] ss:$2 sm:$0xff]
        %s1869 = scalar_lea.vmem [#allocation2], 289
        %v1870 = vld [vmem:[%s1869] ss:$2 sm:$0xff]
        %s1871 = scalar_lea.vmem [#allocation2], 305
        %v1872 = vld [vmem:[%s1871] ss:$2 sm:$0xff]
        %s1873 = scalar_lea.vmem [#allocation2], 321
        %v1874 = vld [vmem:[%s1873] ss:$2 sm:$0xff]
        %s1875 = scalar_lea.vmem [#allocation2], 337
        %v1876 = vld [vmem:[%s1875] ss:$2 sm:$0xff]
        %s1877 = scalar_lea.vmem [#allocation2], 353
        %v1878 = vld [vmem:[%s1877] ss:$2 sm:$0xff]
        %s1879 = scalar_lea.vmem [#allocation2], 369
        %v1880 = vld [vmem:[%s1879] ss:$2 sm:$0xff]
        %s1881 = scalar_lea.vmem [#allocation2], 385
        %v1882 = vld [vmem:[%s1881] ss:$2 sm:$0xff]
        %s1883 = scalar_lea.vmem [#allocation2], 401
        %v1884 = vld [vmem:[%s1883] ss:$2 sm:$0xff]
        %s1885 = scalar_lea.vmem [#allocation2], 417
        %v1886 = vld [vmem:[%s1885] ss:$2 sm:$0xff]
        %s1887 = scalar_lea.vmem [#allocation2], 433
        %v1888 = vld [vmem:[%s1887] ss:$2 sm:$0xff]
        %s1889 = scalar_lea.vmem [#allocation2], 449
        %v1890 = vld [vmem:[%s1889] ss:$2 sm:$0xff]
        %s1891 = scalar_lea.vmem [#allocation2], 465
        %v1892 = vld [vmem:[%s1891] ss:$2 sm:$0xff]
        %s1893 = scalar_lea.vmem [#allocation2], 481
        %v1894 = vld [vmem:[%s1893] ss:$2 sm:$0xff]
        %s1895 = scalar_lea.vmem [#allocation2], 497
        %v1896 = vld [vmem:[%s1895] ss:$2 sm:$0xff]
        %v1897 = vmax.f32 %v1770, %v1834
        %v1898 = vmax.f32 %v1772, %v1836
        %v1899 = vmax.f32 %v1774, %v1838
        %v1900 = vmax.f32 %v1776, %v1840
        %v1901 = vmax.f32 %v1778, %v1842
        %v1902 = vmax.f32 %v1780, %v1844
        %v1903 = vmax.f32 %v1782, %v1846
        %v1904 = vmax.f32 %v1784, %v1848
        %v1905 = vmax.f32 %v1786, %v1850
        %v1906 = vmax.f32 %v1788, %v1852
        %v1907 = vmax.f32 %v1790, %v1854
        %v1908 = vmax.f32 %v1792, %v1856
        %v1909 = vmax.f32 %v1794, %v1858
        %v1910 = vmax.f32 %v1796, %v1860
        %v1911 = vmax.f32 %v1798, %v1862
        %v1912 = vmax.f32 %v1800, %v1864
        %v1913 = vmax.f32 %v1802, %v1866
        %v1914 = vmax.f32 %v1804, %v1868
        %v1915 = vmax.f32 %v1806, %v1870
        %v1916 = vmax.f32 %v1808, %v1872
        %v1917 = vmax.f32 %v1810, %v1874
        %v1918 = vmax.f32 %v1812, %v1876
        %v1919 = vmax.f32 %v1814, %v1878
        %v1920 = vmax.f32 %v1816, %v1880
        %v1921 = vmax.f32 %v1818, %v1882
        %v1922 = vmax.f32 %v1820, %v1884
        %v1923 = vmax.f32 %v1822, %v1886
        %v1924 = vmax.f32 %v1824, %v1888
        %v1925 = vmax.f32 %v1826, %v1890
        %v1926 = vmax.f32 %v1828, %v1892
        %v1927 = vmax.f32 %v1830, %v1894
        %v1928 = vmax.f32 %v1832, %v1896
        %1929 = vst.msk [vmem:[#allocation3] sm:$0xff] %vm1705, 0.0
        %1930 = vst.msk [vmem:[#allocation3 + $0x8] sm:$0xff] %vm1705, 0.0
        %vm1931 = vcmask 257024
        %1932 = vst.msk [vmem:[#allocation3 + $0x10] sm:$0xf] %vm1931, 0.0
        %1933 = vst.msk [vmem:[#allocation3 + $0x18] sm:$0xff] %vm1705, 0.0
        %1934 = vst.msk [vmem:[#allocation3 + $0x20] sm:$0xff] %vm1705, 0.0
        %1935 = vst.msk [vmem:[#allocation3 + $0x28] sm:$0xf] %vm1931, 0.0
        %1936 = vst.msk [vmem:[#allocation3 + $0x30] sm:$0xff] %vm1705, 0.0
        %1937 = vst.msk [vmem:[#allocation3 + $0x38] sm:$0xff] %vm1705, 0.0
        %1938 = vst.msk [vmem:[#allocation3 + $0x40] sm:$0xf] %vm1931, 0.0
        %1939 = vst.msk [vmem:[#allocation3 + $0x48] sm:$0xff] %vm1705, 0.0
        %1940 = vst.msk [vmem:[#allocation3 + $0x50] sm:$0xff] %vm1705, 0.0
        %1941 = vst.msk [vmem:[#allocation3 + $0x58] sm:$0xf] %vm1931, 0.0
        %1942 = vst.msk [vmem:[#allocation3 + $0x60] sm:$0xff] %vm1705, 0.0
        %1943 = vst.msk [vmem:[#allocation3 + $0x68] sm:$0xff] %vm1705, 0.0
        %1944 = vst.msk [vmem:[#allocation3 + $0x70] sm:$0xf] %vm1931, 0.0
        %1945 = vst.msk [vmem:[#allocation3 + $0x78] sm:$0xff] %vm1705, 0.0
        %1946 = vst.msk [vmem:[#allocation3 + $0x80] sm:$0xff] %vm1705, 0.0
        %1947 = vst.msk [vmem:[#allocation3 + $0x88] sm:$0xf] %vm1931, 0.0
        %1948 = vst.msk [vmem:[#allocation3 + $0x90] sm:$0xff] %vm1705, 0.0
        %1949 = vst.msk [vmem:[#allocation3 + $0x98] sm:$0xff] %vm1705, 0.0
        %1950 = vst.msk [vmem:[#allocation3 + $0xa0] sm:$0xf] %vm1931, 0.0
        %1951 = vst.msk [vmem:[#allocation3 + $0xa8] sm:$0xff] %vm1705, 0.0
        %1952 = vst.msk [vmem:[#allocation3 + $0xb0] sm:$0xff] %vm1705, 0.0
        %1953 = vst.msk [vmem:[#allocation3 + $0xb8] sm:$0xf] %vm1931, 0.0
        %1954 = vst.msk [vmem:[#allocation3 + $0xc0] sm:$0xff] %vm1705, 0.0
        %1955 = vst.msk [vmem:[#allocation3 + $0xc8] sm:$0xff] %vm1705, 0.0
        %1956 = vst.msk [vmem:[#allocation3 + $0xd0] sm:$0xf] %vm1931, 0.0
        %1957 = vst.msk [vmem:[#allocation3 + $0xd8] sm:$0xff] %vm1705, 0.0
        %1958 = vst.msk [vmem:[#allocation3 + $0xe0] sm:$0xff] %vm1705, 0.0
        %1959 = vst.msk [vmem:[#allocation3 + $0xe8] sm:$0xf] %vm1931, 0.0
        %1960 = vst.msk [vmem:[#allocation3 + $0xf0] sm:$0xff] %vm1705, 0.0
        %1961 = vst.msk [vmem:[#allocation3 + $0xf8] sm:$0xff] %vm1705, 0.0
        %1962 = vst.msk [vmem:[#allocation3 + $0x100] sm:$0xf] %vm1931, 0.0
        %1963 = vst.msk [vmem:[#allocation3 + $0x108] sm:$0xff] %vm1705, 0.0
        %1964 = vst.msk [vmem:[#allocation3 + $0x110] sm:$0xff] %vm1705, 0.0
        %1965 = vst.msk [vmem:[#allocation3 + $0x118] sm:$0xf] %vm1931, 0.0
        %1966 = vst.msk [vmem:[#allocation3 + $0x120] sm:$0xff] %vm1705, 0.0
        %1967 = vst.msk [vmem:[#allocation3 + $0x128] sm:$0xff] %vm1705, 0.0
        %1968 = vst.msk [vmem:[#allocation3 + $0x130] sm:$0xf] %vm1931, 0.0
        %1969 = vst.msk [vmem:[#allocation3 + $0x138] sm:$0xff] %vm1705, 0.0
        %1970 = vst.msk [vmem:[#allocation3 + $0x140] sm:$0xff] %vm1705, 0.0
        %1971 = vst.msk [vmem:[#allocation3 + $0x148] sm:$0xf] %vm1931, 0.0
        %1972 = vst.msk [vmem:[#allocation3 + $0x150] sm:$0xff] %vm1705, 0.0
        %1973 = vst.msk [vmem:[#allocation3 + $0x158] sm:$0xff] %vm1705, 0.0
        %1974 = vst.msk [vmem:[#allocation3 + $0x160] sm:$0xf] %vm1931, 0.0
        %1975 = vst.msk [vmem:[#allocation3 + $0x168] sm:$0xff] %vm1705, 0.0
        %1976 = vst.msk [vmem:[#allocation3 + $0x170] sm:$0xff] %vm1705, 0.0
        %1977 = vst.msk [vmem:[#allocation3 + $0x178] sm:$0xf] %vm1931, 0.0
        %1978 = vst.msk [vmem:[#allocation3 + $0x180] sm:$0xff] %vm1705, 0.0
        %1979 = vst.msk [vmem:[#allocation3 + $0x188] sm:$0xff] %vm1705, 0.0
        %1980 = vst.msk [vmem:[#allocation3 + $0x190] sm:$0xf] %vm1931, 0.0
        %1981 = vst.msk [vmem:[#allocation3 + $0x198] sm:$0xff] %vm1705, 0.0
        %1982 = vst.msk [vmem:[#allocation3 + $0x1a0] sm:$0xff] %vm1705, 0.0
        %1983 = vst.msk [vmem:[#allocation3 + $0x1a8] sm:$0xf] %vm1931, 0.0
        %1984 = vst.msk [vmem:[#allocation3 + $0x1b0] sm:$0xff] %vm1705, 0.0
        %1985 = vst.msk [vmem:[#allocation3 + $0x1b8] sm:$0xff] %vm1705, 0.0
        %1986 = vst.msk [vmem:[#allocation3 + $0x1c0] sm:$0xf] %vm1931, 0.0
        %1987 = vst.msk [vmem:[#allocation3 + $0x1c8] sm:$0xff] %vm1705, 0.0
        %1988 = vst.msk [vmem:[#allocation3 + $0x1d0] sm:$0xff] %vm1705, 0.0
        %1989 = vst.msk [vmem:[#allocation3 + $0x1d8] sm:$0xf] %vm1931, 0.0
        %s1990 = scalar_lea.vmem [#allocation3], 48
        %1991 = vst.msk [vmem:[%s1990 + $0x2] sm:$0xff] %vm1705, %v1897
        %1992 = vst.msk [vmem:[%s1990 + $0xa] sm:$0xff] %vm1705, %v1898
        %1993 = vst.msk [vmem:[%s1990 + $0x1a] sm:$0xff] %vm1705, %v1899
        %1994 = vst.msk [vmem:[%s1990 + $0x22] sm:$0xff] %vm1705, %v1900
        %1995 = vst.msk [vmem:[%s1990 + $0x32] sm:$0xff] %vm1705, %v1901
        %1996 = vst.msk [vmem:[%s1990 + $0x3a] sm:$0xff] %vm1705, %v1902
        %1997 = vst.msk [vmem:[%s1990 + $0x4a] sm:$0xff] %vm1705, %v1903
        %1998 = vst.msk [vmem:[%s1990 + $0x52] sm:$0xff] %vm1705, %v1904
        %1999 = vst.msk [vmem:[%s1990 + $0x62] sm:$0xff] %vm1705, %v1905
        %2000 = vst.msk [vmem:[%s1990 + $0x6a] sm:$0xff] %vm1705, %v1906
        %2001 = vst.msk [vmem:[%s1990 + $0x7a] sm:$0xff] %vm1705, %v1907
        %2002 = vst.msk [vmem:[%s1990 + $0x82] sm:$0xff] %vm1705, %v1908
        %2003 = vst.msk [vmem:[%s1990 + $0x92] sm:$0xff] %vm1705, %v1909
        %2004 = vst.msk [vmem:[%s1990 + $0x9a] sm:$0xff] %vm1705, %v1910
        %2005 = vst.msk [vmem:[%s1990 + $0xaa] sm:$0xff] %vm1705, %v1911
        %2006 = vst.msk [vmem:[%s1990 + $0xb2] sm:$0xff] %vm1705, %v1912
        %2007 = vst.msk [vmem:[%s1990 + $0xc2] sm:$0xff] %vm1705, %v1913
        %2008 = vst.msk [vmem:[%s1990 + $0xca] sm:$0xff] %vm1705, %v1914
        %2009 = vst.msk [vmem:[%s1990 + $0xda] sm:$0xff] %vm1705, %v1915
        %2010 = vst.msk [vmem:[%s1990 + $0xe2] sm:$0xff] %vm1705, %v1916
        %2011 = vst.msk [vmem:[%s1990 + $0xf2] sm:$0xff] %vm1705, %v1917
        %2012 = vst.msk [vmem:[%s1990 + $0xfa] sm:$0xff] %vm1705, %v1918
        %2013 = vst.msk [vmem:[%s1990 + $0x10a] sm:$0xff] %vm1705, %v1919
        %2014 = vst.msk [vmem:[%s1990 + $0x112] sm:$0xff] %vm1705, %v1920
        %2015 = vst.msk [vmem:[%s1990 + $0x122] sm:$0xff] %vm1705, %v1921
        %2016 = vst.msk [vmem:[%s1990 + $0x12a] sm:$0xff] %vm1705, %v1922
        %2017 = vst.msk [vmem:[%s1990 + $0x13a] sm:$0xff] %vm1705, %v1923
        %2018 = vst.msk [vmem:[%s1990 + $0x142] sm:$0xff] %vm1705, %v1924
        %2019 = vst.msk [vmem:[%s1990 + $0x152] sm:$0xff] %vm1705, %v1925
        %2020 = vst.msk [vmem:[%s1990 + $0x15a] sm:$0xff] %vm1705, %v1926
        %2021 = vst.msk [vmem:[%s1990 + $0x16a] sm:$0xff] %vm1705, %v1927
        %2022 = vst.msk [vmem:[%s1990 + $0x172] sm:$0xff] %vm1705, %v1928
        %v2023 = vld [vmem:[#allocation3] sm:$0xff]
        %v2024 = vld [vmem:[#allocation3 + $0x8] sm:$0xff]
        %v2025 = vld [vmem:[#allocation3 + $0x18] sm:$0xff]
        %v2026 = vld [vmem:[#allocation3 + $0x20] sm:$0xff]
        %v2027 = vld [vmem:[#allocation3 + $0x30] sm:$0xff]
        %v2028 = vld [vmem:[#allocation3 + $0x38] sm:$0xff]
        %v2029 = vld [vmem:[#allocation3 + $0x48] sm:$0xff]
        %v2030 = vld [vmem:[#allocation3 + $0x50] sm:$0xff]
        %v2031 = vld [vmem:[#allocation3 + $0x60] sm:$0xff]
        %v2032 = vld [vmem:[#allocation3 + $0x68] sm:$0xff]
        %v2033 = vld [vmem:[#allocation3 + $0x78] sm:$0xff]
        %v2034 = vld [vmem:[#allocation3 + $0x80] sm:$0xff]
        %v2035 = vld [vmem:[#allocation3 + $0x90] sm:$0xff]
        %v2036 = vld [vmem:[#allocation3 + $0x98] sm:$0xff]
        %v2037 = vld [vmem:[#allocation3 + $0xa8] sm:$0xff]
        %v2038 = vld [vmem:[#allocation3 + $0xb0] sm:$0xff]
        %v2039 = vld [vmem:[#allocation3 + $0xc0] sm:$0xff]
        %v2040 = vld [vmem:[#allocation3 + $0xc8] sm:$0xff]
        %v2041 = vld [vmem:[#allocation3 + $0xd8] sm:$0xff]
        %v2042 = vld [vmem:[#allocation3 + $0xe0] sm:$0xff]
        %v2043 = vld [vmem:[#allocation3 + $0xf0] sm:$0xff]
        %v2044 = vld [vmem:[#allocation3 + $0xf8] sm:$0xff]
        %v2045 = vld [vmem:[#allocation3 + $0x108] sm:$0xff]
        %v2046 = vld [vmem:[#allocation3 + $0x110] sm:$0xff]
        %v2047 = vld [vmem:[#allocation3 + $0x120] sm:$0xff]
        %v2048 = vld [vmem:[#allocation3 + $0x128] sm:$0xff]
        %v2049 = vld [vmem:[#allocation3 + $0x138] sm:$0xff]
        %v2050 = vld [vmem:[#allocation3 + $0x140] sm:$0xff]
        %v2051 = vld [vmem:[#allocation3 + $0x150] sm:$0xff]
        %v2052 = vld [vmem:[#allocation3 + $0x158] sm:$0xff]
        %v2053 = vld [vmem:[#allocation3 + $0x168] sm:$0xff]
        %v2054 = vld [vmem:[#allocation3 + $0x170] sm:$0xff]
        %v2055 = vpack.c.bf16 %v2024, %v2023
        %v2056 = vpack.c.bf16 %v2026, %v2025
        %v2057 = vpack.c.bf16 %v2028, %v2027
        %v2058 = vpack.c.bf16 %v2030, %v2029
        %v2059 = vpack.c.bf16 %v2032, %v2031
        %v2060 = vpack.c.bf16 %v2034, %v2033
        %v2061 = vpack.c.bf16 %v2036, %v2035
        %v2062 = vpack.c.bf16 %v2038, %v2037
        %v2063 = vpack.c.bf16 %v2040, %v2039
        %v2064 = vpack.c.bf16 %v2042, %v2041
        %v2065 = vpack.c.bf16 %v2044, %v2043
        %v2066 = vpack.c.bf16 %v2046, %v2045
        %v2067 = vpack.c.bf16 %v2048, %v2047
        %v2068 = vpack.c.bf16 %v2050, %v2049
        %v2069 = vpack.c.bf16 %v2052, %v2051
        %v2070 = vpack.c.bf16 %v2054, %v2053
        %2071 = vst.msk [vmem:[#allocation4] sm:$0xff] %vm1705, %v2055
        %2072 = vst.msk [vmem:[#allocation4 + $0x38] sm:$0xff] %vm1705, %v2056
        %2073 = vst.msk [vmem:[#allocation4 + $0x70] sm:$0xff] %vm1705, %v2057
        %2074 = vst.msk [vmem:[#allocation4 + $0xa8] sm:$0xff] %vm1705, %v2058
        %2075 = vst.msk [vmem:[#allocation4 + $0xe0] sm:$0xff] %vm1705, %v2059
        %2076 = vst.msk [vmem:[#allocation4 + $0x118] sm:$0xff] %vm1705, %v2060
        %2077 = vst.msk [vmem:[#allocation4 + $0x150] sm:$0xff] %vm1705, %v2061
        %2078 = vst.msk [vmem:[#allocation4 + $0x188] sm:$0xff] %vm1705, %v2062
        %2079 = vst.msk [vmem:[#allocation4 + $0x1c0] sm:$0xff] %vm1705, %v2063
        %2080 = vst.msk [vmem:[#allocation4 + $0x1f8] sm:$0xff] %vm1705, %v2064
        %2081 = vst.msk [vmem:[#allocation4 + $0x230] sm:$0xff] %vm1705, %v2065
        %2082 = vst.msk [vmem:[#allocation4 + $0x268] sm:$0xff] %vm1705, %v2066
        %2083 = vst.msk [vmem:[#allocation4 + $0x2a0] sm:$0xff] %vm1705, %v2067
        %2084 = vst.msk [vmem:[#allocation4 + $0x2d8] sm:$0xff] %vm1705, %v2068
        %2085 = vst.msk [vmem:[#allocation4 + $0x310] sm:$0xff] %vm1705, %v2069
        %2086 = vst.msk [vmem:[#allocation4 + $0x348] sm:$0xff] %vm1705, %v2070
        %v2087 = vld [vmem:[#allocation3 + $0x1] sm:$0xff]
        %v2088 = vld [vmem:[#allocation3 + $0x9] sm:$0xff]
        %v2089 = vld [vmem:[#allocation3 + $0x19] sm:$0xff]
        %v2090 = vld [vmem:[#allocation3 + $0x21] sm:$0xff]
        %v2091 = vld [vmem:[#allocation3 + $0x31] sm:$0xff]
        %v2092 = vld [vmem:[#allocation3 + $0x39] sm:$0xff]
        %v2093 = vld [vmem:[#allocation3 + $0x49] sm:$0xff]
        %v2094 = vld [vmem:[#allocation3 + $0x51] sm:$0xff]
        %v2095 = vld [vmem:[#allocation3 + $0x61] sm:$0xff]
        %v2096 = vld [vmem:[#allocation3 + $0x69] sm:$0xff]
        %v2097 = vld [vmem:[#allocation3 + $0x79] sm:$0xff]
        %v2098 = vld [vmem:[#allocation3 + $0x81] sm:$0xff]
        %v2099 = vld [vmem:[#allocation3 + $0x91] sm:$0xff]
        %v2100 = vld [vmem:[#allocation3 + $0x99] sm:$0xff]
        %v2101 = vld [vmem:[#allocation3 + $0xa9] sm:$0xff]
        %v2102 = vld [vmem:[#allocation3 + $0xb1] sm:$0xff]
        %v2103 = vld [vmem:[#allocation3 + $0xc1] sm:$0xff]
        %v2104 = vld [vmem:[#allocation3 + $0xc9] sm:$0xff]
        %v2105 = vld [vmem:[#allocation3 + $0xd9] sm:$0xff]
        %v2106 = vld [vmem:[#allocation3 + $0xe1] sm:$0xff]
        %v2107 = vld [vmem:[#allocation3 + $0xf1] sm:$0xff]
        %v2108 = vld [vmem:[#allocation3 + $0xf9] sm:$0xff]
        %v2109 = vld [vmem:[#allocation3 + $0x109] sm:$0xff]
        %v2110 = vld [vmem:[#allocation3 + $0x111] sm:$0xff]
        %v2111 = vld [vmem:[#allocation3 + $0x121] sm:$0xff]
        %v2112 = vld [vmem:[#allocation3 + $0x129] sm:$0xff]
        %v2113 = vld [vmem:[#allocation3 + $0x139] sm:$0xff]
        %v2114 = vld [vmem:[#allocation3 + $0x141] sm:$0xff]
        %v2115 = vld [vmem:[#allocation3 + $0x151] sm:$0xff]
        %v2116 = vld [vmem:[#allocation3 + $0x159] sm:$0xff]
        %v2117 = vld [vmem:[#allocation3 + $0x169] sm:$0xff]
        %v2118 = vld [vmem:[#allocation3 + $0x171] sm:$0xff]
        %v2119 = vpack.c.bf16 %v2088, %v2087
        %v2120 = vpack.c.bf16 %v2090, %v2089
        %v2121 = vpack.c.bf16 %v2092, %v2091
        %v2122 = vpack.c.bf16 %v2094, %v2093
        %v2123 = vpack.c.bf16 %v2096, %v2095
        %v2124 = vpack.c.bf16 %v2098, %v2097
        %v2125 = vpack.c.bf16 %v2100, %v2099
        %v2126 = vpack.c.bf16 %v2102, %v2101
        %v2127 = vpack.c.bf16 %v2104, %v2103
        %v2128 = vpack.c.bf16 %v2106, %v2105
        %v2129 = vpack.c.bf16 %v2108, %v2107
        %v2130 = vpack.c.bf16 %v2110, %v2109
        %v2131 = vpack.c.bf16 %v2112, %v2111
        %v2132 = vpack.c.bf16 %v2114, %v2113
        %v2133 = vpack.c.bf16 %v2116, %v2115
        %v2134 = vpack.c.bf16 %v2118, %v2117
        %2151 = vrot.lane.b32.xlu0 %v2119, 32
        %v2152 = vpop.permute.xlu0 %2151
        %2153 = vrot.lane.b32.xlu0 %v2120, 32
        %v2154 = vpop.permute.xlu0 %2153
        %2155 = vrot.lane.b32.xlu0 %v2121, 32
        %v2156 = vpop.permute.xlu0 %2155
        %2157 = vrot.lane.b32.xlu0 %v2122, 32
        %v2158 = vpop.permute.xlu0 %2157
        %2159 = vrot.lane.b32.xlu0 %v2123, 32
        %v2160 = vpop.permute.xlu0 %2159
        %2161 = vrot.lane.b32.xlu0 %v2124, 32
        %v2162 = vpop.permute.xlu0 %2161
        %2163 = vrot.lane.b32.xlu0 %v2125, 32
        %v2164 = vpop.permute.xlu0 %2163
        %2165 = vrot.lane.b32.xlu0 %v2126, 32
        %v2166 = vpop.permute.xlu0 %2165
        %2167 = vrot.lane.b32.xlu0 %v2127, 32
        %v2168 = vpop.permute.xlu0 %2167
        %2169 = vrot.lane.b32.xlu0 %v2128, 32
        %v2170 = vpop.permute.xlu0 %2169
        %2171 = vrot.lane.b32.xlu0 %v2129, 32
        %v2172 = vpop.permute.xlu0 %2171
        %2173 = vrot.lane.b32.xlu0 %v2130, 32
        %v2174 = vpop.permute.xlu0 %2173
        %2175 = vrot.lane.b32.xlu0 %v2131, 32
        %v2176 = vpop.permute.xlu0 %2175
        %2177 = vrot.lane.b32.xlu0 %v2132, 32
        %v2178 = vpop.permute.xlu0 %2177
        %2179 = vrot.lane.b32.xlu0 %v2133, 32
        %v2180 = vpop.permute.xlu0 %2179
        %2181 = vrot.lane.b32.xlu0 %v2134, 32
        %v2182 = vpop.permute.xlu0 %2181
        %vm2199 = vcmask 523520
        %2200 = vst.msk [vmem:[#allocation4] sm:$0xff] %vm2199, %v2152
        %2201 = vst.msk [vmem:[#allocation4 + $0x38] sm:$0xff] %vm2199, %v2154
        %2202 = vst.msk [vmem:[#allocation4 + $0x70] sm:$0xff] %vm2199, %v2156
        %2203 = vst.msk [vmem:[#allocation4 + $0xa8] sm:$0xff] %vm2199, %v2158
        %2204 = vst.msk [vmem:[#allocation4 + $0xe0] sm:$0xff] %vm2199, %v2160
        %2205 = vst.msk [vmem:[#allocation4 + $0x118] sm:$0xff] %vm2199, %v2162
        %2206 = vst.msk [vmem:[#allocation4 + $0x150] sm:$0xff] %vm2199, %v2164
        %2207 = vst.msk [vmem:[#allocation4 + $0x188] sm:$0xff] %vm2199, %v2166
        %2208 = vst.msk [vmem:[#allocation4 + $0x1c0] sm:$0xff] %vm2199, %v2168
        %2209 = vst.msk [vmem:[#allocation4 + $0x1f8] sm:$0xff] %vm2199, %v2170
        %2210 = vst.msk [vmem:[#allocation4 + $0x230] sm:$0xff] %vm2199, %v2172
        %2211 = vst.msk [vmem:[#allocation4 + $0x268] sm:$0xff] %vm2199, %v2174
        %2212 = vst.msk [vmem:[#allocation4 + $0x2a0] sm:$0xff] %vm2199, %v2176
        %2213 = vst.msk [vmem:[#allocation4 + $0x2d8] sm:$0xff] %vm2199, %v2178
        %2214 = vst.msk [vmem:[#allocation4 + $0x310] sm:$0xff] %vm2199, %v2180
        %2215 = vst.msk [vmem:[#allocation4 + $0x348] sm:$0xff] %vm2199, %v2182
        %v2216 = vld [vmem:[#allocation3 + $0x2] sm:$0xff]
        %v2217 = vld [vmem:[#allocation3 + $0xa] sm:$0xff]
        %v2218 = vld [vmem:[#allocation3 + $0x1a] sm:$0xff]
        %v2219 = vld [vmem:[#allocation3 + $0x22] sm:$0xff]
        %v2220 = vld [vmem:[#allocation3 + $0x32] sm:$0xff]
        %v2221 = vld [vmem:[#allocation3 + $0x3a] sm:$0xff]
        %v2222 = vld [vmem:[#allocation3 + $0x4a] sm:$0xff]
        %v2223 = vld [vmem:[#allocation3 + $0x52] sm:$0xff]
        %v2224 = vld [vmem:[#allocation3 + $0x62] sm:$0xff]
        %v2225 = vld [vmem:[#allocation3 + $0x6a] sm:$0xff]
        %v2226 = vld [vmem:[#allocation3 + $0x7a] sm:$0xff]
        %v2227 = vld [vmem:[#allocation3 + $0x82] sm:$0xff]
        %v2228 = vld [vmem:[#allocation3 + $0x92] sm:$0xff]
        %v2229 = vld [vmem:[#allocation3 + $0x9a] sm:$0xff]
        %v2230 = vld [vmem:[#allocation3 + $0xaa] sm:$0xff]
        %v2231 = vld [vmem:[#allocation3 + $0xb2] sm:$0xff]
        %v2232 = vld [vmem:[#allocation3 + $0xc2] sm:$0xff]
        %v2233 = vld [vmem:[#allocation3 + $0xca] sm:$0xff]
        %v2234 = vld [vmem:[#allocation3 + $0xda] sm:$0xff]
        %v2235 = vld [vmem:[#allocation3 + $0xe2] sm:$0xff]
        %v2236 = vld [vmem:[#allocation3 + $0xf2] sm:$0xff]
        %v2237 = vld [vmem:[#allocation3 + $0xfa] sm:$0xff]
        %v2238 = vld [vmem:[#allocation3 + $0x10a] sm:$0xff]
        %v2239 = vld [vmem:[#allocation3 + $0x112] sm:$0xff]
        %v2240 = vld [vmem:[#allocation3 + $0x122] sm:$0xff]
        %v2241 = vld [vmem:[#allocation3 + $0x12a] sm:$0xff]
        %v2242 = vld [vmem:[#allocation3 + $0x13a] sm:$0xff]
        %v2243 = vld [vmem:[#allocation3 + $0x142] sm:$0xff]
        %v2244 = vld [vmem:[#allocation3 + $0x152] sm:$0xff]
        %v2245 = vld [vmem:[#allocation3 + $0x15a] sm:$0xff]
        %v2246 = vld [vmem:[#allocation3 + $0x16a] sm:$0xff]
        %v2247 = vld [vmem:[#allocation3 + $0x172] sm:$0xff]
        %v2248 = vpack.c.bf16 %v2217, %v2216
        %v2249 = vpack.c.bf16 %v2219, %v2218
        %v2250 = vpack.c.bf16 %v2221, %v2220
        %v2251 = vpack.c.bf16 %v2223, %v2222
        %v2252 = vpack.c.bf16 %v2225, %v2224
        %v2253 = vpack.c.bf16 %v2227, %v2226
        %v2254 = vpack.c.bf16 %v2229, %v2228
        %v2255 = vpack.c.bf16 %v2231, %v2230
        %v2256 = vpack.c.bf16 %v2233, %v2232
        %v2257 = vpack.c.bf16 %v2235, %v2234
        %v2258 = vpack.c.bf16 %v2237, %v2236
        %v2259 = vpack.c.bf16 %v2239, %v2238
        %v2260 = vpack.c.bf16 %v2241, %v2240
        %v2261 = vpack.c.bf16 %v2243, %v2242
        %v2262 = vpack.c.bf16 %v2245, %v2244
        %v2263 = vpack.c.bf16 %v2247, %v2246
        %2280 = vrot.lane.b32.xlu0 %v2248, 64
        %v2281 = vpop.permute.xlu0 %2280
        %2282 = vrot.lane.b32.xlu0 %v2249, 64
        %v2283 = vpop.permute.xlu0 %2282
        %2284 = vrot.lane.b32.xlu0 %v2250, 64
        %v2285 = vpop.permute.xlu0 %2284
        %2286 = vrot.lane.b32.xlu0 %v2251, 64
        %v2287 = vpop.permute.xlu0 %2286
        %2288 = vrot.lane.b32.xlu0 %v2252, 64
        %v2289 = vpop.permute.xlu0 %2288
        %2290 = vrot.lane.b32.xlu0 %v2253, 64
        %v2291 = vpop.permute.xlu0 %2290
        %2292 = vrot.lane.b32.xlu0 %v2254, 64
        %v2293 = vpop.permute.xlu0 %2292
        %2294 = vrot.lane.b32.xlu0 %v2255, 64
        %v2295 = vpop.permute.xlu0 %2294
        %2296 = vrot.lane.b32.xlu0 %v2256, 64
        %v2297 = vpop.permute.xlu0 %2296
        %2298 = vrot.lane.b32.xlu0 %v2257, 64
        %v2299 = vpop.permute.xlu0 %2298
        %2300 = vrot.lane.b32.xlu0 %v2258, 64
        %v2301 = vpop.permute.xlu0 %2300
        %2302 = vrot.lane.b32.xlu0 %v2259, 64
        %v2303 = vpop.permute.xlu0 %2302
        %2304 = vrot.lane.b32.xlu0 %v2260, 64
        %v2305 = vpop.permute.xlu0 %2304
        %2306 = vrot.lane.b32.xlu0 %v2261, 64
        %v2307 = vpop.permute.xlu0 %2306
        %2308 = vrot.lane.b32.xlu0 %v2262, 64
        %v2309 = vpop.permute.xlu0 %2308
        %2310 = vrot.lane.b32.xlu0 %v2263, 64
        %v2311 = vpop.permute.xlu0 %2310
        %vm2328 = vcmask 785920
        %2329 = vst.msk [vmem:[#allocation4] sm:$0xff] %vm2328, %v2281
        %2330 = vst.msk [vmem:[#allocation4 + $0x38] sm:$0xff] %vm2328, %v2283
        %2331 = vst.msk [vmem:[#allocation4 + $0x70] sm:$0xff] %vm2328, %v2285
        %2332 = vst.msk [vmem:[#allocation4 + $0xa8] sm:$0xff] %vm2328, %v2287
        %2333 = vst.msk [vmem:[#allocation4 + $0xe0] sm:$0xff] %vm2328, %v2289
        %2334 = vst.msk [vmem:[#allocation4 + $0x118] sm:$0xff] %vm2328, %v2291
        %2335 = vst.msk [vmem:[#allocation4 + $0x150] sm:$0xff] %vm2328, %v2293
        %2336 = vst.msk [vmem:[#allocation4 + $0x188] sm:$0xff] %vm2328, %v2295
        %2337 = vst.msk [vmem:[#allocation4 + $0x1c0] sm:$0xff] %vm2328, %v2297
        %2338 = vst.msk [vmem:[#allocation4 + $0x1f8] sm:$0xff] %vm2328, %v2299
        %2339 = vst.msk [vmem:[#allocation4 + $0x230] sm:$0xff] %vm2328, %v2301
        %2340 = vst.msk [vmem:[#allocation4 + $0x268] sm:$0xff] %vm2328, %v2303
        %2341 = vst.msk [vmem:[#allocation4 + $0x2a0] sm:$0xff] %vm2328, %v2305
        %2342 = vst.msk [vmem:[#allocation4 + $0x2d8] sm:$0xff] %vm2328, %v2307
        %2343 = vst.msk [vmem:[#allocation4 + $0x310] sm:$0xff] %vm2328, %v2309
        %2344 = vst.msk [vmem:[#allocation4 + $0x348] sm:$0xff] %vm2328, %v2311
        %v2345 = vld [vmem:[#allocation3 + $0x3] sm:$0xff]
        %v2346 = vld [vmem:[#allocation3 + $0xb] sm:$0xff]
        %v2347 = vld [vmem:[#allocation3 + $0x1b] sm:$0xff]
        %v2348 = vld [vmem:[#allocation3 + $0x23] sm:$0xff]
        %v2349 = vld [vmem:[#allocation3 + $0x33] sm:$0xff]
        %v2350 = vld [vmem:[#allocation3 + $0x3b] sm:$0xff]
        %v2351 = vld [vmem:[#allocation3 + $0x4b] sm:$0xff]
        %v2352 = vld [vmem:[#allocation3 + $0x53] sm:$0xff]
        %v2353 = vld [vmem:[#allocation3 + $0x63] sm:$0xff]
        %v2354 = vld [vmem:[#allocation3 + $0x6b] sm:$0xff]
        %v2355 = vld [vmem:[#allocation3 + $0x7b] sm:$0xff]
        %v2356 = vld [vmem:[#allocation3 + $0x83] sm:$0xff]
        %v2357 = vld [vmem:[#allocation3 + $0x93] sm:$0xff]
        %v2358 = vld [vmem:[#allocation3 + $0x9b] sm:$0xff]
        %v2359 = vld [vmem:[#allocation3 + $0xab] sm:$0xff]
        %v2360 = vld [vmem:[#allocation3 + $0xb3] sm:$0xff]
        %v2361 = vld [vmem:[#allocation3 + $0xc3] sm:$0xff]
        %v2362 = vld [vmem:[#allocation3 + $0xcb] sm:$0xff]
        %v2363 = vld [vmem:[#allocation3 + $0xdb] sm:$0xff]
        %v2364 = vld [vmem:[#allocation3 + $0xe3] sm:$0xff]
        %v2365 = vld [vmem:[#allocation3 + $0xf3] sm:$0xff]
        %v2366 = vld [vmem:[#allocation3 + $0xfb] sm:$0xff]
        %v2367 = vld [vmem:[#allocation3 + $0x10b] sm:$0xff]
        %v2368 = vld [vmem:[#allocation3 + $0x113] sm:$0xff]
        %v2369 = vld [vmem:[#allocation3 + $0x123] sm:$0xff]
        %v2370 = vld [vmem:[#allocation3 + $0x12b] sm:$0xff]
        %v2371 = vld [vmem:[#allocation3 + $0x13b] sm:$0xff]
        %v2372 = vld [vmem:[#allocation3 + $0x143] sm:$0xff]
        %v2373 = vld [vmem:[#allocation3 + $0x153] sm:$0xff]
        %v2374 = vld [vmem:[#allocation3 + $0x15b] sm:$0xff]
        %v2375 = vld [vmem:[#allocation3 + $0x16b] sm:$0xff]
        %v2376 = vld [vmem:[#allocation3 + $0x173] sm:$0xff]
        %v2377 = vpack.c.bf16 %v2346, %v2345
        %v2378 = vpack.c.bf16 %v2348, %v2347
        %v2379 = vpack.c.bf16 %v2350, %v2349
        %v2380 = vpack.c.bf16 %v2352, %v2351
        %v2381 = vpack.c.bf16 %v2354, %v2353
        %v2382 = vpack.c.bf16 %v2356, %v2355
        %v2383 = vpack.c.bf16 %v2358, %v2357
        %v2384 = vpack.c.bf16 %v2360, %v2359
        %v2385 = vpack.c.bf16 %v2362, %v2361
        %v2386 = vpack.c.bf16 %v2364, %v2363
        %v2387 = vpack.c.bf16 %v2366, %v2365
        %v2388 = vpack.c.bf16 %v2368, %v2367
        %v2389 = vpack.c.bf16 %v2370, %v2369
        %v2390 = vpack.c.bf16 %v2372, %v2371
        %v2391 = vpack.c.bf16 %v2374, %v2373
        %v2392 = vpack.c.bf16 %v2376, %v2375
        %2409 = vrot.lane.b32.xlu0 %v2377, 96
        %v2410 = vpop.permute.xlu0 %2409
        %2411 = vrot.lane.b32.xlu0 %v2378, 96
        %v2412 = vpop.permute.xlu0 %2411
        %2413 = vrot.lane.b32.xlu0 %v2379, 96
        %v2414 = vpop.permute.xlu0 %2413
        %2415 = vrot.lane.b32.xlu0 %v2380, 96
        %v2416 = vpop.permute.xlu0 %2415
        %2417 = vrot.lane.b32.xlu0 %v2381, 96
        %v2418 = vpop.permute.xlu0 %2417
        %2419 = vrot.lane.b32.xlu0 %v2382, 96
        %v2420 = vpop.permute.xlu0 %2419
        %2421 = vrot.lane.b32.xlu0 %v2383, 96
        %v2422 = vpop.permute.xlu0 %2421
        %2423 = vrot.lane.b32.xlu0 %v2384, 96
        %v2424 = vpop.permute.xlu0 %2423
        %2425 = vrot.lane.b32.xlu0 %v2385, 96
        %v2426 = vpop.permute.xlu0 %2425
        %2427 = vrot.lane.b32.xlu0 %v2386, 96
        %v2428 = vpop.permute.xlu0 %2427
        %2429 = vrot.lane.b32.xlu0 %v2387, 96
        %v2430 = vpop.permute.xlu0 %2429
        %2431 = vrot.lane.b32.xlu0 %v2388, 96
        %v2432 = vpop.permute.xlu0 %2431
        %2433 = vrot.lane.b32.xlu0 %v2389, 96
        %v2434 = vpop.permute.xlu0 %2433
        %2435 = vrot.lane.b32.xlu0 %v2390, 96
        %v2436 = vpop.permute.xlu0 %2435
        %2437 = vrot.lane.b32.xlu0 %v2391, 96
        %v2438 = vpop.permute.xlu0 %2437
        %2439 = vrot.lane.b32.xlu0 %v2392, 96
        %v2440 = vpop.permute.xlu0 %2439
        %vm2457 = vcmask 1048320
        %2458 = vst.msk [vmem:[#allocation4] sm:$0xff] %vm2457, %v2410
        %2459 = vst.msk [vmem:[#allocation4 + $0x38] sm:$0xff] %vm2457, %v2412
        %2460 = vst.msk [vmem:[#allocation4 + $0x70] sm:$0xff] %vm2457, %v2414
        %2461 = vst.msk [vmem:[#allocation4 + $0xa8] sm:$0xff] %vm2457, %v2416
        %2462 = vst.msk [vmem:[#allocation4 + $0xe0] sm:$0xff] %vm2457, %v2418
        %2463 = vst.msk [vmem:[#allocation4 + $0x118] sm:$0xff] %vm2457, %v2420
        %2464 = vst.msk [vmem:[#allocation4 + $0x150] sm:$0xff] %vm2457, %v2422
        %2465 = vst.msk [vmem:[#allocation4 + $0x188] sm:$0xff] %vm2457, %v2424
        %2466 = vst.msk [vmem:[#allocation4 + $0x1c0] sm:$0xff] %vm2457, %v2426
        %2467 = vst.msk [vmem:[#allocation4 + $0x1f8] sm:$0xff] %vm2457, %v2428
        %2468 = vst.msk [vmem:[#allocation4 + $0x230] sm:$0xff] %vm2457, %v2430
        %2469 = vst.msk [vmem:[#allocation4 + $0x268] sm:$0xff] %vm2457, %v2432
        %2470 = vst.msk [vmem:[#allocation4 + $0x2a0] sm:$0xff] %vm2457, %v2434
        %2471 = vst.msk [vmem:[#allocation4 + $0x2d8] sm:$0xff] %vm2457, %v2436
        %2472 = vst.msk [vmem:[#allocation4 + $0x310] sm:$0xff] %vm2457, %v2438
        %2473 = vst.msk [vmem:[#allocation4 + $0x348] sm:$0xff] %vm2457, %v2440
        %v2474 = vld [vmem:[#allocation3 + $0x4] sm:$0xff]
        %v2475 = vld [vmem:[#allocation3 + $0xc] sm:$0xff]
        %v2476 = vld [vmem:[#allocation3 + $0x1c] sm:$0xff]
        %v2477 = vld [vmem:[#allocation3 + $0x24] sm:$0xff]
        %v2478 = vld [vmem:[#allocation3 + $0x34] sm:$0xff]
        %v2479 = vld [vmem:[#allocation3 + $0x3c] sm:$0xff]
        %v2480 = vld [vmem:[#allocation3 + $0x4c] sm:$0xff]
        %v2481 = vld [vmem:[#allocation3 + $0x54] sm:$0xff]
        %v2482 = vld [vmem:[#allocation3 + $0x64] sm:$0xff]
        %v2483 = vld [vmem:[#allocation3 + $0x6c] sm:$0xff]
        %v2484 = vld [vmem:[#allocation3 + $0x7c] sm:$0xff]
        %v2485 = vld [vmem:[#allocation3 + $0x84] sm:$0xff]
        %v2486 = vld [vmem:[#allocation3 + $0x94] sm:$0xff]
        %v2487 = vld [vmem:[#allocation3 + $0x9c] sm:$0xff]
        %v2488 = vld [vmem:[#allocation3 + $0xac] sm:$0xff]
        %v2489 = vld [vmem:[#allocation3 + $0xb4] sm:$0xff]
        %v2490 = vld [vmem:[#allocation3 + $0xc4] sm:$0xff]
        %v2491 = vld [vmem:[#allocation3 + $0xcc] sm:$0xff]
        %v2492 = vld [vmem:[#allocation3 + $0xdc] sm:$0xff]
        %v2493 = vld [vmem:[#allocation3 + $0xe4] sm:$0xff]
        %v2494 = vld [vmem:[#allocation3 + $0xf4] sm:$0xff]
        %v2495 = vld [vmem:[#allocation3 + $0xfc] sm:$0xff]
        %v2496 = vld [vmem:[#allocation3 + $0x10c] sm:$0xff]
        %v2497 = vld [vmem:[#allocation3 + $0x114] sm:$0xff]
        %v2498 = vld [vmem:[#allocation3 + $0x124] sm:$0xff]
        %v2499 = vld [vmem:[#allocation3 + $0x12c] sm:$0xff]
        %v2500 = vld [vmem:[#allocation3 + $0x13c] sm:$0xff]
        %v2501 = vld [vmem:[#allocation3 + $0x144] sm:$0xff]
        %v2502 = vld [vmem:[#allocation3 + $0x154] sm:$0xff]
        %v2503 = vld [vmem:[#allocation3 + $0x15c] sm:$0xff]
        %v2504 = vld [vmem:[#allocation3 + $0x16c] sm:$0xff]
        %v2505 = vld [vmem:[#allocation3 + $0x174] sm:$0xff]
        %v2506 = vpack.c.bf16 %v2475, %v2474
        %v2507 = vpack.c.bf16 %v2477, %v2476
        %v2508 = vpack.c.bf16 %v2479, %v2478
        %v2509 = vpack.c.bf16 %v2481, %v2480
        %v2510 = vpack.c.bf16 %v2483, %v2482
        %v2511 = vpack.c.bf16 %v2485, %v2484
        %v2512 = vpack.c.bf16 %v2487, %v2486
        %v2513 = vpack.c.bf16 %v2489, %v2488
        %v2514 = vpack.c.bf16 %v2491, %v2490
        %v2515 = vpack.c.bf16 %v2493, %v2492
        %v2516 = vpack.c.bf16 %v2495, %v2494
        %v2517 = vpack.c.bf16 %v2497, %v2496
        %v2518 = vpack.c.bf16 %v2499, %v2498
        %v2519 = vpack.c.bf16 %v2501, %v2500
        %v2520 = vpack.c.bf16 %v2503, %v2502
        %v2521 = vpack.c.bf16 %v2505, %v2504
        %2522 = vst.msk [vmem:[#allocation4 + $0x8] sm:$0xff] %vm1705, %v2506
        %2523 = vst.msk [vmem:[#allocation4 + $0x40] sm:$0xff] %vm1705, %v2507
        %2524 = vst.msk [vmem:[#allocation4 + $0x78] sm:$0xff] %vm1705, %v2508
        %2525 = vst.msk [vmem:[#allocation4 + $0xb0] sm:$0xff] %vm1705, %v2509
        %2526 = vst.msk [vmem:[#allocation4 + $0xe8] sm:$0xff] %vm1705, %v2510
        %2527 = vst.msk [vmem:[#allocation4 + $0x120] sm:$0xff] %vm1705, %v2511
        %2528 = vst.msk [vmem:[#allocation4 + $0x158] sm:$0xff] %vm1705, %v2512
        %2529 = vst.msk [vmem:[#allocation4 + $0x190] sm:$0xff] %vm1705, %v2513
        %2530 = vst.msk [vmem:[#allocation4 + $0x1c8] sm:$0xff] %vm1705, %v2514
        %2531 = vst.msk [vmem:[#allocation4 + $0x200] sm:$0xff] %vm1705, %v2515
        %2532 = vst.msk [vmem:[#allocation4 + $0x238] sm:$0xff] %vm1705, %v2516
        %2533 = vst.msk [vmem:[#allocation4 + $0x270] sm:$0xff] %vm1705, %v2517
        %2534 = vst.msk [vmem:[#allocation4 + $0x2a8] sm:$0xff] %vm1705, %v2518
        %2535 = vst.msk [vmem:[#allocation4 + $0x2e0] sm:$0xff] %vm1705, %v2519
        %2536 = vst.msk [vmem:[#allocation4 + $0x318] sm:$0xff] %vm1705, %v2520
        %2537 = vst.msk [vmem:[#allocation4 + $0x350] sm:$0xff] %vm1705, %v2521
        %s2538 = scalar_lea.vmem [#allocation3], 24
        %v2539 = vld [vmem:[%s2538] sm:$0xff]
        %v2540 = vld [vmem:[%s2538 + $0x8] sm:$0xff]
        %v2541 = vld [vmem:[%s2538 + $0x18] sm:$0xff]
        %v2542 = vld [vmem:[%s2538 + $0x20] sm:$0xff]
        %v2543 = vld [vmem:[%s2538 + $0x30] sm:$0xff]
        %v2544 = vld [vmem:[%s2538 + $0x38] sm:$0xff]
        %v2545 = vld [vmem:[%s2538 + $0x48] sm:$0xff]
        %v2546 = vld [vmem:[%s2538 + $0x50] sm:$0xff]
        %v2547 = vld [vmem:[%s2538 + $0x60] sm:$0xff]
        %v2548 = vld [vmem:[%s2538 + $0x68] sm:$0xff]
        %v2549 = vld [vmem:[%s2538 + $0x78] sm:$0xff]
        %v2550 = vld [vmem:[%s2538 + $0x80] sm:$0xff]
        %v2551 = vld [vmem:[%s2538 + $0x90] sm:$0xff]
        %v2552 = vld [vmem:[%s2538 + $0x98] sm:$0xff]
        %v2553 = vld [vmem:[%s2538 + $0xa8] sm:$0xff]
        %v2554 = vld [vmem:[%s2538 + $0xb0] sm:$0xff]
        %v2555 = vld [vmem:[%s2538 + $0xc0] sm:$0xff]
        %v2556 = vld [vmem:[%s2538 + $0xc8] sm:$0xff]
        %v2557 = vld [vmem:[%s2538 + $0xd8] sm:$0xff]
        %v2558 = vld [vmem:[%s2538 + $0xe0] sm:$0xff]
        %v2559 = vld [vmem:[%s2538 + $0xf0] sm:$0xff]
        %v2560 = vld [vmem:[%s2538 + $0xf8] sm:$0xff]
        %v2561 = vld [vmem:[%s2538 + $0x108] sm:$0xff]
        %v2562 = vld [vmem:[%s2538 + $0x110] sm:$0xff]
        %v2563 = vld [vmem:[%s2538 + $0x120] sm:$0xff]
        %v2564 = vld [vmem:[%s2538 + $0x128] sm:$0xff]
        %v2565 = vld [vmem:[%s2538 + $0x138] sm:$0xff]
        %v2566 = vld [vmem:[%s2538 + $0x140] sm:$0xff]
        %v2567 = vld [vmem:[%s2538 + $0x150] sm:$0xff]
        %v2568 = vld [vmem:[%s2538 + $0x158] sm:$0xff]
        %v2569 = vld [vmem:[%s2538 + $0x168] sm:$0xff]
        %v2570 = vld [vmem:[%s2538 + $0x170] sm:$0xff]
        %v2571 = vpack.c.bf16 %v2540, %v2539
        %v2572 = vpack.c.bf16 %v2542, %v2541
        %v2573 = vpack.c.bf16 %v2544, %v2543
        %v2574 = vpack.c.bf16 %v2546, %v2545
        %v2575 = vpack.c.bf16 %v2548, %v2547
        %v2576 = vpack.c.bf16 %v2550, %v2549
        %v2577 = vpack.c.bf16 %v2552, %v2551
        %v2578 = vpack.c.bf16 %v2554, %v2553
        %v2579 = vpack.c.bf16 %v2556, %v2555
        %v2580 = vpack.c.bf16 %v2558, %v2557
        %v2581 = vpack.c.bf16 %v2560, %v2559
        %v2582 = vpack.c.bf16 %v2562, %v2561
        %v2583 = vpack.c.bf16 %v2564, %v2563
        %v2584 = vpack.c.bf16 %v2566, %v2565
        %v2585 = vpack.c.bf16 %v2568, %v2567
        %v2586 = vpack.c.bf16 %v2570, %v2569
        %2603 = vrot.lane.b32.xlu0 %v2571, 32
        %v2604 = vpop.permute.xlu0 %2603
        %2605 = vrot.lane.b32.xlu0 %v2572, 32
        %v2606 = vpop.permute.xlu0 %2605
        %2607 = vrot.lane.b32.xlu0 %v2573, 32
        %v2608 = vpop.permute.xlu0 %2607
        %2609 = vrot.lane.b32.xlu0 %v2574, 32
        %v2610 = vpop.permute.xlu0 %2609
        %2611 = vrot.lane.b32.xlu0 %v2575, 32
        %v2612 = vpop.permute.xlu0 %2611
        %2613 = vrot.lane.b32.xlu0 %v2576, 32
        %v2614 = vpop.permute.xlu0 %2613
        %2615 = vrot.lane.b32.xlu0 %v2577, 32
        %v2616 = vpop.permute.xlu0 %2615
        %2617 = vrot.lane.b32.xlu0 %v2578, 32
        %v2618 = vpop.permute.xlu0 %2617
        %2619 = vrot.lane.b32.xlu0 %v2579, 32
        %v2620 = vpop.permute.xlu0 %2619
        %2621 = vrot.lane.b32.xlu0 %v2580, 32
        %v2622 = vpop.permute.xlu0 %2621
        %2623 = vrot.lane.b32.xlu0 %v2581, 32
        %v2624 = vpop.permute.xlu0 %2623
        %2625 = vrot.lane.b32.xlu0 %v2582, 32
        %v2626 = vpop.permute.xlu0 %2625
        %2627 = vrot.lane.b32.xlu0 %v2583, 32
        %v2628 = vpop.permute.xlu0 %2627
        %2629 = vrot.lane.b32.xlu0 %v2584, 32
        %v2630 = vpop.permute.xlu0 %2629
        %2631 = vrot.lane.b32.xlu0 %v2585, 32
        %v2632 = vpop.permute.xlu0 %2631
        %2633 = vrot.lane.b32.xlu0 %v2586, 32
        %v2634 = vpop.permute.xlu0 %2633
        %2651 = vst.msk [vmem:[#allocation4 + $0x8] sm:$0xff] %vm2199, %v2604
        %2652 = vst.msk [vmem:[#allocation4 + $0x40] sm:$0xff] %vm2199, %v2606
        %2653 = vst.msk [vmem:[#allocation4 + $0x78] sm:$0xff] %vm2199, %v2608
        %2654 = vst.msk [vmem:[#allocation4 + $0xb0] sm:$0xff] %vm2199, %v2610
        %2655 = vst.msk [vmem:[#allocation4 + $0xe8] sm:$0xff] %vm2199, %v2612
        %2656 = vst.msk [vmem:[#allocation4 + $0x120] sm:$0xff] %vm2199, %v2614
        %2657 = vst.msk [vmem:[#allocation4 + $0x158] sm:$0xff] %vm2199, %v2616
        %2658 = vst.msk [vmem:[#allocation4 + $0x190] sm:$0xff] %vm2199, %v2618
        %2659 = vst.msk [vmem:[#allocation4 + $0x1c8] sm:$0xff] %vm2199, %v2620
        %2660 = vst.msk [vmem:[#allocation4 + $0x200] sm:$0xff] %vm2199, %v2622
        %2661 = vst.msk [vmem:[#allocation4 + $0x238] sm:$0xff] %vm2199, %v2624
        %2662 = vst.msk [vmem:[#allocation4 + $0x270] sm:$0xff] %vm2199, %v2626
        %2663 = vst.msk [vmem:[#allocation4 + $0x2a8] sm:$0xff] %vm2199, %v2628
        %2664 = vst.msk [vmem:[#allocation4 + $0x2e0] sm:$0xff] %vm2199, %v2630
        %2665 = vst.msk [vmem:[#allocation4 + $0x318] sm:$0xff] %vm2199, %v2632
        %2666 = vst.msk [vmem:[#allocation4 + $0x350] sm:$0xff] %vm2199, %v2634
        %v2667 = vld [vmem:[%s2538 + $0x1] sm:$0xff]
        %v2668 = vld [vmem:[%s2538 + $0x9] sm:$0xff]
        %v2669 = vld [vmem:[%s2538 + $0x19] sm:$0xff]
        %v2670 = vld [vmem:[%s2538 + $0x21] sm:$0xff]
        %v2671 = vld [vmem:[%s2538 + $0x31] sm:$0xff]
        %v2672 = vld [vmem:[%s2538 + $0x39] sm:$0xff]
        %v2673 = vld [vmem:[%s2538 + $0x49] sm:$0xff]
        %v2674 = vld [vmem:[%s2538 + $0x51] sm:$0xff]
        %v2675 = vld [vmem:[%s2538 + $0x61] sm:$0xff]
        %v2676 = vld [vmem:[%s2538 + $0x69] sm:$0xff]
        %v2677 = vld [vmem:[%s2538 + $0x79] sm:$0xff]
        %v2678 = vld [vmem:[%s2538 + $0x81] sm:$0xff]
        %v2679 = vld [vmem:[%s2538 + $0x91] sm:$0xff]
        %v2680 = vld [vmem:[%s2538 + $0x99] sm:$0xff]
        %v2681 = vld [vmem:[%s2538 + $0xa9] sm:$0xff]
        %v2682 = vld [vmem:[%s2538 + $0xb1] sm:$0xff]
        %v2683 = vld [vmem:[%s2538 + $0xc1] sm:$0xff]
        %v2684 = vld [vmem:[%s2538 + $0xc9] sm:$0xff]
        %v2685 = vld [vmem:[%s2538 + $0xd9] sm:$0xff]
        %v2686 = vld [vmem:[%s2538 + $0xe1] sm:$0xff]
        %v2687 = vld [vmem:[%s2538 + $0xf1] sm:$0xff]
        %v2688 = vld [vmem:[%s2538 + $0xf9] sm:$0xff]
        %v2689 = vld [vmem:[%s2538 + $0x109] sm:$0xff]
        %v2690 = vld [vmem:[%s2538 + $0x111] sm:$0xff]
        %v2691 = vld [vmem:[%s2538 + $0x121] sm:$0xff]
        %v2692 = vld [vmem:[%s2538 + $0x129] sm:$0xff]
        %v2693 = vld [vmem:[%s2538 + $0x139] sm:$0xff]
        %v2694 = vld [vmem:[%s2538 + $0x141] sm:$0xff]
        %v2695 = vld [vmem:[%s2538 + $0x151] sm:$0xff]
        %v2696 = vld [vmem:[%s2538 + $0x159] sm:$0xff]
        %v2697 = vld [vmem:[%s2538 + $0x169] sm:$0xff]
        %v2698 = vld [vmem:[%s2538 + $0x171] sm:$0xff]
        %v2699 = vpack.c.bf16 %v2668, %v2667
        %v2700 = vpack.c.bf16 %v2670, %v2669
        %v2701 = vpack.c.bf16 %v2672, %v2671
        %v2702 = vpack.c.bf16 %v2674, %v2673
        %v2703 = vpack.c.bf16 %v2676, %v2675
        %v2704 = vpack.c.bf16 %v2678, %v2677
        %v2705 = vpack.c.bf16 %v2680, %v2679
        %v2706 = vpack.c.bf16 %v2682, %v2681
        %v2707 = vpack.c.bf16 %v2684, %v2683
        %v2708 = vpack.c.bf16 %v2686, %v2685
        %v2709 = vpack.c.bf16 %v2688, %v2687
        %v2710 = vpack.c.bf16 %v2690, %v2689
        %v2711 = vpack.c.bf16 %v2692, %v2691
        %v2712 = vpack.c.bf16 %v2694, %v2693
        %v2713 = vpack.c.bf16 %v2696, %v2695
        %v2714 = vpack.c.bf16 %v2698, %v2697
        %2731 = vrot.lane.b32.xlu0 %v2699, 64
        %v2732 = vpop.permute.xlu0 %2731
        %2733 = vrot.lane.b32.xlu0 %v2700, 64
        %v2734 = vpop.permute.xlu0 %2733
        %2735 = vrot.lane.b32.xlu0 %v2701, 64
        %v2736 = vpop.permute.xlu0 %2735
        %2737 = vrot.lane.b32.xlu0 %v2702, 64
        %v2738 = vpop.permute.xlu0 %2737
        %2739 = vrot.lane.b32.xlu0 %v2703, 64
        %v2740 = vpop.permute.xlu0 %2739
        %2741 = vrot.lane.b32.xlu0 %v2704, 64
        %v2742 = vpop.permute.xlu0 %2741
        %2743 = vrot.lane.b32.xlu0 %v2705, 64
        %v2744 = vpop.permute.xlu0 %2743
        %2745 = vrot.lane.b32.xlu0 %v2706, 64
        %v2746 = vpop.permute.xlu0 %2745
        %2747 = vrot.lane.b32.xlu0 %v2707, 64
        %v2748 = vpop.permute.xlu0 %2747
        %2749 = vrot.lane.b32.xlu0 %v2708, 64
        %v2750 = vpop.permute.xlu0 %2749
        %2751 = vrot.lane.b32.xlu0 %v2709, 64
        %v2752 = vpop.permute.xlu0 %2751
        %2753 = vrot.lane.b32.xlu0 %v2710, 64
        %v2754 = vpop.permute.xlu0 %2753
        %2755 = vrot.lane.b32.xlu0 %v2711, 64
        %v2756 = vpop.permute.xlu0 %2755
        %2757 = vrot.lane.b32.xlu0 %v2712, 64
        %v2758 = vpop.permute.xlu0 %2757
        %2759 = vrot.lane.b32.xlu0 %v2713, 64
        %v2760 = vpop.permute.xlu0 %2759
        %2761 = vrot.lane.b32.xlu0 %v2714, 64
        %v2762 = vpop.permute.xlu0 %2761
        %2779 = vst.msk [vmem:[#allocation4 + $0x8] sm:$0xff] %vm2328, %v2732
        %2780 = vst.msk [vmem:[#allocation4 + $0x40] sm:$0xff] %vm2328, %v2734
        %2781 = vst.msk [vmem:[#allocation4 + $0x78] sm:$0xff] %vm2328, %v2736
        %2782 = vst.msk [vmem:[#allocation4 + $0xb0] sm:$0xff] %vm2328, %v2738
        %2783 = vst.msk [vmem:[#allocation4 + $0xe8] sm:$0xff] %vm2328, %v2740
        %2784 = vst.msk [vmem:[#allocation4 + $0x120] sm:$0xff] %vm2328, %v2742
        %2785 = vst.msk [vmem:[#allocation4 + $0x158] sm:$0xff] %vm2328, %v2744
        %2786 = vst.msk [vmem:[#allocation4 + $0x190] sm:$0xff] %vm2328, %v2746
        %2787 = vst.msk [vmem:[#allocation4 + $0x1c8] sm:$0xff] %vm2328, %v2748
        %2788 = vst.msk [vmem:[#allocation4 + $0x200] sm:$0xff] %vm2328, %v2750
        %2789 = vst.msk [vmem:[#allocation4 + $0x238] sm:$0xff] %vm2328, %v2752
        %2790 = vst.msk [vmem:[#allocation4 + $0x270] sm:$0xff] %vm2328, %v2754
        %2791 = vst.msk [vmem:[#allocation4 + $0x2a8] sm:$0xff] %vm2328, %v2756
        %2792 = vst.msk [vmem:[#allocation4 + $0x2e0] sm:$0xff] %vm2328, %v2758
        %2793 = vst.msk [vmem:[#allocation4 + $0x318] sm:$0xff] %vm2328, %v2760
        %2794 = vst.msk [vmem:[#allocation4 + $0x350] sm:$0xff] %vm2328, %v2762
        %v2795 = vld [vmem:[%s2538 + $0x2] sm:$0xff]
        %v2796 = vld [vmem:[%s2538 + $0xa] sm:$0xff]
        %v2797 = vld [vmem:[%s2538 + $0x1a] sm:$0xff]
        %v2798 = vld [vmem:[%s2538 + $0x22] sm:$0xff]
        %v2799 = vld [vmem:[%s2538 + $0x32] sm:$0xff]
        %v2800 = vld [vmem:[%s2538 + $0x3a] sm:$0xff]
        %v2801 = vld [vmem:[%s2538 + $0x4a] sm:$0xff]
        %v2802 = vld [vmem:[%s2538 + $0x52] sm:$0xff]
        %v2803 = vld [vmem:[%s2538 + $0x62] sm:$0xff]
        %v2804 = vld [vmem:[%s2538 + $0x6a] sm:$0xff]
        %v2805 = vld [vmem:[%s2538 + $0x7a] sm:$0xff]
        %v2806 = vld [vmem:[%s2538 + $0x82] sm:$0xff]
        %v2807 = vld [vmem:[%s2538 + $0x92] sm:$0xff]
        %v2808 = vld [vmem:[%s2538 + $0x9a] sm:$0xff]
        %v2809 = vld [vmem:[%s2538 + $0xaa] sm:$0xff]
        %v2810 = vld [vmem:[%s2538 + $0xb2] sm:$0xff]
        %v2811 = vld [vmem:[%s2538 + $0xc2] sm:$0xff]
        %v2812 = vld [vmem:[%s2538 + $0xca] sm:$0xff]
        %v2813 = vld [vmem:[%s2538 + $0xda] sm:$0xff]
        %v2814 = vld [vmem:[%s2538 + $0xe2] sm:$0xff]
        %v2815 = vld [vmem:[%s2538 + $0xf2] sm:$0xff]
        %v2816 = vld [vmem:[%s2538 + $0xfa] sm:$0xff]
        %v2817 = vld [vmem:[%s2538 + $0x10a] sm:$0xff]
        %v2818 = vld [vmem:[%s2538 + $0x112] sm:$0xff]
        %v2819 = vld [vmem:[%s2538 + $0x122] sm:$0xff]
        %v2820 = vld [vmem:[%s2538 + $0x12a] sm:$0xff]
        %v2821 = vld [vmem:[%s2538 + $0x13a] sm:$0xff]
        %v2822 = vld [vmem:[%s2538 + $0x142] sm:$0xff]
        %v2823 = vld [vmem:[%s2538 + $0x152] sm:$0xff]
        %v2824 = vld [vmem:[%s2538 + $0x15a] sm:$0xff]
        %v2825 = vld [vmem:[%s2538 + $0x16a] sm:$0xff]
        %v2826 = vld [vmem:[%s2538 + $0x172] sm:$0xff]
        %v2827 = vpack.c.bf16 %v2796, %v2795
        %v2828 = vpack.c.bf16 %v2798, %v2797
        %v2829 = vpack.c.bf16 %v2800, %v2799
        %v2830 = vpack.c.bf16 %v2802, %v2801
        %v2831 = vpack.c.bf16 %v2804, %v2803
        %v2832 = vpack.c.bf16 %v2806, %v2805
        %v2833 = vpack.c.bf16 %v2808, %v2807
        %v2834 = vpack.c.bf16 %v2810, %v2809
        %v2835 = vpack.c.bf16 %v2812, %v2811
        %v2836 = vpack.c.bf16 %v2814, %v2813
        %v2837 = vpack.c.bf16 %v2816, %v2815
        %v2838 = vpack.c.bf16 %v2818, %v2817
        %v2839 = vpack.c.bf16 %v2820, %v2819
        %v2840 = vpack.c.bf16 %v2822, %v2821
        %v2841 = vpack.c.bf16 %v2824, %v2823
        %v2842 = vpack.c.bf16 %v2826, %v2825
        %2859 = vrot.lane.b32.xlu0 %v2827, 96
        %v2860 = vpop.permute.xlu0 %2859
        %2861 = vrot.lane.b32.xlu0 %v2828, 96
        %v2862 = vpop.permute.xlu0 %2861
        %2863 = vrot.lane.b32.xlu0 %v2829, 96
        %v2864 = vpop.permute.xlu0 %2863
        %2865 = vrot.lane.b32.xlu0 %v2830, 96
        %v2866 = vpop.permute.xlu0 %2865
        %2867 = vrot.lane.b32.xlu0 %v2831, 96
        %v2868 = vpop.permute.xlu0 %2867
        %2869 = vrot.lane.b32.xlu0 %v2832, 96
        %v2870 = vpop.permute.xlu0 %2869
        %2871 = vrot.lane.b32.xlu0 %v2833, 96
        %v2872 = vpop.permute.xlu0 %2871
        %2873 = vrot.lane.b32.xlu0 %v2834, 96
        %v2874 = vpop.permute.xlu0 %2873
        %2875 = vrot.lane.b32.xlu0 %v2835, 96
        %v2876 = vpop.permute.xlu0 %2875
        %2877 = vrot.lane.b32.xlu0 %v2836, 96
        %v2878 = vpop.permute.xlu0 %2877
        %2879 = vrot.lane.b32.xlu0 %v2837, 96
        %v2880 = vpop.permute.xlu0 %2879
        %2881 = vrot.lane.b32.xlu0 %v2838, 96
        %v2882 = vpop.permute.xlu0 %2881
        %2883 = vrot.lane.b32.xlu0 %v2839, 96
        %v2884 = vpop.permute.xlu0 %2883
        %2885 = vrot.lane.b32.xlu0 %v2840, 96
        %v2886 = vpop.permute.xlu0 %2885
        %2887 = vrot.lane.b32.xlu0 %v2841, 96
        %v2888 = vpop.permute.xlu0 %2887
        %2889 = vrot.lane.b32.xlu0 %v2842, 96
        %v2890 = vpop.permute.xlu0 %2889
        %2907 = vst.msk [vmem:[#allocation4 + $0x8] sm:$0xff] %vm2457, %v2860
        %2908 = vst.msk [vmem:[#allocation4 + $0x40] sm:$0xff] %vm2457, %v2862
        %2909 = vst.msk [vmem:[#allocation4 + $0x78] sm:$0xff] %vm2457, %v2864
        %2910 = vst.msk [vmem:[#allocation4 + $0xb0] sm:$0xff] %vm2457, %v2866
        %2911 = vst.msk [vmem:[#allocation4 + $0xe8] sm:$0xff] %vm2457, %v2868
        %2912 = vst.msk [vmem:[#allocation4 + $0x120] sm:$0xff] %vm2457, %v2870
        %2913 = vst.msk [vmem:[#allocation4 + $0x158] sm:$0xff] %vm2457, %v2872
        %2914 = vst.msk [vmem:[#allocation4 + $0x190] sm:$0xff] %vm2457, %v2874
        %2915 = vst.msk [vmem:[#allocation4 + $0x1c8] sm:$0xff] %vm2457, %v2876
        %2916 = vst.msk [vmem:[#allocation4 + $0x200] sm:$0xff] %vm2457, %v2878
        %2917 = vst.msk [vmem:[#allocation4 + $0x238] sm:$0xff] %vm2457, %v2880
        %2918 = vst.msk [vmem:[#allocation4 + $0x270] sm:$0xff] %vm2457, %v2882
        %2919 = vst.msk [vmem:[#allocation4 + $0x2a8] sm:$0xff] %vm2457, %v2884
        %2920 = vst.msk [vmem:[#allocation4 + $0x2e0] sm:$0xff] %vm2457, %v2886
        %2921 = vst.msk [vmem:[#allocation4 + $0x318] sm:$0xff] %vm2457, %v2888
        %2922 = vst.msk [vmem:[#allocation4 + $0x350] sm:$0xff] %vm2457, %v2890
        %v2923 = vld [vmem:[%s2538 + $0x3] sm:$0xff]
        %v2924 = vld [vmem:[%s2538 + $0xb] sm:$0xff]
        %v2925 = vld [vmem:[%s2538 + $0x1b] sm:$0xff]
        %v2926 = vld [vmem:[%s2538 + $0x23] sm:$0xff]
        %v2927 = vld [vmem:[%s2538 + $0x33] sm:$0xff]
        %v2928 = vld [vmem:[%s2538 + $0x3b] sm:$0xff]
        %v2929 = vld [vmem:[%s2538 + $0x4b] sm:$0xff]
        %v2930 = vld [vmem:[%s2538 + $0x53] sm:$0xff]
        %v2931 = vld [vmem:[%s2538 + $0x63] sm:$0xff]
        %v2932 = vld [vmem:[%s2538 + $0x6b] sm:$0xff]
        %v2933 = vld [vmem:[%s2538 + $0x7b] sm:$0xff]
        %v2934 = vld [vmem:[%s2538 + $0x83] sm:$0xff]
        %v2935 = vld [vmem:[%s2538 + $0x93] sm:$0xff]
        %v2936 = vld [vmem:[%s2538 + $0x9b] sm:$0xff]
        %v2937 = vld [vmem:[%s2538 + $0xab] sm:$0xff]
        %v2938 = vld [vmem:[%s2538 + $0xb3] sm:$0xff]
        %v2939 = vld [vmem:[%s2538 + $0xc3] sm:$0xff]
        %v2940 = vld [vmem:[%s2538 + $0xcb] sm:$0xff]
        %v2941 = vld [vmem:[%s2538 + $0xdb] sm:$0xff]
        %v2942 = vld [vmem:[%s2538 + $0xe3] sm:$0xff]
        %v2943 = vld [vmem:[%s2538 + $0xf3] sm:$0xff]
        %v2944 = vld [vmem:[%s2538 + $0xfb] sm:$0xff]
        %v2945 = vld [vmem:[%s2538 + $0x10b] sm:$0xff]
        %v2946 = vld [vmem:[%s2538 + $0x113] sm:$0xff]
        %v2947 = vld [vmem:[%s2538 + $0x123] sm:$0xff]
        %v2948 = vld [vmem:[%s2538 + $0x12b] sm:$0xff]
        %v2949 = vld [vmem:[%s2538 + $0x13b] sm:$0xff]
        %v2950 = vld [vmem:[%s2538 + $0x143] sm:$0xff]
        %v2951 = vld [vmem:[%s2538 + $0x153] sm:$0xff]
        %v2952 = vld [vmem:[%s2538 + $0x15b] sm:$0xff]
        %v2953 = vld [vmem:[%s2538 + $0x16b] sm:$0xff]
        %v2954 = vld [vmem:[%s2538 + $0x173] sm:$0xff]
        %v2955 = vpack.c.bf16 %v2924, %v2923
        %v2956 = vpack.c.bf16 %v2926, %v2925
        %v2957 = vpack.c.bf16 %v2928, %v2927
        %v2958 = vpack.c.bf16 %v2930, %v2929
        %v2959 = vpack.c.bf16 %v2932, %v2931
        %v2960 = vpack.c.bf16 %v2934, %v2933
        %v2961 = vpack.c.bf16 %v2936, %v2935
        %v2962 = vpack.c.bf16 %v2938, %v2937
        %v2963 = vpack.c.bf16 %v2940, %v2939
        %v2964 = vpack.c.bf16 %v2942, %v2941
        %v2965 = vpack.c.bf16 %v2944, %v2943
        %v2966 = vpack.c.bf16 %v2946, %v2945
        %v2967 = vpack.c.bf16 %v2948, %v2947
        %v2968 = vpack.c.bf16 %v2950, %v2949
        %v2969 = vpack.c.bf16 %v2952, %v2951
        %v2970 = vpack.c.bf16 %v2954, %v2953
        %2971 = vst.msk [vmem:[#allocation4 + $0x10] sm:$0xff] %vm1705, %v2955
        %2972 = vst.msk [vmem:[#allocation4 + $0x48] sm:$0xff] %vm1705, %v2956
        %2973 = vst.msk [vmem:[#allocation4 + $0x80] sm:$0xff] %vm1705, %v2957
        %2974 = vst.msk [vmem:[#allocation4 + $0xb8] sm:$0xff] %vm1705, %v2958
        %2975 = vst.msk [vmem:[#allocation4 + $0xf0] sm:$0xff] %vm1705, %v2959
        %2976 = vst.msk [vmem:[#allocation4 + $0x128] sm:$0xff] %vm1705, %v2960
        %2977 = vst.msk [vmem:[#allocation4 + $0x160] sm:$0xff] %vm1705, %v2961
        %2978 = vst.msk [vmem:[#allocation4 + $0x198] sm:$0xff] %vm1705, %v2962
        %2979 = vst.msk [vmem:[#allocation4 + $0x1d0] sm:$0xff] %vm1705, %v2963
        %2980 = vst.msk [vmem:[#allocation4 + $0x208] sm:$0xff] %vm1705, %v2964
        %2981 = vst.msk [vmem:[#allocation4 + $0x240] sm:$0xff] %vm1705, %v2965
        %2982 = vst.msk [vmem:[#allocation4 + $0x278] sm:$0xff] %vm1705, %v2966
        %2983 = vst.msk [vmem:[#allocation4 + $0x2b0] sm:$0xff] %vm1705, %v2967
        %2984 = vst.msk [vmem:[#allocation4 + $0x2e8] sm:$0xff] %vm1705, %v2968
        %2985 = vst.msk [vmem:[#allocation4 + $0x320] sm:$0xff] %vm1705, %v2969
        %2986 = vst.msk [vmem:[#allocation4 + $0x358] sm:$0xff] %vm1705, %v2970
        %v2987 = vld [vmem:[%s2538 + $0x4] sm:$0xff]
        %v2988 = vld [vmem:[%s2538 + $0xc] sm:$0xff]
        %v2989 = vld [vmem:[%s2538 + $0x1c] sm:$0xff]
        %v2990 = vld [vmem:[%s2538 + $0x24] sm:$0xff]
        %v2991 = vld [vmem:[%s2538 + $0x34] sm:$0xff]
        %v2992 = vld [vmem:[%s2538 + $0x3c] sm:$0xff]
        %v2993 = vld [vmem:[%s2538 + $0x4c] sm:$0xff]
        %v2994 = vld [vmem:[%s2538 + $0x54] sm:$0xff]
        %v2995 = vld [vmem:[%s2538 + $0x64] sm:$0xff]
        %v2996 = vld [vmem:[%s2538 + $0x6c] sm:$0xff]
        %v2997 = vld [vmem:[%s2538 + $0x7c] sm:$0xff]
        %v2998 = vld [vmem:[%s2538 + $0x84] sm:$0xff]
        %v2999 = vld [vmem:[%s2538 + $0x94] sm:$0xff]
        %v3000 = vld [vmem:[%s2538 + $0x9c] sm:$0xff]
        %v3001 = vld [vmem:[%s2538 + $0xac] sm:$0xff]
        %v3002 = vld [vmem:[%s2538 + $0xb4] sm:$0xff]
        %v3003 = vld [vmem:[%s2538 + $0xc4] sm:$0xff]
        %v3004 = vld [vmem:[%s2538 + $0xcc] sm:$0xff]
        %v3005 = vld [vmem:[%s2538 + $0xdc] sm:$0xff]
        %v3006 = vld [vmem:[%s2538 + $0xe4] sm:$0xff]
        %v3007 = vld [vmem:[%s2538 + $0xf4] sm:$0xff]
        %v3008 = vld [vmem:[%s2538 + $0xfc] sm:$0xff]
        %v3009 = vld [vmem:[%s2538 + $0x10c] sm:$0xff]
        %v3010 = vld [vmem:[%s2538 + $0x114] sm:$0xff]
        %v3011 = vld [vmem:[%s2538 + $0x124] sm:$0xff]
        %v3012 = vld [vmem:[%s2538 + $0x12c] sm:$0xff]
        %v3013 = vld [vmem:[%s2538 + $0x13c] sm:$0xff]
        %v3014 = vld [vmem:[%s2538 + $0x144] sm:$0xff]
        %v3015 = vld [vmem:[%s2538 + $0x154] sm:$0xff]
        %v3016 = vld [vmem:[%s2538 + $0x15c] sm:$0xff]
        %v3017 = vld [vmem:[%s2538 + $0x16c] sm:$0xff]
        %v3018 = vld [vmem:[%s2538 + $0x174] sm:$0xff]
        %v3019 = vpack.c.bf16 %v2988, %v2987
        %v3020 = vpack.c.bf16 %v2990, %v2989
        %v3021 = vpack.c.bf16 %v2992, %v2991
        %v3022 = vpack.c.bf16 %v2994, %v2993
        %v3023 = vpack.c.bf16 %v2996, %v2995
        %v3024 = vpack.c.bf16 %v2998, %v2997
        %v3025 = vpack.c.bf16 %v3000, %v2999
        %v3026 = vpack.c.bf16 %v3002, %v3001
        %v3027 = vpack.c.bf16 %v3004, %v3003
        %v3028 = vpack.c.bf16 %v3006, %v3005
        %v3029 = vpack.c.bf16 %v3008, %v3007
        %v3030 = vpack.c.bf16 %v3010, %v3009
        %v3031 = vpack.c.bf16 %v3012, %v3011
        %v3032 = vpack.c.bf16 %v3014, %v3013
        %v3033 = vpack.c.bf16 %v3016, %v3015
        %v3034 = vpack.c.bf16 %v3018, %v3017
        %3051 = vrot.lane.b32.xlu0 %v3019, 32
        %v3052 = vpop.permute.xlu0 %3051
        %3053 = vrot.lane.b32.xlu0 %v3020, 32
        %v3054 = vpop.permute.xlu0 %3053
        %3055 = vrot.lane.b32.xlu0 %v3021, 32
        %v3056 = vpop.permute.xlu0 %3055
        %3057 = vrot.lane.b32.xlu0 %v3022, 32
        %v3058 = vpop.permute.xlu0 %3057
        %3059 = vrot.lane.b32.xlu0 %v3023, 32
        %v3060 = vpop.permute.xlu0 %3059
        %3061 = vrot.lane.b32.xlu0 %v3024, 32
        %v3062 = vpop.permute.xlu0 %3061
        %3063 = vrot.lane.b32.xlu0 %v3025, 32
        %v3064 = vpop.permute.xlu0 %3063
        %3065 = vrot.lane.b32.xlu0 %v3026, 32
        %v3066 = vpop.permute.xlu0 %3065
        %3067 = vrot.lane.b32.xlu0 %v3027, 32
        %v3068 = vpop.permute.xlu0 %3067
        %3069 = vrot.lane.b32.xlu0 %v3028, 32
        %v3070 = vpop.permute.xlu0 %3069
        %3071 = vrot.lane.b32.xlu0 %v3029, 32
        %v3072 = vpop.permute.xlu0 %3071
        %3073 = vrot.lane.b32.xlu0 %v3030, 32
        %v3074 = vpop.permute.xlu0 %3073
        %3075 = vrot.lane.b32.xlu0 %v3031, 32
        %v3076 = vpop.permute.xlu0 %3075
        %3077 = vrot.lane.b32.xlu0 %v3032, 32
        %v3078 = vpop.permute.xlu0 %3077
        %3079 = vrot.lane.b32.xlu0 %v3033, 32
        %v3080 = vpop.permute.xlu0 %3079
        %3081 = vrot.lane.b32.xlu0 %v3034, 32
        %v3082 = vpop.permute.xlu0 %3081
        %3099 = vst.msk [vmem:[#allocation4 + $0x10] sm:$0xff] %vm2199, %v3052
        %3100 = vst.msk [vmem:[#allocation4 + $0x48] sm:$0xff] %vm2199, %v3054
        %3101 = vst.msk [vmem:[#allocation4 + $0x80] sm:$0xff] %vm2199, %v3056
        %3102 = vst.msk [vmem:[#allocation4 + $0xb8] sm:$0xff] %vm2199, %v3058
        %3103 = vst.msk [vmem:[#allocation4 + $0xf0] sm:$0xff] %vm2199, %v3060
        %3104 = vst.msk [vmem:[#allocation4 + $0x128] sm:$0xff] %vm2199, %v3062
        %3105 = vst.msk [vmem:[#allocation4 + $0x160] sm:$0xff] %vm2199, %v3064
        %3106 = vst.msk [vmem:[#allocation4 + $0x198] sm:$0xff] %vm2199, %v3066
        %3107 = vst.msk [vmem:[#allocation4 + $0x1d0] sm:$0xff] %vm2199, %v3068
        %3108 = vst.msk [vmem:[#allocation4 + $0x208] sm:$0xff] %vm2199, %v3070
        %3109 = vst.msk [vmem:[#allocation4 + $0x240] sm:$0xff] %vm2199, %v3072
        %3110 = vst.msk [vmem:[#allocation4 + $0x278] sm:$0xff] %vm2199, %v3074
        %3111 = vst.msk [vmem:[#allocation4 + $0x2b0] sm:$0xff] %vm2199, %v3076
        %3112 = vst.msk [vmem:[#allocation4 + $0x2e8] sm:$0xff] %vm2199, %v3078
        %3113 = vst.msk [vmem:[#allocation4 + $0x320] sm:$0xff] %vm2199, %v3080
        %3114 = vst.msk [vmem:[#allocation4 + $0x358] sm:$0xff] %vm2199, %v3082
        %v3115 = vld [vmem:[%s1990] sm:$0xff]
        %v3116 = vld [vmem:[%s1990 + $0x8] sm:$0xff]
        %v3117 = vld [vmem:[%s1990 + $0x18] sm:$0xff]
        %v3118 = vld [vmem:[%s1990 + $0x20] sm:$0xff]
        %v3119 = vld [vmem:[%s1990 + $0x30] sm:$0xff]
        %v3120 = vld [vmem:[%s1990 + $0x38] sm:$0xff]
        %v3121 = vld [vmem:[%s1990 + $0x48] sm:$0xff]
        %v3122 = vld [vmem:[%s1990 + $0x50] sm:$0xff]
        %v3123 = vld [vmem:[%s1990 + $0x60] sm:$0xff]
        %v3124 = vld [vmem:[%s1990 + $0x68] sm:$0xff]
        %v3125 = vld [vmem:[%s1990 + $0x78] sm:$0xff]
        %v3126 = vld [vmem:[%s1990 + $0x80] sm:$0xff]
        %v3127 = vld [vmem:[%s1990 + $0x90] sm:$0xff]
        %v3128 = vld [vmem:[%s1990 + $0x98] sm:$0xff]
        %v3129 = vld [vmem:[%s1990 + $0xa8] sm:$0xff]
        %v3130 = vld [vmem:[%s1990 + $0xb0] sm:$0xff]
        %v3131 = vld [vmem:[%s1990 + $0xc0] sm:$0xff]
        %v3132 = vld [vmem:[%s1990 + $0xc8] sm:$0xff]
        %v3133 = vld [vmem:[%s1990 + $0xd8] sm:$0xff]
        %v3134 = vld [vmem:[%s1990 + $0xe0] sm:$0xff]
        %v3135 = vld [vmem:[%s1990 + $0xf0] sm:$0xff]
        %v3136 = vld [vmem:[%s1990 + $0xf8] sm:$0xff]
        %v3137 = vld [vmem:[%s1990 + $0x108] sm:$0xff]
        %v3138 = vld [vmem:[%s1990 + $0x110] sm:$0xff]
        %v3139 = vld [vmem:[%s1990 + $0x120] sm:$0xff]
        %v3140 = vld [vmem:[%s1990 + $0x128] sm:$0xff]
        %v3141 = vld [vmem:[%s1990 + $0x138] sm:$0xff]
        %v3142 = vld [vmem:[%s1990 + $0x140] sm:$0xff]
        %v3143 = vld [vmem:[%s1990 + $0x150] sm:$0xff]
        %v3144 = vld [vmem:[%s1990 + $0x158] sm:$0xff]
        %v3145 = vld [vmem:[%s1990 + $0x168] sm:$0xff]
        %v3146 = vld [vmem:[%s1990 + $0x170] sm:$0xff]
        %v3147 = vpack.c.bf16 %v3116, %v3115
        %v3148 = vpack.c.bf16 %v3118, %v3117
        %v3149 = vpack.c.bf16 %v3120, %v3119
        %v3150 = vpack.c.bf16 %v3122, %v3121
        %v3151 = vpack.c.bf16 %v3124, %v3123
        %v3152 = vpack.c.bf16 %v3126, %v3125
        %v3153 = vpack.c.bf16 %v3128, %v3127
        %v3154 = vpack.c.bf16 %v3130, %v3129
        %v3155 = vpack.c.bf16 %v3132, %v3131
        %v3156 = vpack.c.bf16 %v3134, %v3133
        %v3157 = vpack.c.bf16 %v3136, %v3135
        %v3158 = vpack.c.bf16 %v3138, %v3137
        %v3159 = vpack.c.bf16 %v3140, %v3139
        %v3160 = vpack.c.bf16 %v3142, %v3141
        %v3161 = vpack.c.bf16 %v3144, %v3143
        %v3162 = vpack.c.bf16 %v3146, %v3145
        %3179 = vrot.lane.b32.xlu0 %v3147, 64
        %v3180 = vpop.permute.xlu0 %3179
        %3181 = vrot.lane.b32.xlu0 %v3148, 64
        %v3182 = vpop.permute.xlu0 %3181
        %3183 = vrot.lane.b32.xlu0 %v3149, 64
        %v3184 = vpop.permute.xlu0 %3183
        %3185 = vrot.lane.b32.xlu0 %v3150, 64
        %v3186 = vpop.permute.xlu0 %3185
        %3187 = vrot.lane.b32.xlu0 %v3151, 64
        %v3188 = vpop.permute.xlu0 %3187
        %3189 = vrot.lane.b32.xlu0 %v3152, 64
        %v3190 = vpop.permute.xlu0 %3189
        %3191 = vrot.lane.b32.xlu0 %v3153, 64
        %v3192 = vpop.permute.xlu0 %3191
        %3193 = vrot.lane.b32.xlu0 %v3154, 64
        %v3194 = vpop.permute.xlu0 %3193
        %3195 = vrot.lane.b32.xlu0 %v3155, 64
        %v3196 = vpop.permute.xlu0 %3195
        %3197 = vrot.lane.b32.xlu0 %v3156, 64
        %v3198 = vpop.permute.xlu0 %3197
        %3199 = vrot.lane.b32.xlu0 %v3157, 64
        %v3200 = vpop.permute.xlu0 %3199
        %3201 = vrot.lane.b32.xlu0 %v3158, 64
        %v3202 = vpop.permute.xlu0 %3201
        %3203 = vrot.lane.b32.xlu0 %v3159, 64
        %v3204 = vpop.permute.xlu0 %3203
        %3205 = vrot.lane.b32.xlu0 %v3160, 64
        %v3206 = vpop.permute.xlu0 %3205
        %3207 = vrot.lane.b32.xlu0 %v3161, 64
        %v3208 = vpop.permute.xlu0 %3207
        %3209 = vrot.lane.b32.xlu0 %v3162, 64
        %v3210 = vpop.permute.xlu0 %3209
        %3227 = vst.msk [vmem:[#allocation4 + $0x10] sm:$0xff] %vm2328, %v3180
        %3228 = vst.msk [vmem:[#allocation4 + $0x48] sm:$0xff] %vm2328, %v3182
        %3229 = vst.msk [vmem:[#allocation4 + $0x80] sm:$0xff] %vm2328, %v3184
        %3230 = vst.msk [vmem:[#allocation4 + $0xb8] sm:$0xff] %vm2328, %v3186
        %3231 = vst.msk [vmem:[#allocation4 + $0xf0] sm:$0xff] %vm2328, %v3188
        %3232 = vst.msk [vmem:[#allocation4 + $0x128] sm:$0xff] %vm2328, %v3190
        %3233 = vst.msk [vmem:[#allocation4 + $0x160] sm:$0xff] %vm2328, %v3192
        %3234 = vst.msk [vmem:[#allocation4 + $0x198] sm:$0xff] %vm2328, %v3194
        %3235 = vst.msk [vmem:[#allocation4 + $0x1d0] sm:$0xff] %vm2328, %v3196
        %3236 = vst.msk [vmem:[#allocation4 + $0x208] sm:$0xff] %vm2328, %v3198
        %3237 = vst.msk [vmem:[#allocation4 + $0x240] sm:$0xff] %vm2328, %v3200
        %3238 = vst.msk [vmem:[#allocation4 + $0x278] sm:$0xff] %vm2328, %v3202
        %3239 = vst.msk [vmem:[#allocation4 + $0x2b0] sm:$0xff] %vm2328, %v3204
        %3240 = vst.msk [vmem:[#allocation4 + $0x2e8] sm:$0xff] %vm2328, %v3206
        %3241 = vst.msk [vmem:[#allocation4 + $0x320] sm:$0xff] %vm2328, %v3208
        %3242 = vst.msk [vmem:[#allocation4 + $0x358] sm:$0xff] %vm2328, %v3210
        %v3243 = vld [vmem:[%s1990 + $0x1] sm:$0xff]
        %v3244 = vld [vmem:[%s1990 + $0x9] sm:$0xff]
        %v3245 = vld [vmem:[%s1990 + $0x19] sm:$0xff]
        %v3246 = vld [vmem:[%s1990 + $0x21] sm:$0xff]
        %v3247 = vld [vmem:[%s1990 + $0x31] sm:$0xff]
        %v3248 = vld [vmem:[%s1990 + $0x39] sm:$0xff]
        %v3249 = vld [vmem:[%s1990 + $0x49] sm:$0xff]
        %v3250 = vld [vmem:[%s1990 + $0x51] sm:$0xff]
        %v3251 = vld [vmem:[%s1990 + $0x61] sm:$0xff]
        %v3252 = vld [vmem:[%s1990 + $0x69] sm:$0xff]
        %v3253 = vld [vmem:[%s1990 + $0x79] sm:$0xff]
        %v3254 = vld [vmem:[%s1990 + $0x81] sm:$0xff]
        %v3255 = vld [vmem:[%s1990 + $0x91] sm:$0xff]
        %v3256 = vld [vmem:[%s1990 + $0x99] sm:$0xff]
        %v3257 = vld [vmem:[%s1990 + $0xa9] sm:$0xff]
        %v3258 = vld [vmem:[%s1990 + $0xb1] sm:$0xff]
        %v3259 = vld [vmem:[%s1990 + $0xc1] sm:$0xff]
        %v3260 = vld [vmem:[%s1990 + $0xc9] sm:$0xff]
        %v3261 = vld [vmem:[%s1990 + $0xd9] sm:$0xff]
        %v3262 = vld [vmem:[%s1990 + $0xe1] sm:$0xff]
        %v3263 = vld [vmem:[%s1990 + $0xf1] sm:$0xff]
        %v3264 = vld [vmem:[%s1990 + $0xf9] sm:$0xff]
        %v3265 = vld [vmem:[%s1990 + $0x109] sm:$0xff]
        %v3266 = vld [vmem:[%s1990 + $0x111] sm:$0xff]
        %v3267 = vld [vmem:[%s1990 + $0x121] sm:$0xff]
        %v3268 = vld [vmem:[%s1990 + $0x129] sm:$0xff]
        %v3269 = vld [vmem:[%s1990 + $0x139] sm:$0xff]
        %v3270 = vld [vmem:[%s1990 + $0x141] sm:$0xff]
        %v3271 = vld [vmem:[%s1990 + $0x151] sm:$0xff]
        %v3272 = vld [vmem:[%s1990 + $0x159] sm:$0xff]
        %v3273 = vld [vmem:[%s1990 + $0x169] sm:$0xff]
        %v3274 = vld [vmem:[%s1990 + $0x171] sm:$0xff]
        %v3275 = vpack.c.bf16 %v3244, %v3243
        %v3276 = vpack.c.bf16 %v3246, %v3245
        %v3277 = vpack.c.bf16 %v3248, %v3247
        %v3278 = vpack.c.bf16 %v3250, %v3249
        %v3279 = vpack.c.bf16 %v3252, %v3251
        %v3280 = vpack.c.bf16 %v3254, %v3253
        %v3281 = vpack.c.bf16 %v3256, %v3255
        %v3282 = vpack.c.bf16 %v3258, %v3257
        %v3283 = vpack.c.bf16 %v3260, %v3259
        %v3284 = vpack.c.bf16 %v3262, %v3261
        %v3285 = vpack.c.bf16 %v3264, %v3263
        %v3286 = vpack.c.bf16 %v3266, %v3265
        %v3287 = vpack.c.bf16 %v3268, %v3267
        %v3288 = vpack.c.bf16 %v3270, %v3269
        %v3289 = vpack.c.bf16 %v3272, %v3271
        %v3290 = vpack.c.bf16 %v3274, %v3273
        %3307 = vrot.lane.b32.xlu0 %v3275, 96
        %v3308 = vpop.permute.xlu0 %3307
        %3309 = vrot.lane.b32.xlu0 %v3276, 96
        %v3310 = vpop.permute.xlu0 %3309
        %3311 = vrot.lane.b32.xlu0 %v3277, 96
        %v3312 = vpop.permute.xlu0 %3311
        %3313 = vrot.lane.b32.xlu0 %v3278, 96
        %v3314 = vpop.permute.xlu0 %3313
        %3315 = vrot.lane.b32.xlu0 %v3279, 96
        %v3316 = vpop.permute.xlu0 %3315
        %3317 = vrot.lane.b32.xlu0 %v3280, 96
        %v3318 = vpop.permute.xlu0 %3317
        %3319 = vrot.lane.b32.xlu0 %v3281, 96
        %v3320 = vpop.permute.xlu0 %3319
        %3321 = vrot.lane.b32.xlu0 %v3282, 96
        %v3322 = vpop.permute.xlu0 %3321
        %3323 = vrot.lane.b32.xlu0 %v3283, 96
        %v3324 = vpop.permute.xlu0 %3323
        %3325 = vrot.lane.b32.xlu0 %v3284, 96
        %v3326 = vpop.permute.xlu0 %3325
        %3327 = vrot.lane.b32.xlu0 %v3285, 96
        %v3328 = vpop.permute.xlu0 %3327
        %3329 = vrot.lane.b32.xlu0 %v3286, 96
        %v3330 = vpop.permute.xlu0 %3329
        %3331 = vrot.lane.b32.xlu0 %v3287, 96
        %v3332 = vpop.permute.xlu0 %3331
        %3333 = vrot.lane.b32.xlu0 %v3288, 96
        %v3334 = vpop.permute.xlu0 %3333
        %3335 = vrot.lane.b32.xlu0 %v3289, 96
        %v3336 = vpop.permute.xlu0 %3335
        %3337 = vrot.lane.b32.xlu0 %v3290, 96
        %v3338 = vpop.permute.xlu0 %3337
        %3355 = vst.msk [vmem:[#allocation4 + $0x10] sm:$0xff] %vm2457, %v3308
        %3356 = vst.msk [vmem:[#allocation4 + $0x48] sm:$0xff] %vm2457, %v3310
        %3357 = vst.msk [vmem:[#allocation4 + $0x80] sm:$0xff] %vm2457, %v3312
        %3358 = vst.msk [vmem:[#allocation4 + $0xb8] sm:$0xff] %vm2457, %v3314
        %3359 = vst.msk [vmem:[#allocation4 + $0xf0] sm:$0xff] %vm2457, %v3316
        %3360 = vst.msk [vmem:[#allocation4 + $0x128] sm:$0xff] %vm2457, %v3318
        %3361 = vst.msk [vmem:[#allocation4 + $0x160] sm:$0xff] %vm2457, %v3320
        %3362 = vst.msk [vmem:[#allocation4 + $0x198] sm:$0xff] %vm2457, %v3322
        %3363 = vst.msk [vmem:[#allocation4 + $0x1d0] sm:$0xff] %vm2457, %v3324
        %3364 = vst.msk [vmem:[#allocation4 + $0x208] sm:$0xff] %vm2457, %v3326
        %3365 = vst.msk [vmem:[#allocation4 + $0x240] sm:$0xff] %vm2457, %v3328
        %3366 = vst.msk [vmem:[#allocation4 + $0x278] sm:$0xff] %vm2457, %v3330
        %3367 = vst.msk [vmem:[#allocation4 + $0x2b0] sm:$0xff] %vm2457, %v3332
        %3368 = vst.msk [vmem:[#allocation4 + $0x2e8] sm:$0xff] %vm2457, %v3334
        %3369 = vst.msk [vmem:[#allocation4 + $0x320] sm:$0xff] %vm2457, %v3336
        %3370 = vst.msk [vmem:[#allocation4 + $0x358] sm:$0xff] %vm2457, %v3338
        %v3371 = vld [vmem:[%s1990 + $0x2] sm:$0xff]
        %v3372 = vld [vmem:[%s1990 + $0xa] sm:$0xff]
        %v3373 = vld [vmem:[%s1990 + $0x1a] sm:$0xff]
        %v3374 = vld [vmem:[%s1990 + $0x22] sm:$0xff]
        %v3375 = vld [vmem:[%s1990 + $0x32] sm:$0xff]
        %v3376 = vld [vmem:[%s1990 + $0x3a] sm:$0xff]
        %v3377 = vld [vmem:[%s1990 + $0x4a] sm:$0xff]
        %v3378 = vld [vmem:[%s1990 + $0x52] sm:$0xff]
        %v3379 = vld [vmem:[%s1990 + $0x62] sm:$0xff]
        %v3380 = vld [vmem:[%s1990 + $0x6a] sm:$0xff]
        %v3381 = vld [vmem:[%s1990 + $0x7a] sm:$0xff]
        %v3382 = vld [vmem:[%s1990 + $0x82] sm:$0xff]
        %v3383 = vld [vmem:[%s1990 + $0x92] sm:$0xff]
        %v3384 = vld [vmem:[%s1990 + $0x9a] sm:$0xff]
        %v3385 = vld [vmem:[%s1990 + $0xaa] sm:$0xff]
        %v3386 = vld [vmem:[%s1990 + $0xb2] sm:$0xff]
        %v3387 = vld [vmem:[%s1990 + $0xc2] sm:$0xff]
        %v3388 = vld [vmem:[%s1990 + $0xca] sm:$0xff]
        %v3389 = vld [vmem:[%s1990 + $0xda] sm:$0xff]
        %v3390 = vld [vmem:[%s1990 + $0xe2] sm:$0xff]
        %v3391 = vld [vmem:[%s1990 + $0xf2] sm:$0xff]
        %v3392 = vld [vmem:[%s1990 + $0xfa] sm:$0xff]
        %v3393 = vld [vmem:[%s1990 + $0x10a] sm:$0xff]
        %v3394 = vld [vmem:[%s1990 + $0x112] sm:$0xff]
        %v3395 = vld [vmem:[%s1990 + $0x122] sm:$0xff]
        %v3396 = vld [vmem:[%s1990 + $0x12a] sm:$0xff]
        %v3397 = vld [vmem:[%s1990 + $0x13a] sm:$0xff]
        %v3398 = vld [vmem:[%s1990 + $0x142] sm:$0xff]
        %v3399 = vld [vmem:[%s1990 + $0x152] sm:$0xff]
        %v3400 = vld [vmem:[%s1990 + $0x15a] sm:$0xff]
        %v3401 = vld [vmem:[%s1990 + $0x16a] sm:$0xff]
        %v3402 = vld [vmem:[%s1990 + $0x172] sm:$0xff]
        %v3403 = vpack.c.bf16 %v3372, %v3371
        %v3404 = vpack.c.bf16 %v3374, %v3373
        %v3405 = vpack.c.bf16 %v3376, %v3375
        %v3406 = vpack.c.bf16 %v3378, %v3377
        %v3407 = vpack.c.bf16 %v3380, %v3379
        %v3408 = vpack.c.bf16 %v3382, %v3381
        %v3409 = vpack.c.bf16 %v3384, %v3383
        %v3410 = vpack.c.bf16 %v3386, %v3385
        %v3411 = vpack.c.bf16 %v3388, %v3387
        %v3412 = vpack.c.bf16 %v3390, %v3389
        %v3413 = vpack.c.bf16 %v3392, %v3391
        %v3414 = vpack.c.bf16 %v3394, %v3393
        %v3415 = vpack.c.bf16 %v3396, %v3395
        %v3416 = vpack.c.bf16 %v3398, %v3397
        %v3417 = vpack.c.bf16 %v3400, %v3399
        %v3418 = vpack.c.bf16 %v3402, %v3401
        %3419 = vst.msk [vmem:[#allocation4 + $0x18] sm:$0xff] %vm1705, %v3403
        %3420 = vst.msk [vmem:[#allocation4 + $0x50] sm:$0xff] %vm1705, %v3404
        %3421 = vst.msk [vmem:[#allocation4 + $0x88] sm:$0xff] %vm1705, %v3405
        %3422 = vst.msk [vmem:[#allocation4 + $0xc0] sm:$0xff] %vm1705, %v3406
        %3423 = vst.msk [vmem:[#allocation4 + $0xf8] sm:$0xff] %vm1705, %v3407
        %3424 = vst.msk [vmem:[#allocation4 + $0x130] sm:$0xff] %vm1705, %v3408
        %3425 = vst.msk [vmem:[#allocation4 + $0x168] sm:$0xff] %vm1705, %v3409
        %3426 = vst.msk [vmem:[#allocation4 + $0x1a0] sm:$0xff] %vm1705, %v3410
        %3427 = vst.msk [vmem:[#allocation4 + $0x1d8] sm:$0xff] %vm1705, %v3411
        %3428 = vst.msk [vmem:[#allocation4 + $0x210] sm:$0xff] %vm1705, %v3412
        %3429 = vst.msk [vmem:[#allocation4 + $0x248] sm:$0xff] %vm1705, %v3413
        %3430 = vst.msk [vmem:[#allocation4 + $0x280] sm:$0xff] %vm1705, %v3414
        %3431 = vst.msk [vmem:[#allocation4 + $0x2b8] sm:$0xff] %vm1705, %v3415
        %3432 = vst.msk [vmem:[#allocation4 + $0x2f0] sm:$0xff] %vm1705, %v3416
        %3433 = vst.msk [vmem:[#allocation4 + $0x328] sm:$0xff] %vm1705, %v3417
        %3434 = vst.msk [vmem:[#allocation4 + $0x360] sm:$0xff] %vm1705, %v3418
        %v3435 = vld [vmem:[%s1990 + $0x3] sm:$0xff]
        %v3436 = vld [vmem:[%s1990 + $0xb] sm:$0xff]
        %v3437 = vld [vmem:[%s1990 + $0x1b] sm:$0xff]
        %v3438 = vld [vmem:[%s1990 + $0x23] sm:$0xff]
        %v3439 = vld [vmem:[%s1990 + $0x33] sm:$0xff]
        %v3440 = vld [vmem:[%s1990 + $0x3b] sm:$0xff]
        %v3441 = vld [vmem:[%s1990 + $0x4b] sm:$0xff]
        %v3442 = vld [vmem:[%s1990 + $0x53] sm:$0xff]
        %v3443 = vld [vmem:[%s1990 + $0x63] sm:$0xff]
        %v3444 = vld [vmem:[%s1990 + $0x6b] sm:$0xff]
        %v3445 = vld [vmem:[%s1990 + $0x7b] sm:$0xff]
        %v3446 = vld [vmem:[%s1990 + $0x83] sm:$0xff]
        %v3447 = vld [vmem:[%s1990 + $0x93] sm:$0xff]
        %v3448 = vld [vmem:[%s1990 + $0x9b] sm:$0xff]
        %v3449 = vld [vmem:[%s1990 + $0xab] sm:$0xff]
        %v3450 = vld [vmem:[%s1990 + $0xb3] sm:$0xff]
        %v3451 = vld [vmem:[%s1990 + $0xc3] sm:$0xff]
        %v3452 = vld [vmem:[%s1990 + $0xcb] sm:$0xff]
        %v3453 = vld [vmem:[%s1990 + $0xdb] sm:$0xff]
        %v3454 = vld [vmem:[%s1990 + $0xe3] sm:$0xff]
        %v3455 = vld [vmem:[%s1990 + $0xf3] sm:$0xff]
        %v3456 = vld [vmem:[%s1990 + $0xfb] sm:$0xff]
        %v3457 = vld [vmem:[%s1990 + $0x10b] sm:$0xff]
        %v3458 = vld [vmem:[%s1990 + $0x113] sm:$0xff]
        %v3459 = vld [vmem:[%s1990 + $0x123] sm:$0xff]
        %v3460 = vld [vmem:[%s1990 + $0x12b] sm:$0xff]
        %v3461 = vld [vmem:[%s1990 + $0x13b] sm:$0xff]
        %v3462 = vld [vmem:[%s1990 + $0x143] sm:$0xff]
        %v3463 = vld [vmem:[%s1990 + $0x153] sm:$0xff]
        %v3464 = vld [vmem:[%s1990 + $0x15b] sm:$0xff]
        %v3465 = vld [vmem:[%s1990 + $0x16b] sm:$0xff]
        %v3466 = vld [vmem:[%s1990 + $0x173] sm:$0xff]
        %v3467 = vpack.c.bf16 %v3436, %v3435
        %v3468 = vpack.c.bf16 %v3438, %v3437
        %v3469 = vpack.c.bf16 %v3440, %v3439
        %v3470 = vpack.c.bf16 %v3442, %v3441
        %v3471 = vpack.c.bf16 %v3444, %v3443
        %v3472 = vpack.c.bf16 %v3446, %v3445
        %v3473 = vpack.c.bf16 %v3448, %v3447
        %v3474 = vpack.c.bf16 %v3450, %v3449
        %v3475 = vpack.c.bf16 %v3452, %v3451
        %v3476 = vpack.c.bf16 %v3454, %v3453
        %v3477 = vpack.c.bf16 %v3456, %v3455
        %v3478 = vpack.c.bf16 %v3458, %v3457
        %v3479 = vpack.c.bf16 %v3460, %v3459
        %v3480 = vpack.c.bf16 %v3462, %v3461
        %v3481 = vpack.c.bf16 %v3464, %v3463
        %v3482 = vpack.c.bf16 %v3466, %v3465
        %3499 = vrot.lane.b32.xlu0 %v3467, 32
        %v3500 = vpop.permute.xlu0 %3499
        %3501 = vrot.lane.b32.xlu0 %v3468, 32
        %v3502 = vpop.permute.xlu0 %3501
        %3503 = vrot.lane.b32.xlu0 %v3469, 32
        %v3504 = vpop.permute.xlu0 %3503
        %3505 = vrot.lane.b32.xlu0 %v3470, 32
        %v3506 = vpop.permute.xlu0 %3505
        %3507 = vrot.lane.b32.xlu0 %v3471, 32
        %v3508 = vpop.permute.xlu0 %3507
        %3509 = vrot.lane.b32.xlu0 %v3472, 32
        %v3510 = vpop.permute.xlu0 %3509
        %3511 = vrot.lane.b32.xlu0 %v3473, 32
        %v3512 = vpop.permute.xlu0 %3511
        %3513 = vrot.lane.b32.xlu0 %v3474, 32
        %v3514 = vpop.permute.xlu0 %3513
        %3515 = vrot.lane.b32.xlu0 %v3475, 32
        %v3516 = vpop.permute.xlu0 %3515
        %3517 = vrot.lane.b32.xlu0 %v3476, 32
        %v3518 = vpop.permute.xlu0 %3517
        %3519 = vrot.lane.b32.xlu0 %v3477, 32
        %v3520 = vpop.permute.xlu0 %3519
        %3521 = vrot.lane.b32.xlu0 %v3478, 32
        %v3522 = vpop.permute.xlu0 %3521
        %3523 = vrot.lane.b32.xlu0 %v3479, 32
        %v3524 = vpop.permute.xlu0 %3523
        %3525 = vrot.lane.b32.xlu0 %v3480, 32
        %v3526 = vpop.permute.xlu0 %3525
        %3527 = vrot.lane.b32.xlu0 %v3481, 32
        %v3528 = vpop.permute.xlu0 %3527
        %3529 = vrot.lane.b32.xlu0 %v3482, 32
        %v3530 = vpop.permute.xlu0 %3529
        %3547 = vst.msk [vmem:[#allocation4 + $0x18] sm:$0xff] %vm2199, %v3500
        %3548 = vst.msk [vmem:[#allocation4 + $0x50] sm:$0xff] %vm2199, %v3502
        %3549 = vst.msk [vmem:[#allocation4 + $0x88] sm:$0xff] %vm2199, %v3504
        %3550 = vst.msk [vmem:[#allocation4 + $0xc0] sm:$0xff] %vm2199, %v3506
        %3551 = vst.msk [vmem:[#allocation4 + $0xf8] sm:$0xff] %vm2199, %v3508
        %3552 = vst.msk [vmem:[#allocation4 + $0x130] sm:$0xff] %vm2199, %v3510
        %3553 = vst.msk [vmem:[#allocation4 + $0x168] sm:$0xff] %vm2199, %v3512
        %3554 = vst.msk [vmem:[#allocation4 + $0x1a0] sm:$0xff] %vm2199, %v3514
        %3555 = vst.msk [vmem:[#allocation4 + $0x1d8] sm:$0xff] %vm2199, %v3516
        %3556 = vst.msk [vmem:[#allocation4 + $0x210] sm:$0xff] %vm2199, %v3518
        %3557 = vst.msk [vmem:[#allocation4 + $0x248] sm:$0xff] %vm2199, %v3520
        %3558 = vst.msk [vmem:[#allocation4 + $0x280] sm:$0xff] %vm2199, %v3522
        %3559 = vst.msk [vmem:[#allocation4 + $0x2b8] sm:$0xff] %vm2199, %v3524
        %3560 = vst.msk [vmem:[#allocation4 + $0x2f0] sm:$0xff] %vm2199, %v3526
        %3561 = vst.msk [vmem:[#allocation4 + $0x328] sm:$0xff] %vm2199, %v3528
        %3562 = vst.msk [vmem:[#allocation4 + $0x360] sm:$0xff] %vm2199, %v3530
        %v3563 = vld [vmem:[%s1990 + $0x4] sm:$0xff]
        %v3564 = vld [vmem:[%s1990 + $0xc] sm:$0xff]
        %v3565 = vld [vmem:[%s1990 + $0x1c] sm:$0xff]
        %v3566 = vld [vmem:[%s1990 + $0x24] sm:$0xff]
        %v3567 = vld [vmem:[%s1990 + $0x34] sm:$0xff]
        %v3568 = vld [vmem:[%s1990 + $0x3c] sm:$0xff]
        %v3569 = vld [vmem:[%s1990 + $0x4c] sm:$0xff]
        %v3570 = vld [vmem:[%s1990 + $0x54] sm:$0xff]
        %v3571 = vld [vmem:[%s1990 + $0x64] sm:$0xff]
        %v3572 = vld [vmem:[%s1990 + $0x6c] sm:$0xff]
        %v3573 = vld [vmem:[%s1990 + $0x7c] sm:$0xff]
        %v3574 = vld [vmem:[%s1990 + $0x84] sm:$0xff]
        %v3575 = vld [vmem:[%s1990 + $0x94] sm:$0xff]
        %v3576 = vld [vmem:[%s1990 + $0x9c] sm:$0xff]
        %v3577 = vld [vmem:[%s1990 + $0xac] sm:$0xff]
        %v3578 = vld [vmem:[%s1990 + $0xb4] sm:$0xff]
        %v3579 = vld [vmem:[%s1990 + $0xc4] sm:$0xff]
        %v3580 = vld [vmem:[%s1990 + $0xcc] sm:$0xff]
        %v3581 = vld [vmem:[%s1990 + $0xdc] sm:$0xff]
        %v3582 = vld [vmem:[%s1990 + $0xe4] sm:$0xff]
        %v3583 = vld [vmem:[%s1990 + $0xf4] sm:$0xff]
        %v3584 = vld [vmem:[%s1990 + $0xfc] sm:$0xff]
        %v3585 = vld [vmem:[%s1990 + $0x10c] sm:$0xff]
        %v3586 = vld [vmem:[%s1990 + $0x114] sm:$0xff]
        %v3587 = vld [vmem:[%s1990 + $0x124] sm:$0xff]
        %v3588 = vld [vmem:[%s1990 + $0x12c] sm:$0xff]
        %v3589 = vld [vmem:[%s1990 + $0x13c] sm:$0xff]
        %v3590 = vld [vmem:[%s1990 + $0x144] sm:$0xff]
        %v3591 = vld [vmem:[%s1990 + $0x154] sm:$0xff]
        %v3592 = vld [vmem:[%s1990 + $0x15c] sm:$0xff]
        %v3593 = vld [vmem:[%s1990 + $0x16c] sm:$0xff]
        %v3594 = vld [vmem:[%s1990 + $0x174] sm:$0xff]
        %v3595 = vpack.c.bf16 %v3564, %v3563
        %v3596 = vpack.c.bf16 %v3566, %v3565
        %v3597 = vpack.c.bf16 %v3568, %v3567
        %v3598 = vpack.c.bf16 %v3570, %v3569
        %v3599 = vpack.c.bf16 %v3572, %v3571
        %v3600 = vpack.c.bf16 %v3574, %v3573
        %v3601 = vpack.c.bf16 %v3576, %v3575
        %v3602 = vpack.c.bf16 %v3578, %v3577
        %v3603 = vpack.c.bf16 %v3580, %v3579
        %v3604 = vpack.c.bf16 %v3582, %v3581
        %v3605 = vpack.c.bf16 %v3584, %v3583
        %v3606 = vpack.c.bf16 %v3586, %v3585
        %v3607 = vpack.c.bf16 %v3588, %v3587
        %v3608 = vpack.c.bf16 %v3590, %v3589
        %v3609 = vpack.c.bf16 %v3592, %v3591
        %v3610 = vpack.c.bf16 %v3594, %v3593
        %3627 = vrot.lane.b32.xlu0 %v3595, 64
        %v3628 = vpop.permute.xlu0 %3627
        %3629 = vrot.lane.b32.xlu0 %v3596, 64
        %v3630 = vpop.permute.xlu0 %3629
        %3631 = vrot.lane.b32.xlu0 %v3597, 64
        %v3632 = vpop.permute.xlu0 %3631
        %3633 = vrot.lane.b32.xlu0 %v3598, 64
        %v3634 = vpop.permute.xlu0 %3633
        %3635 = vrot.lane.b32.xlu0 %v3599, 64
        %v3636 = vpop.permute.xlu0 %3635
        %3637 = vrot.lane.b32.xlu0 %v3600, 64
        %v3638 = vpop.permute.xlu0 %3637
        %3639 = vrot.lane.b32.xlu0 %v3601, 64
        %v3640 = vpop.permute.xlu0 %3639
        %3641 = vrot.lane.b32.xlu0 %v3602, 64
        %v3642 = vpop.permute.xlu0 %3641
        %3643 = vrot.lane.b32.xlu0 %v3603, 64
        %v3644 = vpop.permute.xlu0 %3643
        %3645 = vrot.lane.b32.xlu0 %v3604, 64
        %v3646 = vpop.permute.xlu0 %3645
        %3647 = vrot.lane.b32.xlu0 %v3605, 64
        %v3648 = vpop.permute.xlu0 %3647
        %3649 = vrot.lane.b32.xlu0 %v3606, 64
        %v3650 = vpop.permute.xlu0 %3649
        %3651 = vrot.lane.b32.xlu0 %v3607, 64
        %v3652 = vpop.permute.xlu0 %3651
        %3653 = vrot.lane.b32.xlu0 %v3608, 64
        %v3654 = vpop.permute.xlu0 %3653
        %3655 = vrot.lane.b32.xlu0 %v3609, 64
        %v3656 = vpop.permute.xlu0 %3655
        %3657 = vrot.lane.b32.xlu0 %v3610, 64
        %v3658 = vpop.permute.xlu0 %3657
        %3675 = vst.msk [vmem:[#allocation4 + $0x18] sm:$0xff] %vm2328, %v3628
        %3676 = vst.msk [vmem:[#allocation4 + $0x50] sm:$0xff] %vm2328, %v3630
        %3677 = vst.msk [vmem:[#allocation4 + $0x88] sm:$0xff] %vm2328, %v3632
        %3678 = vst.msk [vmem:[#allocation4 + $0xc0] sm:$0xff] %vm2328, %v3634
        %3679 = vst.msk [vmem:[#allocation4 + $0xf8] sm:$0xff] %vm2328, %v3636
        %3680 = vst.msk [vmem:[#allocation4 + $0x130] sm:$0xff] %vm2328, %v3638
        %3681 = vst.msk [vmem:[#allocation4 + $0x168] sm:$0xff] %vm2328, %v3640
        %3682 = vst.msk [vmem:[#allocation4 + $0x1a0] sm:$0xff] %vm2328, %v3642
        %3683 = vst.msk [vmem:[#allocation4 + $0x1d8] sm:$0xff] %vm2328, %v3644
        %3684 = vst.msk [vmem:[#allocation4 + $0x210] sm:$0xff] %vm2328, %v3646
        %3685 = vst.msk [vmem:[#allocation4 + $0x248] sm:$0xff] %vm2328, %v3648
        %3686 = vst.msk [vmem:[#allocation4 + $0x280] sm:$0xff] %vm2328, %v3650
        %3687 = vst.msk [vmem:[#allocation4 + $0x2b8] sm:$0xff] %vm2328, %v3652
        %3688 = vst.msk [vmem:[#allocation4 + $0x2f0] sm:$0xff] %vm2328, %v3654
        %3689 = vst.msk [vmem:[#allocation4 + $0x328] sm:$0xff] %vm2328, %v3656
        %3690 = vst.msk [vmem:[#allocation4 + $0x360] sm:$0xff] %vm2328, %v3658
        %s3691 = scalar_lea.vmem [#allocation3], 72
        %v3692 = vld [vmem:[%s3691] sm:$0xff]
        %v3693 = vld [vmem:[%s3691 + $0x8] sm:$0xff]
        %v3694 = vld [vmem:[%s3691 + $0x18] sm:$0xff]
        %v3695 = vld [vmem:[%s3691 + $0x20] sm:$0xff]
        %v3696 = vld [vmem:[%s3691 + $0x30] sm:$0xff]
        %v3697 = vld [vmem:[%s3691 + $0x38] sm:$0xff]
        %v3698 = vld [vmem:[%s3691 + $0x48] sm:$0xff]
        %v3699 = vld [vmem:[%s3691 + $0x50] sm:$0xff]
        %v3700 = vld [vmem:[%s3691 + $0x60] sm:$0xff]
        %v3701 = vld [vmem:[%s3691 + $0x68] sm:$0xff]
        %v3702 = vld [vmem:[%s3691 + $0x78] sm:$0xff]
        %v3703 = vld [vmem:[%s3691 + $0x80] sm:$0xff]
        %v3704 = vld [vmem:[%s3691 + $0x90] sm:$0xff]
        %v3705 = vld [vmem:[%s3691 + $0x98] sm:$0xff]
        %v3706 = vld [vmem:[%s3691 + $0xa8] sm:$0xff]
        %v3707 = vld [vmem:[%s3691 + $0xb0] sm:$0xff]
        %v3708 = vld [vmem:[%s3691 + $0xc0] sm:$0xff]
        %v3709 = vld [vmem:[%s3691 + $0xc8] sm:$0xff]
        %v3710 = vld [vmem:[%s3691 + $0xd8] sm:$0xff]
        %v3711 = vld [vmem:[%s3691 + $0xe0] sm:$0xff]
        %v3712 = vld [vmem:[%s3691 + $0xf0] sm:$0xff]
        %v3713 = vld [vmem:[%s3691 + $0xf8] sm:$0xff]
        %v3714 = vld [vmem:[%s3691 + $0x108] sm:$0xff]
        %v3715 = vld [vmem:[%s3691 + $0x110] sm:$0xff]
        %v3716 = vld [vmem:[%s3691 + $0x120] sm:$0xff]
        %v3717 = vld [vmem:[%s3691 + $0x128] sm:$0xff]
        %v3718 = vld [vmem:[%s3691 + $0x138] sm:$0xff]
        %v3719 = vld [vmem:[%s3691 + $0x140] sm:$0xff]
        %v3720 = vld [vmem:[%s3691 + $0x150] sm:$0xff]
        %v3721 = vld [vmem:[%s3691 + $0x158] sm:$0xff]
        %v3722 = vld [vmem:[%s3691 + $0x168] sm:$0xff]
        %v3723 = vld [vmem:[%s3691 + $0x170] sm:$0xff]
        %v3724 = vpack.c.bf16 %v3693, %v3692
        %v3725 = vpack.c.bf16 %v3695, %v3694
        %v3726 = vpack.c.bf16 %v3697, %v3696
        %v3727 = vpack.c.bf16 %v3699, %v3698
        %v3728 = vpack.c.bf16 %v3701, %v3700
        %v3729 = vpack.c.bf16 %v3703, %v3702
        %v3730 = vpack.c.bf16 %v3705, %v3704
        %v3731 = vpack.c.bf16 %v3707, %v3706
        %v3732 = vpack.c.bf16 %v3709, %v3708
        %v3733 = vpack.c.bf16 %v3711, %v3710
        %v3734 = vpack.c.bf16 %v3713, %v3712
        %v3735 = vpack.c.bf16 %v3715, %v3714
        %v3736 = vpack.c.bf16 %v3717, %v3716
        %v3737 = vpack.c.bf16 %v3719, %v3718
        %v3738 = vpack.c.bf16 %v3721, %v3720
        %v3739 = vpack.c.bf16 %v3723, %v3722
        %3756 = vrot.lane.b32.xlu0 %v3724, 96
        %v3757 = vpop.permute.xlu0 %3756
        %3758 = vrot.lane.b32.xlu0 %v3725, 96
        %v3759 = vpop.permute.xlu0 %3758
        %3760 = vrot.lane.b32.xlu0 %v3726, 96
        %v3761 = vpop.permute.xlu0 %3760
        %3762 = vrot.lane.b32.xlu0 %v3727, 96
        %v3763 = vpop.permute.xlu0 %3762
        %3764 = vrot.lane.b32.xlu0 %v3728, 96
        %v3765 = vpop.permute.xlu0 %3764
        %3766 = vrot.lane.b32.xlu0 %v3729, 96
        %v3767 = vpop.permute.xlu0 %3766
        %3768 = vrot.lane.b32.xlu0 %v3730, 96
        %v3769 = vpop.permute.xlu0 %3768
        %3770 = vrot.lane.b32.xlu0 %v3731, 96
        %v3771 = vpop.permute.xlu0 %3770
        %3772 = vrot.lane.b32.xlu0 %v3732, 96
        %v3773 = vpop.permute.xlu0 %3772
        %3774 = vrot.lane.b32.xlu0 %v3733, 96
        %v3775 = vpop.permute.xlu0 %3774
        %3776 = vrot.lane.b32.xlu0 %v3734, 96
        %v3777 = vpop.permute.xlu0 %3776
        %3778 = vrot.lane.b32.xlu0 %v3735, 96
        %v3779 = vpop.permute.xlu0 %3778
        %3780 = vrot.lane.b32.xlu0 %v3736, 96
        %v3781 = vpop.permute.xlu0 %3780
        %3782 = vrot.lane.b32.xlu0 %v3737, 96
        %v3783 = vpop.permute.xlu0 %3782
        %3784 = vrot.lane.b32.xlu0 %v3738, 96
        %v3785 = vpop.permute.xlu0 %3784
        %3786 = vrot.lane.b32.xlu0 %v3739, 96
        %v3787 = vpop.permute.xlu0 %3786
        %3804 = vst.msk [vmem:[#allocation4 + $0x18] sm:$0xff] %vm2457, %v3757
        %3805 = vst.msk [vmem:[#allocation4 + $0x50] sm:$0xff] %vm2457, %v3759
        %3806 = vst.msk [vmem:[#allocation4 + $0x88] sm:$0xff] %vm2457, %v3761
        %3807 = vst.msk [vmem:[#allocation4 + $0xc0] sm:$0xff] %vm2457, %v3763
        %3808 = vst.msk [vmem:[#allocation4 + $0xf8] sm:$0xff] %vm2457, %v3765
        %3809 = vst.msk [vmem:[#allocation4 + $0x130] sm:$0xff] %vm2457, %v3767
        %3810 = vst.msk [vmem:[#allocation4 + $0x168] sm:$0xff] %vm2457, %v3769
        %3811 = vst.msk [vmem:[#allocation4 + $0x1a0] sm:$0xff] %vm2457, %v3771
        %3812 = vst.msk [vmem:[#allocation4 + $0x1d8] sm:$0xff] %vm2457, %v3773
        %3813 = vst.msk [vmem:[#allocation4 + $0x210] sm:$0xff] %vm2457, %v3775
        %3814 = vst.msk [vmem:[#allocation4 + $0x248] sm:$0xff] %vm2457, %v3777
        %3815 = vst.msk [vmem:[#allocation4 + $0x280] sm:$0xff] %vm2457, %v3779
        %3816 = vst.msk [vmem:[#allocation4 + $0x2b8] sm:$0xff] %vm2457, %v3781
        %3817 = vst.msk [vmem:[#allocation4 + $0x2f0] sm:$0xff] %vm2457, %v3783
        %3818 = vst.msk [vmem:[#allocation4 + $0x328] sm:$0xff] %vm2457, %v3785
        %3819 = vst.msk [vmem:[#allocation4 + $0x360] sm:$0xff] %vm2457, %v3787
        %v3820 = vld [vmem:[%s3691 + $0x1] sm:$0xff]
        %v3821 = vld [vmem:[%s3691 + $0x9] sm:$0xff]
        %v3822 = vld [vmem:[%s3691 + $0x19] sm:$0xff]
        %v3823 = vld [vmem:[%s3691 + $0x21] sm:$0xff]
        %v3824 = vld [vmem:[%s3691 + $0x31] sm:$0xff]
        %v3825 = vld [vmem:[%s3691 + $0x39] sm:$0xff]
        %v3826 = vld [vmem:[%s3691 + $0x49] sm:$0xff]
        %v3827 = vld [vmem:[%s3691 + $0x51] sm:$0xff]
        %v3828 = vld [vmem:[%s3691 + $0x61] sm:$0xff]
        %v3829 = vld [vmem:[%s3691 + $0x69] sm:$0xff]
        %v3830 = vld [vmem:[%s3691 + $0x79] sm:$0xff]
        %v3831 = vld [vmem:[%s3691 + $0x81] sm:$0xff]
        %v3832 = vld [vmem:[%s3691 + $0x91] sm:$0xff]
        %v3833 = vld [vmem:[%s3691 + $0x99] sm:$0xff]
        %v3834 = vld [vmem:[%s3691 + $0xa9] sm:$0xff]
        %v3835 = vld [vmem:[%s3691 + $0xb1] sm:$0xff]
        %v3836 = vld [vmem:[%s3691 + $0xc1] sm:$0xff]
        %v3837 = vld [vmem:[%s3691 + $0xc9] sm:$0xff]
        %v3838 = vld [vmem:[%s3691 + $0xd9] sm:$0xff]
        %v3839 = vld [vmem:[%s3691 + $0xe1] sm:$0xff]
        %v3840 = vld [vmem:[%s3691 + $0xf1] sm:$0xff]
        %v3841 = vld [vmem:[%s3691 + $0xf9] sm:$0xff]
        %v3842 = vld [vmem:[%s3691 + $0x109] sm:$0xff]
        %v3843 = vld [vmem:[%s3691 + $0x111] sm:$0xff]
        %v3844 = vld [vmem:[%s3691 + $0x121] sm:$0xff]
        %v3845 = vld [vmem:[%s3691 + $0x129] sm:$0xff]
        %v3846 = vld [vmem:[%s3691 + $0x139] sm:$0xff]
        %v3847 = vld [vmem:[%s3691 + $0x141] sm:$0xff]
        %v3848 = vld [vmem:[%s3691 + $0x151] sm:$0xff]
        %v3849 = vld [vmem:[%s3691 + $0x159] sm:$0xff]
        %v3850 = vld [vmem:[%s3691 + $0x169] sm:$0xff]
        %v3851 = vld [vmem:[%s3691 + $0x171] sm:$0xff]
        %v3852 = vpack.c.bf16 %v3821, %v3820
        %v3853 = vpack.c.bf16 %v3823, %v3822
        %v3854 = vpack.c.bf16 %v3825, %v3824
        %v3855 = vpack.c.bf16 %v3827, %v3826
        %v3856 = vpack.c.bf16 %v3829, %v3828
        %v3857 = vpack.c.bf16 %v3831, %v3830
        %v3858 = vpack.c.bf16 %v3833, %v3832
        %v3859 = vpack.c.bf16 %v3835, %v3834
        %v3860 = vpack.c.bf16 %v3837, %v3836
        %v3861 = vpack.c.bf16 %v3839, %v3838
        %v3862 = vpack.c.bf16 %v3841, %v3840
        %v3863 = vpack.c.bf16 %v3843, %v3842
        %v3864 = vpack.c.bf16 %v3845, %v3844
        %v3865 = vpack.c.bf16 %v3847, %v3846
        %v3866 = vpack.c.bf16 %v3849, %v3848
        %v3867 = vpack.c.bf16 %v3851, %v3850
        %3868 = vst.msk [vmem:[#allocation4 + $0x20] sm:$0xff] %vm1705, %v3852
        %3869 = vst.msk [vmem:[#allocation4 + $0x58] sm:$0xff] %vm1705, %v3853
        %3870 = vst.msk [vmem:[#allocation4 + $0x90] sm:$0xff] %vm1705, %v3854
        %3871 = vst.msk [vmem:[#allocation4 + $0xc8] sm:$0xff] %vm1705, %v3855
        %3872 = vst.msk [vmem:[#allocation4 + $0x100] sm:$0xff] %vm1705, %v3856
        %3873 = vst.msk [vmem:[#allocation4 + $0x138] sm:$0xff] %vm1705, %v3857
        %3874 = vst.msk [vmem:[#allocation4 + $0x170] sm:$0xff] %vm1705, %v3858
        %3875 = vst.msk [vmem:[#allocation4 + $0x1a8] sm:$0xff] %vm1705, %v3859
        %3876 = vst.msk [vmem:[#allocation4 + $0x1e0] sm:$0xff] %vm1705, %v3860
        %3877 = vst.msk [vmem:[#allocation4 + $0x218] sm:$0xff] %vm1705, %v3861
        %3878 = vst.msk [vmem:[#allocation4 + $0x250] sm:$0xff] %vm1705, %v3862
        %3879 = vst.msk [vmem:[#allocation4 + $0x288] sm:$0xff] %vm1705, %v3863
        %3880 = vst.msk [vmem:[#allocation4 + $0x2c0] sm:$0xff] %vm1705, %v3864
        %3881 = vst.msk [vmem:[#allocation4 + $0x2f8] sm:$0xff] %vm1705, %v3865
        %3882 = vst.msk [vmem:[#allocation4 + $0x330] sm:$0xff] %vm1705, %v3866
        %3883 = vst.msk [vmem:[#allocation4 + $0x368] sm:$0xff] %vm1705, %v3867
        %v3884 = vld [vmem:[%s3691 + $0x2] sm:$0xff]
        %v3885 = vld [vmem:[%s3691 + $0xa] sm:$0xff]
        %v3886 = vld [vmem:[%s3691 + $0x1a] sm:$0xff]
        %v3887 = vld [vmem:[%s3691 + $0x22] sm:$0xff]
        %v3888 = vld [vmem:[%s3691 + $0x32] sm:$0xff]
        %v3889 = vld [vmem:[%s3691 + $0x3a] sm:$0xff]
        %v3890 = vld [vmem:[%s3691 + $0x4a] sm:$0xff]
        %v3891 = vld [vmem:[%s3691 + $0x52] sm:$0xff]
        %v3892 = vld [vmem:[%s3691 + $0x62] sm:$0xff]
        %v3893 = vld [vmem:[%s3691 + $0x6a] sm:$0xff]
        %v3894 = vld [vmem:[%s3691 + $0x7a] sm:$0xff]
        %v3895 = vld [vmem:[%s3691 + $0x82] sm:$0xff]
        %v3896 = vld [vmem:[%s3691 + $0x92] sm:$0xff]
        %v3897 = vld [vmem:[%s3691 + $0x9a] sm:$0xff]
        %v3898 = vld [vmem:[%s3691 + $0xaa] sm:$0xff]
        %v3899 = vld [vmem:[%s3691 + $0xb2] sm:$0xff]
        %v3900 = vld [vmem:[%s3691 + $0xc2] sm:$0xff]
        %v3901 = vld [vmem:[%s3691 + $0xca] sm:$0xff]
        %v3902 = vld [vmem:[%s3691 + $0xda] sm:$0xff]
        %v3903 = vld [vmem:[%s3691 + $0xe2] sm:$0xff]
        %v3904 = vld [vmem:[%s3691 + $0xf2] sm:$0xff]
        %v3905 = vld [vmem:[%s3691 + $0xfa] sm:$0xff]
        %v3906 = vld [vmem:[%s3691 + $0x10a] sm:$0xff]
        %v3907 = vld [vmem:[%s3691 + $0x112] sm:$0xff]
        %v3908 = vld [vmem:[%s3691 + $0x122] sm:$0xff]
        %v3909 = vld [vmem:[%s3691 + $0x12a] sm:$0xff]
        %v3910 = vld [vmem:[%s3691 + $0x13a] sm:$0xff]
        %v3911 = vld [vmem:[%s3691 + $0x142] sm:$0xff]
        %v3912 = vld [vmem:[%s3691 + $0x152] sm:$0xff]
        %v3913 = vld [vmem:[%s3691 + $0x15a] sm:$0xff]
        %v3914 = vld [vmem:[%s3691 + $0x16a] sm:$0xff]
        %v3915 = vld [vmem:[%s3691 + $0x172] sm:$0xff]
        %v3916 = vpack.c.bf16 %v3885, %v3884
        %v3917 = vpack.c.bf16 %v3887, %v3886
        %v3918 = vpack.c.bf16 %v3889, %v3888
        %v3919 = vpack.c.bf16 %v3891, %v3890
        %v3920 = vpack.c.bf16 %v3893, %v3892
        %v3921 = vpack.c.bf16 %v3895, %v3894
        %v3922 = vpack.c.bf16 %v3897, %v3896
        %v3923 = vpack.c.bf16 %v3899, %v3898
        %v3924 = vpack.c.bf16 %v3901, %v3900
        %v3925 = vpack.c.bf16 %v3903, %v3902
        %v3926 = vpack.c.bf16 %v3905, %v3904
        %v3927 = vpack.c.bf16 %v3907, %v3906
        %v3928 = vpack.c.bf16 %v3909, %v3908
        %v3929 = vpack.c.bf16 %v3911, %v3910
        %v3930 = vpack.c.bf16 %v3913, %v3912
        %v3931 = vpack.c.bf16 %v3915, %v3914
        %3948 = vrot.lane.b32.xlu0 %v3916, 32
        %v3949 = vpop.permute.xlu0 %3948
        %3950 = vrot.lane.b32.xlu0 %v3917, 32
        %v3951 = vpop.permute.xlu0 %3950
        %3952 = vrot.lane.b32.xlu0 %v3918, 32
        %v3953 = vpop.permute.xlu0 %3952
        %3954 = vrot.lane.b32.xlu0 %v3919, 32
        %v3955 = vpop.permute.xlu0 %3954
        %3956 = vrot.lane.b32.xlu0 %v3920, 32
        %v3957 = vpop.permute.xlu0 %3956
        %3958 = vrot.lane.b32.xlu0 %v3921, 32
        %v3959 = vpop.permute.xlu0 %3958
        %3960 = vrot.lane.b32.xlu0 %v3922, 32
        %v3961 = vpop.permute.xlu0 %3960
        %3962 = vrot.lane.b32.xlu0 %v3923, 32
        %v3963 = vpop.permute.xlu0 %3962
        %3964 = vrot.lane.b32.xlu0 %v3924, 32
        %v3965 = vpop.permute.xlu0 %3964
        %3966 = vrot.lane.b32.xlu0 %v3925, 32
        %v3967 = vpop.permute.xlu0 %3966
        %3968 = vrot.lane.b32.xlu0 %v3926, 32
        %v3969 = vpop.permute.xlu0 %3968
        %3970 = vrot.lane.b32.xlu0 %v3927, 32
        %v3971 = vpop.permute.xlu0 %3970
        %3972 = vrot.lane.b32.xlu0 %v3928, 32
        %v3973 = vpop.permute.xlu0 %3972
        %3974 = vrot.lane.b32.xlu0 %v3929, 32
        %v3975 = vpop.permute.xlu0 %3974
        %3976 = vrot.lane.b32.xlu0 %v3930, 32
        %v3977 = vpop.permute.xlu0 %3976
        %3978 = vrot.lane.b32.xlu0 %v3931, 32
        %v3979 = vpop.permute.xlu0 %3978
        %3996 = vst.msk [vmem:[#allocation4 + $0x20] sm:$0xff] %vm2199, %v3949
        %3997 = vst.msk [vmem:[#allocation4 + $0x58] sm:$0xff] %vm2199, %v3951
        %3998 = vst.msk [vmem:[#allocation4 + $0x90] sm:$0xff] %vm2199, %v3953
        %3999 = vst.msk [vmem:[#allocation4 + $0xc8] sm:$0xff] %vm2199, %v3955
        %4000 = vst.msk [vmem:[#allocation4 + $0x100] sm:$0xff] %vm2199, %v3957
        %4001 = vst.msk [vmem:[#allocation4 + $0x138] sm:$0xff] %vm2199, %v3959
        %4002 = vst.msk [vmem:[#allocation4 + $0x170] sm:$0xff] %vm2199, %v3961
        %4003 = vst.msk [vmem:[#allocation4 + $0x1a8] sm:$0xff] %vm2199, %v3963
        %4004 = vst.msk [vmem:[#allocation4 + $0x1e0] sm:$0xff] %vm2199, %v3965
        %4005 = vst.msk [vmem:[#allocation4 + $0x218] sm:$0xff] %vm2199, %v3967
        %4006 = vst.msk [vmem:[#allocation4 + $0x250] sm:$0xff] %vm2199, %v3969
        %4007 = vst.msk [vmem:[#allocation4 + $0x288] sm:$0xff] %vm2199, %v3971
        %4008 = vst.msk [vmem:[#allocation4 + $0x2c0] sm:$0xff] %vm2199, %v3973
        %4009 = vst.msk [vmem:[#allocation4 + $0x2f8] sm:$0xff] %vm2199, %v3975
        %4010 = vst.msk [vmem:[#allocation4 + $0x330] sm:$0xff] %vm2199, %v3977
        %4011 = vst.msk [vmem:[#allocation4 + $0x368] sm:$0xff] %vm2199, %v3979
        %v4012 = vld [vmem:[%s3691 + $0x3] sm:$0xff]
        %v4013 = vld [vmem:[%s3691 + $0xb] sm:$0xff]
        %v4014 = vld [vmem:[%s3691 + $0x1b] sm:$0xff]
        %v4015 = vld [vmem:[%s3691 + $0x23] sm:$0xff]
        %v4016 = vld [vmem:[%s3691 + $0x33] sm:$0xff]
        %v4017 = vld [vmem:[%s3691 + $0x3b] sm:$0xff]
        %v4018 = vld [vmem:[%s3691 + $0x4b] sm:$0xff]
        %v4019 = vld [vmem:[%s3691 + $0x53] sm:$0xff]
        %v4020 = vld [vmem:[%s3691 + $0x63] sm:$0xff]
        %v4021 = vld [vmem:[%s3691 + $0x6b] sm:$0xff]
        %v4022 = vld [vmem:[%s3691 + $0x7b] sm:$0xff]
        %v4023 = vld [vmem:[%s3691 + $0x83] sm:$0xff]
        %v4024 = vld [vmem:[%s3691 + $0x93] sm:$0xff]
        %v4025 = vld [vmem:[%s3691 + $0x9b] sm:$0xff]
        %v4026 = vld [vmem:[%s3691 + $0xab] sm:$0xff]
        %v4027 = vld [vmem:[%s3691 + $0xb3] sm:$0xff]
        %v4028 = vld [vmem:[%s3691 + $0xc3] sm:$0xff]
        %v4029 = vld [vmem:[%s3691 + $0xcb] sm:$0xff]
        %v4030 = vld [vmem:[%s3691 + $0xdb] sm:$0xff]
        %v4031 = vld [vmem:[%s3691 + $0xe3] sm:$0xff]
        %v4032 = vld [vmem:[%s3691 + $0xf3] sm:$0xff]
        %v4033 = vld [vmem:[%s3691 + $0xfb] sm:$0xff]
        %v4034 = vld [vmem:[%s3691 + $0x10b] sm:$0xff]
        %v4035 = vld [vmem:[%s3691 + $0x113] sm:$0xff]
        %v4036 = vld [vmem:[%s3691 + $0x123] sm:$0xff]
        %v4037 = vld [vmem:[%s3691 + $0x12b] sm:$0xff]
        %v4038 = vld [vmem:[%s3691 + $0x13b] sm:$0xff]
        %v4039 = vld [vmem:[%s3691 + $0x143] sm:$0xff]
        %v4040 = vld [vmem:[%s3691 + $0x153] sm:$0xff]
        %v4041 = vld [vmem:[%s3691 + $0x15b] sm:$0xff]
        %v4042 = vld [vmem:[%s3691 + $0x16b] sm:$0xff]
        %v4043 = vld [vmem:[%s3691 + $0x173] sm:$0xff]
        %v4044 = vpack.c.bf16 %v4013, %v4012
        %v4045 = vpack.c.bf16 %v4015, %v4014
        %v4046 = vpack.c.bf16 %v4017, %v4016
        %v4047 = vpack.c.bf16 %v4019, %v4018
        %v4048 = vpack.c.bf16 %v4021, %v4020
        %v4049 = vpack.c.bf16 %v4023, %v4022
        %v4050 = vpack.c.bf16 %v4025, %v4024
        %v4051 = vpack.c.bf16 %v4027, %v4026
        %v4052 = vpack.c.bf16 %v4029, %v4028
        %v4053 = vpack.c.bf16 %v4031, %v4030
        %v4054 = vpack.c.bf16 %v4033, %v4032
        %v4055 = vpack.c.bf16 %v4035, %v4034
        %v4056 = vpack.c.bf16 %v4037, %v4036
        %v4057 = vpack.c.bf16 %v4039, %v4038
        %v4058 = vpack.c.bf16 %v4041, %v4040
        %v4059 = vpack.c.bf16 %v4043, %v4042
        %4076 = vrot.lane.b32.xlu0 %v4044, 64
        %v4077 = vpop.permute.xlu0 %4076
        %4078 = vrot.lane.b32.xlu0 %v4045, 64
        %v4079 = vpop.permute.xlu0 %4078
        %4080 = vrot.lane.b32.xlu0 %v4046, 64
        %v4081 = vpop.permute.xlu0 %4080
        %4082 = vrot.lane.b32.xlu0 %v4047, 64
        %v4083 = vpop.permute.xlu0 %4082
        %4084 = vrot.lane.b32.xlu0 %v4048, 64
        %v4085 = vpop.permute.xlu0 %4084
        %4086 = vrot.lane.b32.xlu0 %v4049, 64
        %v4087 = vpop.permute.xlu0 %4086
        %4088 = vrot.lane.b32.xlu0 %v4050, 64
        %v4089 = vpop.permute.xlu0 %4088
        %4090 = vrot.lane.b32.xlu0 %v4051, 64
        %v4091 = vpop.permute.xlu0 %4090
        %4092 = vrot.lane.b32.xlu0 %v4052, 64
        %v4093 = vpop.permute.xlu0 %4092
        %4094 = vrot.lane.b32.xlu0 %v4053, 64
        %v4095 = vpop.permute.xlu0 %4094
        %4096 = vrot.lane.b32.xlu0 %v4054, 64
        %v4097 = vpop.permute.xlu0 %4096
        %4098 = vrot.lane.b32.xlu0 %v4055, 64
        %v4099 = vpop.permute.xlu0 %4098
        %4100 = vrot.lane.b32.xlu0 %v4056, 64
        %v4101 = vpop.permute.xlu0 %4100
        %4102 = vrot.lane.b32.xlu0 %v4057, 64
        %v4103 = vpop.permute.xlu0 %4102
        %4104 = vrot.lane.b32.xlu0 %v4058, 64
        %v4105 = vpop.permute.xlu0 %4104
        %4106 = vrot.lane.b32.xlu0 %v4059, 64
        %v4107 = vpop.permute.xlu0 %4106
        %4124 = vst.msk [vmem:[#allocation4 + $0x20] sm:$0xff] %vm2328, %v4077
        %4125 = vst.msk [vmem:[#allocation4 + $0x58] sm:$0xff] %vm2328, %v4079
        %4126 = vst.msk [vmem:[#allocation4 + $0x90] sm:$0xff] %vm2328, %v4081
        %4127 = vst.msk [vmem:[#allocation4 + $0xc8] sm:$0xff] %vm2328, %v4083
        %4128 = vst.msk [vmem:[#allocation4 + $0x100] sm:$0xff] %vm2328, %v4085
        %4129 = vst.msk [vmem:[#allocation4 + $0x138] sm:$0xff] %vm2328, %v4087
        %4130 = vst.msk [vmem:[#allocation4 + $0x170] sm:$0xff] %vm2328, %v4089
        %4131 = vst.msk [vmem:[#allocation4 + $0x1a8] sm:$0xff] %vm2328, %v4091
        %4132 = vst.msk [vmem:[#allocation4 + $0x1e0] sm:$0xff] %vm2328, %v4093
        %4133 = vst.msk [vmem:[#allocation4 + $0x218] sm:$0xff] %vm2328, %v4095
        %4134 = vst.msk [vmem:[#allocation4 + $0x250] sm:$0xff] %vm2328, %v4097
        %4135 = vst.msk [vmem:[#allocation4 + $0x288] sm:$0xff] %vm2328, %v4099
        %4136 = vst.msk [vmem:[#allocation4 + $0x2c0] sm:$0xff] %vm2328, %v4101
        %4137 = vst.msk [vmem:[#allocation4 + $0x2f8] sm:$0xff] %vm2328, %v4103
        %4138 = vst.msk [vmem:[#allocation4 + $0x330] sm:$0xff] %vm2328, %v4105
        %4139 = vst.msk [vmem:[#allocation4 + $0x368] sm:$0xff] %vm2328, %v4107
        %v4140 = vld [vmem:[%s3691 + $0x4] sm:$0xff]
        %v4141 = vld [vmem:[%s3691 + $0xc] sm:$0xff]
        %v4142 = vld [vmem:[%s3691 + $0x1c] sm:$0xff]
        %v4143 = vld [vmem:[%s3691 + $0x24] sm:$0xff]
        %v4144 = vld [vmem:[%s3691 + $0x34] sm:$0xff]
        %v4145 = vld [vmem:[%s3691 + $0x3c] sm:$0xff]
        %v4146 = vld [vmem:[%s3691 + $0x4c] sm:$0xff]
        %v4147 = vld [vmem:[%s3691 + $0x54] sm:$0xff]
        %v4148 = vld [vmem:[%s3691 + $0x64] sm:$0xff]
        %v4149 = vld [vmem:[%s3691 + $0x6c] sm:$0xff]
        %v4150 = vld [vmem:[%s3691 + $0x7c] sm:$0xff]
        %v4151 = vld [vmem:[%s3691 + $0x84] sm:$0xff]
        %v4152 = vld [vmem:[%s3691 + $0x94] sm:$0xff]
        %v4153 = vld [vmem:[%s3691 + $0x9c] sm:$0xff]
        %v4154 = vld [vmem:[%s3691 + $0xac] sm:$0xff]
        %v4155 = vld [vmem:[%s3691 + $0xb4] sm:$0xff]
        %v4156 = vld [vmem:[%s3691 + $0xc4] sm:$0xff]
        %v4157 = vld [vmem:[%s3691 + $0xcc] sm:$0xff]
        %v4158 = vld [vmem:[%s3691 + $0xdc] sm:$0xff]
        %v4159 = vld [vmem:[%s3691 + $0xe4] sm:$0xff]
        %v4160 = vld [vmem:[%s3691 + $0xf4] sm:$0xff]
        %v4161 = vld [vmem:[%s3691 + $0xfc] sm:$0xff]
        %v4162 = vld [vmem:[%s3691 + $0x10c] sm:$0xff]
        %v4163 = vld [vmem:[%s3691 + $0x114] sm:$0xff]
        %v4164 = vld [vmem:[%s3691 + $0x124] sm:$0xff]
        %v4165 = vld [vmem:[%s3691 + $0x12c] sm:$0xff]
        %v4166 = vld [vmem:[%s3691 + $0x13c] sm:$0xff]
        %v4167 = vld [vmem:[%s3691 + $0x144] sm:$0xff]
        %v4168 = vld [vmem:[%s3691 + $0x154] sm:$0xff]
        %v4169 = vld [vmem:[%s3691 + $0x15c] sm:$0xff]
        %v4170 = vld [vmem:[%s3691 + $0x16c] sm:$0xff]
        %v4171 = vld [vmem:[%s3691 + $0x174] sm:$0xff]
        %v4172 = vpack.c.bf16 %v4141, %v4140
        %v4173 = vpack.c.bf16 %v4143, %v4142
        %v4174 = vpack.c.bf16 %v4145, %v4144
        %v4175 = vpack.c.bf16 %v4147, %v4146
        %v4176 = vpack.c.bf16 %v4149, %v4148
        %v4177 = vpack.c.bf16 %v4151, %v4150
        %v4178 = vpack.c.bf16 %v4153, %v4152
        %v4179 = vpack.c.bf16 %v4155, %v4154
        %v4180 = vpack.c.bf16 %v4157, %v4156
        %v4181 = vpack.c.bf16 %v4159, %v4158
        %v4182 = vpack.c.bf16 %v4161, %v4160
        %v4183 = vpack.c.bf16 %v4163, %v4162
        %v4184 = vpack.c.bf16 %v4165, %v4164
        %v4185 = vpack.c.bf16 %v4167, %v4166
        %v4186 = vpack.c.bf16 %v4169, %v4168
        %v4187 = vpack.c.bf16 %v4171, %v4170
        %4204 = vrot.lane.b32.xlu0 %v4172, 96
        %v4205 = vpop.permute.xlu0 %4204
        %4206 = vrot.lane.b32.xlu0 %v4173, 96
        %v4207 = vpop.permute.xlu0 %4206
        %4208 = vrot.lane.b32.xlu0 %v4174, 96
        %v4209 = vpop.permute.xlu0 %4208
        %4210 = vrot.lane.b32.xlu0 %v4175, 96
        %v4211 = vpop.permute.xlu0 %4210
        %4212 = vrot.lane.b32.xlu0 %v4176, 96
        %v4213 = vpop.permute.xlu0 %4212
        %4214 = vrot.lane.b32.xlu0 %v4177, 96
        %v4215 = vpop.permute.xlu0 %4214
        %4216 = vrot.lane.b32.xlu0 %v4178, 96
        %v4217 = vpop.permute.xlu0 %4216
        %4218 = vrot.lane.b32.xlu0 %v4179, 96
        %v4219 = vpop.permute.xlu0 %4218
        %4220 = vrot.lane.b32.xlu0 %v4180, 96
        %v4221 = vpop.permute.xlu0 %4220
        %4222 = vrot.lane.b32.xlu0 %v4181, 96
        %v4223 = vpop.permute.xlu0 %4222
        %4224 = vrot.lane.b32.xlu0 %v4182, 96
        %v4225 = vpop.permute.xlu0 %4224
        %4226 = vrot.lane.b32.xlu0 %v4183, 96
        %v4227 = vpop.permute.xlu0 %4226
        %4228 = vrot.lane.b32.xlu0 %v4184, 96
        %v4229 = vpop.permute.xlu0 %4228
        %4230 = vrot.lane.b32.xlu0 %v4185, 96
        %v4231 = vpop.permute.xlu0 %4230
        %4232 = vrot.lane.b32.xlu0 %v4186, 96
        %v4233 = vpop.permute.xlu0 %4232
        %4234 = vrot.lane.b32.xlu0 %v4187, 96
        %v4235 = vpop.permute.xlu0 %4234
        %4252 = vst.msk [vmem:[#allocation4 + $0x20] sm:$0xff] %vm2457, %v4205
        %4253 = vst.msk [vmem:[#allocation4 + $0x58] sm:$0xff] %vm2457, %v4207
        %4254 = vst.msk [vmem:[#allocation4 + $0x90] sm:$0xff] %vm2457, %v4209
        %4255 = vst.msk [vmem:[#allocation4 + $0xc8] sm:$0xff] %vm2457, %v4211
        %4256 = vst.msk [vmem:[#allocation4 + $0x100] sm:$0xff] %vm2457, %v4213
        %4257 = vst.msk [vmem:[#allocation4 + $0x138] sm:$0xff] %vm2457, %v4215
        %4258 = vst.msk [vmem:[#allocation4 + $0x170] sm:$0xff] %vm2457, %v4217
        %4259 = vst.msk [vmem:[#allocation4 + $0x1a8] sm:$0xff] %vm2457, %v4219
        %4260 = vst.msk [vmem:[#allocation4 + $0x1e0] sm:$0xff] %vm2457, %v4221
        %4261 = vst.msk [vmem:[#allocation4 + $0x218] sm:$0xff] %vm2457, %v4223
        %4262 = vst.msk [vmem:[#allocation4 + $0x250] sm:$0xff] %vm2457, %v4225
        %4263 = vst.msk [vmem:[#allocation4 + $0x288] sm:$0xff] %vm2457, %v4227
        %4264 = vst.msk [vmem:[#allocation4 + $0x2c0] sm:$0xff] %vm2457, %v4229
        %4265 = vst.msk [vmem:[#allocation4 + $0x2f8] sm:$0xff] %vm2457, %v4231
        %4266 = vst.msk [vmem:[#allocation4 + $0x330] sm:$0xff] %vm2457, %v4233
        %4267 = vst.msk [vmem:[#allocation4 + $0x368] sm:$0xff] %vm2457, %v4235
        %s4268 = scalar_lea.vmem [#allocation3], 96
        %v4269 = vld [vmem:[%s4268] sm:$0xff]
        %v4270 = vld [vmem:[%s4268 + $0x8] sm:$0xff]
        %v4271 = vld [vmem:[%s4268 + $0x18] sm:$0xff]
        %v4272 = vld [vmem:[%s4268 + $0x20] sm:$0xff]
        %v4273 = vld [vmem:[%s4268 + $0x30] sm:$0xff]
        %v4274 = vld [vmem:[%s4268 + $0x38] sm:$0xff]
        %v4275 = vld [vmem:[%s4268 + $0x48] sm:$0xff]
        %v4276 = vld [vmem:[%s4268 + $0x50] sm:$0xff]
        %v4277 = vld [vmem:[%s4268 + $0x60] sm:$0xff]
        %v4278 = vld [vmem:[%s4268 + $0x68] sm:$0xff]
        %v4279 = vld [vmem:[%s4268 + $0x78] sm:$0xff]
        %v4280 = vld [vmem:[%s4268 + $0x80] sm:$0xff]
        %v4281 = vld [vmem:[%s4268 + $0x90] sm:$0xff]
        %v4282 = vld [vmem:[%s4268 + $0x98] sm:$0xff]
        %v4283 = vld [vmem:[%s4268 + $0xa8] sm:$0xff]
        %v4284 = vld [vmem:[%s4268 + $0xb0] sm:$0xff]
        %v4285 = vld [vmem:[%s4268 + $0xc0] sm:$0xff]
        %v4286 = vld [vmem:[%s4268 + $0xc8] sm:$0xff]
        %v4287 = vld [vmem:[%s4268 + $0xd8] sm:$0xff]
        %v4288 = vld [vmem:[%s4268 + $0xe0] sm:$0xff]
        %v4289 = vld [vmem:[%s4268 + $0xf0] sm:$0xff]
        %v4290 = vld [vmem:[%s4268 + $0xf8] sm:$0xff]
        %v4291 = vld [vmem:[%s4268 + $0x108] sm:$0xff]
        %v4292 = vld [vmem:[%s4268 + $0x110] sm:$0xff]
        %v4293 = vld [vmem:[%s4268 + $0x120] sm:$0xff]
        %v4294 = vld [vmem:[%s4268 + $0x128] sm:$0xff]
        %v4295 = vld [vmem:[%s4268 + $0x138] sm:$0xff]
        %v4296 = vld [vmem:[%s4268 + $0x140] sm:$0xff]
        %v4297 = vld [vmem:[%s4268 + $0x150] sm:$0xff]
        %v4298 = vld [vmem:[%s4268 + $0x158] sm:$0xff]
        %v4299 = vld [vmem:[%s4268 + $0x168] sm:$0xff]
        %v4300 = vld [vmem:[%s4268 + $0x170] sm:$0xff]
        %v4301 = vpack.c.bf16 %v4270, %v4269
        %v4302 = vpack.c.bf16 %v4272, %v4271
        %v4303 = vpack.c.bf16 %v4274, %v4273
        %v4304 = vpack.c.bf16 %v4276, %v4275
        %v4305 = vpack.c.bf16 %v4278, %v4277
        %v4306 = vpack.c.bf16 %v4280, %v4279
        %v4307 = vpack.c.bf16 %v4282, %v4281
        %v4308 = vpack.c.bf16 %v4284, %v4283
        %v4309 = vpack.c.bf16 %v4286, %v4285
        %v4310 = vpack.c.bf16 %v4288, %v4287
        %v4311 = vpack.c.bf16 %v4290, %v4289
        %v4312 = vpack.c.bf16 %v4292, %v4291
        %v4313 = vpack.c.bf16 %v4294, %v4293
        %v4314 = vpack.c.bf16 %v4296, %v4295
        %v4315 = vpack.c.bf16 %v4298, %v4297
        %v4316 = vpack.c.bf16 %v4300, %v4299
        %4317 = vst.msk [vmem:[#allocation4 + $0x28] sm:$0xff] %vm1705, %v4301
        %4318 = vst.msk [vmem:[#allocation4 + $0x60] sm:$0xff] %vm1705, %v4302
        %4319 = vst.msk [vmem:[#allocation4 + $0x98] sm:$0xff] %vm1705, %v4303
        %4320 = vst.msk [vmem:[#allocation4 + $0xd0] sm:$0xff] %vm1705, %v4304
        %4321 = vst.msk [vmem:[#allocation4 + $0x108] sm:$0xff] %vm1705, %v4305
        %4322 = vst.msk [vmem:[#allocation4 + $0x140] sm:$0xff] %vm1705, %v4306
        %4323 = vst.msk [vmem:[#allocation4 + $0x178] sm:$0xff] %vm1705, %v4307
        %4324 = vst.msk [vmem:[#allocation4 + $0x1b0] sm:$0xff] %vm1705, %v4308
        %4325 = vst.msk [vmem:[#allocation4 + $0x1e8] sm:$0xff] %vm1705, %v4309
        %4326 = vst.msk [vmem:[#allocation4 + $0x220] sm:$0xff] %vm1705, %v4310
        %4327 = vst.msk [vmem:[#allocation4 + $0x258] sm:$0xff] %vm1705, %v4311
        %4328 = vst.msk [vmem:[#allocation4 + $0x290] sm:$0xff] %vm1705, %v4312
        %4329 = vst.msk [vmem:[#allocation4 + $0x2c8] sm:$0xff] %vm1705, %v4313
        %4330 = vst.msk [vmem:[#allocation4 + $0x300] sm:$0xff] %vm1705, %v4314
        %4331 = vst.msk [vmem:[#allocation4 + $0x338] sm:$0xff] %vm1705, %v4315
        %4332 = vst.msk [vmem:[#allocation4 + $0x370] sm:$0xff] %vm1705, %v4316
        %v4333 = vld [vmem:[%s4268 + $0x1] sm:$0xff]
        %v4334 = vld [vmem:[%s4268 + $0x9] sm:$0xff]
        %v4335 = vld [vmem:[%s4268 + $0x19] sm:$0xff]
        %v4336 = vld [vmem:[%s4268 + $0x21] sm:$0xff]
        %v4337 = vld [vmem:[%s4268 + $0x31] sm:$0xff]
        %v4338 = vld [vmem:[%s4268 + $0x39] sm:$0xff]
        %v4339 = vld [vmem:[%s4268 + $0x49] sm:$0xff]
        %v4340 = vld [vmem:[%s4268 + $0x51] sm:$0xff]
        %v4341 = vld [vmem:[%s4268 + $0x61] sm:$0xff]
        %v4342 = vld [vmem:[%s4268 + $0x69] sm:$0xff]
        %v4343 = vld [vmem:[%s4268 + $0x79] sm:$0xff]
        %v4344 = vld [vmem:[%s4268 + $0x81] sm:$0xff]
        %v4345 = vld [vmem:[%s4268 + $0x91] sm:$0xff]
        %v4346 = vld [vmem:[%s4268 + $0x99] sm:$0xff]
        %v4347 = vld [vmem:[%s4268 + $0xa9] sm:$0xff]
        %v4348 = vld [vmem:[%s4268 + $0xb1] sm:$0xff]
        %v4349 = vld [vmem:[%s4268 + $0xc1] sm:$0xff]
        %v4350 = vld [vmem:[%s4268 + $0xc9] sm:$0xff]
        %v4351 = vld [vmem:[%s4268 + $0xd9] sm:$0xff]
        %v4352 = vld [vmem:[%s4268 + $0xe1] sm:$0xff]
        %v4353 = vld [vmem:[%s4268 + $0xf1] sm:$0xff]
        %v4354 = vld [vmem:[%s4268 + $0xf9] sm:$0xff]
        %v4355 = vld [vmem:[%s4268 + $0x109] sm:$0xff]
        %v4356 = vld [vmem:[%s4268 + $0x111] sm:$0xff]
        %v4357 = vld [vmem:[%s4268 + $0x121] sm:$0xff]
        %v4358 = vld [vmem:[%s4268 + $0x129] sm:$0xff]
        %v4359 = vld [vmem:[%s4268 + $0x139] sm:$0xff]
        %v4360 = vld [vmem:[%s4268 + $0x141] sm:$0xff]
        %v4361 = vld [vmem:[%s4268 + $0x151] sm:$0xff]
        %v4362 = vld [vmem:[%s4268 + $0x159] sm:$0xff]
        %v4363 = vld [vmem:[%s4268 + $0x169] sm:$0xff]
        %v4364 = vld [vmem:[%s4268 + $0x171] sm:$0xff]
        %v4365 = vpack.c.bf16 %v4334, %v4333
        %v4366 = vpack.c.bf16 %v4336, %v4335
        %v4367 = vpack.c.bf16 %v4338, %v4337
        %v4368 = vpack.c.bf16 %v4340, %v4339
        %v4369 = vpack.c.bf16 %v4342, %v4341
        %v4370 = vpack.c.bf16 %v4344, %v4343
        %v4371 = vpack.c.bf16 %v4346, %v4345
        %v4372 = vpack.c.bf16 %v4348, %v4347
        %v4373 = vpack.c.bf16 %v4350, %v4349
        %v4374 = vpack.c.bf16 %v4352, %v4351
        %v4375 = vpack.c.bf16 %v4354, %v4353
        %v4376 = vpack.c.bf16 %v4356, %v4355
        %v4377 = vpack.c.bf16 %v4358, %v4357
        %v4378 = vpack.c.bf16 %v4360, %v4359
        %v4379 = vpack.c.bf16 %v4362, %v4361
        %v4380 = vpack.c.bf16 %v4364, %v4363
        %4397 = vrot.lane.b32.xlu0 %v4365, 32
        %v4398 = vpop.permute.xlu0 %4397
        %4399 = vrot.lane.b32.xlu0 %v4366, 32
        %v4400 = vpop.permute.xlu0 %4399
        %4401 = vrot.lane.b32.xlu0 %v4367, 32
        %v4402 = vpop.permute.xlu0 %4401
        %4403 = vrot.lane.b32.xlu0 %v4368, 32
        %v4404 = vpop.permute.xlu0 %4403
        %4405 = vrot.lane.b32.xlu0 %v4369, 32
        %v4406 = vpop.permute.xlu0 %4405
        %4407 = vrot.lane.b32.xlu0 %v4370, 32
        %v4408 = vpop.permute.xlu0 %4407
        %4409 = vrot.lane.b32.xlu0 %v4371, 32
        %v4410 = vpop.permute.xlu0 %4409
        %4411 = vrot.lane.b32.xlu0 %v4372, 32
        %v4412 = vpop.permute.xlu0 %4411
        %4413 = vrot.lane.b32.xlu0 %v4373, 32
        %v4414 = vpop.permute.xlu0 %4413
        %4415 = vrot.lane.b32.xlu0 %v4374, 32
        %v4416 = vpop.permute.xlu0 %4415
        %4417 = vrot.lane.b32.xlu0 %v4375, 32
        %v4418 = vpop.permute.xlu0 %4417
        %4419 = vrot.lane.b32.xlu0 %v4376, 32
        %v4420 = vpop.permute.xlu0 %4419
        %4421 = vrot.lane.b32.xlu0 %v4377, 32
        %v4422 = vpop.permute.xlu0 %4421
        %4423 = vrot.lane.b32.xlu0 %v4378, 32
        %v4424 = vpop.permute.xlu0 %4423
        %4425 = vrot.lane.b32.xlu0 %v4379, 32
        %v4426 = vpop.permute.xlu0 %4425
        %4427 = vrot.lane.b32.xlu0 %v4380, 32
        %v4428 = vpop.permute.xlu0 %4427
        %4445 = vst.msk [vmem:[#allocation4 + $0x28] sm:$0xff] %vm2199, %v4398
        %4446 = vst.msk [vmem:[#allocation4 + $0x60] sm:$0xff] %vm2199, %v4400
        %4447 = vst.msk [vmem:[#allocation4 + $0x98] sm:$0xff] %vm2199, %v4402
        %4448 = vst.msk [vmem:[#allocation4 + $0xd0] sm:$0xff] %vm2199, %v4404
        %4449 = vst.msk [vmem:[#allocation4 + $0x108] sm:$0xff] %vm2199, %v4406
        %4450 = vst.msk [vmem:[#allocation4 + $0x140] sm:$0xff] %vm2199, %v4408
        %4451 = vst.msk [vmem:[#allocation4 + $0x178] sm:$0xff] %vm2199, %v4410
        %4452 = vst.msk [vmem:[#allocation4 + $0x1b0] sm:$0xff] %vm2199, %v4412
        %4453 = vst.msk [vmem:[#allocation4 + $0x1e8] sm:$0xff] %vm2199, %v4414
        %4454 = vst.msk [vmem:[#allocation4 + $0x220] sm:$0xff] %vm2199, %v4416
        %4455 = vst.msk [vmem:[#allocation4 + $0x258] sm:$0xff] %vm2199, %v4418
        %4456 = vst.msk [vmem:[#allocation4 + $0x290] sm:$0xff] %vm2199, %v4420
        %4457 = vst.msk [vmem:[#allocation4 + $0x2c8] sm:$0xff] %vm2199, %v4422
        %4458 = vst.msk [vmem:[#allocation4 + $0x300] sm:$0xff] %vm2199, %v4424
        %4459 = vst.msk [vmem:[#allocation4 + $0x338] sm:$0xff] %vm2199, %v4426
        %4460 = vst.msk [vmem:[#allocation4 + $0x370] sm:$0xff] %vm2199, %v4428
        %v4461 = vld [vmem:[%s4268 + $0x2] sm:$0xff]
        %v4462 = vld [vmem:[%s4268 + $0xa] sm:$0xff]
        %v4463 = vld [vmem:[%s4268 + $0x1a] sm:$0xff]
        %v4464 = vld [vmem:[%s4268 + $0x22] sm:$0xff]
        %v4465 = vld [vmem:[%s4268 + $0x32] sm:$0xff]
        %v4466 = vld [vmem:[%s4268 + $0x3a] sm:$0xff]
        %v4467 = vld [vmem:[%s4268 + $0x4a] sm:$0xff]
        %v4468 = vld [vmem:[%s4268 + $0x52] sm:$0xff]
        %v4469 = vld [vmem:[%s4268 + $0x62] sm:$0xff]
        %v4470 = vld [vmem:[%s4268 + $0x6a] sm:$0xff]
        %v4471 = vld [vmem:[%s4268 + $0x7a] sm:$0xff]
        %v4472 = vld [vmem:[%s4268 + $0x82] sm:$0xff]
        %v4473 = vld [vmem:[%s4268 + $0x92] sm:$0xff]
        %v4474 = vld [vmem:[%s4268 + $0x9a] sm:$0xff]
        %v4475 = vld [vmem:[%s4268 + $0xaa] sm:$0xff]
        %v4476 = vld [vmem:[%s4268 + $0xb2] sm:$0xff]
        %v4477 = vld [vmem:[%s4268 + $0xc2] sm:$0xff]
        %v4478 = vld [vmem:[%s4268 + $0xca] sm:$0xff]
        %v4479 = vld [vmem:[%s4268 + $0xda] sm:$0xff]
        %v4480 = vld [vmem:[%s4268 + $0xe2] sm:$0xff]
        %v4481 = vld [vmem:[%s4268 + $0xf2] sm:$0xff]
        %v4482 = vld [vmem:[%s4268 + $0xfa] sm:$0xff]
        %v4483 = vld [vmem:[%s4268 + $0x10a] sm:$0xff]
        %v4484 = vld [vmem:[%s4268 + $0x112] sm:$0xff]
        %v4485 = vld [vmem:[%s4268 + $0x122] sm:$0xff]
        %v4486 = vld [vmem:[%s4268 + $0x12a] sm:$0xff]
        %v4487 = vld [vmem:[%s4268 + $0x13a] sm:$0xff]
        %v4488 = vld [vmem:[%s4268 + $0x142] sm:$0xff]
        %v4489 = vld [vmem:[%s4268 + $0x152] sm:$0xff]
        %v4490 = vld [vmem:[%s4268 + $0x15a] sm:$0xff]
        %v4491 = vld [vmem:[%s4268 + $0x16a] sm:$0xff]
        %v4492 = vld [vmem:[%s4268 + $0x172] sm:$0xff]
        %v4493 = vpack.c.bf16 %v4462, %v4461
        %v4494 = vpack.c.bf16 %v4464, %v4463
        %v4495 = vpack.c.bf16 %v4466, %v4465
        %v4496 = vpack.c.bf16 %v4468, %v4467
        %v4497 = vpack.c.bf16 %v4470, %v4469
        %v4498 = vpack.c.bf16 %v4472, %v4471
        %v4499 = vpack.c.bf16 %v4474, %v4473
        %v4500 = vpack.c.bf16 %v4476, %v4475
        %v4501 = vpack.c.bf16 %v4478, %v4477
        %v4502 = vpack.c.bf16 %v4480, %v4479
        %v4503 = vpack.c.bf16 %v4482, %v4481
        %v4504 = vpack.c.bf16 %v4484, %v4483
        %v4505 = vpack.c.bf16 %v4486, %v4485
        %v4506 = vpack.c.bf16 %v4488, %v4487
        %v4507 = vpack.c.bf16 %v4490, %v4489
        %v4508 = vpack.c.bf16 %v4492, %v4491
        %4525 = vrot.lane.b32.xlu0 %v4493, 64
        %v4526 = vpop.permute.xlu0 %4525
        %4527 = vrot.lane.b32.xlu0 %v4494, 64
        %v4528 = vpop.permute.xlu0 %4527
        %4529 = vrot.lane.b32.xlu0 %v4495, 64
        %v4530 = vpop.permute.xlu0 %4529
        %4531 = vrot.lane.b32.xlu0 %v4496, 64
        %v4532 = vpop.permute.xlu0 %4531
        %4533 = vrot.lane.b32.xlu0 %v4497, 64
        %v4534 = vpop.permute.xlu0 %4533
        %4535 = vrot.lane.b32.xlu0 %v4498, 64
        %v4536 = vpop.permute.xlu0 %4535
        %4537 = vrot.lane.b32.xlu0 %v4499, 64
        %v4538 = vpop.permute.xlu0 %4537
        %4539 = vrot.lane.b32.xlu0 %v4500, 64
        %v4540 = vpop.permute.xlu0 %4539
        %4541 = vrot.lane.b32.xlu0 %v4501, 64
        %v4542 = vpop.permute.xlu0 %4541
        %4543 = vrot.lane.b32.xlu0 %v4502, 64
        %v4544 = vpop.permute.xlu0 %4543
        %4545 = vrot.lane.b32.xlu0 %v4503, 64
        %v4546 = vpop.permute.xlu0 %4545
        %4547 = vrot.lane.b32.xlu0 %v4504, 64
        %v4548 = vpop.permute.xlu0 %4547
        %4549 = vrot.lane.b32.xlu0 %v4505, 64
        %v4550 = vpop.permute.xlu0 %4549
        %4551 = vrot.lane.b32.xlu0 %v4506, 64
        %v4552 = vpop.permute.xlu0 %4551
        %4553 = vrot.lane.b32.xlu0 %v4507, 64
        %v4554 = vpop.permute.xlu0 %4553
        %4555 = vrot.lane.b32.xlu0 %v4508, 64
        %v4556 = vpop.permute.xlu0 %4555
        %4573 = vst.msk [vmem:[#allocation4 + $0x28] sm:$0xff] %vm2328, %v4526
        %4574 = vst.msk [vmem:[#allocation4 + $0x60] sm:$0xff] %vm2328, %v4528
        %4575 = vst.msk [vmem:[#allocation4 + $0x98] sm:$0xff] %vm2328, %v4530
        %4576 = vst.msk [vmem:[#allocation4 + $0xd0] sm:$0xff] %vm2328, %v4532
        %4577 = vst.msk [vmem:[#allocation4 + $0x108] sm:$0xff] %vm2328, %v4534
        %4578 = vst.msk [vmem:[#allocation4 + $0x140] sm:$0xff] %vm2328, %v4536
        %4579 = vst.msk [vmem:[#allocation4 + $0x178] sm:$0xff] %vm2328, %v4538
        %4580 = vst.msk [vmem:[#allocation4 + $0x1b0] sm:$0xff] %vm2328, %v4540
        %4581 = vst.msk [vmem:[#allocation4 + $0x1e8] sm:$0xff] %vm2328, %v4542
        %4582 = vst.msk [vmem:[#allocation4 + $0x220] sm:$0xff] %vm2328, %v4544
        %4583 = vst.msk [vmem:[#allocation4 + $0x258] sm:$0xff] %vm2328, %v4546
        %4584 = vst.msk [vmem:[#allocation4 + $0x290] sm:$0xff] %vm2328, %v4548
        %4585 = vst.msk [vmem:[#allocation4 + $0x2c8] sm:$0xff] %vm2328, %v4550
        %4586 = vst.msk [vmem:[#allocation4 + $0x300] sm:$0xff] %vm2328, %v4552
        %4587 = vst.msk [vmem:[#allocation4 + $0x338] sm:$0xff] %vm2328, %v4554
        %4588 = vst.msk [vmem:[#allocation4 + $0x370] sm:$0xff] %vm2328, %v4556
        %v4589 = vld [vmem:[%s4268 + $0x3] sm:$0xff]
        %v4590 = vld [vmem:[%s4268 + $0xb] sm:$0xff]
        %v4591 = vld [vmem:[%s4268 + $0x1b] sm:$0xff]
        %v4592 = vld [vmem:[%s4268 + $0x23] sm:$0xff]
        %v4593 = vld [vmem:[%s4268 + $0x33] sm:$0xff]
        %v4594 = vld [vmem:[%s4268 + $0x3b] sm:$0xff]
        %v4595 = vld [vmem:[%s4268 + $0x4b] sm:$0xff]
        %v4596 = vld [vmem:[%s4268 + $0x53] sm:$0xff]
        %v4597 = vld [vmem:[%s4268 + $0x63] sm:$0xff]
        %v4598 = vld [vmem:[%s4268 + $0x6b] sm:$0xff]
        %v4599 = vld [vmem:[%s4268 + $0x7b] sm:$0xff]
        %v4600 = vld [vmem:[%s4268 + $0x83] sm:$0xff]
        %v4601 = vld [vmem:[%s4268 + $0x93] sm:$0xff]
        %v4602 = vld [vmem:[%s4268 + $0x9b] sm:$0xff]
        %v4603 = vld [vmem:[%s4268 + $0xab] sm:$0xff]
        %v4604 = vld [vmem:[%s4268 + $0xb3] sm:$0xff]
        %v4605 = vld [vmem:[%s4268 + $0xc3] sm:$0xff]
        %v4606 = vld [vmem:[%s4268 + $0xcb] sm:$0xff]
        %v4607 = vld [vmem:[%s4268 + $0xdb] sm:$0xff]
        %v4608 = vld [vmem:[%s4268 + $0xe3] sm:$0xff]
        %v4609 = vld [vmem:[%s4268 + $0xf3] sm:$0xff]
        %v4610 = vld [vmem:[%s4268 + $0xfb] sm:$0xff]
        %v4611 = vld [vmem:[%s4268 + $0x10b] sm:$0xff]
        %v4612 = vld [vmem:[%s4268 + $0x113] sm:$0xff]
        %v4613 = vld [vmem:[%s4268 + $0x123] sm:$0xff]
        %v4614 = vld [vmem:[%s4268 + $0x12b] sm:$0xff]
        %v4615 = vld [vmem:[%s4268 + $0x13b] sm:$0xff]
        %v4616 = vld [vmem:[%s4268 + $0x143] sm:$0xff]
        %v4617 = vld [vmem:[%s4268 + $0x153] sm:$0xff]
        %v4618 = vld [vmem:[%s4268 + $0x15b] sm:$0xff]
        %v4619 = vld [vmem:[%s4268 + $0x16b] sm:$0xff]
        %v4620 = vld [vmem:[%s4268 + $0x173] sm:$0xff]
        %v4621 = vpack.c.bf16 %v4590, %v4589
        %v4622 = vpack.c.bf16 %v4592, %v4591
        %v4623 = vpack.c.bf16 %v4594, %v4593
        %v4624 = vpack.c.bf16 %v4596, %v4595
        %v4625 = vpack.c.bf16 %v4598, %v4597
        %v4626 = vpack.c.bf16 %v4600, %v4599
        %v4627 = vpack.c.bf16 %v4602, %v4601
        %v4628 = vpack.c.bf16 %v4604, %v4603
        %v4629 = vpack.c.bf16 %v4606, %v4605
        %v4630 = vpack.c.bf16 %v4608, %v4607
        %v4631 = vpack.c.bf16 %v4610, %v4609
        %v4632 = vpack.c.bf16 %v4612, %v4611
        %v4633 = vpack.c.bf16 %v4614, %v4613
        %v4634 = vpack.c.bf16 %v4616, %v4615
        %v4635 = vpack.c.bf16 %v4618, %v4617
        %v4636 = vpack.c.bf16 %v4620, %v4619
        %4653 = vrot.lane.b32.xlu0 %v4621, 96
        %v4654 = vpop.permute.xlu0 %4653
        %4655 = vrot.lane.b32.xlu0 %v4622, 96
        %v4656 = vpop.permute.xlu0 %4655
        %4657 = vrot.lane.b32.xlu0 %v4623, 96
        %v4658 = vpop.permute.xlu0 %4657
        %4659 = vrot.lane.b32.xlu0 %v4624, 96
        %v4660 = vpop.permute.xlu0 %4659
        %4661 = vrot.lane.b32.xlu0 %v4625, 96
        %v4662 = vpop.permute.xlu0 %4661
        %4663 = vrot.lane.b32.xlu0 %v4626, 96
        %v4664 = vpop.permute.xlu0 %4663
        %4665 = vrot.lane.b32.xlu0 %v4627, 96
        %v4666 = vpop.permute.xlu0 %4665
        %4667 = vrot.lane.b32.xlu0 %v4628, 96
        %v4668 = vpop.permute.xlu0 %4667
        %4669 = vrot.lane.b32.xlu0 %v4629, 96
        %v4670 = vpop.permute.xlu0 %4669
        %4671 = vrot.lane.b32.xlu0 %v4630, 96
        %v4672 = vpop.permute.xlu0 %4671
        %4673 = vrot.lane.b32.xlu0 %v4631, 96
        %v4674 = vpop.permute.xlu0 %4673
        %4675 = vrot.lane.b32.xlu0 %v4632, 96
        %v4676 = vpop.permute.xlu0 %4675
        %4677 = vrot.lane.b32.xlu0 %v4633, 96
        %v4678 = vpop.permute.xlu0 %4677
        %4679 = vrot.lane.b32.xlu0 %v4634, 96
        %v4680 = vpop.permute.xlu0 %4679
        %4681 = vrot.lane.b32.xlu0 %v4635, 96
        %v4682 = vpop.permute.xlu0 %4681
        %4683 = vrot.lane.b32.xlu0 %v4636, 96
        %v4684 = vpop.permute.xlu0 %4683
        %4701 = vst.msk [vmem:[#allocation4 + $0x28] sm:$0xff] %vm2457, %v4654
        %4702 = vst.msk [vmem:[#allocation4 + $0x60] sm:$0xff] %vm2457, %v4656
        %4703 = vst.msk [vmem:[#allocation4 + $0x98] sm:$0xff] %vm2457, %v4658
        %4704 = vst.msk [vmem:[#allocation4 + $0xd0] sm:$0xff] %vm2457, %v4660
        %4705 = vst.msk [vmem:[#allocation4 + $0x108] sm:$0xff] %vm2457, %v4662
        %4706 = vst.msk [vmem:[#allocation4 + $0x140] sm:$0xff] %vm2457, %v4664
        %4707 = vst.msk [vmem:[#allocation4 + $0x178] sm:$0xff] %vm2457, %v4666
        %4708 = vst.msk [vmem:[#allocation4 + $0x1b0] sm:$0xff] %vm2457, %v4668
        %4709 = vst.msk [vmem:[#allocation4 + $0x1e8] sm:$0xff] %vm2457, %v4670
        %4710 = vst.msk [vmem:[#allocation4 + $0x220] sm:$0xff] %vm2457, %v4672
        %4711 = vst.msk [vmem:[#allocation4 + $0x258] sm:$0xff] %vm2457, %v4674
        %4712 = vst.msk [vmem:[#allocation4 + $0x290] sm:$0xff] %vm2457, %v4676
        %4713 = vst.msk [vmem:[#allocation4 + $0x2c8] sm:$0xff] %vm2457, %v4678
        %4714 = vst.msk [vmem:[#allocation4 + $0x300] sm:$0xff] %vm2457, %v4680
        %4715 = vst.msk [vmem:[#allocation4 + $0x338] sm:$0xff] %vm2457, %v4682
        %4716 = vst.msk [vmem:[#allocation4 + $0x370] sm:$0xff] %vm2457, %v4684
        %v4717 = vld [vmem:[%s4268 + $0x4] sm:$0xff]
        %v4718 = vld [vmem:[%s4268 + $0xc] sm:$0xff]
        %v4719 = vld [vmem:[%s4268 + $0x1c] sm:$0xff]
        %v4720 = vld [vmem:[%s4268 + $0x24] sm:$0xff]
        %v4721 = vld [vmem:[%s4268 + $0x34] sm:$0xff]
        %v4722 = vld [vmem:[%s4268 + $0x3c] sm:$0xff]
        %v4723 = vld [vmem:[%s4268 + $0x4c] sm:$0xff]
        %v4724 = vld [vmem:[%s4268 + $0x54] sm:$0xff]
        %v4725 = vld [vmem:[%s4268 + $0x64] sm:$0xff]
        %v4726 = vld [vmem:[%s4268 + $0x6c] sm:$0xff]
        %v4727 = vld [vmem:[%s4268 + $0x7c] sm:$0xff]
        %v4728 = vld [vmem:[%s4268 + $0x84] sm:$0xff]
        %v4729 = vld [vmem:[%s4268 + $0x94] sm:$0xff]
        %v4730 = vld [vmem:[%s4268 + $0x9c] sm:$0xff]
        %v4731 = vld [vmem:[%s4268 + $0xac] sm:$0xff]
        %v4732 = vld [vmem:[%s4268 + $0xb4] sm:$0xff]
        %v4733 = vld [vmem:[%s4268 + $0xc4] sm:$0xff]
        %v4734 = vld [vmem:[%s4268 + $0xcc] sm:$0xff]
        %v4735 = vld [vmem:[%s4268 + $0xdc] sm:$0xff]
        %v4736 = vld [vmem:[%s4268 + $0xe4] sm:$0xff]
        %v4737 = vld [vmem:[%s4268 + $0xf4] sm:$0xff]
        %v4738 = vld [vmem:[%s4268 + $0xfc] sm:$0xff]
        %v4739 = vld [vmem:[%s4268 + $0x10c] sm:$0xff]
        %v4740 = vld [vmem:[%s4268 + $0x114] sm:$0xff]
        %v4741 = vld [vmem:[%s4268 + $0x124] sm:$0xff]
        %v4742 = vld [vmem:[%s4268 + $0x12c] sm:$0xff]
        %v4743 = vld [vmem:[%s4268 + $0x13c] sm:$0xff]
        %v4744 = vld [vmem:[%s4268 + $0x144] sm:$0xff]
        %v4745 = vld [vmem:[%s4268 + $0x154] sm:$0xff]
        %v4746 = vld [vmem:[%s4268 + $0x15c] sm:$0xff]
        %v4747 = vld [vmem:[%s4268 + $0x16c] sm:$0xff]
        %v4748 = vld [vmem:[%s4268 + $0x174] sm:$0xff]
        %v4749 = vpack.c.bf16 %v4718, %v4717
        %v4750 = vpack.c.bf16 %v4720, %v4719
        %v4751 = vpack.c.bf16 %v4722, %v4721
        %v4752 = vpack.c.bf16 %v4724, %v4723
        %v4753 = vpack.c.bf16 %v4726, %v4725
        %v4754 = vpack.c.bf16 %v4728, %v4727
        %v4755 = vpack.c.bf16 %v4730, %v4729
        %v4756 = vpack.c.bf16 %v4732, %v4731
        %v4757 = vpack.c.bf16 %v4734, %v4733
        %v4758 = vpack.c.bf16 %v4736, %v4735
        %v4759 = vpack.c.bf16 %v4738, %v4737
        %v4760 = vpack.c.bf16 %v4740, %v4739
        %v4761 = vpack.c.bf16 %v4742, %v4741
        %v4762 = vpack.c.bf16 %v4744, %v4743
        %v4763 = vpack.c.bf16 %v4746, %v4745
        %v4764 = vpack.c.bf16 %v4748, %v4747
        %4765 = vst.msk [vmem:[#allocation4 + $0x30] sm:$0xff] %vm1705, %v4749
        %4766 = vst.msk [vmem:[#allocation4 + $0x68] sm:$0xff] %vm1705, %v4750
        %4767 = vst.msk [vmem:[#allocation4 + $0xa0] sm:$0xff] %vm1705, %v4751
        %4768 = vst.msk [vmem:[#allocation4 + $0xd8] sm:$0xff] %vm1705, %v4752
        %4769 = vst.msk [vmem:[#allocation4 + $0x110] sm:$0xff] %vm1705, %v4753
        %4770 = vst.msk [vmem:[#allocation4 + $0x148] sm:$0xff] %vm1705, %v4754
        %4771 = vst.msk [vmem:[#allocation4 + $0x180] sm:$0xff] %vm1705, %v4755
        %4772 = vst.msk [vmem:[#allocation4 + $0x1b8] sm:$0xff] %vm1705, %v4756
        %4773 = vst.msk [vmem:[#allocation4 + $0x1f0] sm:$0xff] %vm1705, %v4757
        %4774 = vst.msk [vmem:[#allocation4 + $0x228] sm:$0xff] %vm1705, %v4758
        %4775 = vst.msk [vmem:[#allocation4 + $0x260] sm:$0xff] %vm1705, %v4759
        %4776 = vst.msk [vmem:[#allocation4 + $0x298] sm:$0xff] %vm1705, %v4760
        %4777 = vst.msk [vmem:[#allocation4 + $0x2d0] sm:$0xff] %vm1705, %v4761
        %4778 = vst.msk [vmem:[#allocation4 + $0x308] sm:$0xff] %vm1705, %v4762
        %4779 = vst.msk [vmem:[#allocation4 + $0x340] sm:$0xff] %vm1705, %v4763
        %4780 = vst.msk [vmem:[#allocation4 + $0x378] sm:$0xff] %vm1705, %v4764
        %v4781 = vld [vmem:[#allocation4] sm:$0xff]
        %v4782 = vld [vmem:[#allocation4 + $0x8] sm:$0xff]
        %v4783 = vld [vmem:[#allocation4 + $0x10] sm:$0xff]
        %v4784 = vld [vmem:[#allocation4 + $0x18] sm:$0xff]
        %v4785 = vld [vmem:[#allocation4 + $0x20] sm:$0xff]
        %v4786 = vld [vmem:[#allocation4 + $0x28] sm:$0xff]
        %v4787 = vld [vmem:[#allocation4 + $0x30] sm:$0xff]
        %v4788 = vld [vmem:[#allocation4 + $0x38] sm:$0xff]
        %v4789 = vld [vmem:[#allocation4 + $0x40] sm:$0xff]
        %v4790 = vld [vmem:[#allocation4 + $0x48] sm:$0xff]
        %v4791 = vld [vmem:[#allocation4 + $0x50] sm:$0xff]
        %v4792 = vld [vmem:[#allocation4 + $0x58] sm:$0xff]
        %v4793 = vld [vmem:[#allocation4 + $0x60] sm:$0xff]
        %v4794 = vld [vmem:[#allocation4 + $0x68] sm:$0xff]
        %v4795 = vld [vmem:[#allocation4 + $0x70] sm:$0xff]
        %v4796 = vld [vmem:[#allocation4 + $0x78] sm:$0xff]
        %v4797 = vld [vmem:[#allocation4 + $0x80] sm:$0xff]
        %v4798 = vld [vmem:[#allocation4 + $0x88] sm:$0xff]
        %v4799 = vld [vmem:[#allocation4 + $0x90] sm:$0xff]
        %v4800 = vld [vmem:[#allocation4 + $0x98] sm:$0xff]
        %v4801 = vld [vmem:[#allocation4 + $0xa0] sm:$0xff]
        %v4802 = vld [vmem:[#allocation4 + $0xa8] sm:$0xff]
        %v4803 = vld [vmem:[#allocation4 + $0xb0] sm:$0xff]
        %v4804 = vld [vmem:[#allocation4 + $0xb8] sm:$0xff]
        %v4805 = vld [vmem:[#allocation4 + $0xc0] sm:$0xff]
        %v4806 = vld [vmem:[#allocation4 + $0xc8] sm:$0xff]
        %v4807 = vld [vmem:[#allocation4 + $0xd0] sm:$0xff]
        %v4808 = vld [vmem:[#allocation4 + $0xd8] sm:$0xff]
        %v4809 = vld [vmem:[#allocation4 + $0xe0] sm:$0xff]
        %v4810 = vld [vmem:[#allocation4 + $0xe8] sm:$0xff]
        %v4811 = vld [vmem:[#allocation4 + $0xf0] sm:$0xff]
        %v4812 = vld [vmem:[#allocation4 + $0xf8] sm:$0xff]
        %v4813 = vld [vmem:[#allocation4 + $0x100] sm:$0xff]
        %v4814 = vld [vmem:[#allocation4 + $0x108] sm:$0xff]
        %v4815 = vld [vmem:[#allocation4 + $0x110] sm:$0xff]
        %v4816 = vld [vmem:[#allocation4 + $0x118] sm:$0xff]
        %v4817 = vld [vmem:[#allocation4 + $0x120] sm:$0xff]
        %v4818 = vld [vmem:[#allocation4 + $0x128] sm:$0xff]
        %v4819 = vld [vmem:[#allocation4 + $0x130] sm:$0xff]
        %v4820 = vld [vmem:[#allocation4 + $0x138] sm:$0xff]
        %v4821 = vld [vmem:[#allocation4 + $0x140] sm:$0xff]
        %v4822 = vld [vmem:[#allocation4 + $0x148] sm:$0xff]
        %v4823 = vld [vmem:[#allocation4 + $0x150] sm:$0xff]
        %v4824 = vld [vmem:[#allocation4 + $0x158] sm:$0xff]
        %v4825 = vld [vmem:[#allocation4 + $0x160] sm:$0xff]
        %v4826 = vld [vmem:[#allocation4 + $0x168] sm:$0xff]
        %v4827 = vld [vmem:[#allocation4 + $0x170] sm:$0xff]
        %v4828 = vld [vmem:[#allocation4 + $0x178] sm:$0xff]
        %v4829 = vld [vmem:[#allocation4 + $0x180] sm:$0xff]
        %v4830 = vld [vmem:[#allocation4 + $0x188] sm:$0xff]
        %v4831 = vld [vmem:[#allocation4 + $0x190] sm:$0xff]
        %v4832 = vld [vmem:[#allocation4 + $0x198] sm:$0xff]
        %v4833 = vld [vmem:[#allocation4 + $0x1a0] sm:$0xff]
        %v4834 = vld [vmem:[#allocation4 + $0x1a8] sm:$0xff]
        %v4835 = vld [vmem:[#allocation4 + $0x1b0] sm:$0xff]
        %v4836 = vld [vmem:[#allocation4 + $0x1b8] sm:$0xff]
        %v4837 = vld [vmem:[#allocation4 + $0x1c0] sm:$0xff]
        %v4838 = vld [vmem:[#allocation4 + $0x1c8] sm:$0xff]
        %v4839 = vld [vmem:[#allocation4 + $0x1d0] sm:$0xff]
        %v4840 = vld [vmem:[#allocation4 + $0x1d8] sm:$0xff]
        %v4841 = vld [vmem:[#allocation4 + $0x1e0] sm:$0xff]
        %v4842 = vld [vmem:[#allocation4 + $0x1e8] sm:$0xff]
        %v4843 = vld [vmem:[#allocation4 + $0x1f0] sm:$0xff]
        %v4844 = vld [vmem:[#allocation4 + $0x1f8] sm:$0xff]
        %v4845 = vld [vmem:[#allocation4 + $0x200] sm:$0xff]
        %v4846 = vld [vmem:[#allocation4 + $0x208] sm:$0xff]
        %v4847 = vld [vmem:[#allocation4 + $0x210] sm:$0xff]
        %v4848 = vld [vmem:[#allocation4 + $0x218] sm:$0xff]
        %v4849 = vld [vmem:[#allocation4 + $0x220] sm:$0xff]
        %v4850 = vld [vmem:[#allocation4 + $0x228] sm:$0xff]
        %v4851 = vld [vmem:[#allocation4 + $0x230] sm:$0xff]
        %v4852 = vld [vmem:[#allocation4 + $0x238] sm:$0xff]
        %v4853 = vld [vmem:[#allocation4 + $0x240] sm:$0xff]
        %v4854 = vld [vmem:[#allocation4 + $0x248] sm:$0xff]
        %v4855 = vld [vmem:[#allocation4 + $0x250] sm:$0xff]
        %v4856 = vld [vmem:[#allocation4 + $0x258] sm:$0xff]
        %v4857 = vld [vmem:[#allocation4 + $0x260] sm:$0xff]
        %v4858 = vld [vmem:[#allocation4 + $0x268] sm:$0xff]
        %v4859 = vld [vmem:[#allocation4 + $0x270] sm:$0xff]
        %v4860 = vld [vmem:[#allocation4 + $0x278] sm:$0xff]
        %v4861 = vld [vmem:[#allocation4 + $0x280] sm:$0xff]
        %v4862 = vld [vmem:[#allocation4 + $0x288] sm:$0xff]
        %v4863 = vld [vmem:[#allocation4 + $0x290] sm:$0xff]
        %v4864 = vld [vmem:[#allocation4 + $0x298] sm:$0xff]
        %v4865 = vld [vmem:[#allocation4 + $0x2a0] sm:$0xff]
        %v4866 = vld [vmem:[#allocation4 + $0x2a8] sm:$0xff]
        %v4867 = vld [vmem:[#allocation4 + $0x2b0] sm:$0xff]
        %v4868 = vld [vmem:[#allocation4 + $0x2b8] sm:$0xff]
        %v4869 = vld [vmem:[#allocation4 + $0x2c0] sm:$0xff]
        %v4870 = vld [vmem:[#allocation4 + $0x2c8] sm:$0xff]
        %v4871 = vld [vmem:[#allocation4 + $0x2d0] sm:$0xff]
        %v4872 = vld [vmem:[#allocation4 + $0x2d8] sm:$0xff]
        %v4873 = vld [vmem:[#allocation4 + $0x2e0] sm:$0xff]
        %v4874 = vld [vmem:[#allocation4 + $0x2e8] sm:$0xff]
        %v4875 = vld [vmem:[#allocation4 + $0x2f0] sm:$0xff]
        %v4876 = vld [vmem:[#allocation4 + $0x2f8] sm:$0xff]
        %v4877 = vld [vmem:[#allocation4 + $0x300] sm:$0xff]
        %v4878 = vld [vmem:[#allocation4 + $0x308] sm:$0xff]
        %v4879 = vld [vmem:[#allocation4 + $0x310] sm:$0xff]
        %v4880 = vld [vmem:[#allocation4 + $0x318] sm:$0xff]
        %v4881 = vld [vmem:[#allocation4 + $0x320] sm:$0xff]
        %v4882 = vld [vmem:[#allocation4 + $0x328] sm:$0xff]
        %v4883 = vld [vmem:[#allocation4 + $0x330] sm:$0xff]
        %v4884 = vld [vmem:[#allocation4 + $0x338] sm:$0xff]
        %v4885 = vld [vmem:[#allocation4 + $0x340] sm:$0xff]
        %v4886 = vld [vmem:[#allocation4 + $0x348] sm:$0xff]
        %v4887 = vld [vmem:[#allocation4 + $0x350] sm:$0xff]
        %v4888 = vld [vmem:[#allocation4 + $0x358] sm:$0xff]
        %v4889 = vld [vmem:[#allocation4 + $0x360] sm:$0xff]
        %v4890 = vld [vmem:[#allocation4 + $0x368] sm:$0xff]
        %v4891 = vld [vmem:[#allocation4 + $0x370] sm:$0xff]
        %v4892 = vld [vmem:[#allocation4 + $0x378] sm:$0xff]
        %v4893 = vld [vmem:[%s3] sm:$0xf]
        %v4894 = vld [vmem:[%s3 + $0x4] sm:$0xf]
        %v4895 = vld [vmem:[%s3 + $0x8] sm:$0xf]
        %v4896 = vld [vmem:[%s3 + $0xc] sm:$0xf]
        %v4897 = vld [vmem:[%s3 + $0x10] sm:$0xf]
        %v4898 = vld [vmem:[%s3 + $0x14] sm:$0xf]
        %v4899 = vld [vmem:[%s3 + $0x18] sm:$0xf]
        %v4900 = vld [vmem:[%s3 + $0x1c] sm:$0xf]
        %v4901 = vld [vmem:[%s3 + $0x20] sm:$0xf]
        %v4902 = vld [vmem:[%s3 + $0x24] sm:$0xf]
        %v4903 = vld [vmem:[%s3 + $0x28] sm:$0xf]
        %v4904 = vld [vmem:[%s3 + $0x2c] sm:$0xf]
        %v4905 = vld [vmem:[%s3 + $0x30] sm:$0xf]
        %v4906 = vld [vmem:[%s3 + $0x34] sm:$0xf]
        %v4907 = vld [vmem:[%s3 + $0x38] sm:$0xf]
        %v4908 = vld [vmem:[%s3 + $0x3c] sm:$0xf]
        %v4909 = vld [vmem:[%s3 + $0x40] sm:$0xf]
        %v4910 = vld [vmem:[%s3 + $0x44] sm:$0xf]
        %v4911 = vld [vmem:[%s3 + $0x48] sm:$0xf]
        %v4912 = vld [vmem:[%s3 + $0x4c] sm:$0xf]
        %v4913 = vld [vmem:[%s3 + $0x50] sm:$0xf]
        %v4914 = vld [vmem:[%s3 + $0x54] sm:$0xf]
        %v4915 = vld [vmem:[%s3 + $0x58] sm:$0xf]
        %v4916 = vld [vmem:[%s3 + $0x5c] sm:$0xf]
        %v4917 = vld [vmem:[%s3 + $0x60] sm:$0xf]
        %v4918 = vld [vmem:[%s3 + $0x64] sm:$0xf]
        %v4919 = vld [vmem:[%s3 + $0x68] sm:$0xf]
        %v4920 = vld [vmem:[%s3 + $0x6c] sm:$0xf]
        %v4921 = vld [vmem:[%s3 + $0x70] sm:$0xf]
        %v4922 = vld [vmem:[%s3 + $0x74] sm:$0xf]
        %v4923 = vld [vmem:[%s3 + $0x78] sm:$0xf]
        %v4924 = vld [vmem:[%s3 + $0x7c] sm:$0xf]
        %v4925 = vld [vmem:[%s3 + $0x80] sm:$0xf]
        %v4926 = vld [vmem:[%s3 + $0x84] sm:$0xf]
        %v4927 = vld [vmem:[%s3 + $0x88] sm:$0xf]
        %v4928 = vld [vmem:[%s3 + $0x8c] sm:$0xf]
        %v4929 = vld [vmem:[%s3 + $0x90] sm:$0xf]
        %v4930 = vld [vmem:[%s3 + $0x94] sm:$0xf]
        %v4931 = vld [vmem:[%s3 + $0x98] sm:$0xf]
        %v4932 = vld [vmem:[%s3 + $0x9c] sm:$0xf]
        %v4933 = vld [vmem:[%s3 + $0xa0] sm:$0xf]
        %v4934 = vld [vmem:[%s3 + $0xa4] sm:$0xf]
        %v4935 = vld [vmem:[%s3 + $0xa8] sm:$0xf]
        %v4936 = vld [vmem:[%s3 + $0xac] sm:$0xf]
        %v4937 = vld [vmem:[%s3 + $0xb0] sm:$0xf]
        %v4938 = vld [vmem:[%s3 + $0xb4] sm:$0xf]
        %v4939 = vld [vmem:[%s3 + $0xb8] sm:$0xf]
        %v4940 = vld [vmem:[%s3 + $0xbc] sm:$0xf]
        %v4941 = vld [vmem:[%s3 + $0xc0] sm:$0xf]
        %v4942 = vld [vmem:[%s3 + $0xc4] sm:$0xf]
        %v4943 = vld [vmem:[%s3 + $0xc8] sm:$0xf]
        %v4944 = vld [vmem:[%s3 + $0xcc] sm:$0xf]
        %v4945 = vld [vmem:[%s3 + $0xd0] sm:$0xf]
        %v4946 = vld [vmem:[%s3 + $0xd4] sm:$0xf]
        %v4947 = vld [vmem:[%s3 + $0xd8] sm:$0xf]
        %v4948 = vld [vmem:[%s3 + $0xdc] sm:$0xf]
        %v4949 = vld [vmem:[%s3 + $0xe0] sm:$0xf]
        %v4950 = vld [vmem:[%s3 + $0xe4] sm:$0xf]
        %v4951 = vld [vmem:[%s3 + $0xe8] sm:$0xf]
        %v4952 = vld [vmem:[%s3 + $0xec] sm:$0xf]
        %v4953 = vld [vmem:[%s3 + $0xf0] sm:$0xf]
        %v4954 = vld [vmem:[%s3 + $0xf4] sm:$0xf]
        %v4955 = vld [vmem:[%s3 + $0xf8] sm:$0xf]
        %v4956 = vld [vmem:[%s3 + $0xfc] sm:$0xf]
        %v4957 = vld [vmem:[%s3 + $0x100] sm:$0xf]
        %v4958 = vld [vmem:[%s3 + $0x104] sm:$0xf]
        %v4959 = vld [vmem:[%s3 + $0x108] sm:$0xf]
        %v4960 = vld [vmem:[%s3 + $0x10c] sm:$0xf]
        %v4961 = vld [vmem:[%s3 + $0x110] sm:$0xf]
        %v4962 = vld [vmem:[%s3 + $0x114] sm:$0xf]
        %v4963 = vld [vmem:[%s3 + $0x118] sm:$0xf]
        %v4964 = vld [vmem:[%s3 + $0x11c] sm:$0xf]
        %v4965 = vld [vmem:[%s3 + $0x120] sm:$0xf]
        %v4966 = vld [vmem:[%s3 + $0x124] sm:$0xf]
        %v4967 = vld [vmem:[%s3 + $0x128] sm:$0xf]
        %v4968 = vld [vmem:[%s3 + $0x12c] sm:$0xf]
        %v4969 = vld [vmem:[%s3 + $0x130] sm:$0xf]
        %v4970 = vld [vmem:[%s3 + $0x134] sm:$0xf]
        %v4971 = vld [vmem:[%s3 + $0x138] sm:$0xf]
        %v4972 = vld [vmem:[%s3 + $0x13c] sm:$0xf]
        %v4973 = vld [vmem:[%s3 + $0x140] sm:$0xf]
        %v4974 = vld [vmem:[%s3 + $0x144] sm:$0xf]
        %v4975 = vld [vmem:[%s3 + $0x148] sm:$0xf]
        %v4976 = vld [vmem:[%s3 + $0x14c] sm:$0xf]
        %v4977 = vld [vmem:[%s3 + $0x150] sm:$0xf]
        %v4978 = vld [vmem:[%s3 + $0x154] sm:$0xf]
        %v4979 = vld [vmem:[%s3 + $0x158] sm:$0xf]
        %v4980 = vld [vmem:[%s3 + $0x15c] sm:$0xf]
        %v4981 = vld [vmem:[%s3 + $0x160] sm:$0xf]
        %v4982 = vld [vmem:[%s3 + $0x164] sm:$0xf]
        %v4983 = vld [vmem:[%s3 + $0x168] sm:$0xf]
        %v4984 = vld [vmem:[%s3 + $0x16c] sm:$0xf]
        %v4985 = vld [vmem:[%s3 + $0x170] sm:$0xf]
        %v4986 = vld [vmem:[%s3 + $0x174] sm:$0xf]
        %v4987 = vld [vmem:[%s3 + $0x178] sm:$0xf]
        %v4988 = vld [vmem:[%s3 + $0x17c] sm:$0xf]
        %v4989 = vld [vmem:[%s3 + $0x180] sm:$0xf]
        %v4990 = vld [vmem:[%s3 + $0x184] sm:$0xf]
        %v4991 = vld [vmem:[%s3 + $0x188] sm:$0xf]
        %v4992 = vld [vmem:[%s3 + $0x18c] sm:$0xf]
        %v4993 = vld [vmem:[%s4] sm:$0x1]
        %v4995 = vlaneseq
        %v4996 = vshrl.u32 %v4995, 7
        %v4997 = vsub.s32 0, %v4996
        %v4998 = vrot.slane %v4993, %v4997
        %v5100 = vunpack.c.l.b16 %v4893
        %v5101 = vunpack.c.l.b16 %v4894
        %v5102 = vunpack.c.l.b16 %v4895
        %v5103 = vunpack.c.l.b16 %v4896
        %v5104 = vunpack.c.l.b16 %v4897
        %v5105 = vunpack.c.l.b16 %v4898
        %v5106 = vunpack.c.l.b16 %v4899
        %v5107 = vunpack.c.l.b16 %v4900
        %v5108 = vunpack.c.l.b16 %v4901
        %v5109 = vunpack.c.l.b16 %v4902
        %v5110 = vunpack.c.l.b16 %v4903
        %v5111 = vunpack.c.l.b16 %v4904
        %v5112 = vunpack.c.l.b16 %v4905
        %v5113 = vunpack.c.l.b16 %v4906
        %v5114 = vunpack.c.l.b16 %v4907
        %v5115 = vunpack.c.l.b16 %v4908
        %v5116 = vunpack.c.l.b16 %v4909
        %v5117 = vunpack.c.l.b16 %v4910
        %v5118 = vunpack.c.l.b16 %v4911
        %v5119 = vunpack.c.l.b16 %v4912
        %v5120 = vunpack.c.l.b16 %v4913
        %v5121 = vunpack.c.l.b16 %v4914
        %v5122 = vunpack.c.l.b16 %v4915
        %v5123 = vunpack.c.l.b16 %v4916
        %v5124 = vunpack.c.l.b16 %v4917
        %v5125 = vunpack.c.l.b16 %v4918
        %v5126 = vunpack.c.l.b16 %v4919
        %v5127 = vunpack.c.l.b16 %v4920
        %v5128 = vunpack.c.l.b16 %v4921
        %v5129 = vunpack.c.l.b16 %v4922
        %v5130 = vunpack.c.l.b16 %v4923
        %v5131 = vunpack.c.l.b16 %v4924
        %v5132 = vunpack.c.l.b16 %v4925
        %v5133 = vunpack.c.l.b16 %v4926
        %v5134 = vunpack.c.l.b16 %v4927
        %v5135 = vunpack.c.l.b16 %v4928
        %v5136 = vunpack.c.l.b16 %v4929
        %v5137 = vunpack.c.l.b16 %v4930
        %v5138 = vunpack.c.l.b16 %v4931
        %v5139 = vunpack.c.l.b16 %v4932
        %v5140 = vunpack.c.l.b16 %v4933
        %v5141 = vunpack.c.l.b16 %v4934
        %v5142 = vunpack.c.l.b16 %v4935
        %v5143 = vunpack.c.l.b16 %v4936
        %v5144 = vunpack.c.l.b16 %v4937
        %v5145 = vunpack.c.l.b16 %v4938
        %v5146 = vunpack.c.l.b16 %v4939
        %v5147 = vunpack.c.l.b16 %v4940
        %v5148 = vunpack.c.l.b16 %v4941
        %v5149 = vunpack.c.l.b16 %v4942
        %v5150 = vunpack.c.l.b16 %v4943
        %v5151 = vunpack.c.l.b16 %v4944
        %v5152 = vunpack.c.l.b16 %v4945
        %v5153 = vunpack.c.l.b16 %v4946
        %v5154 = vunpack.c.l.b16 %v4947
        %v5155 = vunpack.c.l.b16 %v4948
        %v5156 = vunpack.c.l.b16 %v4949
        %v5157 = vunpack.c.l.b16 %v4950
        %v5158 = vunpack.c.l.b16 %v4951
        %v5159 = vunpack.c.l.b16 %v4952
        %v5160 = vunpack.c.l.b16 %v4953
        %v5161 = vunpack.c.l.b16 %v4954
        %v5162 = vunpack.c.l.b16 %v4955
        %v5163 = vunpack.c.l.b16 %v4956
        %v5164 = vunpack.c.l.b16 %v4957
        %v5165 = vunpack.c.l.b16 %v4958
        %v5166 = vunpack.c.l.b16 %v4959
        %v5167 = vunpack.c.l.b16 %v4960
        %v5168 = vunpack.c.l.b16 %v4961
        %v5169 = vunpack.c.l.b16 %v4962
        %v5170 = vunpack.c.l.b16 %v4963
        %v5171 = vunpack.c.l.b16 %v4964
        %v5172 = vunpack.c.l.b16 %v4965
        %v5173 = vunpack.c.l.b16 %v4966
        %v5174 = vunpack.c.l.b16 %v4967
        %v5175 = vunpack.c.l.b16 %v4968
        %v5176 = vunpack.c.l.b16 %v4969
        %v5177 = vunpack.c.l.b16 %v4970
        %v5178 = vunpack.c.l.b16 %v4971
        %v5179 = vunpack.c.l.b16 %v4972
        %v5180 = vunpack.c.l.b16 %v4973
        %v5181 = vunpack.c.l.b16 %v4974
        %v5182 = vunpack.c.l.b16 %v4975
        %v5183 = vunpack.c.l.b16 %v4976
        %v5184 = vunpack.c.l.b16 %v4977
        %v5185 = vunpack.c.l.b16 %v4978
        %v5186 = vunpack.c.l.b16 %v4979
        %v5187 = vunpack.c.l.b16 %v4980
        %v5188 = vunpack.c.l.b16 %v4981
        %v5189 = vunpack.c.l.b16 %v4982
        %v5190 = vunpack.c.l.b16 %v4983
        %v5191 = vunpack.c.l.b16 %v4984
        %v5192 = vunpack.c.l.b16 %v4985
        %v5193 = vunpack.c.l.b16 %v4986
        %v5194 = vunpack.c.l.b16 %v4987
        %v5195 = vunpack.c.l.b16 %v4988
        %v5196 = vunpack.c.l.b16 %v4989
        %v5197 = vunpack.c.l.b16 %v4990
        %v5198 = vunpack.c.l.b16 %v4991
        %v5199 = vunpack.c.l.b16 %v4992
        %v5200 = vpack.c.b16 %v5101, %v5100
        %v5201 = vpack.c.b16 %v5103, %v5102
        %v5202 = vpack.c.b16 %v5105, %v5104
        %v5203 = vpack.c.b16 %v5107, %v5106
        %v5204 = vpack.c.b16 %v5109, %v5108
        %v5205 = vpack.c.b16 %v5111, %v5110
        %v5206 = vpack.c.b16 %v5113, %v5112
        %v5207 = vpack.c.b16 %v5115, %v5114
        %v5208 = vpack.c.b16 %v5117, %v5116
        %v5209 = vpack.c.b16 %v5119, %v5118
        %v5210 = vpack.c.b16 %v5121, %v5120
        %v5211 = vpack.c.b16 %v5123, %v5122
        %v5212 = vpack.c.b16 %v5125, %v5124
        %v5213 = vpack.c.b16 %v5127, %v5126
        %v5214 = vpack.c.b16 %v5129, %v5128
        %v5215 = vpack.c.b16 %v5131, %v5130
        %v5216 = vpack.c.b16 %v5133, %v5132
        %v5217 = vpack.c.b16 %v5135, %v5134
        %v5218 = vpack.c.b16 %v5137, %v5136
        %v5219 = vpack.c.b16 %v5139, %v5138
        %v5220 = vpack.c.b16 %v5141, %v5140
        %v5221 = vpack.c.b16 %v5143, %v5142
        %v5222 = vpack.c.b16 %v5145, %v5144
        %v5223 = vpack.c.b16 %v5147, %v5146
        %v5224 = vpack.c.b16 %v5149, %v5148
        %v5225 = vpack.c.b16 %v5151, %v5150
        %v5226 = vpack.c.b16 %v5153, %v5152
        %v5227 = vpack.c.b16 %v5155, %v5154
        %v5228 = vpack.c.b16 %v5157, %v5156
        %v5229 = vpack.c.b16 %v5159, %v5158
        %v5230 = vpack.c.b16 %v5161, %v5160
        %v5231 = vpack.c.b16 %v5163, %v5162
        %v5232 = vpack.c.b16 %v5165, %v5164
        %v5233 = vpack.c.b16 %v5167, %v5166
        %v5234 = vpack.c.b16 %v5169, %v5168
        %v5235 = vpack.c.b16 %v5171, %v5170
        %v5236 = vpack.c.b16 %v5173, %v5172
        %v5237 = vpack.c.b16 %v5175, %v5174
        %v5238 = vpack.c.b16 %v5177, %v5176
        %v5239 = vpack.c.b16 %v5179, %v5178
        %v5240 = vpack.c.b16 %v5181, %v5180
        %v5241 = vpack.c.b16 %v5183, %v5182
        %v5242 = vpack.c.b16 %v5185, %v5184
        %v5243 = vpack.c.b16 %v5187, %v5186
        %v5244 = vpack.c.b16 %v5189, %v5188
        %v5245 = vpack.c.b16 %v5191, %v5190
        %v5246 = vpack.c.b16 %v5193, %v5192
        %v5247 = vpack.c.b16 %v5195, %v5194
        %v5248 = vpack.c.b16 %v5197, %v5196
        %v5249 = vpack.c.b16 %v5199, %v5198
        %v5301 = vsel %vm1705, %v4787, 0
        %v5304 = vsel %vm1705, %v4794, 0
        %v5307 = vsel %vm1705, %v4801, 0
        %v5310 = vsel %vm1705, %v4808, 0
        %v5313 = vsel %vm1705, %v4815, 0
        %v5316 = vsel %vm1705, %v4822, 0
        %v5319 = vsel %vm1705, %v4829, 0
        %v5322 = vsel %vm1705, %v4836, 0
        %v5325 = vsel %vm1705, %v4843, 0
        %v5328 = vsel %vm1705, %v4850, 0
        %v5331 = vsel %vm1705, %v4857, 0
        %v5334 = vsel %vm1705, %v4864, 0
        %v5337 = vsel %vm1705, %v4871, 0
        %v5340 = vsel %vm1705, %v4878, 0
        %v5343 = vsel %vm1705, %v4885, 0
        %v5346 = vsel %vm1705, %v4892, 0
        %5348 = vmatprep.subr.bf16.mxu0 0
        %5349 = vmatpush1.bf16.msra.mxu0 %v5200
        %5350 = vmatprep.subr.bf16.mxu0 0
        %5351 = vmatpush1.bf16.msra.mxu0 %v5201
        %5352 = vmatprep.subr.bf16.mxu0 0
        %5353 = vmatpush1.bf16.msra.mxu0 %v5202
        %5354 = vmatprep.subr.bf16.mxu0 0
        %5355 = vmatpush1.bf16.msra.mxu0 %v5203
        %5356 = vmatprep.subr.bf16.mxu0 0
        %5357 = vmatpush1.bf16.msra.mxu0 %v5204
        %5358 = vmatprep.subr.bf16.mxu0 0
        %5359 = vmatpush1.bf16.msra.mxu0 %v5205
        %5360 = vmatprep.subr.bf16.mxu0 0
        %5361 = vmatpush1.bf16.msra.mxu0 %v5206
        %5362 = vmatprep.subr.bf16.mxu0 0
        %5363 = vmatpush1.bf16.msra.mxu0 %v5207
        %5364 = vmatprep.subr.bf16.mxu0 0
        %5365 = vmatpush1.bf16.msra.mxu0 %v5208
        %5366 = vmatprep.subr.bf16.mxu0 0
        %5367 = vmatpush1.bf16.msra.mxu0 %v5209
        %5368 = vmatprep.subr.bf16.mxu0 0
        %5369 = vmatpush1.bf16.msra.mxu0 %v5210
        %5370 = vmatprep.subr.bf16.mxu0 0
        %5371 = vmatpush1.bf16.msra.mxu0 %v5211
        %5372 = vmatprep.subr.bf16.mxu0 0
        %5373 = vmatpush1.bf16.msra.mxu0 %v5212
        %5374 = vmatprep.subr.bf16.mxu0 0
        %5375 = vmatpush1.bf16.msra.mxu0 %v5213
        %5376 = vmatprep.subr.bf16.mxu0 0
        %5377 = vmatpush1.bf16.msra.mxu0 %v5214
        %5378 = vmatprep.subr.bf16.mxu0 0
        %5379 = vmatpush1.bf16.msra.mxu0 %v5215
        %5380 = vmatprep.mubr.bf16.mxu0 %v4782
        %5381 = vmatmul.mubr.bf16.gmra.mrb[0].mxu0 %v4781
        %v5382 = vpop.f32.mrb[0].mxu0
        %v5383 = vadd.f32 %v4998, %v5382
        %v5384 = vpop.f32.mrb[0].mxu0
        %v5385 = vpop.f32.mrb[0].mxu0
        %v5386 = vadd.f32 %v4998, %v5385
        %v5387 = vpop.f32.mrb[0].mxu0
        %5388 = vmatprep.mubr.bf16.mxu0 %v4789
        %5389 = vmatmul.mubr.bf16.gmra.mrb[0].mxu0 %v4788
        %v5390 = vpop.f32.mrb[0].mxu0
        %v5391 = vadd.f32 %v4998, %v5390
        %v5392 = vpop.f32.mrb[0].mxu0
        %v5393 = vpop.f32.mrb[0].mxu0
        %v5394 = vadd.f32 %v4998, %v5393
        %v5395 = vpop.f32.mrb[0].mxu0
        %5396 = vmatprep.mubr.bf16.mxu0 %v4796
        %5397 = vmatmul.mubr.bf16.gmra.mrb[0].mxu0 %v4795
        %v5398 = vpop.f32.mrb[0].mxu0
        %v5399 = vadd.f32 %v4998, %v5398
        %v5400 = vpop.f32.mrb[0].mxu0
        %v5401 = vpop.f32.mrb[0].mxu0
        %v5402 = vadd.f32 %v4998, %v5401
        %v5403 = vpop.f32.mrb[0].mxu0
        %5404 = vmatprep.mubr.bf16.mxu0 %v4803
        %5405 = vmatmul.mubr.bf16.gmra.mrb[0].mxu0 %v4802
        %v5406 = vpop.f32.mrb[0].mxu0
        %v5407 = vadd.f32 %v4998, %v5406
        %v5408 = vpop.f32.mrb[0].mxu0
        %v5409 = vpop.f32.mrb[0].mxu0
        %v5410 = vadd.f32 %v4998, %v5409
        %v5411 = vpop.f32.mrb[0].mxu0
        %5412 = vmatprep.mubr.bf16.mxu0 %v4810
        %5413 = vmatmul.mubr.bf16.gmra.mrb[0].mxu0 %v4809
        %v5414 = vpop.f32.mrb[0].mxu0
        %v5415 = vadd.f32 %v4998, %v5414
        %v5416 = vpop.f32.mrb[0].mxu0
        %v5417 = vpop.f32.mrb[0].mxu0
        %v5418 = vadd.f32 %v4998, %v5417
        %v5419 = vpop.f32.mrb[0].mxu0
        %5420 = vmatprep.mubr.bf16.mxu0 %v4817
        %5421 = vmatmul.mubr.bf16.gmra.mrb[0].mxu0 %v4816
        %v5422 = vpop.f32.mrb[0].mxu0
        %v5423 = vadd.f32 %v4998, %v5422
        %v5424 = vpop.f32.mrb[0].mxu0
        %v5425 = vpop.f32.mrb[0].mxu0
        %v5426 = vadd.f32 %v4998, %v5425
        %v5427 = vpop.f32.mrb[0].mxu0
        %5428 = vmatprep.mubr.bf16.mxu0 %v4824
        %5429 = vmatmul.mubr.bf16.gmra.mrb[0].mxu0 %v4823
        %v5430 = vpop.f32.mrb[0].mxu0
        %v5431 = vadd.f32 %v4998, %v5430
        %v5432 = vpop.f32.mrb[0].mxu0
        %v5433 = vpop.f32.mrb[0].mxu0
        %v5434 = vadd.f32 %v4998, %v5433
        %v5435 = vpop.f32.mrb[0].mxu0
        %5436 = vmatprep.mubr.bf16.mxu0 %v4831
        %5437 = vmatmul.mubr.bf16.gmra.mrb[0].mxu0 %v4830
        %v5438 = vpop.f32.mrb[0].mxu0
        %v5439 = vadd.f32 %v4998, %v5438
        %v5440 = vpop.f32.mrb[0].mxu0
        %v5441 = vpop.f32.mrb[0].mxu0
        %v5442 = vadd.f32 %v4998, %v5441
        %v5443 = vpop.f32.mrb[0].mxu0
        %5444 = vmatprep.mubr.bf16.mxu0 %v4838
        %5445 = vmatmul.mubr.bf16.gmra.mrb[0].mxu0 %v4837
        %v5446 = vpop.f32.mrb[0].mxu0
        %v5447 = vadd.f32 %v4998, %v5446
        %v5448 = vpop.f32.mrb[0].mxu0
        %v5449 = vpop.f32.mrb[0].mxu0
        %v5450 = vadd.f32 %v4998, %v5449
        %v5451 = vpop.f32.mrb[0].mxu0
        %5452 = vmatprep.mubr.bf16.mxu0 %v4845
        %5453 = vmatmul.mubr.bf16.gmra.mrb[0].mxu0 %v4844
        %v5454 = vpop.f32.mrb[0].mxu0
        %v5455 = vadd.f32 %v4998, %v5454
        %v5456 = vpop.f32.mrb[0].mxu0
        %v5457 = vpop.f32.mrb[0].mxu0
        %v5458 = vadd.f32 %v4998, %v5457
        %v5459 = vpop.f32.mrb[0].mxu0
        %5460 = vmatprep.mubr.bf16.mxu0 %v4852
        %5461 = vmatmul.mubr.bf16.gmra.mrb[0].mxu0 %v4851
        %v5462 = vpop.f32.mrb[0].mxu0
        %v5463 = vadd.f32 %v4998, %v5462
        %v5464 = vpop.f32.mrb[0].mxu0
        %v5465 = vpop.f32.mrb[0].mxu0
        %v5466 = vadd.f32 %v4998, %v5465
        %v5467 = vpop.f32.mrb[0].mxu0
        %5468 = vmatprep.mubr.bf16.mxu0 %v4859
        %5469 = vmatmul.mubr.bf16.gmra.mrb[0].mxu0 %v4858
        %v5470 = vpop.f32.mrb[0].mxu0
        %v5471 = vadd.f32 %v4998, %v5470
        %v5472 = vpop.f32.mrb[0].mxu0
        %v5473 = vpop.f32.mrb[0].mxu0
        %v5474 = vadd.f32 %v4998, %v5473
        %v5475 = vpop.f32.mrb[0].mxu0
        %5476 = vmatprep.mubr.bf16.mxu0 %v4866
        %5477 = vmatmul.mubr.bf16.gmra.mrb[0].mxu0 %v4865
        %v5478 = vpop.f32.mrb[0].mxu0
        %v5479 = vadd.f32 %v4998, %v5478
        %v5480 = vpop.f32.mrb[0].mxu0
        %v5481 = vpop.f32.mrb[0].mxu0
        %v5482 = vadd.f32 %v4998, %v5481
        %v5483 = vpop.f32.mrb[0].mxu0
        %5484 = vmatprep.mubr.bf16.mxu0 %v4873
        %5485 = vmatmul.mubr.bf16.gmra.mrb[0].mxu0 %v4872
        %v5486 = vpop.f32.mrb[0].mxu0
        %v5487 = vadd.f32 %v4998, %v5486
        %v5488 = vpop.f32.mrb[0].mxu0
        %v5489 = vpop.f32.mrb[0].mxu0
        %v5490 = vadd.f32 %v4998, %v5489
        %v5491 = vpop.f32.mrb[0].mxu0
        %5492 = vmatprep.mubr.bf16.mxu0 %v4880
        %5493 = vmatmul.mubr.bf16.gmra.mrb[0].mxu0 %v4879
        %v5494 = vpop.f32.mrb[0].mxu0
        %v5495 = vadd.f32 %v4998, %v5494
        %v5496 = vpop.f32.mrb[0].mxu0
        %v5497 = vpop.f32.mrb[0].mxu0
        %v5498 = vadd.f32 %v4998, %v5497
        %v5499 = vpop.f32.mrb[0].mxu0
        %5500 = vmatprep.mubr.bf16.mxu0 %v4887
        %5501 = vmatmul.mubr.bf16.gmra.mrb[0].mxu0 %v4886
        %v5502 = vpop.f32.mrb[0].mxu0
        %v5503 = vadd.f32 %v4998, %v5502
        %v5504 = vpop.f32.mrb[0].mxu0
        %v5505 = vpop.f32.mrb[0].mxu0
        %v5506 = vadd.f32 %v4998, %v5505
        %v5507 = vpop.f32.mrb[0].mxu0
        %5508 = vdwg.mxu0
        %5509 = vmatprep.subr.bf16.mxu0 0
        %5510 = vmatpush1.bf16.msra.mxu0 %v5216
        %5511 = vmatprep.subr.bf16.mxu0 0
        %5512 = vmatpush1.bf16.msra.mxu0 %v5217
        %5513 = vmatprep.subr.bf16.mxu0 0
        %5514 = vmatpush1.bf16.msra.mxu0 %v5218
        %5515 = vmatprep.subr.bf16.mxu0 0
        %5516 = vmatpush1.bf16.msra.mxu0 %v5219
        %5517 = vmatprep.subr.bf16.mxu0 0
        %5518 = vmatpush1.bf16.msra.mxu0 %v5220
        %5519 = vmatprep.subr.bf16.mxu0 0
        %5520 = vmatpush1.bf16.msra.mxu0 %v5221
        %5521 = vmatprep.subr.bf16.mxu0 0
        %5522 = vmatpush1.bf16.msra.mxu0 %v5222
        %5523 = vmatprep.subr.bf16.mxu0 0
        %5524 = vmatpush1.bf16.msra.mxu0 %v5223
        %5525 = vmatprep.subr.bf16.mxu0 0
        %5526 = vmatpush1.bf16.msra.mxu0 %v5224
        %5527 = vmatprep.subr.bf16.mxu0 0
        %5528 = vmatpush1.bf16.msra.mxu0 %v5225
        %5529 = vmatprep.subr.bf16.mxu0 0
        %5530 = vmatpush1.bf16.msra.mxu0 %v5226
        %5531 = vmatprep.subr.bf16.mxu0 0
        %5532 = vmatpush1.bf16.msra.mxu0 %v5227
        %5533 = vmatprep.subr.bf16.mxu0 0
        %5534 = vmatpush1.bf16.msra.mxu0 %v5228
        %5535 = vmatprep.subr.bf16.mxu0 0
        %5536 = vmatpush1.bf16.msra.mxu0 %v5229
        %5537 = vmatprep.subr.bf16.mxu0 0
        %5538 = vmatpush1.bf16.msra.mxu0 %v5230
        %5539 = vmatprep.subr.bf16.mxu0 0
        %5540 = vmatpush1.bf16.msra.mxu0 %v5231
        %5541 = vmatprep.mubr.bf16.mxu0 %v4784
        %5542 = vmatmul.mubr.bf16.gmra.mrb[0].mxu0 %v4783
        %v5543 = vpop.f32.mrb[0].mxu0
        %v5544 = vadd.f32 %v5383, %v5543
        %v5545 = vpop.f32.mrb[0].mxu0
        %v5546 = vpop.f32.mrb[0].mxu0
        %v5547 = vadd.f32 %v5386, %v5546
        %v5548 = vpop.f32.mrb[0].mxu0
        %5549 = vmatprep.mubr.bf16.mxu0 %v4791
        %5550 = vmatmul.mubr.bf16.gmra.mrb[0].mxu0 %v4790
        %v5551 = vpop.f32.mrb[0].mxu0
        %v5552 = vadd.f32 %v5391, %v5551
        %v5553 = vpop.f32.mrb[0].mxu0
        %v5554 = vpop.f32.mrb[0].mxu0
        %v5555 = vadd.f32 %v5394, %v5554
        %v5556 = vpop.f32.mrb[0].mxu0
        %5557 = vmatprep.mubr.bf16.mxu0 %v4798
        %5558 = vmatmul.mubr.bf16.gmra.mrb[0].mxu0 %v4797
        %v5559 = vpop.f32.mrb[0].mxu0
        %v5560 = vadd.f32 %v5399, %v5559
        %v5561 = vpop.f32.mrb[0].mxu0
        %v5562 = vpop.f32.mrb[0].mxu0
        %v5563 = vadd.f32 %v5402, %v5562
        %v5564 = vpop.f32.mrb[0].mxu0
        %5565 = vmatprep.mubr.bf16.mxu0 %v4805
        %5566 = vmatmul.mubr.bf16.gmra.mrb[0].mxu0 %v4804
        %v5567 = vpop.f32.mrb[0].mxu0
        %v5568 = vadd.f32 %v5407, %v5567
        %v5569 = vpop.f32.mrb[0].mxu0
        %v5570 = vpop.f32.mrb[0].mxu0
        %v5571 = vadd.f32 %v5410, %v5570
        %v5572 = vpop.f32.mrb[0].mxu0
        %5573 = vmatprep.mubr.bf16.mxu0 %v4812
        %5574 = vmatmul.mubr.bf16.gmra.mrb[0].mxu0 %v4811
        %v5575 = vpop.f32.mrb[0].mxu0
        %v5576 = vadd.f32 %v5415, %v5575
        %v5577 = vpop.f32.mrb[0].mxu0
        %v5578 = vpop.f32.mrb[0].mxu0
        %v5579 = vadd.f32 %v5418, %v5578
        %v5580 = vpop.f32.mrb[0].mxu0
        %5581 = vmatprep.mubr.bf16.mxu0 %v4819
        %5582 = vmatmul.mubr.bf16.gmra.mrb[0].mxu0 %v4818
        %v5583 = vpop.f32.mrb[0].mxu0
        %v5584 = vadd.f32 %v5423, %v5583
        %v5585 = vpop.f32.mrb[0].mxu0
        %v5586 = vpop.f32.mrb[0].mxu0
        %v5587 = vadd.f32 %v5426, %v5586
        %v5588 = vpop.f32.mrb[0].mxu0
        %5589 = vmatprep.mubr.bf16.mxu0 %v4826
        %5590 = vmatmul.mubr.bf16.gmra.mrb[0].mxu0 %v4825
        %v5591 = vpop.f32.mrb[0].mxu0
        %v5592 = vadd.f32 %v5431, %v5591
        %v5593 = vpop.f32.mrb[0].mxu0
        %v5594 = vpop.f32.mrb[0].mxu0
        %v5595 = vadd.f32 %v5434, %v5594
        %v5596 = vpop.f32.mrb[0].mxu0
        %5597 = vmatprep.mubr.bf16.mxu0 %v4833
        %5598 = vmatmul.mubr.bf16.gmra.mrb[0].mxu0 %v4832
        %v5599 = vpop.f32.mrb[0].mxu0
        %v5600 = vadd.f32 %v5439, %v5599
        %v5601 = vpop.f32.mrb[0].mxu0
        %v5602 = vpop.f32.mrb[0].mxu0
        %v5603 = vadd.f32 %v5442, %v5602
        %v5604 = vpop.f32.mrb[0].mxu0
        %5605 = vmatprep.mubr.bf16.mxu0 %v4840
        %5606 = vmatmul.mubr.bf16.gmra.mrb[0].mxu0 %v4839
        %v5607 = vpop.f32.mrb[0].mxu0
        %v5608 = vadd.f32 %v5447, %v5607
        %v5609 = vpop.f32.mrb[0].mxu0
        %v5610 = vpop.f32.mrb[0].mxu0
        %v5611 = vadd.f32 %v5450, %v5610
        %v5612 = vpop.f32.mrb[0].mxu0
        %5613 = vmatprep.mubr.bf16.mxu0 %v4847
        %5614 = vmatmul.mubr.bf16.gmra.mrb[0].mxu0 %v4846
        %v5615 = vpop.f32.mrb[0].mxu0
        %v5616 = vadd.f32 %v5455, %v5615
        %v5617 = vpop.f32.mrb[0].mxu0
        %v5618 = vpop.f32.mrb[0].mxu0
        %v5619 = vadd.f32 %v5458, %v5618
        %v5620 = vpop.f32.mrb[0].mxu0
        %5621 = vmatprep.mubr.bf16.mxu0 %v4854
        %5622 = vmatmul.mubr.bf16.gmra.mrb[0].mxu0 %v4853
        %v5623 = vpop.f32.mrb[0].mxu0
        %v5624 = vadd.f32 %v5463, %v5623
        %v5625 = vpop.f32.mrb[0].mxu0
        %v5626 = vpop.f32.mrb[0].mxu0
        %v5627 = vadd.f32 %v5466, %v5626
        %v5628 = vpop.f32.mrb[0].mxu0
        %5629 = vmatprep.mubr.bf16.mxu0 %v4861
        %5630 = vmatmul.mubr.bf16.gmra.mrb[0].mxu0 %v4860
        %v5631 = vpop.f32.mrb[0].mxu0
        %v5632 = vadd.f32 %v5471, %v5631
        %v5633 = vpop.f32.mrb[0].mxu0
        %v5634 = vpop.f32.mrb[0].mxu0
        %v5635 = vadd.f32 %v5474, %v5634
        %v5636 = vpop.f32.mrb[0].mxu0
        %5637 = vmatprep.mubr.bf16.mxu0 %v4868
        %5638 = vmatmul.mubr.bf16.gmra.mrb[0].mxu0 %v4867
        %v5639 = vpop.f32.mrb[0].mxu0
        %v5640 = vadd.f32 %v5479, %v5639
        %v5641 = vpop.f32.mrb[0].mxu0
        %v5642 = vpop.f32.mrb[0].mxu0
        %v5643 = vadd.f32 %v5482, %v5642
        %v5644 = vpop.f32.mrb[0].mxu0
        %5645 = vmatprep.mubr.bf16.mxu0 %v4875
        %5646 = vmatmul.mubr.bf16.gmra.mrb[0].mxu0 %v4874
        %v5647 = vpop.f32.mrb[0].mxu0
        %v5648 = vadd.f32 %v5487, %v5647
        %v5649 = vpop.f32.mrb[0].mxu0
        %v5650 = vpop.f32.mrb[0].mxu0
        %v5651 = vadd.f32 %v5490, %v5650
        %v5652 = vpop.f32.mrb[0].mxu0
        %5653 = vmatprep.mubr.bf16.mxu0 %v4882
        %5654 = vmatmul.mubr.bf16.gmra.mrb[0].mxu0 %v4881
        %v5655 = vpop.f32.mrb[0].mxu0
        %v5656 = vadd.f32 %v5495, %v5655
        %v5657 = vpop.f32.mrb[0].mxu0
        %v5658 = vpop.f32.mrb[0].mxu0
        %v5659 = vadd.f32 %v5498, %v5658
        %v5660 = vpop.f32.mrb[0].mxu0
        %5661 = vmatprep.mubr.bf16.mxu0 %v4889
        %5662 = vmatmul.mubr.bf16.gmra.mrb[0].mxu0 %v4888
        %v5663 = vpop.f32.mrb[0].mxu0
        %v5664 = vadd.f32 %v5503, %v5663
        %v5665 = vpop.f32.mrb[0].mxu0
        %v5666 = vpop.f32.mrb[0].mxu0
        %v5667 = vadd.f32 %v5506, %v5666
        %v5668 = vpop.f32.mrb[0].mxu0
        %5669 = vdwg.mxu0
        %5670 = vmatprep.subr.bf16.mxu0 0
        %5671 = vmatpush1.bf16.msra.mxu0 %v5232
        %5672 = vmatprep.subr.bf16.mxu0 0
        %5673 = vmatpush1.bf16.msra.mxu0 %v5233
        %5674 = vmatprep.subr.bf16.mxu0 0
        %5675 = vmatpush1.bf16.msra.mxu0 %v5234
        %5676 = vmatprep.subr.bf16.mxu0 0
        %5677 = vmatpush1.bf16.msra.mxu0 %v5235
        %5678 = vmatprep.subr.bf16.mxu0 0
        %5679 = vmatpush1.bf16.msra.mxu0 %v5236
        %5680 = vmatprep.subr.bf16.mxu0 0
        %5681 = vmatpush1.bf16.msra.mxu0 %v5237
        %5682 = vmatprep.subr.bf16.mxu0 0
        %5683 = vmatpush1.bf16.msra.mxu0 %v5238
        %5684 = vmatprep.subr.bf16.mxu0 0
        %5685 = vmatpush1.bf16.msra.mxu0 %v5239
        %5686 = vmatprep.subr.bf16.mxu0 0
        %5687 = vmatpush1.bf16.msra.mxu0 %v5240
        %5688 = vmatprep.subr.bf16.mxu0 0
        %5689 = vmatpush1.bf16.msra.mxu0 %v5241
        %5690 = vmatprep.subr.bf16.mxu0 0
        %5691 = vmatpush1.bf16.msra.mxu0 %v5242
        %5692 = vmatprep.subr.bf16.mxu0 0
        %5693 = vmatpush1.bf16.msra.mxu0 %v5243
        %5694 = vmatprep.subr.bf16.mxu0 0
        %5695 = vmatpush1.bf16.msra.mxu0 %v5244
        %5696 = vmatprep.subr.bf16.mxu0 0
        %5697 = vmatpush1.bf16.msra.mxu0 %v5245
        %5698 = vmatprep.subr.bf16.mxu0 0
        %5699 = vmatpush1.bf16.msra.mxu0 %v5246
        %5700 = vmatprep.subr.bf16.mxu0 0
        %5701 = vmatpush1.bf16.msra.mxu0 %v5247
        %5702 = vmatprep.mubr.bf16.mxu0 %v4786
        %5703 = vmatmul.mubr.bf16.gmra.mrb[0].mxu0 %v4785
        %v5704 = vpop.f32.mrb[0].mxu0
        %v5705 = vadd.f32 %v5544, %v5704
        %v5706 = vpop.f32.mrb[0].mxu0
        %v5707 = vpop.f32.mrb[0].mxu0
        %v5708 = vadd.f32 %v5547, %v5707
        %v5709 = vpop.f32.mrb[0].mxu0
        %5710 = vmatprep.mubr.bf16.mxu0 %v4793
        %5711 = vmatmul.mubr.bf16.gmra.mrb[0].mxu0 %v4792
        %v5712 = vpop.f32.mrb[0].mxu0
        %v5713 = vadd.f32 %v5552, %v5712
        %v5714 = vpop.f32.mrb[0].mxu0
        %v5715 = vpop.f32.mrb[0].mxu0
        %v5716 = vadd.f32 %v5555, %v5715
        %v5717 = vpop.f32.mrb[0].mxu0
        %5718 = vmatprep.mubr.bf16.mxu0 %v4800
        %5719 = vmatmul.mubr.bf16.gmra.mrb[0].mxu0 %v4799
        %v5720 = vpop.f32.mrb[0].mxu0
        %v5721 = vadd.f32 %v5560, %v5720
        %v5722 = vpop.f32.mrb[0].mxu0
        %v5723 = vpop.f32.mrb[0].mxu0
        %v5724 = vadd.f32 %v5563, %v5723
        %v5725 = vpop.f32.mrb[0].mxu0
        %5726 = vmatprep.mubr.bf16.mxu0 %v4807
        %5727 = vmatmul.mubr.bf16.gmra.mrb[0].mxu0 %v4806
        %v5728 = vpop.f32.mrb[0].mxu0
        %v5729 = vadd.f32 %v5568, %v5728
        %v5730 = vpop.f32.mrb[0].mxu0
        %v5731 = vpop.f32.mrb[0].mxu0
        %v5732 = vadd.f32 %v5571, %v5731
        %v5733 = vpop.f32.mrb[0].mxu0
        %5734 = vmatprep.mubr.bf16.mxu0 %v4814
        %5735 = vmatmul.mubr.bf16.gmra.mrb[0].mxu0 %v4813
        %v5736 = vpop.f32.mrb[0].mxu0
        %v5737 = vadd.f32 %v5576, %v5736
        %v5738 = vpop.f32.mrb[0].mxu0
        %v5739 = vpop.f32.mrb[0].mxu0
        %v5740 = vadd.f32 %v5579, %v5739
        %v5741 = vpop.f32.mrb[0].mxu0
        %5742 = vmatprep.mubr.bf16.mxu0 %v4821
        %5743 = vmatmul.mubr.bf16.gmra.mrb[0].mxu0 %v4820
        %v5744 = vpop.f32.mrb[0].mxu0
        %v5745 = vadd.f32 %v5584, %v5744
        %v5746 = vpop.f32.mrb[0].mxu0
        %v5747 = vpop.f32.mrb[0].mxu0
        %v5748 = vadd.f32 %v5587, %v5747
        %v5749 = vpop.f32.mrb[0].mxu0
        %5750 = vmatprep.mubr.bf16.mxu0 %v4828
        %5751 = vmatmul.mubr.bf16.gmra.mrb[0].mxu0 %v4827
        %v5752 = vpop.f32.mrb[0].mxu0
        %v5753 = vadd.f32 %v5592, %v5752
        %v5754 = vpop.f32.mrb[0].mxu0
        %v5755 = vpop.f32.mrb[0].mxu0
        %v5756 = vadd.f32 %v5595, %v5755
        %v5757 = vpop.f32.mrb[0].mxu0
        %5758 = vmatprep.mubr.bf16.mxu0 %v4835
        %5759 = vmatmul.mubr.bf16.gmra.mrb[0].mxu0 %v4834
        %v5760 = vpop.f32.mrb[0].mxu0
        %v5761 = vadd.f32 %v5600, %v5760
        %v5762 = vpop.f32.mrb[0].mxu0
        %v5763 = vpop.f32.mrb[0].mxu0
        %v5764 = vadd.f32 %v5603, %v5763
        %v5765 = vpop.f32.mrb[0].mxu0
        %5766 = vmatprep.mubr.bf16.mxu0 %v4842
        %5767 = vmatmul.mubr.bf16.gmra.mrb[0].mxu0 %v4841
        %v5768 = vpop.f32.mrb[0].mxu0
        %v5769 = vadd.f32 %v5608, %v5768
        %v5770 = vpop.f32.mrb[0].mxu0
        %v5771 = vpop.f32.mrb[0].mxu0
        %v5772 = vadd.f32 %v5611, %v5771
        %v5773 = vpop.f32.mrb[0].mxu0
        %5774 = vmatprep.mubr.bf16.mxu0 %v4849
        %5775 = vmatmul.mubr.bf16.gmra.mrb[0].mxu0 %v4848
        %v5776 = vpop.f32.mrb[0].mxu0
        %v5777 = vadd.f32 %v5616, %v5776
        %v5778 = vpop.f32.mrb[0].mxu0
        %v5779 = vpop.f32.mrb[0].mxu0
        %v5780 = vadd.f32 %v5619, %v5779
        %v5781 = vpop.f32.mrb[0].mxu0
        %5782 = vmatprep.mubr.bf16.mxu0 %v4856
        %5783 = vmatmul.mubr.bf16.gmra.mrb[0].mxu0 %v4855
        %v5784 = vpop.f32.mrb[0].mxu0
        %v5785 = vadd.f32 %v5624, %v5784
        %v5786 = vpop.f32.mrb[0].mxu0
        %v5787 = vpop.f32.mrb[0].mxu0
        %v5788 = vadd.f32 %v5627, %v5787
        %v5789 = vpop.f32.mrb[0].mxu0
        %5790 = vmatprep.mubr.bf16.mxu0 %v4863
        %5791 = vmatmul.mubr.bf16.gmra.mrb[0].mxu0 %v4862
        %v5792 = vpop.f32.mrb[0].mxu0
        %v5793 = vadd.f32 %v5632, %v5792
        %v5794 = vpop.f32.mrb[0].mxu0
        %v5795 = vpop.f32.mrb[0].mxu0
        %v5796 = vadd.f32 %v5635, %v5795
        %v5797 = vpop.f32.mrb[0].mxu0
        %5798 = vmatprep.mubr.bf16.mxu0 %v4870
        %5799 = vmatmul.mubr.bf16.gmra.mrb[0].mxu0 %v4869
        %v5800 = vpop.f32.mrb[0].mxu0
        %v5801 = vadd.f32 %v5640, %v5800
        %v5802 = vpop.f32.mrb[0].mxu0
        %v5803 = vpop.f32.mrb[0].mxu0
        %v5804 = vadd.f32 %v5643, %v5803
        %v5805 = vpop.f32.mrb[0].mxu0
        %5806 = vmatprep.mubr.bf16.mxu0 %v4877
        %5807 = vmatmul.mubr.bf16.gmra.mrb[0].mxu0 %v4876
        %v5808 = vpop.f32.mrb[0].mxu0
        %v5809 = vadd.f32 %v5648, %v5808
        %v5810 = vpop.f32.mrb[0].mxu0
        %v5811 = vpop.f32.mrb[0].mxu0
        %v5812 = vadd.f32 %v5651, %v5811
        %v5813 = vpop.f32.mrb[0].mxu0
        %5814 = vmatprep.mubr.bf16.mxu0 %v4884
        %5815 = vmatmul.mubr.bf16.gmra.mrb[0].mxu0 %v4883
        %v5816 = vpop.f32.mrb[0].mxu0
        %v5817 = vadd.f32 %v5656, %v5816
        %v5818 = vpop.f32.mrb[0].mxu0
        %v5819 = vpop.f32.mrb[0].mxu0
        %v5820 = vadd.f32 %v5659, %v5819
        %v5821 = vpop.f32.mrb[0].mxu0
        %5822 = vmatprep.mubr.bf16.mxu0 %v4891
        %5823 = vmatmul.mubr.bf16.gmra.mrb[0].mxu0 %v4890
        %v5824 = vpop.f32.mrb[0].mxu0
        %v5825 = vadd.f32 %v5664, %v5824
        %v5826 = vpop.f32.mrb[0].mxu0
        %v5827 = vpop.f32.mrb[0].mxu0
        %v5828 = vadd.f32 %v5667, %v5827
        %v5829 = vpop.f32.mrb[0].mxu0
        %5830 = vdwg.mxu0
        %5831 = vmatprep.subr.bf16.mxu0 0
        %5832 = vmatpush1.bf16.msra.mxu0 %v5248
        %5833 = vmatprep.subr.bf16.mxu0 0
        %5834 = vmatpush1.bf16.msra.mxu0 %v5249
        %5835 = vmatprep.subr.bf16.mxu0 0
        %5836 = vmatpush1.bf16.msra.mxu0 0
        %5837 = vmatprep.subr.bf16.mxu0 0
        %5838 = vmatpush1.bf16.msra.mxu0 0
        %5839 = vmatprep.subr.bf16.mxu0 0
        %5840 = vmatpush1.bf16.msra.mxu0 0
        %5841 = vmatprep.subr.bf16.mxu0 0
        %5842 = vmatpush1.bf16.msra.mxu0 0
        %5843 = vmatprep.subr.bf16.mxu0 0
        %5844 = vmatpush1.bf16.msra.mxu0 0
        %5845 = vmatprep.subr.bf16.mxu0 0
        %5846 = vmatpush1.bf16.msra.mxu0 0
        %5847 = vmatprep.subr.bf16.mxu0 0
        %5848 = vmatpush1.bf16.msra.mxu0 0
        %5849 = vmatprep.subr.bf16.mxu0 0
        %5850 = vmatpush1.bf16.msra.mxu0 0
        %5851 = vmatprep.subr.bf16.mxu0 0
        %5852 = vmatpush1.bf16.msra.mxu0 0
        %5853 = vmatprep.subr.bf16.mxu0 0
        %5854 = vmatpush1.bf16.msra.mxu0 0
        %5855 = vmatprep.subr.bf16.mxu0 0
        %5856 = vmatpush1.bf16.msra.mxu0 0
        %5857 = vmatprep.subr.bf16.mxu0 0
        %5858 = vmatpush1.bf16.msra.mxu0 0
        %5859 = vmatprep.subr.bf16.mxu0 0
        %5860 = vmatpush1.bf16.msra.mxu0 0
        %5861 = vmatprep.subr.bf16.mxu0 0
        %5862 = vmatpush1.bf16.msra.mxu0 0
        %5863 = vmatprep.mubr.bf16.mxu0 0
        %5864 = vmatmul.mubr.bf16.gmra.mrb[0].mxu0 %v5301
        %v5865 = vpop.f32.mrb[0].mxu0
        %v5866 = vadd.f32 %v5705, %v5865
        %v5867 = vpop.f32.mrb[0].mxu0
        %v5868 = vpop.f32.mrb[0].mxu0
        %v5869 = vadd.f32 %v5708, %v5868
        %v5870 = vpop.f32.mrb[0].mxu0
        %5871 = vmatprep.mubr.bf16.mxu0 0
        %5872 = vmatmul.mubr.bf16.gmra.mrb[0].mxu0 %v5304
        %v5873 = vpop.f32.mrb[0].mxu0
        %v5874 = vadd.f32 %v5713, %v5873
        %v5875 = vpop.f32.mrb[0].mxu0
        %v5876 = vpop.f32.mrb[0].mxu0
        %v5877 = vadd.f32 %v5716, %v5876
        %v5878 = vpop.f32.mrb[0].mxu0
        %5879 = vmatprep.mubr.bf16.mxu0 0
        %5880 = vmatmul.mubr.bf16.gmra.mrb[0].mxu0 %v5307
        %v5881 = vpop.f32.mrb[0].mxu0
        %v5882 = vadd.f32 %v5721, %v5881
        %v5883 = vpop.f32.mrb[0].mxu0
        %v5884 = vpop.f32.mrb[0].mxu0
        %v5885 = vadd.f32 %v5724, %v5884
        %v5886 = vpop.f32.mrb[0].mxu0
        %5887 = vmatprep.mubr.bf16.mxu0 0
        %5888 = vmatmul.mubr.bf16.gmra.mrb[0].mxu0 %v5310
        %v5889 = vpop.f32.mrb[0].mxu0
        %v5890 = vadd.f32 %v5729, %v5889
        %v5891 = vpop.f32.mrb[0].mxu0
        %v5892 = vpop.f32.mrb[0].mxu0
        %v5893 = vadd.f32 %v5732, %v5892
        %v5894 = vpop.f32.mrb[0].mxu0
        %5895 = vmatprep.mubr.bf16.mxu0 0
        %5896 = vmatmul.mubr.bf16.gmra.mrb[0].mxu0 %v5313
        %v5897 = vpop.f32.mrb[0].mxu0
        %v5898 = vadd.f32 %v5737, %v5897
        %v5899 = vpop.f32.mrb[0].mxu0
        %v5900 = vpop.f32.mrb[0].mxu0
        %v5901 = vadd.f32 %v5740, %v5900
        %v5902 = vpop.f32.mrb[0].mxu0
        %5903 = vmatprep.mubr.bf16.mxu0 0
        %5904 = vmatmul.mubr.bf16.gmra.mrb[0].mxu0 %v5316
        %v5905 = vpop.f32.mrb[0].mxu0
        %v5906 = vadd.f32 %v5745, %v5905
        %v5907 = vpop.f32.mrb[0].mxu0
        %v5908 = vpop.f32.mrb[0].mxu0
        %v5909 = vadd.f32 %v5748, %v5908
        %v5910 = vpop.f32.mrb[0].mxu0
        %5911 = vmatprep.mubr.bf16.mxu0 0
        %5912 = vmatmul.mubr.bf16.gmra.mrb[0].mxu0 %v5319
        %v5913 = vpop.f32.mrb[0].mxu0
        %v5914 = vadd.f32 %v5753, %v5913
        %v5915 = vpop.f32.mrb[0].mxu0
        %v5916 = vpop.f32.mrb[0].mxu0
        %v5917 = vadd.f32 %v5756, %v5916
        %v5918 = vpop.f32.mrb[0].mxu0
        %5919 = vmatprep.mubr.bf16.mxu0 0
        %5920 = vmatmul.mubr.bf16.gmra.mrb[0].mxu0 %v5322
        %v5921 = vpop.f32.mrb[0].mxu0
        %v5922 = vadd.f32 %v5761, %v5921
        %v5923 = vpop.f32.mrb[0].mxu0
        %v5924 = vpop.f32.mrb[0].mxu0
        %v5925 = vadd.f32 %v5764, %v5924
        %v5926 = vpop.f32.mrb[0].mxu0
        %5927 = vmatprep.mubr.bf16.mxu0 0
        %5928 = vmatmul.mubr.bf16.gmra.mrb[0].mxu0 %v5325
        %v5929 = vpop.f32.mrb[0].mxu0
        %v5930 = vadd.f32 %v5769, %v5929
        %v5931 = vpop.f32.mrb[0].mxu0
        %v5932 = vpop.f32.mrb[0].mxu0
        %v5933 = vadd.f32 %v5772, %v5932
        %v5934 = vpop.f32.mrb[0].mxu0
        %5935 = vmatprep.mubr.bf16.mxu0 0
        %5936 = vmatmul.mubr.bf16.gmra.mrb[0].mxu0 %v5328
        %v5937 = vpop.f32.mrb[0].mxu0
        %v5938 = vadd.f32 %v5777, %v5937
        %v5939 = vpop.f32.mrb[0].mxu0
        %v5940 = vpop.f32.mrb[0].mxu0
        %v5941 = vadd.f32 %v5780, %v5940
        %v5942 = vpop.f32.mrb[0].mxu0
        %5943 = vmatprep.mubr.bf16.mxu0 0
        %5944 = vmatmul.mubr.bf16.gmra.mrb[0].mxu0 %v5331
        %v5945 = vpop.f32.mrb[0].mxu0
        %v5946 = vadd.f32 %v5785, %v5945
        %v5947 = vpop.f32.mrb[0].mxu0
        %v5948 = vpop.f32.mrb[0].mxu0
        %v5949 = vadd.f32 %v5788, %v5948
        %v5950 = vpop.f32.mrb[0].mxu0
        %5951 = vmatprep.mubr.bf16.mxu0 0
        %5952 = vmatmul.mubr.bf16.gmra.mrb[0].mxu0 %v5334
        %v5953 = vpop.f32.mrb[0].mxu0
        %v5954 = vadd.f32 %v5793, %v5953
        %v5955 = vpop.f32.mrb[0].mxu0
        %v5956 = vpop.f32.mrb[0].mxu0
        %v5957 = vadd.f32 %v5796, %v5956
        %v5958 = vpop.f32.mrb[0].mxu0
        %5959 = vmatprep.mubr.bf16.mxu0 0
        %5960 = vmatmul.mubr.bf16.gmra.mrb[0].mxu0 %v5337
        %v5961 = vpop.f32.mrb[0].mxu0
        %v5962 = vadd.f32 %v5801, %v5961
        %v5963 = vpop.f32.mrb[0].mxu0
        %v5964 = vpop.f32.mrb[0].mxu0
        %v5965 = vadd.f32 %v5804, %v5964
        %v5966 = vpop.f32.mrb[0].mxu0
        %5967 = vmatprep.mubr.bf16.mxu0 0
        %5968 = vmatmul.mubr.bf16.gmra.mrb[0].mxu0 %v5340
        %v5969 = vpop.f32.mrb[0].mxu0
        %v5970 = vadd.f32 %v5809, %v5969
        %v5971 = vpop.f32.mrb[0].mxu0
        %v5972 = vpop.f32.mrb[0].mxu0
        %v5973 = vadd.f32 %v5812, %v5972
        %v5974 = vpop.f32.mrb[0].mxu0
        %5975 = vmatprep.mubr.bf16.mxu0 0
        %5976 = vmatmul.mubr.bf16.gmra.mrb[0].mxu0 %v5343
        %v5977 = vpop.f32.mrb[0].mxu0
        %v5978 = vadd.f32 %v5817, %v5977
        %v5979 = vpop.f32.mrb[0].mxu0
        %v5980 = vpop.f32.mrb[0].mxu0
        %v5981 = vadd.f32 %v5820, %v5980
        %v5982 = vpop.f32.mrb[0].mxu0
        %5983 = vmatprep.mubr.bf16.mxu0 0
        %5984 = vmatmul.mubr.bf16.gmra.mrb[0].mxu0 %v5346
        %v5985 = vpop.f32.mrb[0].mxu0
        %v5986 = vadd.f32 %v5825, %v5985
        %v5987 = vpop.f32.mrb[0].mxu0
        %v5988 = vpop.f32.mrb[0].mxu0
        %v5989 = vadd.f32 %v5828, %v5988
        %v5990 = vpop.f32.mrb[0].mxu0
        %5991 = vdwg.mxu0
        %v5992 = vmax.f32 %v5866, 0.0
        %v5993 = vmax.f32 %v5869, 0.0
        %v5994 = vmax.f32 %v5874, 0.0
        %v5995 = vmax.f32 %v5877, 0.0
        %v5996 = vmax.f32 %v5882, 0.0
        %v5997 = vmax.f32 %v5885, 0.0
        %v5998 = vmax.f32 %v5890, 0.0
        %v5999 = vmax.f32 %v5893, 0.0
        %v6000 = vmax.f32 %v5898, 0.0
        %v6001 = vmax.f32 %v5901, 0.0
        %v6002 = vmax.f32 %v5906, 0.0
        %v6003 = vmax.f32 %v5909, 0.0
        %v6004 = vmax.f32 %v5914, 0.0
        %v6005 = vmax.f32 %v5917, 0.0
        %v6006 = vmax.f32 %v5922, 0.0
        %v6007 = vmax.f32 %v5925, 0.0
        %v6008 = vmax.f32 %v5930, 0.0
        %v6009 = vmax.f32 %v5933, 0.0
        %v6010 = vmax.f32 %v5938, 0.0
        %v6011 = vmax.f32 %v5941, 0.0
        %v6012 = vmax.f32 %v5946, 0.0
        %v6013 = vmax.f32 %v5949, 0.0
        %v6014 = vmax.f32 %v5954, 0.0
        %v6015 = vmax.f32 %v5957, 0.0
        %v6016 = vmax.f32 %v5962, 0.0
        %v6017 = vmax.f32 %v5965, 0.0
        %v6018 = vmax.f32 %v5970, 0.0
        %v6019 = vmax.f32 %v5973, 0.0
        %v6020 = vmax.f32 %v5978, 0.0
        %v6021 = vmax.f32 %v5981, 0.0
        %v6022 = vmax.f32 %v5986, 0.0
        %v6023 = vmax.f32 %v5989, 0.0
        %v6024 = vmax.f32 %v5992, %v5994
        %v6025 = vmax.f32 %v5993, %v5995
        %v6026 = vmax.f32 %v5996, %v5998
        %v6027 = vmax.f32 %v5997, %v5999
        %v6028 = vmax.f32 %v6000, %v6002
        %v6029 = vmax.f32 %v6001, %v6003
        %v6030 = vmax.f32 %v6004, %v6006
        %v6031 = vmax.f32 %v6005, %v6007
        %v6032 = vmax.f32 %v6008, %v6010
        %v6033 = vmax.f32 %v6009, %v6011
        %v6034 = vmax.f32 %v6012, %v6014
        %v6035 = vmax.f32 %v6013, %v6015
        %v6036 = vmax.f32 %v6016, %v6018
        %v6037 = vmax.f32 %v6017, %v6019
        %v6038 = vmax.f32 %v6020, %v6022
        %v6039 = vmax.f32 %v6021, %v6023
        %vm6040 = vcmask 523264
        %6041 = vst.msk [vmem:[#allocation5] sm:$0xff] %vm6040, %v6024
        %6042 = vst.msk [vmem:[#allocation5 + $0x8] sm:$0xff] %vm6040, %v6025
        %6043 = vst.msk [vmem:[#allocation5 + $0x10] sm:$0xff] %vm6040, %v6026
        %6044 = vst.msk [vmem:[#allocation5 + $0x18] sm:$0xff] %vm6040, %v6027
        %6045 = vst.msk [vmem:[#allocation5 + $0x20] sm:$0xff] %vm6040, %v6028
        %6046 = vst.msk [vmem:[#allocation5 + $0x28] sm:$0xff] %vm6040, %v6029
        %6047 = vst.msk [vmem:[#allocation5 + $0x30] sm:$0xff] %vm6040, %v6030
        %6048 = vst.msk [vmem:[#allocation5 + $0x38] sm:$0xff] %vm6040, %v6031
        %6049 = vst.msk [vmem:[#allocation5 + $0x40] sm:$0xff] %vm6040, %v6032
        %6050 = vst.msk [vmem:[#allocation5 + $0x48] sm:$0xff] %vm6040, %v6033
        %6051 = vst.msk [vmem:[#allocation5 + $0x50] sm:$0xff] %vm6040, %v6034
        %6052 = vst.msk [vmem:[#allocation5 + $0x58] sm:$0xff] %vm6040, %v6035
        %6053 = vst.msk [vmem:[#allocation5 + $0x60] sm:$0xff] %vm6040, %v6036
        %6054 = vst.msk [vmem:[#allocation5 + $0x68] sm:$0xff] %vm6040, %v6037
        %6055 = vst.msk [vmem:[#allocation5 + $0x70] sm:$0xff] %vm6040, %v6038
        %6056 = vst.msk [vmem:[#allocation5 + $0x78] sm:$0xff] %vm6040, %v6039
        %v6057 = vld [vmem:[#allocation5] ss:$2 sm:$0xff]
        %s6058 = scalar_lea.vmem [#allocation5], 16
        %v6059 = vld [vmem:[%s6058] ss:$2 sm:$0xff]
        %s6060 = scalar_lea.vmem [#allocation5], 32
        %v6061 = vld [vmem:[%s6060] ss:$2 sm:$0xff]
        %s6062 = scalar_lea.vmem [#allocation5], 48
        %v6063 = vld [vmem:[%s6062] ss:$2 sm:$0xff]
        %s6064 = scalar_lea.vmem [#allocation5], 64
        %v6065 = vld [vmem:[%s6064] ss:$2 sm:$0xff]
        %s6066 = scalar_lea.vmem [#allocation5], 80
        %v6067 = vld [vmem:[%s6066] ss:$2 sm:$0xff]
        %s6068 = scalar_lea.vmem [#allocation5], 96
        %v6069 = vld [vmem:[%s6068] ss:$2 sm:$0xff]
        %s6070 = scalar_lea.vmem [#allocation5], 112
        %v6071 = vld [vmem:[%s6070] ss:$2 sm:$0xff]
        %s6072 = scalar_lea.vmem [#allocation5], 1
        %v6073 = vld [vmem:[%s6072] ss:$2 sm:$0xff]
        %s6074 = scalar_lea.vmem [#allocation5], 17
        %v6075 = vld [vmem:[%s6074] ss:$2 sm:$0xff]
        %s6076 = scalar_lea.vmem [#allocation5], 33
        %v6077 = vld [vmem:[%s6076] ss:$2 sm:$0xff]
        %s6078 = scalar_lea.vmem [#allocation5], 49
        %v6079 = vld [vmem:[%s6078] ss:$2 sm:$0xff]
        %s6080 = scalar_lea.vmem [#allocation5], 65
        %v6081 = vld [vmem:[%s6080] ss:$2 sm:$0xff]
        %s6082 = scalar_lea.vmem [#allocation5], 81
        %v6083 = vld [vmem:[%s6082] ss:$2 sm:$0xff]
        %s6084 = scalar_lea.vmem [#allocation5], 97
        %v6085 = vld [vmem:[%s6084] ss:$2 sm:$0xff]
        %s6086 = scalar_lea.vmem [#allocation5], 113
        %v6087 = vld [vmem:[%s6086] ss:$2 sm:$0xff]
        %v6088 = vmax.f32 %v6057, %v6073
        %v6089 = vmax.f32 %v6059, %v6075
        %v6090 = vmax.f32 %v6061, %v6077
        %v6091 = vmax.f32 %v6063, %v6079
        %v6092 = vmax.f32 %v6065, %v6081
        %v6093 = vmax.f32 %v6067, %v6083
        %v6094 = vmax.f32 %v6069, %v6085
        %v6095 = vmax.f32 %v6071, %v6087
        %6096 = vst.msk [vmem:[#allocation6] sm:$0xff] %vm6040, 0.0
        %vm6097 = vcmask 519168
        %6098 = vst.msk [vmem:[#allocation6 + $0x8] sm:$0xf] %vm6097, 0.0
        %6099 = vst.msk [vmem:[#allocation6 + $0x10] sm:$0xff] %vm6040, 0.0
        %6100 = vst.msk [vmem:[#allocation6 + $0x18] sm:$0xf] %vm6097, 0.0
        %6101 = vst.msk [vmem:[#allocation6 + $0x20] sm:$0xff] %vm6040, 0.0
        %6102 = vst.msk [vmem:[#allocation6 + $0x28] sm:$0xf] %vm6097, 0.0
        %6103 = vst.msk [vmem:[#allocation6 + $0x30] sm:$0xff] %vm6040, 0.0
        %6104 = vst.msk [vmem:[#allocation6 + $0x38] sm:$0xf] %vm6097, 0.0
        %6105 = vst.msk [vmem:[#allocation6 + $0x40] sm:$0xff] %vm6040, 0.0
        %6106 = vst.msk [vmem:[#allocation6 + $0x48] sm:$0xf] %vm6097, 0.0
        %6107 = vst.msk [vmem:[#allocation6 + $0x50] sm:$0xff] %vm6040, 0.0
        %6108 = vst.msk [vmem:[#allocation6 + $0x58] sm:$0xf] %vm6097, 0.0
        %6109 = vst.msk [vmem:[#allocation6 + $0x60] sm:$0xff] %vm6040, 0.0
        %6110 = vst.msk [vmem:[#allocation6 + $0x68] sm:$0xf] %vm6097, 0.0
        %6111 = vst.msk [vmem:[#allocation6 + $0x70] sm:$0xff] %vm6040, 0.0
        %6112 = vst.msk [vmem:[#allocation6 + $0x78] sm:$0xf] %vm6097, 0.0
        %6113 = vst.msk [vmem:[#allocation6 + $0x80] sm:$0xff] %vm6040, 0.0
        %6114 = vst.msk [vmem:[#allocation6 + $0x88] sm:$0xf] %vm6097, 0.0
        %6115 = vst.msk [vmem:[#allocation6 + $0x90] sm:$0xff] %vm6040, 0.0
        %6116 = vst.msk [vmem:[#allocation6 + $0x98] sm:$0xf] %vm6097, 0.0
        %6117 = vst.msk [vmem:[#allocation6 + $0xa0] sm:$0xff] %vm6040, 0.0
        %6118 = vst.msk [vmem:[#allocation6 + $0xa8] sm:$0xf] %vm6097, 0.0
        %6119 = vst.msk [vmem:[#allocation6 + $0xb0] sm:$0xff] %vm6040, 0.0
        %6120 = vst.msk [vmem:[#allocation6 + $0xb8] sm:$0xf] %vm6097, 0.0
        %s6121 = scalar_lea.vmem [#allocation6], 32
        %6122 = vst.msk [vmem:[%s6121 + $0x2] sm:$0xff] %vm6040, %v6088
        %6123 = vst.msk [vmem:[%s6121 + $0x12] sm:$0xff] %vm6040, %v6089
        %6124 = vst.msk [vmem:[%s6121 + $0x22] sm:$0xff] %vm6040, %v6090
        %6125 = vst.msk [vmem:[%s6121 + $0x32] sm:$0xff] %vm6040, %v6091
        %6126 = vst.msk [vmem:[%s6121 + $0x42] sm:$0xff] %vm6040, %v6092
        %6127 = vst.msk [vmem:[%s6121 + $0x52] sm:$0xff] %vm6040, %v6093
        %6128 = vst.msk [vmem:[%s6121 + $0x62] sm:$0xff] %vm6040, %v6094
        %6129 = vst.msk [vmem:[%s6121 + $0x72] sm:$0xff] %vm6040, %v6095
        %v6130 = vld [vmem:[#allocation6] sm:$0xff]
        %v6131 = vld [vmem:[#allocation6 + $0x10] sm:$0xff]
        %v6132 = vld [vmem:[#allocation6 + $0x20] sm:$0xff]
        %v6133 = vld [vmem:[#allocation6 + $0x30] sm:$0xff]
        %v6134 = vld [vmem:[#allocation6 + $0x40] sm:$0xff]
        %v6135 = vld [vmem:[#allocation6 + $0x50] sm:$0xff]
        %v6136 = vld [vmem:[#allocation6 + $0x60] sm:$0xff]
        %v6137 = vld [vmem:[#allocation6 + $0x70] sm:$0xff]
        %v6138 = vpack.c.bf16 %v6131, %v6130
        %v6139 = vpack.c.bf16 %v6133, %v6132
        %v6140 = vpack.c.bf16 %v6135, %v6134
        %v6141 = vpack.c.bf16 %v6137, %v6136
        %6142 = vst.msk [vmem:[#allocation7] sm:$0xff] %vm6040, %v6138
        %6143 = vst.msk [vmem:[#allocation7 + $0x68] sm:$0xff] %vm6040, %v6139
        %6144 = vst.msk [vmem:[#allocation7 + $0xd0] sm:$0xff] %vm6040, %v6140
        %6145 = vst.msk [vmem:[#allocation7 + $0x138] sm:$0xff] %vm6040, %v6141
        %v6146 = vld [vmem:[#allocation6 + $0x1] sm:$0xff]
        %v6147 = vld [vmem:[#allocation6 + $0x11] sm:$0xff]
        %v6148 = vld [vmem:[#allocation6 + $0x21] sm:$0xff]
        %v6149 = vld [vmem:[#allocation6 + $0x31] sm:$0xff]
        %v6150 = vld [vmem:[#allocation6 + $0x41] sm:$0xff]
        %v6151 = vld [vmem:[#allocation6 + $0x51] sm:$0xff]
        %v6152 = vld [vmem:[#allocation6 + $0x61] sm:$0xff]
        %v6153 = vld [vmem:[#allocation6 + $0x71] sm:$0xff]
        %v6154 = vpack.c.bf16 %v6147, %v6146
        %v6155 = vpack.c.bf16 %v6149, %v6148
        %v6156 = vpack.c.bf16 %v6151, %v6150
        %v6157 = vpack.c.bf16 %v6153, %v6152
        %6162 = vrot.lane.b32.xlu0 %v6154, 64
        %v6163 = vpop.permute.xlu0 %6162
        %6164 = vrot.lane.b32.xlu0 %v6155, 64
        %v6165 = vpop.permute.xlu0 %6164
        %6166 = vrot.lane.b32.xlu0 %v6156, 64
        %v6167 = vpop.permute.xlu0 %6166
        %6168 = vrot.lane.b32.xlu0 %v6157, 64
        %v6169 = vpop.permute.xlu0 %6168
        %vm6174 = vcmask 1048064
        %6175 = vst.msk [vmem:[#allocation7] sm:$0xff] %vm6174, %v6163
        %6176 = vst.msk [vmem:[#allocation7 + $0x68] sm:$0xff] %vm6174, %v6165
        %6177 = vst.msk [vmem:[#allocation7 + $0xd0] sm:$0xff] %vm6174, %v6167
        %6178 = vst.msk [vmem:[#allocation7 + $0x138] sm:$0xff] %vm6174, %v6169
        %v6179 = vld [vmem:[#allocation6 + $0x2] sm:$0xff]
        %v6180 = vld [vmem:[#allocation6 + $0x12] sm:$0xff]
        %v6181 = vld [vmem:[#allocation6 + $0x22] sm:$0xff]
        %v6182 = vld [vmem:[#allocation6 + $0x32] sm:$0xff]
        %v6183 = vld [vmem:[#allocation6 + $0x42] sm:$0xff]
        %v6184 = vld [vmem:[#allocation6 + $0x52] sm:$0xff]
        %v6185 = vld [vmem:[#allocation6 + $0x62] sm:$0xff]
        %v6186 = vld [vmem:[#allocation6 + $0x72] sm:$0xff]
        %v6187 = vpack.c.bf16 %v6180, %v6179
        %v6188 = vpack.c.bf16 %v6182, %v6181
        %v6189 = vpack.c.bf16 %v6184, %v6183
        %v6190 = vpack.c.bf16 %v6186, %v6185
        %6191 = vst.msk [vmem:[#allocation7 + $0x8] sm:$0xff] %vm6040, %v6187
        %6192 = vst.msk [vmem:[#allocation7 + $0x70] sm:$0xff] %vm6040, %v6188
        %6193 = vst.msk [vmem:[#allocation7 + $0xd8] sm:$0xff] %vm6040, %v6189
        %6194 = vst.msk [vmem:[#allocation7 + $0x140] sm:$0xff] %vm6040, %v6190
        %v6195 = vld [vmem:[#allocation6 + $0x3] sm:$0xff]
        %v6196 = vld [vmem:[#allocation6 + $0x13] sm:$0xff]
        %v6197 = vld [vmem:[#allocation6 + $0x23] sm:$0xff]
        %v6198 = vld [vmem:[#allocation6 + $0x33] sm:$0xff]
        %v6199 = vld [vmem:[#allocation6 + $0x43] sm:$0xff]
        %v6200 = vld [vmem:[#allocation6 + $0x53] sm:$0xff]
        %v6201 = vld [vmem:[#allocation6 + $0x63] sm:$0xff]
        %v6202 = vld [vmem:[#allocation6 + $0x73] sm:$0xff]
        %v6203 = vpack.c.bf16 %v6196, %v6195
        %v6204 = vpack.c.bf16 %v6198, %v6197
        %v6205 = vpack.c.bf16 %v6200, %v6199
        %v6206 = vpack.c.bf16 %v6202, %v6201
        %6211 = vrot.lane.b32.xlu0 %v6203, 64
        %v6212 = vpop.permute.xlu0 %6211
        %6213 = vrot.lane.b32.xlu0 %v6204, 64
        %v6214 = vpop.permute.xlu0 %6213
        %6215 = vrot.lane.b32.xlu0 %v6205, 64
        %v6216 = vpop.permute.xlu0 %6215
        %6217 = vrot.lane.b32.xlu0 %v6206, 64
        %v6218 = vpop.permute.xlu0 %6217
        %6223 = vst.msk [vmem:[#allocation7 + $0x8] sm:$0xff] %vm6174, %v6212
        %6224 = vst.msk [vmem:[#allocation7 + $0x70] sm:$0xff] %vm6174, %v6214
        %6225 = vst.msk [vmem:[#allocation7 + $0xd8] sm:$0xff] %vm6174, %v6216
        %6226 = vst.msk [vmem:[#allocation7 + $0x140] sm:$0xff] %vm6174, %v6218
        %v6227 = vld [vmem:[#allocation6 + $0x4] sm:$0xff]
        %v6228 = vld [vmem:[#allocation6 + $0x14] sm:$0xff]
        %v6229 = vld [vmem:[#allocation6 + $0x24] sm:$0xff]
        %v6230 = vld [vmem:[#allocation6 + $0x34] sm:$0xff]
        %v6231 = vld [vmem:[#allocation6 + $0x44] sm:$0xff]
        %v6232 = vld [vmem:[#allocation6 + $0x54] sm:$0xff]
        %v6233 = vld [vmem:[#allocation6 + $0x64] sm:$0xff]
        %v6234 = vld [vmem:[#allocation6 + $0x74] sm:$0xff]
        %v6235 = vpack.c.bf16 %v6228, %v6227
        %v6236 = vpack.c.bf16 %v6230, %v6229
        %v6237 = vpack.c.bf16 %v6232, %v6231
        %v6238 = vpack.c.bf16 %v6234, %v6233
        %6239 = vst.msk [vmem:[#allocation7 + $0x10] sm:$0xff] %vm6040, %v6235
        %6240 = vst.msk [vmem:[#allocation7 + $0x78] sm:$0xff] %vm6040, %v6236
        %6241 = vst.msk [vmem:[#allocation7 + $0xe0] sm:$0xff] %vm6040, %v6237
        %6242 = vst.msk [vmem:[#allocation7 + $0x148] sm:$0xff] %vm6040, %v6238
        %s6243 = scalar_lea.vmem [#allocation6], 16
        %v6244 = vld [vmem:[%s6243] sm:$0xff]
        %v6245 = vld [vmem:[%s6243 + $0x10] sm:$0xff]
        %v6246 = vld [vmem:[%s6243 + $0x20] sm:$0xff]
        %v6247 = vld [vmem:[%s6243 + $0x30] sm:$0xff]
        %v6248 = vld [vmem:[%s6243 + $0x40] sm:$0xff]
        %v6249 = vld [vmem:[%s6243 + $0x50] sm:$0xff]
        %v6250 = vld [vmem:[%s6243 + $0x60] sm:$0xff]
        %v6251 = vld [vmem:[%s6243 + $0x70] sm:$0xff]
        %v6252 = vpack.c.bf16 %v6245, %v6244
        %v6253 = vpack.c.bf16 %v6247, %v6246
        %v6254 = vpack.c.bf16 %v6249, %v6248
        %v6255 = vpack.c.bf16 %v6251, %v6250
        %6260 = vrot.lane.b32.xlu0 %v6252, 64
        %v6261 = vpop.permute.xlu0 %6260
        %6262 = vrot.lane.b32.xlu0 %v6253, 64
        %v6263 = vpop.permute.xlu0 %6262
        %6264 = vrot.lane.b32.xlu0 %v6254, 64
        %v6265 = vpop.permute.xlu0 %6264
        %6266 = vrot.lane.b32.xlu0 %v6255, 64
        %v6267 = vpop.permute.xlu0 %6266
        %6272 = vst.msk [vmem:[#allocation7 + $0x10] sm:$0xff] %vm6174, %v6261
        %6273 = vst.msk [vmem:[#allocation7 + $0x78] sm:$0xff] %vm6174, %v6263
        %6274 = vst.msk [vmem:[#allocation7 + $0xe0] sm:$0xff] %vm6174, %v6265
        %6275 = vst.msk [vmem:[#allocation7 + $0x148] sm:$0xff] %vm6174, %v6267
        %v6276 = vld [vmem:[%s6243 + $0x1] sm:$0xff]
        %v6277 = vld [vmem:[%s6243 + $0x11] sm:$0xff]
        %v6278 = vld [vmem:[%s6243 + $0x21] sm:$0xff]
        %v6279 = vld [vmem:[%s6243 + $0x31] sm:$0xff]
        %v6280 = vld [vmem:[%s6243 + $0x41] sm:$0xff]
        %v6281 = vld [vmem:[%s6243 + $0x51] sm:$0xff]
        %v6282 = vld [vmem:[%s6243 + $0x61] sm:$0xff]
        %v6283 = vld [vmem:[%s6243 + $0x71] sm:$0xff]
        %v6284 = vpack.c.bf16 %v6277, %v6276
        %v6285 = vpack.c.bf16 %v6279, %v6278
        %v6286 = vpack.c.bf16 %v6281, %v6280
        %v6287 = vpack.c.bf16 %v6283, %v6282
        %6288 = vst.msk [vmem:[#allocation7 + $0x18] sm:$0xff] %vm6040, %v6284
        %6289 = vst.msk [vmem:[#allocation7 + $0x80] sm:$0xff] %vm6040, %v6285
        %6290 = vst.msk [vmem:[#allocation7 + $0xe8] sm:$0xff] %vm6040, %v6286
        %6291 = vst.msk [vmem:[#allocation7 + $0x150] sm:$0xff] %vm6040, %v6287
        %v6292 = vld [vmem:[%s6243 + $0x2] sm:$0xff]
        %v6293 = vld [vmem:[%s6243 + $0x12] sm:$0xff]
        %v6294 = vld [vmem:[%s6243 + $0x22] sm:$0xff]
        %v6295 = vld [vmem:[%s6243 + $0x32] sm:$0xff]
        %v6296 = vld [vmem:[%s6243 + $0x42] sm:$0xff]
        %v6297 = vld [vmem:[%s6243 + $0x52] sm:$0xff]
        %v6298 = vld [vmem:[%s6243 + $0x62] sm:$0xff]
        %v6299 = vld [vmem:[%s6243 + $0x72] sm:$0xff]
        %v6300 = vpack.c.bf16 %v6293, %v6292
        %v6301 = vpack.c.bf16 %v6295, %v6294
        %v6302 = vpack.c.bf16 %v6297, %v6296
        %v6303 = vpack.c.bf16 %v6299, %v6298
        %6308 = vrot.lane.b32.xlu0 %v6300, 64
        %v6309 = vpop.permute.xlu0 %6308
        %6310 = vrot.lane.b32.xlu0 %v6301, 64
        %v6311 = vpop.permute.xlu0 %6310
        %6312 = vrot.lane.b32.xlu0 %v6302, 64
        %v6313 = vpop.permute.xlu0 %6312
        %6314 = vrot.lane.b32.xlu0 %v6303, 64
        %v6315 = vpop.permute.xlu0 %6314
        %6320 = vst.msk [vmem:[#allocation7 + $0x18] sm:$0xff] %vm6174, %v6309
        %6321 = vst.msk [vmem:[#allocation7 + $0x80] sm:$0xff] %vm6174, %v6311
        %6322 = vst.msk [vmem:[#allocation7 + $0xe8] sm:$0xff] %vm6174, %v6313
        %6323 = vst.msk [vmem:[#allocation7 + $0x150] sm:$0xff] %vm6174, %v6315
        %v6324 = vld [vmem:[%s6243 + $0x3] sm:$0xff]
        %v6325 = vld [vmem:[%s6243 + $0x13] sm:$0xff]
        %v6326 = vld [vmem:[%s6243 + $0x23] sm:$0xff]
        %v6327 = vld [vmem:[%s6243 + $0x33] sm:$0xff]
        %v6328 = vld [vmem:[%s6243 + $0x43] sm:$0xff]
        %v6329 = vld [vmem:[%s6243 + $0x53] sm:$0xff]
        %v6330 = vld [vmem:[%s6243 + $0x63] sm:$0xff]
        %v6331 = vld [vmem:[%s6243 + $0x73] sm:$0xff]
        %v6332 = vpack.c.bf16 %v6325, %v6324
        %v6333 = vpack.c.bf16 %v6327, %v6326
        %v6334 = vpack.c.bf16 %v6329, %v6328
        %v6335 = vpack.c.bf16 %v6331, %v6330
        %6336 = vst.msk [vmem:[#allocation7 + $0x20] sm:$0xff] %vm6040, %v6332
        %6337 = vst.msk [vmem:[#allocation7 + $0x88] sm:$0xff] %vm6040, %v6333
        %6338 = vst.msk [vmem:[#allocation7 + $0xf0] sm:$0xff] %vm6040, %v6334
        %6339 = vst.msk [vmem:[#allocation7 + $0x158] sm:$0xff] %vm6040, %v6335
        %v6340 = vld [vmem:[%s6243 + $0x4] sm:$0xff]
        %v6341 = vld [vmem:[%s6243 + $0x14] sm:$0xff]
        %v6342 = vld [vmem:[%s6243 + $0x24] sm:$0xff]
        %v6343 = vld [vmem:[%s6243 + $0x34] sm:$0xff]
        %v6344 = vld [vmem:[%s6243 + $0x44] sm:$0xff]
        %v6345 = vld [vmem:[%s6243 + $0x54] sm:$0xff]
        %v6346 = vld [vmem:[%s6243 + $0x64] sm:$0xff]
        %v6347 = vld [vmem:[%s6243 + $0x74] sm:$0xff]
        %v6348 = vpack.c.bf16 %v6341, %v6340
        %v6349 = vpack.c.bf16 %v6343, %v6342
        %v6350 = vpack.c.bf16 %v6345, %v6344
        %v6351 = vpack.c.bf16 %v6347, %v6346
        %6356 = vrot.lane.b32.xlu0 %v6348, 64
        %v6357 = vpop.permute.xlu0 %6356
        %6358 = vrot.lane.b32.xlu0 %v6349, 64
        %v6359 = vpop.permute.xlu0 %6358
        %6360 = vrot.lane.b32.xlu0 %v6350, 64
        %v6361 = vpop.permute.xlu0 %6360
        %6362 = vrot.lane.b32.xlu0 %v6351, 64
        %v6363 = vpop.permute.xlu0 %6362
        %6368 = vst.msk [vmem:[#allocation7 + $0x20] sm:$0xff] %vm6174, %v6357
        %6369 = vst.msk [vmem:[#allocation7 + $0x88] sm:$0xff] %vm6174, %v6359
        %6370 = vst.msk [vmem:[#allocation7 + $0xf0] sm:$0xff] %vm6174, %v6361
        %6371 = vst.msk [vmem:[#allocation7 + $0x158] sm:$0xff] %vm6174, %v6363
        %v6372 = vld [vmem:[%s6121] sm:$0xff]
        %v6373 = vld [vmem:[%s6121 + $0x10] sm:$0xff]
        %v6374 = vld [vmem:[%s6121 + $0x20] sm:$0xff]
        %v6375 = vld [vmem:[%s6121 + $0x30] sm:$0xff]
        %v6376 = vld [vmem:[%s6121 + $0x40] sm:$0xff]
        %v6377 = vld [vmem:[%s6121 + $0x50] sm:$0xff]
        %v6378 = vld [vmem:[%s6121 + $0x60] sm:$0xff]
        %v6379 = vld [vmem:[%s6121 + $0x70] sm:$0xff]
        %v6380 = vpack.c.bf16 %v6373, %v6372
        %v6381 = vpack.c.bf16 %v6375, %v6374
        %v6382 = vpack.c.bf16 %v6377, %v6376
        %v6383 = vpack.c.bf16 %v6379, %v6378
        %6384 = vst.msk [vmem:[#allocation7 + $0x28] sm:$0xff] %vm6040, %v6380
        %6385 = vst.msk [vmem:[#allocation7 + $0x90] sm:$0xff] %vm6040, %v6381
        %6386 = vst.msk [vmem:[#allocation7 + $0xf8] sm:$0xff] %vm6040, %v6382
        %6387 = vst.msk [vmem:[#allocation7 + $0x160] sm:$0xff] %vm6040, %v6383
        %v6388 = vld [vmem:[%s6121 + $0x1] sm:$0xff]
        %v6389 = vld [vmem:[%s6121 + $0x11] sm:$0xff]
        %v6390 = vld [vmem:[%s6121 + $0x21] sm:$0xff]
        %v6391 = vld [vmem:[%s6121 + $0x31] sm:$0xff]
        %v6392 = vld [vmem:[%s6121 + $0x41] sm:$0xff]
        %v6393 = vld [vmem:[%s6121 + $0x51] sm:$0xff]
        %v6394 = vld [vmem:[%s6121 + $0x61] sm:$0xff]
        %v6395 = vld [vmem:[%s6121 + $0x71] sm:$0xff]
        %v6396 = vpack.c.bf16 %v6389, %v6388
        %v6397 = vpack.c.bf16 %v6391, %v6390
        %v6398 = vpack.c.bf16 %v6393, %v6392
        %v6399 = vpack.c.bf16 %v6395, %v6394
        %6404 = vrot.lane.b32.xlu0 %v6396, 64
        %v6405 = vpop.permute.xlu0 %6404
        %6406 = vrot.lane.b32.xlu0 %v6397, 64
        %v6407 = vpop.permute.xlu0 %6406
        %6408 = vrot.lane.b32.xlu0 %v6398, 64
        %v6409 = vpop.permute.xlu0 %6408
        %6410 = vrot.lane.b32.xlu0 %v6399, 64
        %v6411 = vpop.permute.xlu0 %6410
        %6416 = vst.msk [vmem:[#allocation7 + $0x28] sm:$0xff] %vm6174, %v6405
        %6417 = vst.msk [vmem:[#allocation7 + $0x90] sm:$0xff] %vm6174, %v6407
        %6418 = vst.msk [vmem:[#allocation7 + $0xf8] sm:$0xff] %vm6174, %v6409
        %6419 = vst.msk [vmem:[#allocation7 + $0x160] sm:$0xff] %vm6174, %v6411
        %v6420 = vld [vmem:[%s6121 + $0x2] sm:$0xff]
        %v6421 = vld [vmem:[%s6121 + $0x12] sm:$0xff]
        %v6422 = vld [vmem:[%s6121 + $0x22] sm:$0xff]
        %v6423 = vld [vmem:[%s6121 + $0x32] sm:$0xff]
        %v6424 = vld [vmem:[%s6121 + $0x42] sm:$0xff]
        %v6425 = vld [vmem:[%s6121 + $0x52] sm:$0xff]
        %v6426 = vld [vmem:[%s6121 + $0x62] sm:$0xff]
        %v6427 = vld [vmem:[%s6121 + $0x72] sm:$0xff]
        %v6428 = vpack.c.bf16 %v6421, %v6420
        %v6429 = vpack.c.bf16 %v6423, %v6422
        %v6430 = vpack.c.bf16 %v6425, %v6424
        %v6431 = vpack.c.bf16 %v6427, %v6426
        %6432 = vst.msk [vmem:[#allocation7 + $0x30] sm:$0xff] %vm6040, %v6428
        %6433 = vst.msk [vmem:[#allocation7 + $0x98] sm:$0xff] %vm6040, %v6429
        %6434 = vst.msk [vmem:[#allocation7 + $0x100] sm:$0xff] %vm6040, %v6430
        %6435 = vst.msk [vmem:[#allocation7 + $0x168] sm:$0xff] %vm6040, %v6431
        %v6436 = vld [vmem:[%s6121 + $0x3] sm:$0xff]
        %v6437 = vld [vmem:[%s6121 + $0x13] sm:$0xff]
        %v6438 = vld [vmem:[%s6121 + $0x23] sm:$0xff]
        %v6439 = vld [vmem:[%s6121 + $0x33] sm:$0xff]
        %v6440 = vld [vmem:[%s6121 + $0x43] sm:$0xff]
        %v6441 = vld [vmem:[%s6121 + $0x53] sm:$0xff]
        %v6442 = vld [vmem:[%s6121 + $0x63] sm:$0xff]
        %v6443 = vld [vmem:[%s6121 + $0x73] sm:$0xff]
        %v6444 = vpack.c.bf16 %v6437, %v6436
        %v6445 = vpack.c.bf16 %v6439, %v6438
        %v6446 = vpack.c.bf16 %v6441, %v6440
        %v6447 = vpack.c.bf16 %v6443, %v6442
        %6452 = vrot.lane.b32.xlu0 %v6444, 64
        %v6453 = vpop.permute.xlu0 %6452
        %6454 = vrot.lane.b32.xlu0 %v6445, 64
        %v6455 = vpop.permute.xlu0 %6454
        %6456 = vrot.lane.b32.xlu0 %v6446, 64
        %v6457 = vpop.permute.xlu0 %6456
        %6458 = vrot.lane.b32.xlu0 %v6447, 64
        %v6459 = vpop.permute.xlu0 %6458
        %6464 = vst.msk [vmem:[#allocation7 + $0x30] sm:$0xff] %vm6174, %v6453
        %6465 = vst.msk [vmem:[#allocation7 + $0x98] sm:$0xff] %vm6174, %v6455
        %6466 = vst.msk [vmem:[#allocation7 + $0x100] sm:$0xff] %vm6174, %v6457
        %6467 = vst.msk [vmem:[#allocation7 + $0x168] sm:$0xff] %vm6174, %v6459
        %v6468 = vld [vmem:[%s6121 + $0x4] sm:$0xff]
        %v6469 = vld [vmem:[%s6121 + $0x14] sm:$0xff]
        %v6470 = vld [vmem:[%s6121 + $0x24] sm:$0xff]
        %v6471 = vld [vmem:[%s6121 + $0x34] sm:$0xff]
        %v6472 = vld [vmem:[%s6121 + $0x44] sm:$0xff]
        %v6473 = vld [vmem:[%s6121 + $0x54] sm:$0xff]
        %v6474 = vld [vmem:[%s6121 + $0x64] sm:$0xff]
        %v6475 = vld [vmem:[%s6121 + $0x74] sm:$0xff]
        %v6476 = vpack.c.bf16 %v6469, %v6468
        %v6477 = vpack.c.bf16 %v6471, %v6470
        %v6478 = vpack.c.bf16 %v6473, %v6472
        %v6479 = vpack.c.bf16 %v6475, %v6474
        %6480 = vst.msk [vmem:[#allocation7 + $0x38] sm:$0xff] %vm6040, %v6476
        %6481 = vst.msk [vmem:[#allocation7 + $0xa0] sm:$0xff] %vm6040, %v6477
        %6482 = vst.msk [vmem:[#allocation7 + $0x108] sm:$0xff] %vm6040, %v6478
        %6483 = vst.msk [vmem:[#allocation7 + $0x170] sm:$0xff] %vm6040, %v6479
        %s6484 = scalar_lea.vmem [#allocation6], 48
        %v6485 = vld [vmem:[%s6484] sm:$0xff]
        %v6486 = vld [vmem:[%s6484 + $0x10] sm:$0xff]
        %v6487 = vld [vmem:[%s6484 + $0x20] sm:$0xff]
        %v6488 = vld [vmem:[%s6484 + $0x30] sm:$0xff]
        %v6489 = vld [vmem:[%s6484 + $0x40] sm:$0xff]
        %v6490 = vld [vmem:[%s6484 + $0x50] sm:$0xff]
        %v6491 = vld [vmem:[%s6484 + $0x60] sm:$0xff]
        %v6492 = vld [vmem:[%s6484 + $0x70] sm:$0xff]
        %v6493 = vpack.c.bf16 %v6486, %v6485
        %v6494 = vpack.c.bf16 %v6488, %v6487
        %v6495 = vpack.c.bf16 %v6490, %v6489
        %v6496 = vpack.c.bf16 %v6492, %v6491
        %6501 = vrot.lane.b32.xlu0 %v6493, 64
        %v6502 = vpop.permute.xlu0 %6501
        %6503 = vrot.lane.b32.xlu0 %v6494, 64
        %v6504 = vpop.permute.xlu0 %6503
        %6505 = vrot.lane.b32.xlu0 %v6495, 64
        %v6506 = vpop.permute.xlu0 %6505
        %6507 = vrot.lane.b32.xlu0 %v6496, 64
        %v6508 = vpop.permute.xlu0 %6507
        %6513 = vst.msk [vmem:[#allocation7 + $0x38] sm:$0xff] %vm6174, %v6502
        %6514 = vst.msk [vmem:[#allocation7 + $0xa0] sm:$0xff] %vm6174, %v6504
        %6515 = vst.msk [vmem:[#allocation7 + $0x108] sm:$0xff] %vm6174, %v6506
        %6516 = vst.msk [vmem:[#allocation7 + $0x170] sm:$0xff] %vm6174, %v6508
        %v6517 = vld [vmem:[%s6484 + $0x1] sm:$0xff]
        %v6518 = vld [vmem:[%s6484 + $0x11] sm:$0xff]
        %v6519 = vld [vmem:[%s6484 + $0x21] sm:$0xff]
        %v6520 = vld [vmem:[%s6484 + $0x31] sm:$0xff]
        %v6521 = vld [vmem:[%s6484 + $0x41] sm:$0xff]
        %v6522 = vld [vmem:[%s6484 + $0x51] sm:$0xff]
        %v6523 = vld [vmem:[%s6484 + $0x61] sm:$0xff]
        %v6524 = vld [vmem:[%s6484 + $0x71] sm:$0xff]
        %v6525 = vpack.c.bf16 %v6518, %v6517
        %v6526 = vpack.c.bf16 %v6520, %v6519
        %v6527 = vpack.c.bf16 %v6522, %v6521
        %v6528 = vpack.c.bf16 %v6524, %v6523
        %6529 = vst.msk [vmem:[#allocation7 + $0x40] sm:$0xff] %vm6040, %v6525
        %6530 = vst.msk [vmem:[#allocation7 + $0xa8] sm:$0xff] %vm6040, %v6526
        %6531 = vst.msk [vmem:[#allocation7 + $0x110] sm:$0xff] %vm6040, %v6527
        %6532 = vst.msk [vmem:[#allocation7 + $0x178] sm:$0xff] %vm6040, %v6528
        %v6533 = vld [vmem:[%s6484 + $0x2] sm:$0xff]
        %v6534 = vld [vmem:[%s6484 + $0x12] sm:$0xff]
        %v6535 = vld [vmem:[%s6484 + $0x22] sm:$0xff]
        %v6536 = vld [vmem:[%s6484 + $0x32] sm:$0xff]
        %v6537 = vld [vmem:[%s6484 + $0x42] sm:$0xff]
        %v6538 = vld [vmem:[%s6484 + $0x52] sm:$0xff]
        %v6539 = vld [vmem:[%s6484 + $0x62] sm:$0xff]
        %v6540 = vld [vmem:[%s6484 + $0x72] sm:$0xff]
        %v6541 = vpack.c.bf16 %v6534, %v6533
        %v6542 = vpack.c.bf16 %v6536, %v6535
        %v6543 = vpack.c.bf16 %v6538, %v6537
        %v6544 = vpack.c.bf16 %v6540, %v6539
        %6549 = vrot.lane.b32.xlu0 %v6541, 64
        %v6550 = vpop.permute.xlu0 %6549
        %6551 = vrot.lane.b32.xlu0 %v6542, 64
        %v6552 = vpop.permute.xlu0 %6551
        %6553 = vrot.lane.b32.xlu0 %v6543, 64
        %v6554 = vpop.permute.xlu0 %6553
        %6555 = vrot.lane.b32.xlu0 %v6544, 64
        %v6556 = vpop.permute.xlu0 %6555
        %6561 = vst.msk [vmem:[#allocation7 + $0x40] sm:$0xff] %vm6174, %v6550
        %6562 = vst.msk [vmem:[#allocation7 + $0xa8] sm:$0xff] %vm6174, %v6552
        %6563 = vst.msk [vmem:[#allocation7 + $0x110] sm:$0xff] %vm6174, %v6554
        %6564 = vst.msk [vmem:[#allocation7 + $0x178] sm:$0xff] %vm6174, %v6556
        %v6565 = vld [vmem:[%s6484 + $0x3] sm:$0xff]
        %v6566 = vld [vmem:[%s6484 + $0x13] sm:$0xff]
        %v6567 = vld [vmem:[%s6484 + $0x23] sm:$0xff]
        %v6568 = vld [vmem:[%s6484 + $0x33] sm:$0xff]
        %v6569 = vld [vmem:[%s6484 + $0x43] sm:$0xff]
        %v6570 = vld [vmem:[%s6484 + $0x53] sm:$0xff]
        %v6571 = vld [vmem:[%s6484 + $0x63] sm:$0xff]
        %v6572 = vld [vmem:[%s6484 + $0x73] sm:$0xff]
        %v6573 = vpack.c.bf16 %v6566, %v6565
        %v6574 = vpack.c.bf16 %v6568, %v6567
        %v6575 = vpack.c.bf16 %v6570, %v6569
        %v6576 = vpack.c.bf16 %v6572, %v6571
        %6577 = vst.msk [vmem:[#allocation7 + $0x48] sm:$0xff] %vm6040, %v6573
        %6578 = vst.msk [vmem:[#allocation7 + $0xb0] sm:$0xff] %vm6040, %v6574
        %6579 = vst.msk [vmem:[#allocation7 + $0x118] sm:$0xff] %vm6040, %v6575
        %6580 = vst.msk [vmem:[#allocation7 + $0x180] sm:$0xff] %vm6040, %v6576
        %v6581 = vld [vmem:[%s6484 + $0x4] sm:$0xff]
        %v6582 = vld [vmem:[%s6484 + $0x14] sm:$0xff]
        %v6583 = vld [vmem:[%s6484 + $0x24] sm:$0xff]
        %v6584 = vld [vmem:[%s6484 + $0x34] sm:$0xff]
        %v6585 = vld [vmem:[%s6484 + $0x44] sm:$0xff]
        %v6586 = vld [vmem:[%s6484 + $0x54] sm:$0xff]
        %v6587 = vld [vmem:[%s6484 + $0x64] sm:$0xff]
        %v6588 = vld [vmem:[%s6484 + $0x74] sm:$0xff]
        %v6589 = vpack.c.bf16 %v6582, %v6581
        %v6590 = vpack.c.bf16 %v6584, %v6583
        %v6591 = vpack.c.bf16 %v6586, %v6585
        %v6592 = vpack.c.bf16 %v6588, %v6587
        %6597 = vrot.lane.b32.xlu0 %v6589, 64
        %v6598 = vpop.permute.xlu0 %6597
        %6599 = vrot.lane.b32.xlu0 %v6590, 64
        %v6600 = vpop.permute.xlu0 %6599
        %6601 = vrot.lane.b32.xlu0 %v6591, 64
        %v6602 = vpop.permute.xlu0 %6601
        %6603 = vrot.lane.b32.xlu0 %v6592, 64
        %v6604 = vpop.permute.xlu0 %6603
        %6609 = vst.msk [vmem:[#allocation7 + $0x48] sm:$0xff] %vm6174, %v6598
        %6610 = vst.msk [vmem:[#allocation7 + $0xb0] sm:$0xff] %vm6174, %v6600
        %6611 = vst.msk [vmem:[#allocation7 + $0x118] sm:$0xff] %vm6174, %v6602
        %6612 = vst.msk [vmem:[#allocation7 + $0x180] sm:$0xff] %vm6174, %v6604
        %s6613 = scalar_lea.vmem [#allocation6], 64
        %v6614 = vld [vmem:[%s6613] sm:$0xff]
        %v6615 = vld [vmem:[%s6613 + $0x10] sm:$0xff]
        %v6616 = vld [vmem:[%s6613 + $0x20] sm:$0xff]
        %v6617 = vld [vmem:[%s6613 + $0x30] sm:$0xff]
        %v6618 = vld [vmem:[%s6613 + $0x40] sm:$0xff]
        %v6619 = vld [vmem:[%s6613 + $0x50] sm:$0xff]
        %v6620 = vld [vmem:[%s6613 + $0x60] sm:$0xff]
        %v6621 = vld [vmem:[%s6613 + $0x70] sm:$0xff]
        %v6622 = vpack.c.bf16 %v6615, %v6614
        %v6623 = vpack.c.bf16 %v6617, %v6616
        %v6624 = vpack.c.bf16 %v6619, %v6618
        %v6625 = vpack.c.bf16 %v6621, %v6620
        %6626 = vst.msk [vmem:[#allocation7 + $0x50] sm:$0xff] %vm6040, %v6622
        %6627 = vst.msk [vmem:[#allocation7 + $0xb8] sm:$0xff] %vm6040, %v6623
        %6628 = vst.msk [vmem:[#allocation7 + $0x120] sm:$0xff] %vm6040, %v6624
        %6629 = vst.msk [vmem:[#allocation7 + $0x188] sm:$0xff] %vm6040, %v6625
        %v6630 = vld [vmem:[%s6613 + $0x1] sm:$0xff]
        %v6631 = vld [vmem:[%s6613 + $0x11] sm:$0xff]
        %v6632 = vld [vmem:[%s6613 + $0x21] sm:$0xff]
        %v6633 = vld [vmem:[%s6613 + $0x31] sm:$0xff]
        %v6634 = vld [vmem:[%s6613 + $0x41] sm:$0xff]
        %v6635 = vld [vmem:[%s6613 + $0x51] sm:$0xff]
        %v6636 = vld [vmem:[%s6613 + $0x61] sm:$0xff]
        %v6637 = vld [vmem:[%s6613 + $0x71] sm:$0xff]
        %v6638 = vpack.c.bf16 %v6631, %v6630
        %v6639 = vpack.c.bf16 %v6633, %v6632
        %v6640 = vpack.c.bf16 %v6635, %v6634
        %v6641 = vpack.c.bf16 %v6637, %v6636
        %6646 = vrot.lane.b32.xlu0 %v6638, 64
        %v6647 = vpop.permute.xlu0 %6646
        %6648 = vrot.lane.b32.xlu0 %v6639, 64
        %v6649 = vpop.permute.xlu0 %6648
        %6650 = vrot.lane.b32.xlu0 %v6640, 64
        %v6651 = vpop.permute.xlu0 %6650
        %6652 = vrot.lane.b32.xlu0 %v6641, 64
        %v6653 = vpop.permute.xlu0 %6652
        %6658 = vst.msk [vmem:[#allocation7 + $0x50] sm:$0xff] %vm6174, %v6647
        %6659 = vst.msk [vmem:[#allocation7 + $0xb8] sm:$0xff] %vm6174, %v6649
        %6660 = vst.msk [vmem:[#allocation7 + $0x120] sm:$0xff] %vm6174, %v6651
        %6661 = vst.msk [vmem:[#allocation7 + $0x188] sm:$0xff] %vm6174, %v6653
        %v6662 = vld [vmem:[%s6613 + $0x2] sm:$0xff]
        %v6663 = vld [vmem:[%s6613 + $0x12] sm:$0xff]
        %v6664 = vld [vmem:[%s6613 + $0x22] sm:$0xff]
        %v6665 = vld [vmem:[%s6613 + $0x32] sm:$0xff]
        %v6666 = vld [vmem:[%s6613 + $0x42] sm:$0xff]
        %v6667 = vld [vmem:[%s6613 + $0x52] sm:$0xff]
        %v6668 = vld [vmem:[%s6613 + $0x62] sm:$0xff]
        %v6669 = vld [vmem:[%s6613 + $0x72] sm:$0xff]
        %v6670 = vpack.c.bf16 %v6663, %v6662
        %v6671 = vpack.c.bf16 %v6665, %v6664
        %v6672 = vpack.c.bf16 %v6667, %v6666
        %v6673 = vpack.c.bf16 %v6669, %v6668
        %6674 = vst.msk [vmem:[#allocation7 + $0x58] sm:$0xff] %vm6040, %v6670
        %6675 = vst.msk [vmem:[#allocation7 + $0xc0] sm:$0xff] %vm6040, %v6671
        %6676 = vst.msk [vmem:[#allocation7 + $0x128] sm:$0xff] %vm6040, %v6672
        %6677 = vst.msk [vmem:[#allocation7 + $0x190] sm:$0xff] %vm6040, %v6673
        %v6678 = vld [vmem:[%s6613 + $0x3] sm:$0xff]
        %v6679 = vld [vmem:[%s6613 + $0x13] sm:$0xff]
        %v6680 = vld [vmem:[%s6613 + $0x23] sm:$0xff]
        %v6681 = vld [vmem:[%s6613 + $0x33] sm:$0xff]
        %v6682 = vld [vmem:[%s6613 + $0x43] sm:$0xff]
        %v6683 = vld [vmem:[%s6613 + $0x53] sm:$0xff]
        %v6684 = vld [vmem:[%s6613 + $0x63] sm:$0xff]
        %v6685 = vld [vmem:[%s6613 + $0x73] sm:$0xff]
        %v6686 = vpack.c.bf16 %v6679, %v6678
        %v6687 = vpack.c.bf16 %v6681, %v6680
        %v6688 = vpack.c.bf16 %v6683, %v6682
        %v6689 = vpack.c.bf16 %v6685, %v6684
        %6694 = vrot.lane.b32.xlu0 %v6686, 64
        %v6695 = vpop.permute.xlu0 %6694
        %6696 = vrot.lane.b32.xlu0 %v6687, 64
        %v6697 = vpop.permute.xlu0 %6696
        %6698 = vrot.lane.b32.xlu0 %v6688, 64
        %v6699 = vpop.permute.xlu0 %6698
        %6700 = vrot.lane.b32.xlu0 %v6689, 64
        %v6701 = vpop.permute.xlu0 %6700
        %6706 = vst.msk [vmem:[#allocation7 + $0x58] sm:$0xff] %vm6174, %v6695
        %6707 = vst.msk [vmem:[#allocation7 + $0xc0] sm:$0xff] %vm6174, %v6697
        %6708 = vst.msk [vmem:[#allocation7 + $0x128] sm:$0xff] %vm6174, %v6699
        %6709 = vst.msk [vmem:[#allocation7 + $0x190] sm:$0xff] %vm6174, %v6701
        %v6710 = vld [vmem:[%s6613 + $0x4] sm:$0xff]
        %v6711 = vld [vmem:[%s6613 + $0x14] sm:$0xff]
        %v6712 = vld [vmem:[%s6613 + $0x24] sm:$0xff]
        %v6713 = vld [vmem:[%s6613 + $0x34] sm:$0xff]
        %v6714 = vld [vmem:[%s6613 + $0x44] sm:$0xff]
        %v6715 = vld [vmem:[%s6613 + $0x54] sm:$0xff]
        %v6716 = vld [vmem:[%s6613 + $0x64] sm:$0xff]
        %v6717 = vld [vmem:[%s6613 + $0x74] sm:$0xff]
        %v6718 = vpack.c.bf16 %v6711, %v6710
        %v6719 = vpack.c.bf16 %v6713, %v6712
        %v6720 = vpack.c.bf16 %v6715, %v6714
        %v6721 = vpack.c.bf16 %v6717, %v6716
        %6722 = vst.msk [vmem:[#allocation7 + $0x60] sm:$0xff] %vm6040, %v6718
        %6723 = vst.msk [vmem:[#allocation7 + $0xc8] sm:$0xff] %vm6040, %v6719
        %6724 = vst.msk [vmem:[#allocation7 + $0x130] sm:$0xff] %vm6040, %v6720
        %6725 = vst.msk [vmem:[#allocation7 + $0x198] sm:$0xff] %vm6040, %v6721
        %v6726 = vld [vmem:[#allocation7] sm:$0xff]
        %v6727 = vld [vmem:[#allocation7 + $0x8] sm:$0xff]
        %v6728 = vld [vmem:[#allocation7 + $0x10] sm:$0xff]
        %v6729 = vld [vmem:[#allocation7 + $0x18] sm:$0xff]
        %v6730 = vld [vmem:[#allocation7 + $0x20] sm:$0xff]
        %v6731 = vld [vmem:[#allocation7 + $0x28] sm:$0xff]
        %v6732 = vld [vmem:[#allocation7 + $0x30] sm:$0xff]
        %v6733 = vld [vmem:[#allocation7 + $0x38] sm:$0xff]
        %v6734 = vld [vmem:[#allocation7 + $0x40] sm:$0xff]
        %v6735 = vld [vmem:[#allocation7 + $0x48] sm:$0xff]
        %v6736 = vld [vmem:[#allocation7 + $0x50] sm:$0xff]
        %v6737 = vld [vmem:[#allocation7 + $0x58] sm:$0xff]
        %v6738 = vld [vmem:[#allocation7 + $0x60] sm:$0xff]
        %v6739 = vld [vmem:[#allocation7 + $0x68] sm:$0xff]
        %v6740 = vld [vmem:[#allocation7 + $0x70] sm:$0xff]
        %v6741 = vld [vmem:[#allocation7 + $0x78] sm:$0xff]
        %v6742 = vld [vmem:[#allocation7 + $0x80] sm:$0xff]
        %v6743 = vld [vmem:[#allocation7 + $0x88] sm:$0xff]
        %v6744 = vld [vmem:[#allocation7 + $0x90] sm:$0xff]
        %v6745 = vld [vmem:[#allocation7 + $0x98] sm:$0xff]
        %v6746 = vld [vmem:[#allocation7 + $0xa0] sm:$0xff]
        %v6747 = vld [vmem:[#allocation7 + $0xa8] sm:$0xff]
        %v6748 = vld [vmem:[#allocation7 + $0xb0] sm:$0xff]
        %v6749 = vld [vmem:[#allocation7 + $0xb8] sm:$0xff]
        %v6750 = vld [vmem:[#allocation7 + $0xc0] sm:$0xff]
        %v6751 = vld [vmem:[#allocation7 + $0xc8] sm:$0xff]
        %v6752 = vld [vmem:[#allocation7 + $0xd0] sm:$0xff]
        %v6753 = vld [vmem:[#allocation7 + $0xd8] sm:$0xff]
        %v6754 = vld [vmem:[#allocation7 + $0xe0] sm:$0xff]
        %v6755 = vld [vmem:[#allocation7 + $0xe8] sm:$0xff]
        %v6756 = vld [vmem:[#allocation7 + $0xf0] sm:$0xff]
        %v6757 = vld [vmem:[#allocation7 + $0xf8] sm:$0xff]
        %v6758 = vld [vmem:[#allocation7 + $0x100] sm:$0xff]
        %v6759 = vld [vmem:[#allocation7 + $0x108] sm:$0xff]
        %v6760 = vld [vmem:[#allocation7 + $0x110] sm:$0xff]
        %v6761 = vld [vmem:[#allocation7 + $0x118] sm:$0xff]
        %v6762 = vld [vmem:[#allocation7 + $0x120] sm:$0xff]
        %v6763 = vld [vmem:[#allocation7 + $0x128] sm:$0xff]
        %v6764 = vld [vmem:[#allocation7 + $0x130] sm:$0xff]
        %v6765 = vld [vmem:[#allocation7 + $0x138] sm:$0xff]
        %v6766 = vld [vmem:[#allocation7 + $0x140] sm:$0xff]
        %v6767 = vld [vmem:[#allocation7 + $0x148] sm:$0xff]
        %v6768 = vld [vmem:[#allocation7 + $0x150] sm:$0xff]
        %v6769 = vld [vmem:[#allocation7 + $0x158] sm:$0xff]
        %v6770 = vld [vmem:[#allocation7 + $0x160] sm:$0xff]
        %v6771 = vld [vmem:[#allocation7 + $0x168] sm:$0xff]
        %v6772 = vld [vmem:[#allocation7 + $0x170] sm:$0xff]
        %v6773 = vld [vmem:[#allocation7 + $0x178] sm:$0xff]
        %v6774 = vld [vmem:[#allocation7 + $0x180] sm:$0xff]
        %v6775 = vld [vmem:[#allocation7 + $0x188] sm:$0xff]
        %v6776 = vld [vmem:[#allocation7 + $0x190] sm:$0xff]
        %v6777 = vld [vmem:[#allocation7 + $0x198] sm:$0xff]
        %v6778 = vld [vmem:[%s5] sm:$0xf]
        %v6779 = vld [vmem:[%s5 + $0x4] sm:$0xf]
        %v6780 = vld [vmem:[%s5 + $0x8] sm:$0xf]
        %v6781 = vld [vmem:[%s5 + $0xc] sm:$0xf]
        %v6782 = vld [vmem:[%s5 + $0x10] sm:$0xf]
        %v6783 = vld [vmem:[%s5 + $0x14] sm:$0xf]
        %v6784 = vld [vmem:[%s5 + $0x18] sm:$0xf]
        %v6785 = vld [vmem:[%s5 + $0x1c] sm:$0xf]
        %v6786 = vld [vmem:[%s5 + $0x20] sm:$0xf]
        %v6787 = vld [vmem:[%s5 + $0x24] sm:$0xf]
        %v6788 = vld [vmem:[%s5 + $0x28] sm:$0xf]
        %v6789 = vld [vmem:[%s5 + $0x2c] sm:$0xf]
        %v6790 = vld [vmem:[%s5 + $0x30] sm:$0xf]
        %v6791 = vld [vmem:[%s5 + $0x34] sm:$0xf]
        %v6792 = vld [vmem:[%s5 + $0x38] sm:$0xf]
        %v6793 = vld [vmem:[%s5 + $0x3c] sm:$0xf]
        %v6794 = vld [vmem:[%s5 + $0x40] sm:$0xf]
        %v6795 = vld [vmem:[%s5 + $0x44] sm:$0xf]
        %v6796 = vld [vmem:[%s5 + $0x48] sm:$0xf]
        %v6797 = vld [vmem:[%s5 + $0x4c] sm:$0xf]
        %v6798 = vld [vmem:[%s5 + $0x50] sm:$0xf]
        %v6799 = vld [vmem:[%s5 + $0x54] sm:$0xf]
        %v6800 = vld [vmem:[%s5 + $0x58] sm:$0xf]
        %v6801 = vld [vmem:[%s5 + $0x5c] sm:$0xf]
        %v6802 = vld [vmem:[%s5 + $0x60] sm:$0xf]
        %v6803 = vld [vmem:[%s5 + $0x64] sm:$0xf]
        %v6804 = vld [vmem:[%s5 + $0x68] sm:$0xf]
        %v6805 = vld [vmem:[%s5 + $0x6c] sm:$0xf]
        %v6806 = vld [vmem:[%s5 + $0x70] sm:$0xf]
        %v6807 = vld [vmem:[%s5 + $0x74] sm:$0xf]
        %v6808 = vld [vmem:[%s5 + $0x78] sm:$0xf]
        %v6809 = vld [vmem:[%s5 + $0x7c] sm:$0xf]
        %v6810 = vld [vmem:[%s5 + $0x80] sm:$0xf]
        %v6811 = vld [vmem:[%s5 + $0x84] sm:$0xf]
        %v6812 = vld [vmem:[%s5 + $0x88] sm:$0xf]
        %v6813 = vld [vmem:[%s5 + $0x8c] sm:$0xf]
        %v6814 = vld [vmem:[%s5 + $0x90] sm:$0xf]
        %v6815 = vld [vmem:[%s5 + $0x94] sm:$0xf]
        %v6816 = vld [vmem:[%s5 + $0x98] sm:$0xf]
        %v6817 = vld [vmem:[%s5 + $0x9c] sm:$0xf]
        %v6818 = vld [vmem:[%s5 + $0xa0] sm:$0xf]
        %v6819 = vld [vmem:[%s5 + $0xa4] sm:$0xf]
        %v6820 = vld [vmem:[%s5 + $0xa8] sm:$0xf]
        %v6821 = vld [vmem:[%s5 + $0xac] sm:$0xf]
        %v6822 = vld [vmem:[%s5 + $0xb0] sm:$0xf]
        %v6823 = vld [vmem:[%s5 + $0xb4] sm:$0xf]
        %v6824 = vld [vmem:[%s5 + $0xb8] sm:$0xf]
        %v6825 = vld [vmem:[%s5 + $0xbc] sm:$0xf]
        %v6826 = vld [vmem:[%s5 + $0xc0] sm:$0xf]
        %v6827 = vld [vmem:[%s5 + $0xc4] sm:$0xf]
        %v6828 = vld [vmem:[%s5 + $0xc8] sm:$0xf]
        %v6829 = vld [vmem:[%s5 + $0xcc] sm:$0xf]
        %v6830 = vld [vmem:[%s5 + $0xd0] sm:$0xf]
        %v6831 = vld [vmem:[%s5 + $0xd4] sm:$0xf]
        %v6832 = vld [vmem:[%s5 + $0xd8] sm:$0xf]
        %v6833 = vld [vmem:[%s5 + $0xdc] sm:$0xf]
        %v6834 = vld [vmem:[%s5 + $0xe0] sm:$0xf]
        %v6835 = vld [vmem:[%s5 + $0xe4] sm:$0xf]
        %v6836 = vld [vmem:[%s5 + $0xe8] sm:$0xf]
        %v6837 = vld [vmem:[%s5 + $0xec] sm:$0xf]
        %v6838 = vld [vmem:[%s5 + $0xf0] sm:$0xf]
        %v6839 = vld [vmem:[%s5 + $0xf4] sm:$0xf]
        %v6840 = vld [vmem:[%s5 + $0xf8] sm:$0xf]
        %v6841 = vld [vmem:[%s5 + $0xfc] sm:$0xf]
        %v6842 = vld [vmem:[%s5 + $0x100] sm:$0xf]
        %v6843 = vld [vmem:[%s5 + $0x104] sm:$0xf]
        %v6844 = vld [vmem:[%s5 + $0x108] sm:$0xf]
        %v6845 = vld [vmem:[%s5 + $0x10c] sm:$0xf]
        %v6846 = vld [vmem:[%s5 + $0x110] sm:$0xf]
        %v6847 = vld [vmem:[%s5 + $0x114] sm:$0xf]
        %v6848 = vld [vmem:[%s5 + $0x118] sm:$0xf]
        %v6849 = vld [vmem:[%s5 + $0x11c] sm:$0xf]
        %v6850 = vld [vmem:[%s5 + $0x120] sm:$0xf]
        %v6851 = vld [vmem:[%s5 + $0x124] sm:$0xf]
        %v6852 = vld [vmem:[%s5 + $0x128] sm:$0xf]
        %v6853 = vld [vmem:[%s5 + $0x12c] sm:$0xf]
        %v6854 = vld [vmem:[%s5 + $0x130] sm:$0xf]
        %v6855 = vld [vmem:[%s5 + $0x134] sm:$0xf]
        %v6856 = vld [vmem:[%s5 + $0x138] sm:$0xf]
        %v6857 = vld [vmem:[%s5 + $0x13c] sm:$0xf]
        %v6858 = vld [vmem:[%s5 + $0x140] sm:$0xf]
        %v6859 = vld [vmem:[%s5 + $0x144] sm:$0xf]
        %v6860 = vld [vmem:[%s5 + $0x148] sm:$0xf]
        %v6861 = vld [vmem:[%s5 + $0x14c] sm:$0xf]
        %v6862 = vld [vmem:[%s5 + $0x150] sm:$0xf]
        %v6863 = vld [vmem:[%s5 + $0x154] sm:$0xf]
        %v6864 = vld [vmem:[%s5 + $0x158] sm:$0xf]
        %v6865 = vld [vmem:[%s5 + $0x15c] sm:$0xf]
        %v6866 = vld [vmem:[%s5 + $0x160] sm:$0xf]
        %v6867 = vld [vmem:[%s5 + $0x164] sm:$0xf]
        %v6868 = vld [vmem:[%s5 + $0x168] sm:$0xf]
        %v6869 = vld [vmem:[%s5 + $0x16c] sm:$0xf]
        %v6870 = vld [vmem:[%s5 + $0x170] sm:$0xf]
        %v6871 = vld [vmem:[%s5 + $0x174] sm:$0xf]
        %v6872 = vld [vmem:[%s5 + $0x178] sm:$0xf]
        %v6873 = vld [vmem:[%s5 + $0x17c] sm:$0xf]
        %v6874 = vld [vmem:[%s5 + $0x180] sm:$0xf]
        %v6875 = vld [vmem:[%s5 + $0x184] sm:$0xf]
        %v6876 = vld [vmem:[%s5 + $0x188] sm:$0xf]
        %v6877 = vld [vmem:[%s5 + $0x18c] sm:$0xf]
        %v6878 = vld [vmem:[%s5 + $0x190] sm:$0xf]
        %v6879 = vld [vmem:[%s5 + $0x194] sm:$0xf]
        %v6880 = vld [vmem:[%s5 + $0x198] sm:$0xf]
        %v6881 = vld [vmem:[%s5 + $0x19c] sm:$0xf]
        %v6882 = vld [vmem:[%s5 + $0x1a0] sm:$0xf]
        %v6883 = vld [vmem:[%s5 + $0x1a4] sm:$0xf]
        %v6884 = vld [vmem:[%s5 + $0x1a8] sm:$0xf]
        %v6885 = vld [vmem:[%s5 + $0x1ac] sm:$0xf]
        %v6886 = vld [vmem:[%s5 + $0x1b0] sm:$0xf]
        %v6887 = vld [vmem:[%s5 + $0x1b4] sm:$0xf]
        %v6888 = vld [vmem:[%s5 + $0x1b8] sm:$0xf]
        %v6889 = vld [vmem:[%s5 + $0x1bc] sm:$0xf]
        %v6890 = vld [vmem:[%s5 + $0x1c0] sm:$0xf]
        %v6891 = vld [vmem:[%s5 + $0x1c4] sm:$0xf]
        %v6892 = vld [vmem:[%s5 + $0x1c8] sm:$0xf]
        %v6893 = vld [vmem:[%s5 + $0x1cc] sm:$0xf]
        %v6894 = vld [vmem:[%s5 + $0x1d0] sm:$0xf]
        %v6895 = vld [vmem:[%s5 + $0x1d4] sm:$0xf]
        %v6896 = vld [vmem:[%s5 + $0x1d8] sm:$0xf]
        %v6897 = vld [vmem:[%s5 + $0x1dc] sm:$0xf]
        %v6898 = vld [vmem:[%s5 + $0x1e0] sm:$0xf]
        %v6899 = vld [vmem:[%s5 + $0x1e4] sm:$0xf]
        %v6900 = vld [vmem:[%s5 + $0x1e8] sm:$0xf]
        %v6901 = vld [vmem:[%s5 + $0x1ec] sm:$0xf]
        %v6902 = vld [vmem:[%s5 + $0x1f0] sm:$0xf]
        %v6903 = vld [vmem:[%s5 + $0x1f4] sm:$0xf]
        %v6904 = vld [vmem:[%s5 + $0x1f8] sm:$0xf]
        %v6905 = vld [vmem:[%s5 + $0x1fc] sm:$0xf]
        %v6906 = vld [vmem:[%s5 + $0x200] sm:$0xf]
        %v6907 = vld [vmem:[%s5 + $0x204] sm:$0xf]
        %v6908 = vld [vmem:[%s5 + $0x208] sm:$0xf]
        %v6909 = vld [vmem:[%s5 + $0x20c] sm:$0xf]
        %v6910 = vld [vmem:[%s5 + $0x210] sm:$0xf]
        %v6911 = vld [vmem:[%s5 + $0x214] sm:$0xf]
        %v6912 = vld [vmem:[%s5 + $0x218] sm:$0xf]
        %v6913 = vld [vmem:[%s5 + $0x21c] sm:$0xf]
        %v6914 = vld [vmem:[%s5 + $0x220] sm:$0xf]
        %v6915 = vld [vmem:[%s5 + $0x224] sm:$0xf]
        %v6916 = vld [vmem:[%s5 + $0x228] sm:$0xf]
        %v6917 = vld [vmem:[%s5 + $0x22c] sm:$0xf]
        %v6918 = vld [vmem:[%s5 + $0x230] sm:$0xf]
        %v6919 = vld [vmem:[%s5 + $0x234] sm:$0xf]
        %v6920 = vld [vmem:[%s5 + $0x238] sm:$0xf]
        %v6921 = vld [vmem:[%s5 + $0x23c] sm:$0xf]
        %v6922 = vld [vmem:[%s5 + $0x240] sm:$0xf]
        %v6923 = vld [vmem:[%s5 + $0x244] sm:$0xf]
        %v6924 = vld [vmem:[%s5 + $0x248] sm:$0xf]
        %v6925 = vld [vmem:[%s5 + $0x24c] sm:$0xf]
        %v6926 = vld [vmem:[%s5 + $0x250] sm:$0xf]
        %v6927 = vld [vmem:[%s5 + $0x254] sm:$0xf]
        %v6928 = vld [vmem:[%s5 + $0x258] sm:$0xf]
        %v6929 = vld [vmem:[%s5 + $0x25c] sm:$0xf]
        %v6930 = vld [vmem:[%s5 + $0x260] sm:$0xf]
        %v6931 = vld [vmem:[%s5 + $0x264] sm:$0xf]
        %v6932 = vld [vmem:[%s5 + $0x268] sm:$0xf]
        %v6933 = vld [vmem:[%s5 + $0x26c] sm:$0xf]
        %v6934 = vld [vmem:[%s5 + $0x270] sm:$0xf]
        %v6935 = vld [vmem:[%s5 + $0x274] sm:$0xf]
        %v6936 = vld [vmem:[%s5 + $0x278] sm:$0xf]
        %v6937 = vld [vmem:[%s5 + $0x27c] sm:$0xf]
        %v6938 = vld [vmem:[%s5 + $0x280] sm:$0xf]
        %v6939 = vld [vmem:[%s5 + $0x284] sm:$0xf]
        %v6940 = vld [vmem:[%s5 + $0x288] sm:$0xf]
        %v6941 = vld [vmem:[%s5 + $0x28c] sm:$0xf]
        %v6942 = vld [vmem:[%s5 + $0x290] sm:$0xf]
        %v6943 = vld [vmem:[%s5 + $0x294] sm:$0xf]
        %v6944 = vld [vmem:[%s5 + $0x298] sm:$0xf]
        %v6945 = vld [vmem:[%s5 + $0x29c] sm:$0xf]
        %v6946 = vld [vmem:[%s5 + $0x2a0] sm:$0xf]
        %v6947 = vld [vmem:[%s5 + $0x2a4] sm:$0xf]
        %v6948 = vld [vmem:[%s5 + $0x2a8] sm:$0xf]
        %v6949 = vld [vmem:[%s5 + $0x2ac] sm:$0xf]
        %v6950 = vld [vmem:[%s5 + $0x2b0] sm:$0xf]
        %v6951 = vld [vmem:[%s5 + $0x2b4] sm:$0xf]
        %v6952 = vld [vmem:[%s5 + $0x2b8] sm:$0xf]
        %v6953 = vld [vmem:[%s5 + $0x2bc] sm:$0xf]
        %v6954 = vld [vmem:[%s5 + $0x2c0] sm:$0xf]
        %v6955 = vld [vmem:[%s5 + $0x2c4] sm:$0xf]
        %v6956 = vld [vmem:[%s5 + $0x2c8] sm:$0xf]
        %v6957 = vld [vmem:[%s5 + $0x2cc] sm:$0xf]
        %v6958 = vld [vmem:[%s5 + $0x2d0] sm:$0xf]
        %v6959 = vld [vmem:[%s5 + $0x2d4] sm:$0xf]
        %v6960 = vld [vmem:[%s5 + $0x2d8] sm:$0xf]
        %v6961 = vld [vmem:[%s5 + $0x2dc] sm:$0xf]
        %v6962 = vld [vmem:[%s5 + $0x2e0] sm:$0xf]
        %v6963 = vld [vmem:[%s5 + $0x2e4] sm:$0xf]
        %v6964 = vld [vmem:[%s5 + $0x2e8] sm:$0xf]
        %v6965 = vld [vmem:[%s5 + $0x2ec] sm:$0xf]
        %v6966 = vld [vmem:[%s5 + $0x2f0] sm:$0xf]
        %v6967 = vld [vmem:[%s5 + $0x2f4] sm:$0xf]
        %v6968 = vld [vmem:[%s5 + $0x2f8] sm:$0xf]
        %v6969 = vld [vmem:[%s5 + $0x2fc] sm:$0xf]
        %v6970 = vld [vmem:[%s5 + $0x300] sm:$0xf]
        %v6971 = vld [vmem:[%s5 + $0x304] sm:$0xf]
        %v6972 = vld [vmem:[%s5 + $0x308] sm:$0xf]
        %v6973 = vld [vmem:[%s5 + $0x30c] sm:$0xf]
        %v6974 = vld [vmem:[%s5 + $0x310] sm:$0xf]
        %v6975 = vld [vmem:[%s5 + $0x314] sm:$0xf]
        %v6976 = vld [vmem:[%s5 + $0x318] sm:$0xf]
        %v6977 = vld [vmem:[%s5 + $0x31c] sm:$0xf]
        %v6978 = vld [vmem:[%s6] sm:$0x1]
        %v6980 = vlaneseq
        %v6981 = vshrl.u32 %v6980, 7
        %v6982 = vsub.s32 0, %v6981
        %v6983 = vrot.slane %v6978, %v6982
        %v7185 = vunpack.c.l.b16 %v6778
        %v7186 = vunpack.c.l.b16 %v6779
        %v7187 = vunpack.c.l.b16 %v6780
        %v7188 = vunpack.c.l.b16 %v6781
        %v7189 = vunpack.c.l.b16 %v6782
        %v7190 = vunpack.c.l.b16 %v6783
        %v7191 = vunpack.c.l.b16 %v6784
        %v7192 = vunpack.c.l.b16 %v6785
        %v7193 = vunpack.c.l.b16 %v6786
        %v7194 = vunpack.c.l.b16 %v6787
        %v7195 = vunpack.c.l.b16 %v6788
        %v7196 = vunpack.c.l.b16 %v6789
        %v7197 = vunpack.c.l.b16 %v6790
        %v7198 = vunpack.c.l.b16 %v6791
        %v7199 = vunpack.c.l.b16 %v6792
        %v7200 = vunpack.c.l.b16 %v6793
        %v7201 = vunpack.c.l.b16 %v6794
        %v7202 = vunpack.c.l.b16 %v6795
        %v7203 = vunpack.c.l.b16 %v6796
        %v7204 = vunpack.c.l.b16 %v6797
        %v7205 = vunpack.c.l.b16 %v6798
        %v7206 = vunpack.c.l.b16 %v6799
        %v7207 = vunpack.c.l.b16 %v6800
        %v7208 = vunpack.c.l.b16 %v6801
        %v7209 = vunpack.c.l.b16 %v6802
        %v7210 = vunpack.c.l.b16 %v6803
        %v7211 = vunpack.c.l.b16 %v6804
        %v7212 = vunpack.c.l.b16 %v6805
        %v7213 = vunpack.c.l.b16 %v6806
        %v7214 = vunpack.c.l.b16 %v6807
        %v7215 = vunpack.c.l.b16 %v6808
        %v7216 = vunpack.c.l.b16 %v6809
        %v7217 = vunpack.c.l.b16 %v6810
        %v7218 = vunpack.c.l.b16 %v6811
        %v7219 = vunpack.c.l.b16 %v6812
        %v7220 = vunpack.c.l.b16 %v6813
        %v7221 = vunpack.c.l.b16 %v6814
        %v7222 = vunpack.c.l.b16 %v6815
        %v7223 = vunpack.c.l.b16 %v6816
        %v7224 = vunpack.c.l.b16 %v6817
        %v7225 = vunpack.c.l.b16 %v6818
        %v7226 = vunpack.c.l.b16 %v6819
        %v7227 = vunpack.c.l.b16 %v6820
        %v7228 = vunpack.c.l.b16 %v6821
        %v7229 = vunpack.c.l.b16 %v6822
        %v7230 = vunpack.c.l.b16 %v6823
        %v7231 = vunpack.c.l.b16 %v6824
        %v7232 = vunpack.c.l.b16 %v6825
        %v7233 = vunpack.c.l.b16 %v6826
        %v7234 = vunpack.c.l.b16 %v6827
        %v7235 = vunpack.c.l.b16 %v6828
        %v7236 = vunpack.c.l.b16 %v6829
        %v7237 = vunpack.c.l.b16 %v6830
        %v7238 = vunpack.c.l.b16 %v6831
        %v7239 = vunpack.c.l.b16 %v6832
        %v7240 = vunpack.c.l.b16 %v6833
        %v7241 = vunpack.c.l.b16 %v6834
        %v7242 = vunpack.c.l.b16 %v6835
        %v7243 = vunpack.c.l.b16 %v6836
        %v7244 = vunpack.c.l.b16 %v6837
        %v7245 = vunpack.c.l.b16 %v6838
        %v7246 = vunpack.c.l.b16 %v6839
        %v7247 = vunpack.c.l.b16 %v6840
        %v7248 = vunpack.c.l.b16 %v6841
        %v7249 = vunpack.c.l.b16 %v6842
        %v7250 = vunpack.c.l.b16 %v6843
        %v7251 = vunpack.c.l.b16 %v6844
        %v7252 = vunpack.c.l.b16 %v6845
        %v7253 = vunpack.c.l.b16 %v6846
        %v7254 = vunpack.c.l.b16 %v6847
        %v7255 = vunpack.c.l.b16 %v6848
        %v7256 = vunpack.c.l.b16 %v6849
        %v7257 = vunpack.c.l.b16 %v6850
        %v7258 = vunpack.c.l.b16 %v6851
        %v7259 = vunpack.c.l.b16 %v6852
        %v7260 = vunpack.c.l.b16 %v6853
        %v7261 = vunpack.c.l.b16 %v6854
        %v7262 = vunpack.c.l.b16 %v6855
        %v7263 = vunpack.c.l.b16 %v6856
        %v7264 = vunpack.c.l.b16 %v6857
        %v7265 = vunpack.c.l.b16 %v6858
        %v7266 = vunpack.c.l.b16 %v6859
        %v7267 = vunpack.c.l.b16 %v6860
        %v7268 = vunpack.c.l.b16 %v6861
        %v7269 = vunpack.c.l.b16 %v6862
        %v7270 = vunpack.c.l.b16 %v6863
        %v7271 = vunpack.c.l.b16 %v6864
        %v7272 = vunpack.c.l.b16 %v6865
        %v7273 = vunpack.c.l.b16 %v6866
        %v7274 = vunpack.c.l.b16 %v6867
        %v7275 = vunpack.c.l.b16 %v6868
        %v7276 = vunpack.c.l.b16 %v6869
        %v7277 = vunpack.c.l.b16 %v6870
        %v7278 = vunpack.c.l.b16 %v6871
        %v7279 = vunpack.c.l.b16 %v6872
        %v7280 = vunpack.c.l.b16 %v6873
        %v7281 = vunpack.c.l.b16 %v6874
        %v7282 = vunpack.c.l.b16 %v6875
        %v7283 = vunpack.c.l.b16 %v6876
        %v7284 = vunpack.c.l.b16 %v6877
        %v7285 = vunpack.c.l.b16 %v6878
        %v7286 = vunpack.c.l.b16 %v6879
        %v7287 = vunpack.c.l.b16 %v6880
        %v7288 = vunpack.c.l.b16 %v6881
        %v7289 = vunpack.c.l.b16 %v6882
        %v7290 = vunpack.c.l.b16 %v6883
        %v7291 = vunpack.c.l.b16 %v6884
        %v7292 = vunpack.c.l.b16 %v6885
        %v7293 = vunpack.c.l.b16 %v6886
        %v7294 = vunpack.c.l.b16 %v6887
        %v7295 = vunpack.c.l.b16 %v6888
        %v7296 = vunpack.c.l.b16 %v6889
        %v7297 = vunpack.c.l.b16 %v6890
        %v7298 = vunpack.c.l.b16 %v6891
        %v7299 = vunpack.c.l.b16 %v6892
        %v7300 = vunpack.c.l.b16 %v6893
        %v7301 = vunpack.c.l.b16 %v6894
        %v7302 = vunpack.c.l.b16 %v6895
        %v7303 = vunpack.c.l.b16 %v6896
        %v7304 = vunpack.c.l.b16 %v6897
        %v7305 = vunpack.c.l.b16 %v6898
        %v7306 = vunpack.c.l.b16 %v6899
        %v7307 = vunpack.c.l.b16 %v6900
        %v7308 = vunpack.c.l.b16 %v6901
        %v7309 = vunpack.c.l.b16 %v6902
        %v7310 = vunpack.c.l.b16 %v6903
        %v7311 = vunpack.c.l.b16 %v6904
        %v7312 = vunpack.c.l.b16 %v6905
        %v7313 = vunpack.c.l.b16 %v6906
        %v7314 = vunpack.c.l.b16 %v6907
        %v7315 = vunpack.c.l.b16 %v6908
        %v7316 = vunpack.c.l.b16 %v6909
        %v7317 = vunpack.c.l.b16 %v6910
        %v7318 = vunpack.c.l.b16 %v6911
        %v7319 = vunpack.c.l.b16 %v6912
        %v7320 = vunpack.c.l.b16 %v6913
        %v7321 = vunpack.c.l.b16 %v6914
        %v7322 = vunpack.c.l.b16 %v6915
        %v7323 = vunpack.c.l.b16 %v6916
        %v7324 = vunpack.c.l.b16 %v6917
        %v7325 = vunpack.c.l.b16 %v6918
        %v7326 = vunpack.c.l.b16 %v6919
        %v7327 = vunpack.c.l.b16 %v6920
        %v7328 = vunpack.c.l.b16 %v6921
        %v7329 = vunpack.c.l.b16 %v6922
        %v7330 = vunpack.c.l.b16 %v6923
        %v7331 = vunpack.c.l.b16 %v6924
        %v7332 = vunpack.c.l.b16 %v6925
        %v7333 = vunpack.c.l.b16 %v6926
        %v7334 = vunpack.c.l.b16 %v6927
        %v7335 = vunpack.c.l.b16 %v6928
        %v7336 = vunpack.c.l.b16 %v6929
        %v7337 = vunpack.c.l.b16 %v6930
        %v7338 = vunpack.c.l.b16 %v6931
        %v7339 = vunpack.c.l.b16 %v6932
        %v7340 = vunpack.c.l.b16 %v6933
        %v7341 = vunpack.c.l.b16 %v6934
        %v7342 = vunpack.c.l.b16 %v6935
        %v7343 = vunpack.c.l.b16 %v6936
        %v7344 = vunpack.c.l.b16 %v6937
        %v7345 = vunpack.c.l.b16 %v6938
        %v7346 = vunpack.c.l.b16 %v6939
        %v7347 = vunpack.c.l.b16 %v6940
        %v7348 = vunpack.c.l.b16 %v6941
        %v7349 = vunpack.c.l.b16 %v6942
        %v7350 = vunpack.c.l.b16 %v6943
        %v7351 = vunpack.c.l.b16 %v6944
        %v7352 = vunpack.c.l.b16 %v6945
        %v7353 = vunpack.c.l.b16 %v6946
        %v7354 = vunpack.c.l.b16 %v6947
        %v7355 = vunpack.c.l.b16 %v6948
        %v7356 = vunpack.c.l.b16 %v6949
        %v7357 = vunpack.c.l.b16 %v6950
        %v7358 = vunpack.c.l.b16 %v6951
        %v7359 = vunpack.c.l.b16 %v6952
        %v7360 = vunpack.c.l.b16 %v6953
        %v7361 = vunpack.c.l.b16 %v6954
        %v7362 = vunpack.c.l.b16 %v6955
        %v7363 = vunpack.c.l.b16 %v6956
        %v7364 = vunpack.c.l.b16 %v6957
        %v7365 = vunpack.c.l.b16 %v6958
        %v7366 = vunpack.c.l.b16 %v6959
        %v7367 = vunpack.c.l.b16 %v6960
        %v7368 = vunpack.c.l.b16 %v6961
        %v7369 = vunpack.c.l.b16 %v6962
        %v7370 = vunpack.c.l.b16 %v6963
        %v7371 = vunpack.c.l.b16 %v6964
        %v7372 = vunpack.c.l.b16 %v6965
        %v7373 = vunpack.c.l.b16 %v6966
        %v7374 = vunpack.c.l.b16 %v6967
        %v7375 = vunpack.c.l.b16 %v6968
        %v7376 = vunpack.c.l.b16 %v6969
        %v7377 = vunpack.c.l.b16 %v6970
        %v7378 = vunpack.c.l.b16 %v6971
        %v7379 = vunpack.c.l.b16 %v6972
        %v7380 = vunpack.c.l.b16 %v6973
        %v7381 = vunpack.c.l.b16 %v6974
        %v7382 = vunpack.c.l.b16 %v6975
        %v7383 = vunpack.c.l.b16 %v6976
        %v7384 = vunpack.c.l.b16 %v6977
        %v7385 = vpack.c.b16 %v7186, %v7185
        %v7386 = vpack.c.b16 %v7188, %v7187
        %v7387 = vpack.c.b16 %v7190, %v7189
        %v7388 = vpack.c.b16 %v7192, %v7191
        %v7389 = vpack.c.b16 %v7194, %v7193
        %v7390 = vpack.c.b16 %v7196, %v7195
        %v7391 = vpack.c.b16 %v7198, %v7197
        %v7392 = vpack.c.b16 %v7200, %v7199
        %v7393 = vpack.c.b16 %v7202, %v7201
        %v7394 = vpack.c.b16 %v7204, %v7203
        %v7395 = vpack.c.b16 %v7206, %v7205
        %v7396 = vpack.c.b16 %v7208, %v7207
        %v7397 = vpack.c.b16 %v7210, %v7209
        %v7398 = vpack.c.b16 %v7212, %v7211
        %v7399 = vpack.c.b16 %v7214, %v7213
        %v7400 = vpack.c.b16 %v7216, %v7215
        %v7401 = vpack.c.b16 %v7218, %v7217
        %v7402 = vpack.c.b16 %v7220, %v7219
        %v7403 = vpack.c.b16 %v7222, %v7221
        %v7404 = vpack.c.b16 %v7224, %v7223
        %v7405 = vpack.c.b16 %v7226, %v7225
        %v7406 = vpack.c.b16 %v7228, %v7227
        %v7407 = vpack.c.b16 %v7230, %v7229
        %v7408 = vpack.c.b16 %v7232, %v7231
        %v7409 = vpack.c.b16 %v7234, %v7233
        %v7410 = vpack.c.b16 %v7236, %v7235
        %v7411 = vpack.c.b16 %v7238, %v7237
        %v7412 = vpack.c.b16 %v7240, %v7239
        %v7413 = vpack.c.b16 %v7242, %v7241
        %v7414 = vpack.c.b16 %v7244, %v7243
        %v7415 = vpack.c.b16 %v7246, %v7245
        %v7416 = vpack.c.b16 %v7248, %v7247
        %v7417 = vpack.c.b16 %v7250, %v7249
        %v7418 = vpack.c.b16 %v7252, %v7251
        %v7419 = vpack.c.b16 %v7254, %v7253
        %v7420 = vpack.c.b16 %v7256, %v7255
        %v7421 = vpack.c.b16 %v7258, %v7257
        %v7422 = vpack.c.b16 %v7260, %v7259
        %v7423 = vpack.c.b16 %v7262, %v7261
        %v7424 = vpack.c.b16 %v7264, %v7263
        %v7425 = vpack.c.b16 %v7266, %v7265
        %v7426 = vpack.c.b16 %v7268, %v7267
        %v7427 = vpack.c.b16 %v7270, %v7269
        %v7428 = vpack.c.b16 %v7272, %v7271
        %v7429 = vpack.c.b16 %v7274, %v7273
        %v7430 = vpack.c.b16 %v7276, %v7275
        %v7431 = vpack.c.b16 %v7278, %v7277
        %v7432 = vpack.c.b16 %v7280, %v7279
        %v7433 = vpack.c.b16 %v7282, %v7281
        %v7434 = vpack.c.b16 %v7284, %v7283
        %v7435 = vpack.c.b16 %v7286, %v7285
        %v7436 = vpack.c.b16 %v7288, %v7287
        %v7437 = vpack.c.b16 %v7290, %v7289
        %v7438 = vpack.c.b16 %v7292, %v7291
        %v7439 = vpack.c.b16 %v7294, %v7293
        %v7440 = vpack.c.b16 %v7296, %v7295
        %v7441 = vpack.c.b16 %v7298, %v7297
        %v7442 = vpack.c.b16 %v7300, %v7299
        %v7443 = vpack.c.b16 %v7302, %v7301
        %v7444 = vpack.c.b16 %v7304, %v7303
        %v7445 = vpack.c.b16 %v7306, %v7305
        %v7446 = vpack.c.b16 %v7308, %v7307
        %v7447 = vpack.c.b16 %v7310, %v7309
        %v7448 = vpack.c.b16 %v7312, %v7311
        %v7449 = vpack.c.b16 %v7314, %v7313
        %v7450 = vpack.c.b16 %v7316, %v7315
        %v7451 = vpack.c.b16 %v7318, %v7317
        %v7452 = vpack.c.b16 %v7320, %v7319
        %v7453 = vpack.c.b16 %v7322, %v7321
        %v7454 = vpack.c.b16 %v7324, %v7323
        %v7455 = vpack.c.b16 %v7326, %v7325
        %v7456 = vpack.c.b16 %v7328, %v7327
        %v7457 = vpack.c.b16 %v7330, %v7329
        %v7458 = vpack.c.b16 %v7332, %v7331
        %v7459 = vpack.c.b16 %v7334, %v7333
        %v7460 = vpack.c.b16 %v7336, %v7335
        %v7461 = vpack.c.b16 %v7338, %v7337
        %v7462 = vpack.c.b16 %v7340, %v7339
        %v7463 = vpack.c.b16 %v7342, %v7341
        %v7464 = vpack.c.b16 %v7344, %v7343
        %v7465 = vpack.c.b16 %v7346, %v7345
        %v7466 = vpack.c.b16 %v7348, %v7347
        %v7467 = vpack.c.b16 %v7350, %v7349
        %v7468 = vpack.c.b16 %v7352, %v7351
        %v7469 = vpack.c.b16 %v7354, %v7353
        %v7470 = vpack.c.b16 %v7356, %v7355
        %v7471 = vpack.c.b16 %v7358, %v7357
        %v7472 = vpack.c.b16 %v7360, %v7359
        %v7473 = vpack.c.b16 %v7362, %v7361
        %v7474 = vpack.c.b16 %v7364, %v7363
        %v7475 = vpack.c.b16 %v7366, %v7365
        %v7476 = vpack.c.b16 %v7368, %v7367
        %v7477 = vpack.c.b16 %v7370, %v7369
        %v7478 = vpack.c.b16 %v7372, %v7371
        %v7479 = vpack.c.b16 %v7374, %v7373
        %v7480 = vpack.c.b16 %v7376, %v7375
        %v7481 = vpack.c.b16 %v7378, %v7377
        %v7482 = vpack.c.b16 %v7380, %v7379
        %v7483 = vpack.c.b16 %v7382, %v7381
        %v7484 = vpack.c.b16 %v7384, %v7383
        %v7586 = vsel %vm6040, %v6738, 0
        %v7589 = vsel %vm6040, %v6751, 0
        %v7592 = vsel %vm6040, %v6764, 0
        %v7595 = vsel %vm6040, %v6777, 0
        %7597 = vmatprep.subr.bf16.mxu0 0
        %7598 = vmatpush1.bf16.msra.mxu0 %v7385
        %7599 = vmatprep.subr.bf16.mxu0 0
        %7600 = vmatpush1.bf16.msra.mxu0 %v7386
        %7601 = vmatprep.subr.bf16.mxu0 0
        %7602 = vmatpush1.bf16.msra.mxu0 %v7387
        %7603 = vmatprep.subr.bf16.mxu0 0
        %7604 = vmatpush1.bf16.msra.mxu0 %v7388
        %7605 = vmatprep.subr.bf16.mxu0 0
        %7606 = vmatpush1.bf16.msra.mxu0 %v7389
        %7607 = vmatprep.subr.bf16.mxu0 0
        %7608 = vmatpush1.bf16.msra.mxu0 %v7390
        %7609 = vmatprep.subr.bf16.mxu0 0
        %7610 = vmatpush1.bf16.msra.mxu0 %v7391
        %7611 = vmatprep.subr.bf16.mxu0 0
        %7612 = vmatpush1.bf16.msra.mxu0 %v7392
        %7613 = vmatprep.subr.bf16.mxu0 0
        %7614 = vmatpush1.bf16.msra.mxu0 %v7393
        %7615 = vmatprep.subr.bf16.mxu0 0
        %7616 = vmatpush1.bf16.msra.mxu0 %v7394
        %7617 = vmatprep.subr.bf16.mxu0 0
        %7618 = vmatpush1.bf16.msra.mxu0 %v7395
        %7619 = vmatprep.subr.bf16.mxu0 0
        %7620 = vmatpush1.bf16.msra.mxu0 %v7396
        %7621 = vmatprep.subr.bf16.mxu0 0
        %7622 = vmatpush1.bf16.msra.mxu0 %v7397
        %7623 = vmatprep.subr.bf16.mxu0 0
        %7624 = vmatpush1.bf16.msra.mxu0 %v7398
        %7625 = vmatprep.subr.bf16.mxu0 0
        %7626 = vmatpush1.bf16.msra.mxu0 %v7399
        %7627 = vmatprep.subr.bf16.mxu0 0
        %7628 = vmatpush1.bf16.msra.mxu0 %v7400
        %7629 = vmatprep.mubr.bf16.mxu0 %v6727
        %7630 = vmatmul.mubr.bf16.gmra.mrb[0].mxu0 %v6726
        %v7631 = vpop.f32.mrb[0].mxu0
        %v7632 = vadd.f32 %v6983, %v7631
        %v7633 = vpop.f32.mrb[0].mxu0
        %v7634 = vpop.f32.mrb[0].mxu0
        %v7635 = vadd.f32 %v6983, %v7634
        %v7636 = vpop.f32.mrb[0].mxu0
        %7637 = vmatprep.mubr.bf16.mxu0 %v6740
        %7638 = vmatmul.mubr.bf16.gmra.mrb[0].mxu0 %v6739
        %v7639 = vpop.f32.mrb[0].mxu0
        %v7640 = vadd.f32 %v6983, %v7639
        %v7641 = vpop.f32.mrb[0].mxu0
        %v7642 = vpop.f32.mrb[0].mxu0
        %v7643 = vadd.f32 %v6983, %v7642
        %v7644 = vpop.f32.mrb[0].mxu0
        %7645 = vmatprep.mubr.bf16.mxu0 %v6753
        %7646 = vmatmul.mubr.bf16.gmra.mrb[0].mxu0 %v6752
        %v7647 = vpop.f32.mrb[0].mxu0
        %v7648 = vadd.f32 %v6983, %v7647
        %v7649 = vpop.f32.mrb[0].mxu0
        %v7650 = vpop.f32.mrb[0].mxu0
        %v7651 = vadd.f32 %v6983, %v7650
        %v7652 = vpop.f32.mrb[0].mxu0
        %7653 = vmatprep.mubr.bf16.mxu0 %v6766
        %7654 = vmatmul.mubr.bf16.gmra.mrb[0].mxu0 %v6765
        %v7655 = vpop.f32.mrb[0].mxu0
        %v7656 = vadd.f32 %v6983, %v7655
        %v7657 = vpop.f32.mrb[0].mxu0
        %v7658 = vpop.f32.mrb[0].mxu0
        %v7659 = vadd.f32 %v6983, %v7658
        %v7660 = vpop.f32.mrb[0].mxu0
        %7661 = vdwg.mxu0
        %7662 = vmatprep.subr.bf16.mxu0 0
        %7663 = vmatpush1.bf16.msra.mxu0 %v7401
        %7664 = vmatprep.subr.bf16.mxu0 0
        %7665 = vmatpush1.bf16.msra.mxu0 %v7402
        %7666 = vmatprep.subr.bf16.mxu0 0
        %7667 = vmatpush1.bf16.msra.mxu0 %v7403
        %7668 = vmatprep.subr.bf16.mxu0 0
        %7669 = vmatpush1.bf16.msra.mxu0 %v7404
        %7670 = vmatprep.subr.bf16.mxu0 0
        %7671 = vmatpush1.bf16.msra.mxu0 %v7405
        %7672 = vmatprep.subr.bf16.mxu0 0
        %7673 = vmatpush1.bf16.msra.mxu0 %v7406
        %7674 = vmatprep.subr.bf16.mxu0 0
        %7675 = vmatpush1.bf16.msra.mxu0 %v7407
        %7676 = vmatprep.subr.bf16.mxu0 0
        %7677 = vmatpush1.bf16.msra.mxu0 %v7408
        %7678 = vmatprep.subr.bf16.mxu0 0
        %7679 = vmatpush1.bf16.msra.mxu0 %v7409
        %7680 = vmatprep.subr.bf16.mxu0 0
        %7681 = vmatpush1.bf16.msra.mxu0 %v7410
        %7682 = vmatprep.subr.bf16.mxu0 0
        %7683 = vmatpush1.bf16.msra.mxu0 %v7411
        %7684 = vmatprep.subr.bf16.mxu0 0
        %7685 = vmatpush1.bf16.msra.mxu0 %v7412
        %7686 = vmatprep.subr.bf16.mxu0 0
        %7687 = vmatpush1.bf16.msra.mxu0 %v7413
        %7688 = vmatprep.subr.bf16.mxu0 0
        %7689 = vmatpush1.bf16.msra.mxu0 %v7414
        %7690 = vmatprep.subr.bf16.mxu0 0
        %7691 = vmatpush1.bf16.msra.mxu0 %v7415
        %7692 = vmatprep.subr.bf16.mxu0 0
        %7693 = vmatpush1.bf16.msra.mxu0 %v7416
        %7694 = vmatprep.mubr.bf16.mxu0 %v6729
        %7695 = vmatmul.mubr.bf16.gmra.mrb[0].mxu0 %v6728
        %v7696 = vpop.f32.mrb[0].mxu0
        %v7697 = vadd.f32 %v7632, %v7696
        %v7698 = vpop.f32.mrb[0].mxu0
        %v7699 = vpop.f32.mrb[0].mxu0
        %v7700 = vadd.f32 %v7635, %v7699
        %v7701 = vpop.f32.mrb[0].mxu0
        %7702 = vmatprep.mubr.bf16.mxu0 %v6742
        %7703 = vmatmul.mubr.bf16.gmra.mrb[0].mxu0 %v6741
        %v7704 = vpop.f32.mrb[0].mxu0
        %v7705 = vadd.f32 %v7640, %v7704
        %v7706 = vpop.f32.mrb[0].mxu0
        %v7707 = vpop.f32.mrb[0].mxu0
        %v7708 = vadd.f32 %v7643, %v7707
        %v7709 = vpop.f32.mrb[0].mxu0
        %7710 = vmatprep.mubr.bf16.mxu0 %v6755
        %7711 = vmatmul.mubr.bf16.gmra.mrb[0].mxu0 %v6754
        %v7712 = vpop.f32.mrb[0].mxu0
        %v7713 = vadd.f32 %v7648, %v7712
        %v7714 = vpop.f32.mrb[0].mxu0
        %v7715 = vpop.f32.mrb[0].mxu0
        %v7716 = vadd.f32 %v7651, %v7715
        %v7717 = vpop.f32.mrb[0].mxu0
        %7718 = vmatprep.mubr.bf16.mxu0 %v6768
        %7719 = vmatmul.mubr.bf16.gmra.mrb[0].mxu0 %v6767
        %v7720 = vpop.f32.mrb[0].mxu0
        %v7721 = vadd.f32 %v7656, %v7720
        %v7722 = vpop.f32.mrb[0].mxu0
        %v7723 = vpop.f32.mrb[0].mxu0
        %v7724 = vadd.f32 %v7659, %v7723
        %v7725 = vpop.f32.mrb[0].mxu0
        %7726 = vdwg.mxu0
        %7727 = vmatprep.subr.bf16.mxu0 0
        %7728 = vmatpush1.bf16.msra.mxu0 %v7417
        %7729 = vmatprep.subr.bf16.mxu0 0
        %7730 = vmatpush1.bf16.msra.mxu0 %v7418
        %7731 = vmatprep.subr.bf16.mxu0 0
        %7732 = vmatpush1.bf16.msra.mxu0 %v7419
        %7733 = vmatprep.subr.bf16.mxu0 0
        %7734 = vmatpush1.bf16.msra.mxu0 %v7420
        %7735 = vmatprep.subr.bf16.mxu0 0
        %7736 = vmatpush1.bf16.msra.mxu0 %v7421
        %7737 = vmatprep.subr.bf16.mxu0 0
        %7738 = vmatpush1.bf16.msra.mxu0 %v7422
        %7739 = vmatprep.subr.bf16.mxu0 0
        %7740 = vmatpush1.bf16.msra.mxu0 %v7423
        %7741 = vmatprep.subr.bf16.mxu0 0
        %7742 = vmatpush1.bf16.msra.mxu0 %v7424
        %7743 = vmatprep.subr.bf16.mxu0 0
        %7744 = vmatpush1.bf16.msra.mxu0 %v7425
        %7745 = vmatprep.subr.bf16.mxu0 0
        %7746 = vmatpush1.bf16.msra.mxu0 %v7426
        %7747 = vmatprep.subr.bf16.mxu0 0
        %7748 = vmatpush1.bf16.msra.mxu0 %v7427
        %7749 = vmatprep.subr.bf16.mxu0 0
        %7750 = vmatpush1.bf16.msra.mxu0 %v7428
        %7751 = vmatprep.subr.bf16.mxu0 0
        %7752 = vmatpush1.bf16.msra.mxu0 %v7429
        %7753 = vmatprep.subr.bf16.mxu0 0
        %7754 = vmatpush1.bf16.msra.mxu0 %v7430
        %7755 = vmatprep.subr.bf16.mxu0 0
        %7756 = vmatpush1.bf16.msra.mxu0 %v7431
        %7757 = vmatprep.subr.bf16.mxu0 0
        %7758 = vmatpush1.bf16.msra.mxu0 %v7432
        %7759 = vmatprep.mubr.bf16.mxu0 %v6731
        %7760 = vmatmul.mubr.bf16.gmra.mrb[0].mxu0 %v6730
        %v7761 = vpop.f32.mrb[0].mxu0
        %v7762 = vadd.f32 %v7697, %v7761
        %v7763 = vpop.f32.mrb[0].mxu0
        %v7764 = vpop.f32.mrb[0].mxu0
        %v7765 = vadd.f32 %v7700, %v7764
        %v7766 = vpop.f32.mrb[0].mxu0
        %7767 = vmatprep.mubr.bf16.mxu0 %v6744
        %7768 = vmatmul.mubr.bf16.gmra.mrb[0].mxu0 %v6743
        %v7769 = vpop.f32.mrb[0].mxu0
        %v7770 = vadd.f32 %v7705, %v7769
        %v7771 = vpop.f32.mrb[0].mxu0
        %v7772 = vpop.f32.mrb[0].mxu0
        %v7773 = vadd.f32 %v7708, %v7772
        %v7774 = vpop.f32.mrb[0].mxu0
        %7775 = vmatprep.mubr.bf16.mxu0 %v6757
        %7776 = vmatmul.mubr.bf16.gmra.mrb[0].mxu0 %v6756
        %v7777 = vpop.f32.mrb[0].mxu0
        %v7778 = vadd.f32 %v7713, %v7777
        %v7779 = vpop.f32.mrb[0].mxu0
        %v7780 = vpop.f32.mrb[0].mxu0
        %v7781 = vadd.f32 %v7716, %v7780
        %v7782 = vpop.f32.mrb[0].mxu0
        %7783 = vmatprep.mubr.bf16.mxu0 %v6770
        %7784 = vmatmul.mubr.bf16.gmra.mrb[0].mxu0 %v6769
        %v7785 = vpop.f32.mrb[0].mxu0
        %v7786 = vadd.f32 %v7721, %v7785
        %v7787 = vpop.f32.mrb[0].mxu0
        %v7788 = vpop.f32.mrb[0].mxu0
        %v7789 = vadd.f32 %v7724, %v7788
        %v7790 = vpop.f32.mrb[0].mxu0
        %7791 = vdwg.mxu0
        %7792 = vmatprep.subr.bf16.mxu0 0
        %7793 = vmatpush1.bf16.msra.mxu0 %v7433
        %7794 = vmatprep.subr.bf16.mxu0 0
        %7795 = vmatpush1.bf16.msra.mxu0 %v7434
        %7796 = vmatprep.subr.bf16.mxu0 0
        %7797 = vmatpush1.bf16.msra.mxu0 %v7435
        %7798 = vmatprep.subr.bf16.mxu0 0
        %7799 = vmatpush1.bf16.msra.mxu0 %v7436
        %7800 = vmatprep.subr.bf16.mxu0 0
        %7801 = vmatpush1.bf16.msra.mxu0 %v7437
        %7802 = vmatprep.subr.bf16.mxu0 0
        %7803 = vmatpush1.bf16.msra.mxu0 %v7438
        %7804 = vmatprep.subr.bf16.mxu0 0
        %7805 = vmatpush1.bf16.msra.mxu0 %v7439
        %7806 = vmatprep.subr.bf16.mxu0 0
        %7807 = vmatpush1.bf16.msra.mxu0 %v7440
        %7808 = vmatprep.subr.bf16.mxu0 0
        %7809 = vmatpush1.bf16.msra.mxu0 %v7441
        %7810 = vmatprep.subr.bf16.mxu0 0
        %7811 = vmatpush1.bf16.msra.mxu0 %v7442
        %7812 = vmatprep.subr.bf16.mxu0 0
        %7813 = vmatpush1.bf16.msra.mxu0 %v7443
        %7814 = vmatprep.subr.bf16.mxu0 0
        %7815 = vmatpush1.bf16.msra.mxu0 %v7444
        %7816 = vmatprep.subr.bf16.mxu0 0
        %7817 = vmatpush1.bf16.msra.mxu0 %v7445
        %7818 = vmatprep.subr.bf16.mxu0 0
        %7819 = vmatpush1.bf16.msra.mxu0 %v7446
        %7820 = vmatprep.subr.bf16.mxu0 0
        %7821 = vmatpush1.bf16.msra.mxu0 %v7447
        %7822 = vmatprep.subr.bf16.mxu0 0
        %7823 = vmatpush1.bf16.msra.mxu0 %v7448
        %7824 = vmatprep.mubr.bf16.mxu0 %v6733
        %7825 = vmatmul.mubr.bf16.gmra.mrb[0].mxu0 %v6732
        %v7826 = vpop.f32.mrb[0].mxu0
        %v7827 = vadd.f32 %v7762, %v7826
        %v7828 = vpop.f32.mrb[0].mxu0
        %v7829 = vpop.f32.mrb[0].mxu0
        %v7830 = vadd.f32 %v7765, %v7829
        %v7831 = vpop.f32.mrb[0].mxu0
        %7832 = vmatprep.mubr.bf16.mxu0 %v6746
        %7833 = vmatmul.mubr.bf16.gmra.mrb[0].mxu0 %v6745
        %v7834 = vpop.f32.mrb[0].mxu0
        %v7835 = vadd.f32 %v7770, %v7834
        %v7836 = vpop.f32.mrb[0].mxu0
        %v7837 = vpop.f32.mrb[0].mxu0
        %v7838 = vadd.f32 %v7773, %v7837
        %v7839 = vpop.f32.mrb[0].mxu0
        %7840 = vmatprep.mubr.bf16.mxu0 %v6759
        %7841 = vmatmul.mubr.bf16.gmra.mrb[0].mxu0 %v6758
        %v7842 = vpop.f32.mrb[0].mxu0
        %v7843 = vadd.f32 %v7778, %v7842
        %v7844 = vpop.f32.mrb[0].mxu0
        %v7845 = vpop.f32.mrb[0].mxu0
        %v7846 = vadd.f32 %v7781, %v7845
        %v7847 = vpop.f32.mrb[0].mxu0
        %7848 = vmatprep.mubr.bf16.mxu0 %v6772
        %7849 = vmatmul.mubr.bf16.gmra.mrb[0].mxu0 %v6771
        %v7850 = vpop.f32.mrb[0].mxu0
        %v7851 = vadd.f32 %v7786, %v7850
        %v7852 = vpop.f32.mrb[0].mxu0
        %v7853 = vpop.f32.mrb[0].mxu0
        %v7854 = vadd.f32 %v7789, %v7853
        %v7855 = vpop.f32.mrb[0].mxu0
        %7856 = vdwg.mxu0
        %7857 = vmatprep.subr.bf16.mxu0 0
        %7858 = vmatpush1.bf16.msra.mxu0 %v7449
        %7859 = vmatprep.subr.bf16.mxu0 0
        %7860 = vmatpush1.bf16.msra.mxu0 %v7450
        %7861 = vmatprep.subr.bf16.mxu0 0
        %7862 = vmatpush1.bf16.msra.mxu0 %v7451
        %7863 = vmatprep.subr.bf16.mxu0 0
        %7864 = vmatpush1.bf16.msra.mxu0 %v7452
        %7865 = vmatprep.subr.bf16.mxu0 0
        %7866 = vmatpush1.bf16.msra.mxu0 %v7453
        %7867 = vmatprep.subr.bf16.mxu0 0
        %7868 = vmatpush1.bf16.msra.mxu0 %v7454
        %7869 = vmatprep.subr.bf16.mxu0 0
        %7870 = vmatpush1.bf16.msra.mxu0 %v7455
        %7871 = vmatprep.subr.bf16.mxu0 0
        %7872 = vmatpush1.bf16.msra.mxu0 %v7456
        %7873 = vmatprep.subr.bf16.mxu0 0
        %7874 = vmatpush1.bf16.msra.mxu0 %v7457
        %7875 = vmatprep.subr.bf16.mxu0 0
        %7876 = vmatpush1.bf16.msra.mxu0 %v7458
        %7877 = vmatprep.subr.bf16.mxu0 0
        %7878 = vmatpush1.bf16.msra.mxu0 %v7459
        %7879 = vmatprep.subr.bf16.mxu0 0
        %7880 = vmatpush1.bf16.msra.mxu0 %v7460
        %7881 = vmatprep.subr.bf16.mxu0 0
        %7882 = vmatpush1.bf16.msra.mxu0 %v7461
        %7883 = vmatprep.subr.bf16.mxu0 0
        %7884 = vmatpush1.bf16.msra.mxu0 %v7462
        %7885 = vmatprep.subr.bf16.mxu0 0
        %7886 = vmatpush1.bf16.msra.mxu0 %v7463
        %7887 = vmatprep.subr.bf16.mxu0 0
        %7888 = vmatpush1.bf16.msra.mxu0 %v7464
        %7889 = vmatprep.mubr.bf16.mxu0 %v6735
        %7890 = vmatmul.mubr.bf16.gmra.mrb[0].mxu0 %v6734
        %v7891 = vpop.f32.mrb[0].mxu0
        %v7892 = vadd.f32 %v7827, %v7891
        %v7893 = vpop.f32.mrb[0].mxu0
        %v7894 = vpop.f32.mrb[0].mxu0
        %v7895 = vadd.f32 %v7830, %v7894
        %v7896 = vpop.f32.mrb[0].mxu0
        %7897 = vmatprep.mubr.bf16.mxu0 %v6748
        %7898 = vmatmul.mubr.bf16.gmra.mrb[0].mxu0 %v6747
        %v7899 = vpop.f32.mrb[0].mxu0
        %v7900 = vadd.f32 %v7835, %v7899
        %v7901 = vpop.f32.mrb[0].mxu0
        %v7902 = vpop.f32.mrb[0].mxu0
        %v7903 = vadd.f32 %v7838, %v7902
        %v7904 = vpop.f32.mrb[0].mxu0
        %7905 = vmatprep.mubr.bf16.mxu0 %v6761
        %7906 = vmatmul.mubr.bf16.gmra.mrb[0].mxu0 %v6760
        %v7907 = vpop.f32.mrb[0].mxu0
        %v7908 = vadd.f32 %v7843, %v7907
        %v7909 = vpop.f32.mrb[0].mxu0
        %v7910 = vpop.f32.mrb[0].mxu0
        %v7911 = vadd.f32 %v7846, %v7910
        %v7912 = vpop.f32.mrb[0].mxu0
        %7913 = vmatprep.mubr.bf16.mxu0 %v6774
        %7914 = vmatmul.mubr.bf16.gmra.mrb[0].mxu0 %v6773
        %v7915 = vpop.f32.mrb[0].mxu0
        %v7916 = vadd.f32 %v7851, %v7915
        %v7917 = vpop.f32.mrb[0].mxu0
        %v7918 = vpop.f32.mrb[0].mxu0
        %v7919 = vadd.f32 %v7854, %v7918
        %v7920 = vpop.f32.mrb[0].mxu0
        %7921 = vdwg.mxu0
        %7922 = vmatprep.subr.bf16.mxu0 0
        %7923 = vmatpush1.bf16.msra.mxu0 %v7465
        %7924 = vmatprep.subr.bf16.mxu0 0
        %7925 = vmatpush1.bf16.msra.mxu0 %v7466
        %7926 = vmatprep.subr.bf16.mxu0 0
        %7927 = vmatpush1.bf16.msra.mxu0 %v7467
        %7928 = vmatprep.subr.bf16.mxu0 0
        %7929 = vmatpush1.bf16.msra.mxu0 %v7468
        %7930 = vmatprep.subr.bf16.mxu0 0
        %7931 = vmatpush1.bf16.msra.mxu0 %v7469
        %7932 = vmatprep.subr.bf16.mxu0 0
        %7933 = vmatpush1.bf16.msra.mxu0 %v7470
        %7934 = vmatprep.subr.bf16.mxu0 0
        %7935 = vmatpush1.bf16.msra.mxu0 %v7471
        %7936 = vmatprep.subr.bf16.mxu0 0
        %7937 = vmatpush1.bf16.msra.mxu0 %v7472
        %7938 = vmatprep.subr.bf16.mxu0 0
        %7939 = vmatpush1.bf16.msra.mxu0 %v7473
        %7940 = vmatprep.subr.bf16.mxu0 0
        %7941 = vmatpush1.bf16.msra.mxu0 %v7474
        %7942 = vmatprep.subr.bf16.mxu0 0
        %7943 = vmatpush1.bf16.msra.mxu0 %v7475
        %7944 = vmatprep.subr.bf16.mxu0 0
        %7945 = vmatpush1.bf16.msra.mxu0 %v7476
        %7946 = vmatprep.subr.bf16.mxu0 0
        %7947 = vmatpush1.bf16.msra.mxu0 %v7477
        %7948 = vmatprep.subr.bf16.mxu0 0
        %7949 = vmatpush1.bf16.msra.mxu0 %v7478
        %7950 = vmatprep.subr.bf16.mxu0 0
        %7951 = vmatpush1.bf16.msra.mxu0 %v7479
        %7952 = vmatprep.subr.bf16.mxu0 0
        %7953 = vmatpush1.bf16.msra.mxu0 %v7480
        %7954 = vmatprep.mubr.bf16.mxu0 %v6737
        %7955 = vmatmul.mubr.bf16.gmra.mrb[0].mxu0 %v6736
        %v7956 = vpop.f32.mrb[0].mxu0
        %v7957 = vadd.f32 %v7892, %v7956
        %v7958 = vpop.f32.mrb[0].mxu0
        %v7959 = vpop.f32.mrb[0].mxu0
        %v7960 = vadd.f32 %v7895, %v7959
        %v7961 = vpop.f32.mrb[0].mxu0
        %7962 = vmatprep.mubr.bf16.mxu0 %v6750
        %7963 = vmatmul.mubr.bf16.gmra.mrb[0].mxu0 %v6749
        %v7964 = vpop.f32.mrb[0].mxu0
        %v7965 = vadd.f32 %v7900, %v7964
        %v7966 = vpop.f32.mrb[0].mxu0
        %v7967 = vpop.f32.mrb[0].mxu0
        %v7968 = vadd.f32 %v7903, %v7967
        %v7969 = vpop.f32.mrb[0].mxu0
        %7970 = vmatprep.mubr.bf16.mxu0 %v6763
        %7971 = vmatmul.mubr.bf16.gmra.mrb[0].mxu0 %v6762
        %v7972 = vpop.f32.mrb[0].mxu0
        %v7973 = vadd.f32 %v7908, %v7972
        %v7974 = vpop.f32.mrb[0].mxu0
        %v7975 = vpop.f32.mrb[0].mxu0
        %v7976 = vadd.f32 %v7911, %v7975
        %v7977 = vpop.f32.mrb[0].mxu0
        %7978 = vmatprep.mubr.bf16.mxu0 %v6776
        %7979 = vmatmul.mubr.bf16.gmra.mrb[0].mxu0 %v6775
        %v7980 = vpop.f32.mrb[0].mxu0
        %v7981 = vadd.f32 %v7916, %v7980
        %v7982 = vpop.f32.mrb[0].mxu0
        %v7983 = vpop.f32.mrb[0].mxu0
        %v7984 = vadd.f32 %v7919, %v7983
        %v7985 = vpop.f32.mrb[0].mxu0
        %7986 = vdwg.mxu0
        %7987 = vmatprep.subr.bf16.mxu0 0
        %7988 = vmatpush1.bf16.msra.mxu0 %v7481
        %7989 = vmatprep.subr.bf16.mxu0 0
        %7990 = vmatpush1.bf16.msra.mxu0 %v7482
        %7991 = vmatprep.subr.bf16.mxu0 0
        %7992 = vmatpush1.bf16.msra.mxu0 %v7483
        %7993 = vmatprep.subr.bf16.mxu0 0
        %7994 = vmatpush1.bf16.msra.mxu0 %v7484
        %7995 = vmatprep.subr.bf16.mxu0 0
        %7996 = vmatpush1.bf16.msra.mxu0 0
        %7997 = vmatprep.subr.bf16.mxu0 0
        %7998 = vmatpush1.bf16.msra.mxu0 0
        %7999 = vmatprep.subr.bf16.mxu0 0
        %8000 = vmatpush1.bf16.msra.mxu0 0
        %8001 = vmatprep.subr.bf16.mxu0 0
        %8002 = vmatpush1.bf16.msra.mxu0 0
        %8003 = vmatprep.subr.bf16.mxu0 0
        %8004 = vmatpush1.bf16.msra.mxu0 0
        %8005 = vmatprep.subr.bf16.mxu0 0
        %8006 = vmatpush1.bf16.msra.mxu0 0
        %8007 = vmatprep.subr.bf16.mxu0 0
        %8008 = vmatpush1.bf16.msra.mxu0 0
        %8009 = vmatprep.subr.bf16.mxu0 0
        %8010 = vmatpush1.bf16.msra.mxu0 0
        %8011 = vmatprep.subr.bf16.mxu0 0
        %8012 = vmatpush1.bf16.msra.mxu0 0
        %8013 = vmatprep.subr.bf16.mxu0 0
        %8014 = vmatpush1.bf16.msra.mxu0 0
        %8015 = vmatprep.subr.bf16.mxu0 0
        %8016 = vmatpush1.bf16.msra.mxu0 0
        %8017 = vmatprep.subr.bf16.mxu0 0
        %8018 = vmatpush1.bf16.msra.mxu0 0
        %8019 = vmatprep.mubr.bf16.mxu0 0
        %8020 = vmatmul.mubr.bf16.gmra.mrb[0].mxu0 %v7586
        %v8021 = vpop.f32.mrb[0].mxu0
        %v8022 = vadd.f32 %v7957, %v8021
        %v8023 = vpop.f32.mrb[0].mxu0
        %v8024 = vpop.f32.mrb[0].mxu0
        %v8025 = vadd.f32 %v7960, %v8024
        %v8026 = vpop.f32.mrb[0].mxu0
        %8027 = vmatprep.mubr.bf16.mxu0 0
        %8028 = vmatmul.mubr.bf16.gmra.mrb[0].mxu0 %v7589
        %v8029 = vpop.f32.mrb[0].mxu0
        %v8030 = vadd.f32 %v7965, %v8029
        %v8031 = vpop.f32.mrb[0].mxu0
        %v8032 = vpop.f32.mrb[0].mxu0
        %v8033 = vadd.f32 %v7968, %v8032
        %v8034 = vpop.f32.mrb[0].mxu0
        %8035 = vmatprep.mubr.bf16.mxu0 0
        %8036 = vmatmul.mubr.bf16.gmra.mrb[0].mxu0 %v7592
        %v8037 = vpop.f32.mrb[0].mxu0
        %v8038 = vadd.f32 %v7973, %v8037
        %v8039 = vpop.f32.mrb[0].mxu0
        %v8040 = vpop.f32.mrb[0].mxu0
        %v8041 = vadd.f32 %v7976, %v8040
        %v8042 = vpop.f32.mrb[0].mxu0
        %8043 = vmatprep.mubr.bf16.mxu0 0
        %8044 = vmatmul.mubr.bf16.gmra.mrb[0].mxu0 %v7595
        %v8045 = vpop.f32.mrb[0].mxu0
        %v8046 = vadd.f32 %v7981, %v8045
        %v8047 = vpop.f32.mrb[0].mxu0
        %v8048 = vpop.f32.mrb[0].mxu0
        %v8049 = vadd.f32 %v7984, %v8048
        %v8050 = vpop.f32.mrb[0].mxu0
        %8051 = vdwg.mxu0
        %v8052 = vmax.f32 %v8022, 0.0
        %v8053 = vmax.f32 %v8025, 0.0
        %v8054 = vmax.f32 %v8030, 0.0
        %v8055 = vmax.f32 %v8033, 0.0
        %v8056 = vmax.f32 %v8038, 0.0
        %v8057 = vmax.f32 %v8041, 0.0
        %v8058 = vmax.f32 %v8046, 0.0
        %v8059 = vmax.f32 %v8049, 0.0
        %v8060 = vmax.f32 %v8052, %v8053
        %v8061 = vmax.f32 %v8054, %v8055
        %v8062 = vmax.f32 %v8056, %v8057
        %v8063 = vmax.f32 %v8058, %v8059
        %8064 = vst [vmem:[#allocation8] sm:$0xff] %v8060
        %8065 = vst [vmem:[#allocation8 + $0x8] sm:$0xff] %v8061
        %8066 = vst [vmem:[#allocation8 + $0x10] sm:$0xff] %v8062
        %8067 = vst [vmem:[#allocation8 + $0x18] sm:$0xff] %v8063
        %v8068 = vld [vmem:[#allocation8] sm:$0x1]
        %v8069 = vld [vmem:[#allocation8 + $0x1] sm:$0x1]
        %v8070 = vmax.f32 %v8068, %v8069
        %v8071 = vpack.c.bf16 %v8070, %v8070
        %vm8072 = vcmask 1040384
        %vm8073 = vsmask.f32 256
        %vm8074 = vmand %vm8072, %vm8073
        %v8075 = vld [vmem:[#allocation9] sm:$0x1]
        %v8076 = vsel %vm8074, %v8071, %v8075
        %8077 = vst [vmem:[#allocation9] sm:$0x1] %v8076
        %v8078 = vld [vmem:[#allocation8 + $0x2] sm:$0x1]
        %v8079 = vld [vmem:[#allocation8 + $0x3] sm:$0x1]
        %v8080 = vmax.f32 %v8078, %v8079
        %v8081 = vpack.c.bf16 %v8080, %v8080
        %v8082 = vld [vmem:[#allocation9 + $0x1] sm:$0x1]
        %v8083 = vsel %vm8074, %v8081, %v8082
        %8084 = vst [vmem:[#allocation9 + $0x1] sm:$0x1] %v8083
        %v8085 = vld [vmem:[#allocation8 + $0x4] sm:$0x1]
        %v8086 = vld [vmem:[#allocation8 + $0x5] sm:$0x1]
        %v8087 = vmax.f32 %v8085, %v8086
        %v8088 = vpack.c.bf16 %v8087, %v8087
        %v8089 = vld [vmem:[#allocation9 + $0x2] sm:$0x1]
        %v8090 = vsel %vm8074, %v8088, %v8089
        %8091 = vst [vmem:[#allocation9 + $0x2] sm:$0x1] %v8090
        %v8092 = vld [vmem:[#allocation8 + $0x6] sm:$0x1]
        %v8093 = vld [vmem:[#allocation8 + $0x7] sm:$0x1]
        %v8094 = vmax.f32 %v8092, %v8093
        %v8095 = vpack.c.bf16 %v8094, %v8094
        %v8096 = vld [vmem:[#allocation9 + $0x3] sm:$0x1]
        %v8097 = vsel %vm8074, %v8095, %v8096
        %8098 = vst [vmem:[#allocation9 + $0x3] sm:$0x1] %v8097
        %s8099 = scalar_lea.vmem [#allocation8], 8
        %v8100 = vld [vmem:[%s8099] sm:$0x1]
        %v8101 = vld [vmem:[%s8099 + $0x1] sm:$0x1]
        %v8102 = vmax.f32 %v8100, %v8101
        %v8103 = vpack.c.bf16 %v8102, %v8102
        %v8104 = vld [vmem:[#allocation9 + $0x4] sm:$0x1]
        %v8105 = vsel %vm8074, %v8103, %v8104
        %8106 = vst [vmem:[#allocation9 + $0x4] sm:$0x1] %v8105
        %v8107 = vld [vmem:[%s8099 + $0x2] sm:$0x1]
        %v8108 = vld [vmem:[%s8099 + $0x3] sm:$0x1]
        %v8109 = vmax.f32 %v8107, %v8108
        %v8110 = vpack.c.bf16 %v8109, %v8109
        %v8111 = vld [vmem:[#allocation9 + $0x5] sm:$0x1]
        %v8112 = vsel %vm8074, %v8110, %v8111
        %8113 = vst [vmem:[#allocation9 + $0x5] sm:$0x1] %v8112
        %v8114 = vld [vmem:[%s8099 + $0x4] sm:$0x1]
        %v8115 = vld [vmem:[%s8099 + $0x5] sm:$0x1]
        %v8116 = vmax.f32 %v8114, %v8115
        %v8117 = vpack.c.bf16 %v8116, %v8116
        %v8118 = vld [vmem:[#allocation9 + $0x6] sm:$0x1]
        %v8119 = vsel %vm8074, %v8117, %v8118
        %8120 = vst [vmem:[#allocation9 + $0x6] sm:$0x1] %v8119
        %v8121 = vld [vmem:[%s8099 + $0x6] sm:$0x1]
        %v8122 = vld [vmem:[%s8099 + $0x7] sm:$0x1]
        %v8123 = vmax.f32 %v8121, %v8122
        %v8124 = vpack.c.bf16 %v8123, %v8123
        %v8125 = vld [vmem:[#allocation9 + $0x7] sm:$0x1]
        %v8126 = vsel %vm8074, %v8124, %v8125
        %8127 = vst [vmem:[#allocation9 + $0x7] sm:$0x1] %v8126
        %s8128 = scalar_lea.vmem [#allocation8], 16
        %v8129 = vld [vmem:[%s8128] sm:$0x1]
        %v8130 = vld [vmem:[%s8128 + $0x1] sm:$0x1]
        %v8131 = vmax.f32 %v8129, %v8130
        %v8132 = vpack.c.bf16 %v8131, %v8131
        %v8133 = vld [vmem:[#allocation9 + $0x8] sm:$0x1]
        %v8134 = vsel %vm8074, %v8132, %v8133
        %8135 = vst [vmem:[#allocation9 + $0x8] sm:$0x1] %v8134
        %v8136 = vld [vmem:[%s8128 + $0x2] sm:$0x1]
        %v8137 = vld [vmem:[%s8128 + $0x3] sm:$0x1]
        %v8138 = vmax.f32 %v8136, %v8137
        %v8139 = vpack.c.bf16 %v8138, %v8138
        %v8140 = vld [vmem:[#allocation9 + $0x9] sm:$0x1]
        %v8141 = vsel %vm8074, %v8139, %v8140
        %8142 = vst [vmem:[#allocation9 + $0x9] sm:$0x1] %v8141
        %v8143 = vld [vmem:[%s8128 + $0x4] sm:$0x1]
        %v8144 = vld [vmem:[%s8128 + $0x5] sm:$0x1]
        %v8145 = vmax.f32 %v8143, %v8144
        %v8146 = vpack.c.bf16 %v8145, %v8145
        %v8147 = vld [vmem:[#allocation9 + $0xa] sm:$0x1]
        %v8148 = vsel %vm8074, %v8146, %v8147
        %8149 = vst [vmem:[#allocation9 + $0xa] sm:$0x1] %v8148
        %v8150 = vld [vmem:[%s8128 + $0x6] sm:$0x1]
        %v8151 = vld [vmem:[%s8128 + $0x7] sm:$0x1]
        %v8152 = vmax.f32 %v8150, %v8151
        %v8153 = vpack.c.bf16 %v8152, %v8152
        %v8154 = vld [vmem:[#allocation9 + $0xb] sm:$0x1]
        %v8155 = vsel %vm8074, %v8153, %v8154
        %8156 = vst [vmem:[#allocation9 + $0xb] sm:$0x1] %v8155
        %s8157 = scalar_lea.vmem [#allocation8], 24
        %v8158 = vld [vmem:[%s8157] sm:$0x1]
        %v8159 = vld [vmem:[%s8157 + $0x1] sm:$0x1]
        %v8160 = vmax.f32 %v8158, %v8159
        %v8161 = vpack.c.bf16 %v8160, %v8160
        %v8162 = vld [vmem:[#allocation9 + $0xc] sm:$0x1]
        %v8163 = vsel %vm8074, %v8161, %v8162
        %8164 = vst [vmem:[#allocation9 + $0xc] sm:$0x1] %v8163
        %v8165 = vld [vmem:[%s8157 + $0x2] sm:$0x1]
        %v8166 = vld [vmem:[%s8157 + $0x3] sm:$0x1]
        %v8167 = vmax.f32 %v8165, %v8166
        %v8168 = vpack.c.bf16 %v8167, %v8167
        %v8169 = vld [vmem:[#allocation9 + $0xd] sm:$0x1]
        %v8170 = vsel %vm8074, %v8168, %v8169
        %8171 = vst [vmem:[#allocation9 + $0xd] sm:$0x1] %v8170
        %v8172 = vld [vmem:[%s8157 + $0x4] sm:$0x1]
        %v8173 = vld [vmem:[%s8157 + $0x5] sm:$0x1]
        %v8174 = vmax.f32 %v8172, %v8173
        %v8175 = vpack.c.bf16 %v8174, %v8174
        %v8176 = vld [vmem:[#allocation9 + $0xe] sm:$0x1]
        %v8177 = vsel %vm8074, %v8175, %v8176
        %8178 = vst [vmem:[#allocation9 + $0xe] sm:$0x1] %v8177
        %v8179 = vld [vmem:[%s8157 + $0x6] sm:$0x1]
        %v8180 = vld [vmem:[%s8157 + $0x7] sm:$0x1]
        %v8181 = vmax.f32 %v8179, %v8180
        %v8182 = vpack.c.bf16 %v8181, %v8181
        %v8183 = vld [vmem:[#allocation9 + $0xf] sm:$0x1]
        %v8184 = vsel %vm8074, %v8182, %v8183
        %8185 = vst [vmem:[#allocation9 + $0xf] sm:$0x1] %v8184
        %v8186 = vld [vmem:[#allocation9] sm:$0xff]
        %v8187 = vld [vmem:[#allocation9 + $0x8] sm:$0xff]
        %v8188 = vld [vmem:[%s7] sm:$0xf]
        %v8189 = vld [vmem:[%s7 + $0x4] sm:$0xf]
        %v8190 = vld [vmem:[%s7 + $0x8] sm:$0xf]
        %v8191 = vld [vmem:[%s7 + $0xc] sm:$0xf]
        %v8192 = vld [vmem:[%s7 + $0x10] sm:$0xf]
        %v8193 = vld [vmem:[%s7 + $0x14] sm:$0xf]
        %v8194 = vld [vmem:[%s7 + $0x18] sm:$0xf]
        %v8195 = vld [vmem:[%s7 + $0x1c] sm:$0xf]
        %v8196 = vld [vmem:[%s7 + $0x20] sm:$0xf]
        %v8197 = vld [vmem:[%s7 + $0x24] sm:$0xf]
        %v8198 = vld [vmem:[%s7 + $0x28] sm:$0xf]
        %v8199 = vld [vmem:[%s7 + $0x2c] sm:$0xf]
        %v8200 = vld [vmem:[%s7 + $0x30] sm:$0xf]
        %v8201 = vld [vmem:[%s7 + $0x34] sm:$0xf]
        %v8202 = vld [vmem:[%s7 + $0x38] sm:$0xf]
        %v8203 = vld [vmem:[%s7 + $0x3c] sm:$0xf]
        %v8204 = vld [vmem:[%s7 + $0x40] sm:$0xf]
        %v8205 = vld [vmem:[%s7 + $0x44] sm:$0xf]
        %v8206 = vld [vmem:[%s7 + $0x48] sm:$0xf]
        %v8207 = vld [vmem:[%s7 + $0x4c] sm:$0xf]
        %v8208 = vld [vmem:[%s7 + $0x50] sm:$0xf]
        %v8209 = vld [vmem:[%s7 + $0x54] sm:$0xf]
        %v8210 = vld [vmem:[%s7 + $0x58] sm:$0xf]
        %v8211 = vld [vmem:[%s7 + $0x5c] sm:$0xf]
        %v8212 = vld [vmem:[%s7 + $0x60] sm:$0xf]
        %v8213 = vld [vmem:[%s7 + $0x64] sm:$0xf]
        %v8214 = vld [vmem:[%s7 + $0x68] sm:$0xf]
        %v8215 = vld [vmem:[%s7 + $0x6c] sm:$0xf]
        %v8216 = vld [vmem:[%s7 + $0x70] sm:$0xf]
        %v8217 = vld [vmem:[%s7 + $0x74] sm:$0xf]
        %v8218 = vld [vmem:[%s7 + $0x78] sm:$0xf]
        %v8219 = vld [vmem:[%s7 + $0x7c] sm:$0xf]
        %v8220 = vld [vmem:[%s7 + $0x80] sm:$0xf]
        %v8221 = vld [vmem:[%s7 + $0x84] sm:$0xf]
        %v8222 = vld [vmem:[%s7 + $0x88] sm:$0xf]
        %v8223 = vld [vmem:[%s7 + $0x8c] sm:$0xf]
        %v8224 = vld [vmem:[%s7 + $0x90] sm:$0xf]
        %v8225 = vld [vmem:[%s7 + $0x94] sm:$0xf]
        %v8226 = vld [vmem:[%s7 + $0x98] sm:$0xf]
        %v8227 = vld [vmem:[%s7 + $0x9c] sm:$0xf]
        %v8228 = vld [vmem:[%s7 + $0xa0] sm:$0xf]
        %v8229 = vld [vmem:[%s7 + $0xa4] sm:$0xf]
        %v8230 = vld [vmem:[%s7 + $0xa8] sm:$0xf]
        %v8231 = vld [vmem:[%s7 + $0xac] sm:$0xf]
        %v8232 = vld [vmem:[%s7 + $0xb0] sm:$0xf]
        %v8233 = vld [vmem:[%s7 + $0xb4] sm:$0xf]
        %v8234 = vld [vmem:[%s7 + $0xb8] sm:$0xf]
        %v8235 = vld [vmem:[%s7 + $0xbc] sm:$0xf]
        %v8236 = vld [vmem:[%s7 + $0xc0] sm:$0xf]
        %v8237 = vld [vmem:[%s7 + $0xc4] sm:$0xf]
        %v8238 = vld [vmem:[%s7 + $0xc8] sm:$0xf]
        %v8239 = vld [vmem:[%s7 + $0xcc] sm:$0xf]
        %v8240 = vld [vmem:[%s7 + $0xd0] sm:$0xf]
        %v8241 = vld [vmem:[%s7 + $0xd4] sm:$0xf]
        %v8242 = vld [vmem:[%s7 + $0xd8] sm:$0xf]
        %v8243 = vld [vmem:[%s7 + $0xdc] sm:$0xf]
        %v8244 = vld [vmem:[%s7 + $0xe0] sm:$0xf]
        %v8245 = vld [vmem:[%s7 + $0xe4] sm:$0xf]
        %v8246 = vld [vmem:[%s7 + $0xe8] sm:$0xf]
        %v8247 = vld [vmem:[%s7 + $0xec] sm:$0xf]
        %v8248 = vld [vmem:[%s7 + $0xf0] sm:$0xf]
        %v8249 = vld [vmem:[%s7 + $0xf4] sm:$0xf]
        %v8250 = vld [vmem:[%s7 + $0xf8] sm:$0xf]
        %v8251 = vld [vmem:[%s7 + $0xfc] sm:$0xf]
        %v8252 = vld [vmem:[%s7 + $0x100] sm:$0xf]
        %v8253 = vld [vmem:[%s7 + $0x104] sm:$0xf]
        %v8254 = vld [vmem:[%s7 + $0x108] sm:$0xf]
        %v8255 = vld [vmem:[%s7 + $0x10c] sm:$0xf]
        %v8256 = vld [vmem:[%s7 + $0x110] sm:$0xf]
        %v8257 = vld [vmem:[%s7 + $0x114] sm:$0xf]
        %v8258 = vld [vmem:[%s7 + $0x118] sm:$0xf]
        %v8259 = vld [vmem:[%s7 + $0x11c] sm:$0xf]
        %v8260 = vld [vmem:[%s7 + $0x120] sm:$0xf]
        %v8261 = vld [vmem:[%s7 + $0x124] sm:$0xf]
        %v8262 = vld [vmem:[%s7 + $0x128] sm:$0xf]
        %v8263 = vld [vmem:[%s7 + $0x12c] sm:$0xf]
        %v8264 = vld [vmem:[%s7 + $0x130] sm:$0xf]
        %v8265 = vld [vmem:[%s7 + $0x134] sm:$0xf]
        %v8266 = vld [vmem:[%s7 + $0x138] sm:$0xf]
        %v8267 = vld [vmem:[%s7 + $0x13c] sm:$0xf]
        %v8268 = vld [vmem:[%s7 + $0x140] sm:$0xf]
        %v8269 = vld [vmem:[%s7 + $0x144] sm:$0xf]
        %v8270 = vld [vmem:[%s7 + $0x148] sm:$0xf]
        %v8271 = vld [vmem:[%s7 + $0x14c] sm:$0xf]
        %v8272 = vld [vmem:[%s7 + $0x150] sm:$0xf]
        %v8273 = vld [vmem:[%s7 + $0x154] sm:$0xf]
        %v8274 = vld [vmem:[%s7 + $0x158] sm:$0xf]
        %v8275 = vld [vmem:[%s7 + $0x15c] sm:$0xf]
        %v8276 = vld [vmem:[%s7 + $0x160] sm:$0xf]
        %v8277 = vld [vmem:[%s7 + $0x164] sm:$0xf]
        %v8278 = vld [vmem:[%s7 + $0x168] sm:$0xf]
        %v8279 = vld [vmem:[%s7 + $0x16c] sm:$0xf]
        %v8280 = vld [vmem:[%s7 + $0x170] sm:$0xf]
        %v8281 = vld [vmem:[%s7 + $0x174] sm:$0xf]
        %v8282 = vld [vmem:[%s7 + $0x178] sm:$0xf]
        %v8283 = vld [vmem:[%s7 + $0x17c] sm:$0xf]
        %v8284 = vld [vmem:[%s7 + $0x180] sm:$0xf]
        %v8285 = vld [vmem:[%s7 + $0x184] sm:$0xf]
        %v8286 = vld [vmem:[%s7 + $0x188] sm:$0xf]
        %v8287 = vld [vmem:[%s7 + $0x18c] sm:$0xf]
        %v8288 = vld [vmem:[%s7 + $0x190] sm:$0xf]
        %v8289 = vld [vmem:[%s7 + $0x194] sm:$0xf]
        %v8290 = vld [vmem:[%s7 + $0x198] sm:$0xf]
        %v8291 = vld [vmem:[%s7 + $0x19c] sm:$0xf]
        %v8292 = vld [vmem:[%s7 + $0x1a0] sm:$0xf]
        %v8293 = vld [vmem:[%s7 + $0x1a4] sm:$0xf]
        %v8294 = vld [vmem:[%s7 + $0x1a8] sm:$0xf]
        %v8295 = vld [vmem:[%s7 + $0x1ac] sm:$0xf]
        %v8296 = vld [vmem:[%s7 + $0x1b0] sm:$0xf]
        %v8297 = vld [vmem:[%s7 + $0x1b4] sm:$0xf]
        %v8298 = vld [vmem:[%s7 + $0x1b8] sm:$0xf]
        %v8299 = vld [vmem:[%s7 + $0x1bc] sm:$0xf]
        %v8300 = vld [vmem:[%s7 + $0x1c0] sm:$0xf]
        %v8301 = vld [vmem:[%s7 + $0x1c4] sm:$0xf]
        %v8302 = vld [vmem:[%s7 + $0x1c8] sm:$0xf]
        %v8303 = vld [vmem:[%s7 + $0x1cc] sm:$0xf]
        %v8304 = vld [vmem:[%s7 + $0x1d0] sm:$0xf]
        %v8305 = vld [vmem:[%s7 + $0x1d4] sm:$0xf]
        %v8306 = vld [vmem:[%s7 + $0x1d8] sm:$0xf]
        %v8307 = vld [vmem:[%s7 + $0x1dc] sm:$0xf]
        %v8308 = vld [vmem:[%s7 + $0x1e0] sm:$0xf]
        %v8309 = vld [vmem:[%s7 + $0x1e4] sm:$0xf]
        %v8310 = vld [vmem:[%s7 + $0x1e8] sm:$0xf]
        %v8311 = vld [vmem:[%s7 + $0x1ec] sm:$0xf]
        %v8312 = vld [vmem:[%s7 + $0x1f0] sm:$0xf]
        %v8313 = vld [vmem:[%s7 + $0x1f4] sm:$0xf]
        %v8314 = vld [vmem:[%s7 + $0x1f8] sm:$0xf]
        %v8315 = vld [vmem:[%s7 + $0x1fc] sm:$0xf]
        %v8316 = vld [vmem:[%s7 + $0x200] sm:$0xf]
        %v8317 = vld [vmem:[%s7 + $0x204] sm:$0xf]
        %v8318 = vld [vmem:[%s7 + $0x208] sm:$0xf]
        %v8319 = vld [vmem:[%s7 + $0x20c] sm:$0xf]
        %v8320 = vld [vmem:[%s7 + $0x210] sm:$0xf]
        %v8321 = vld [vmem:[%s7 + $0x214] sm:$0xf]
        %v8322 = vld [vmem:[%s7 + $0x218] sm:$0xf]
        %v8323 = vld [vmem:[%s7 + $0x21c] sm:$0xf]
        %v8324 = vld [vmem:[%s7 + $0x220] sm:$0xf]
        %v8325 = vld [vmem:[%s7 + $0x224] sm:$0xf]
        %v8326 = vld [vmem:[%s7 + $0x228] sm:$0xf]
        %v8327 = vld [vmem:[%s7 + $0x22c] sm:$0xf]
        %v8328 = vld [vmem:[%s7 + $0x230] sm:$0xf]
        %v8329 = vld [vmem:[%s7 + $0x234] sm:$0xf]
        %v8330 = vld [vmem:[%s7 + $0x238] sm:$0xf]
        %v8331 = vld [vmem:[%s7 + $0x23c] sm:$0xf]
        %v8332 = vld [vmem:[%s7 + $0x240] sm:$0xf]
        %v8333 = vld [vmem:[%s7 + $0x244] sm:$0xf]
        %v8334 = vld [vmem:[%s7 + $0x248] sm:$0xf]
        %v8335 = vld [vmem:[%s7 + $0x24c] sm:$0xf]
        %v8336 = vld [vmem:[%s7 + $0x250] sm:$0xf]
        %v8337 = vld [vmem:[%s7 + $0x254] sm:$0xf]
        %v8338 = vld [vmem:[%s7 + $0x258] sm:$0xf]
        %v8339 = vld [vmem:[%s7 + $0x25c] sm:$0xf]
        %v8340 = vld [vmem:[%s7 + $0x260] sm:$0xf]
        %v8341 = vld [vmem:[%s7 + $0x264] sm:$0xf]
        %v8342 = vld [vmem:[%s7 + $0x268] sm:$0xf]
        %v8343 = vld [vmem:[%s7 + $0x26c] sm:$0xf]
        %v8344 = vld [vmem:[%s7 + $0x270] sm:$0xf]
        %v8345 = vld [vmem:[%s7 + $0x274] sm:$0xf]
        %v8346 = vld [vmem:[%s7 + $0x278] sm:$0xf]
        %v8347 = vld [vmem:[%s7 + $0x27c] sm:$0xf]
        %v8348 = vld [vmem:[%s7 + $0x280] sm:$0xf]
        %v8349 = vld [vmem:[%s7 + $0x284] sm:$0xf]
        %v8350 = vld [vmem:[%s7 + $0x288] sm:$0xf]
        %v8351 = vld [vmem:[%s7 + $0x28c] sm:$0xf]
        %v8352 = vld [vmem:[%s7 + $0x290] sm:$0xf]
        %v8353 = vld [vmem:[%s7 + $0x294] sm:$0xf]
        %v8354 = vld [vmem:[%s7 + $0x298] sm:$0xf]
        %v8355 = vld [vmem:[%s7 + $0x29c] sm:$0xf]
        %v8356 = vld [vmem:[%s7 + $0x2a0] sm:$0xf]
        %v8357 = vld [vmem:[%s7 + $0x2a4] sm:$0xf]
        %v8358 = vld [vmem:[%s7 + $0x2a8] sm:$0xf]
        %v8359 = vld [vmem:[%s7 + $0x2ac] sm:$0xf]
        %v8360 = vld [vmem:[%s7 + $0x2b0] sm:$0xf]
        %v8361 = vld [vmem:[%s7 + $0x2b4] sm:$0xf]
        %v8362 = vld [vmem:[%s7 + $0x2b8] sm:$0xf]
        %v8363 = vld [vmem:[%s7 + $0x2bc] sm:$0xf]
        %v8364 = vld [vmem:[%s7 + $0x2c0] sm:$0xf]
        %v8365 = vld [vmem:[%s7 + $0x2c4] sm:$0xf]
        %v8366 = vld [vmem:[%s7 + $0x2c8] sm:$0xf]
        %v8367 = vld [vmem:[%s7 + $0x2cc] sm:$0xf]
        %v8368 = vld [vmem:[%s7 + $0x2d0] sm:$0xf]
        %v8369 = vld [vmem:[%s7 + $0x2d4] sm:$0xf]
        %v8370 = vld [vmem:[%s7 + $0x2d8] sm:$0xf]
        %v8371 = vld [vmem:[%s7 + $0x2dc] sm:$0xf]
        %v8372 = vld [vmem:[%s7 + $0x2e0] sm:$0xf]
        %v8373 = vld [vmem:[%s7 + $0x2e4] sm:$0xf]
        %v8374 = vld [vmem:[%s7 + $0x2e8] sm:$0xf]
        %v8375 = vld [vmem:[%s7 + $0x2ec] sm:$0xf]
        %v8376 = vld [vmem:[%s7 + $0x2f0] sm:$0xf]
        %v8377 = vld [vmem:[%s7 + $0x2f4] sm:$0xf]
        %v8378 = vld [vmem:[%s7 + $0x2f8] sm:$0xf]
        %v8379 = vld [vmem:[%s7 + $0x2fc] sm:$0xf]
        %v8380 = vld [vmem:[%s7 + $0x300] sm:$0xf]
        %v8381 = vld [vmem:[%s7 + $0x304] sm:$0xf]
        %v8382 = vld [vmem:[%s7 + $0x308] sm:$0xf]
        %v8383 = vld [vmem:[%s7 + $0x30c] sm:$0xf]
        %v8384 = vld [vmem:[%s7 + $0x310] sm:$0xf]
        %v8385 = vld [vmem:[%s7 + $0x314] sm:$0xf]
        %v8386 = vld [vmem:[%s7 + $0x318] sm:$0xf]
        %v8387 = vld [vmem:[%s7 + $0x31c] sm:$0xf]
        %v8388 = vld [vmem:[%s7 + $0x320] sm:$0xf]
        %v8389 = vld [vmem:[%s7 + $0x324] sm:$0xf]
        %v8390 = vld [vmem:[%s7 + $0x328] sm:$0xf]
        %v8391 = vld [vmem:[%s7 + $0x32c] sm:$0xf]
        %v8392 = vld [vmem:[%s7 + $0x330] sm:$0xf]
        %v8393 = vld [vmem:[%s7 + $0x334] sm:$0xf]
        %v8394 = vld [vmem:[%s7 + $0x338] sm:$0xf]
        %v8395 = vld [vmem:[%s7 + $0x33c] sm:$0xf]
        %v8396 = vld [vmem:[%s7 + $0x340] sm:$0xf]
        %v8397 = vld [vmem:[%s7 + $0x344] sm:$0xf]
        %v8398 = vld [vmem:[%s7 + $0x348] sm:$0xf]
        %v8399 = vld [vmem:[%s7 + $0x34c] sm:$0xf]
        %v8400 = vld [vmem:[%s7 + $0x350] sm:$0xf]
        %v8401 = vld [vmem:[%s7 + $0x354] sm:$0xf]
        %v8402 = vld [vmem:[%s7 + $0x358] sm:$0xf]
        %v8403 = vld [vmem:[%s7 + $0x35c] sm:$0xf]
        %v8404 = vld [vmem:[%s7 + $0x360] sm:$0xf]
        %v8405 = vld [vmem:[%s7 + $0x364] sm:$0xf]
        %v8406 = vld [vmem:[%s7 + $0x368] sm:$0xf]
        %v8407 = vld [vmem:[%s7 + $0x36c] sm:$0xf]
        %v8408 = vld [vmem:[%s7 + $0x370] sm:$0xf]
        %v8409 = vld [vmem:[%s7 + $0x374] sm:$0xf]
        %v8410 = vld [vmem:[%s7 + $0x378] sm:$0xf]
        %v8411 = vld [vmem:[%s7 + $0x37c] sm:$0xf]
        %v8412 = vld [vmem:[%s7 + $0x380] sm:$0xf]
        %v8413 = vld [vmem:[%s7 + $0x384] sm:$0xf]
        %v8414 = vld [vmem:[%s7 + $0x388] sm:$0xf]
        %v8415 = vld [vmem:[%s7 + $0x38c] sm:$0xf]
        %v8416 = vld [vmem:[%s7 + $0x390] sm:$0xf]
        %v8417 = vld [vmem:[%s7 + $0x394] sm:$0xf]
        %v8418 = vld [vmem:[%s7 + $0x398] sm:$0xf]
        %v8419 = vld [vmem:[%s7 + $0x39c] sm:$0xf]
        %v8420 = vld [vmem:[%s7 + $0x3a0] sm:$0xf]
        %v8421 = vld [vmem:[%s7 + $0x3a4] sm:$0xf]
        %v8422 = vld [vmem:[%s7 + $0x3a8] sm:$0xf]
        %v8423 = vld [vmem:[%s7 + $0x3ac] sm:$0xf]
        %v8424 = vld [vmem:[%s7 + $0x3b0] sm:$0xf]
        %v8425 = vld [vmem:[%s7 + $0x3b4] sm:$0xf]
        %v8426 = vld [vmem:[%s7 + $0x3b8] sm:$0xf]
        %v8427 = vld [vmem:[%s7 + $0x3bc] sm:$0xf]
        %v8428 = vld [vmem:[%s7 + $0x3c0] sm:$0xf]
        %v8429 = vld [vmem:[%s7 + $0x3c4] sm:$0xf]
        %v8430 = vld [vmem:[%s7 + $0x3c8] sm:$0xf]
        %v8431 = vld [vmem:[%s7 + $0x3cc] sm:$0xf]
        %v8432 = vld [vmem:[%s7 + $0x3d0] sm:$0xf]
        %v8433 = vld [vmem:[%s7 + $0x3d4] sm:$0xf]
        %v8434 = vld [vmem:[%s7 + $0x3d8] sm:$0xf]
        %v8435 = vld [vmem:[%s7 + $0x3dc] sm:$0xf]
        %v8436 = vld [vmem:[%s7 + $0x3e0] sm:$0xf]
        %v8437 = vld [vmem:[%s7 + $0x3e4] sm:$0xf]
        %v8438 = vld [vmem:[%s7 + $0x3e8] sm:$0xf]
        %v8439 = vld [vmem:[%s7 + $0x3ec] sm:$0xf]
        %v8440 = vld [vmem:[%s7 + $0x3f0] sm:$0xf]
        %v8441 = vld [vmem:[%s7 + $0x3f4] sm:$0xf]
        %v8442 = vld [vmem:[%s7 + $0x3f8] sm:$0xf]
        %v8443 = vld [vmem:[%s7 + $0x3fc] sm:$0xf]
        %v8444 = vld [vmem:[%s8] sm:$0x1]
        %v8447 = vcombine.high %v8186, %v8186
        %v8449 = vunpack.c.l.s4 1966171168
        %v8450 = vunpack.c.0.s8 %v8449
        %v8451 = vlaneseq
        %v8452 = vshrl.u32 %v8451, 7
        %v8453 = vsub.s32 %v8450, %v8452
        %v8454 = vrot.slane %v8186, %v8453
        %v8456 = vunpack.c.l.s4 1966171168
        %v8457 = vunpack.c.0.s8 %v8456
        %v8458 = vlaneseq
        %v8459 = vshrl.u32 %v8458, 7
        %v8460 = vsub.s32 %v8457, %v8459
        %v8461 = vrot.slane %v8447, %v8460
        %v8462 = vcombine.high %v8454, %v8454
        %v8463 = vcombine.high %v8461, %v8461
        %v8465 = vunpack.c.l.s4 1966171168
        %v8466 = vunpack.c.0.s8 %v8465
        %v8467 = vlaneseq
        %v8468 = vshrl.u32 %v8467, 7
        %v8469 = vsub.s32 %v8466, %v8468
        %v8470 = vrot.slane %v8454, %v8469
        %v8472 = vunpack.c.l.s4 1966171168
        %v8473 = vunpack.c.0.s8 %v8472
        %v8474 = vlaneseq
        %v8475 = vshrl.u32 %v8474, 7
        %v8476 = vsub.s32 %v8473, %v8475
        %v8477 = vrot.slane %v8461, %v8476
        %v8479 = vunpack.c.l.s4 1966171168
        %v8480 = vunpack.c.0.s8 %v8479
        %v8481 = vlaneseq
        %v8482 = vshrl.u32 %v8481, 7
        %v8483 = vsub.s32 %v8480, %v8482
        %v8484 = vrot.slane %v8462, %v8483
        %v8486 = vunpack.c.l.s4 1966171168
        %v8487 = vunpack.c.0.s8 %v8486
        %v8488 = vlaneseq
        %v8489 = vshrl.u32 %v8488, 7
        %v8490 = vsub.s32 %v8487, %v8489
        %v8491 = vrot.slane %v8463, %v8490
        %v8492 = vcombine.high %v8470, %v8470
        %v8493 = vcombine.high %v8477, %v8477
        %v8494 = vcombine.high %v8484, %v8484
        %v8495 = vcombine.high %v8491, %v8491
        %v8496 = vcombine.high %v8187, %v8187
        %v8498 = vunpack.c.l.s4 1966171168
        %v8499 = vunpack.c.0.s8 %v8498
        %v8500 = vlaneseq
        %v8501 = vshrl.u32 %v8500, 7
        %v8502 = vsub.s32 %v8499, %v8501
        %v8503 = vrot.slane %v8187, %v8502
        %v8505 = vunpack.c.l.s4 1966171168
        %v8506 = vunpack.c.0.s8 %v8505
        %v8507 = vlaneseq
        %v8508 = vshrl.u32 %v8507, 7
        %v8509 = vsub.s32 %v8506, %v8508
        %v8510 = vrot.slane %v8496, %v8509
        %v8511 = vcombine.high %v8503, %v8503
        %v8512 = vcombine.high %v8510, %v8510
        %v8514 = vunpack.c.l.s4 1966171168
        %v8515 = vunpack.c.0.s8 %v8514
        %v8516 = vlaneseq
        %v8517 = vshrl.u32 %v8516, 7
        %v8518 = vsub.s32 %v8515, %v8517
        %v8519 = vrot.slane %v8503, %v8518
        %v8521 = vunpack.c.l.s4 1966171168
        %v8522 = vunpack.c.0.s8 %v8521
        %v8523 = vlaneseq
        %v8524 = vshrl.u32 %v8523, 7
        %v8525 = vsub.s32 %v8522, %v8524
        %v8526 = vrot.slane %v8510, %v8525
        %v8528 = vunpack.c.l.s4 1966171168
        %v8529 = vunpack.c.0.s8 %v8528
        %v8530 = vlaneseq
        %v8531 = vshrl.u32 %v8530, 7
        %v8532 = vsub.s32 %v8529, %v8531
        %v8533 = vrot.slane %v8511, %v8532
        %v8535 = vunpack.c.l.s4 1966171168
        %v8536 = vunpack.c.0.s8 %v8535
        %v8537 = vlaneseq
        %v8538 = vshrl.u32 %v8537, 7
        %v8539 = vsub.s32 %v8536, %v8538
        %v8540 = vrot.slane %v8512, %v8539
        %v8541 = vcombine.high %v8519, %v8519
        %v8542 = vcombine.high %v8526, %v8526
        %v8543 = vcombine.high %v8533, %v8533
        %v8544 = vcombine.high %v8540, %v8540
        %v8817 = vunpack.c.l.b16 %v8188
        %v8818 = vunpack.c.l.b16 %v8189
        %v8819 = vunpack.c.l.b16 %v8190
        %v8820 = vunpack.c.l.b16 %v8191
        %v8821 = vunpack.c.l.b16 %v8192
        %v8822 = vunpack.c.l.b16 %v8193
        %v8823 = vunpack.c.l.b16 %v8194
        %v8824 = vunpack.c.l.b16 %v8195
        %v8825 = vunpack.c.l.b16 %v8196
        %v8826 = vunpack.c.l.b16 %v8197
        %v8827 = vunpack.c.l.b16 %v8198
        %v8828 = vunpack.c.l.b16 %v8199
        %v8829 = vunpack.c.l.b16 %v8200
        %v8830 = vunpack.c.l.b16 %v8201
        %v8831 = vunpack.c.l.b16 %v8202
        %v8832 = vunpack.c.l.b16 %v8203
        %v8833 = vunpack.c.l.b16 %v8204
        %v8834 = vunpack.c.l.b16 %v8205
        %v8835 = vunpack.c.l.b16 %v8206
        %v8836 = vunpack.c.l.b16 %v8207
        %v8837 = vunpack.c.l.b16 %v8208
        %v8838 = vunpack.c.l.b16 %v8209
        %v8839 = vunpack.c.l.b16 %v8210
        %v8840 = vunpack.c.l.b16 %v8211
        %v8841 = vunpack.c.l.b16 %v8212
        %v8842 = vunpack.c.l.b16 %v8213
        %v8843 = vunpack.c.l.b16 %v8214
        %v8844 = vunpack.c.l.b16 %v8215
        %v8845 = vunpack.c.l.b16 %v8216
        %v8846 = vunpack.c.l.b16 %v8217
        %v8847 = vunpack.c.l.b16 %v8218
        %v8848 = vunpack.c.l.b16 %v8219
        %v8849 = vunpack.c.l.b16 %v8220
        %v8850 = vunpack.c.l.b16 %v8221
        %v8851 = vunpack.c.l.b16 %v8222
        %v8852 = vunpack.c.l.b16 %v8223
        %v8853 = vunpack.c.l.b16 %v8224
        %v8854 = vunpack.c.l.b16 %v8225
        %v8855 = vunpack.c.l.b16 %v8226
        %v8856 = vunpack.c.l.b16 %v8227
        %v8857 = vunpack.c.l.b16 %v8228
        %v8858 = vunpack.c.l.b16 %v8229
        %v8859 = vunpack.c.l.b16 %v8230
        %v8860 = vunpack.c.l.b16 %v8231
        %v8861 = vunpack.c.l.b16 %v8232
        %v8862 = vunpack.c.l.b16 %v8233
        %v8863 = vunpack.c.l.b16 %v8234
        %v8864 = vunpack.c.l.b16 %v8235
        %v8865 = vunpack.c.l.b16 %v8236
        %v8866 = vunpack.c.l.b16 %v8237
        %v8867 = vunpack.c.l.b16 %v8238
        %v8868 = vunpack.c.l.b16 %v8239
        %v8869 = vunpack.c.l.b16 %v8240
        %v8870 = vunpack.c.l.b16 %v8241
        %v8871 = vunpack.c.l.b16 %v8242
        %v8872 = vunpack.c.l.b16 %v8243
        %v8873 = vunpack.c.l.b16 %v8244
        %v8874 = vunpack.c.l.b16 %v8245
        %v8875 = vunpack.c.l.b16 %v8246
        %v8876 = vunpack.c.l.b16 %v8247
        %v8877 = vunpack.c.l.b16 %v8248
        %v8878 = vunpack.c.l.b16 %v8249
        %v8879 = vunpack.c.l.b16 %v8250
        %v8880 = vunpack.c.l.b16 %v8251
        %v8881 = vunpack.c.l.b16 %v8252
        %v8882 = vunpack.c.l.b16 %v8253
        %v8883 = vunpack.c.l.b16 %v8254
        %v8884 = vunpack.c.l.b16 %v8255
        %v8885 = vunpack.c.l.b16 %v8256
        %v8886 = vunpack.c.l.b16 %v8257
        %v8887 = vunpack.c.l.b16 %v8258
        %v8888 = vunpack.c.l.b16 %v8259
        %v8889 = vunpack.c.l.b16 %v8260
        %v8890 = vunpack.c.l.b16 %v8261
        %v8891 = vunpack.c.l.b16 %v8262
        %v8892 = vunpack.c.l.b16 %v8263
        %v8893 = vunpack.c.l.b16 %v8264
        %v8894 = vunpack.c.l.b16 %v8265
        %v8895 = vunpack.c.l.b16 %v8266
        %v8896 = vunpack.c.l.b16 %v8267
        %v8897 = vunpack.c.l.b16 %v8268
        %v8898 = vunpack.c.l.b16 %v8269
        %v8899 = vunpack.c.l.b16 %v8270
        %v8900 = vunpack.c.l.b16 %v8271
        %v8901 = vunpack.c.l.b16 %v8272
        %v8902 = vunpack.c.l.b16 %v8273
        %v8903 = vunpack.c.l.b16 %v8274
        %v8904 = vunpack.c.l.b16 %v8275
        %v8905 = vunpack.c.l.b16 %v8276
        %v8906 = vunpack.c.l.b16 %v8277
        %v8907 = vunpack.c.l.b16 %v8278
        %v8908 = vunpack.c.l.b16 %v8279
        %v8909 = vunpack.c.l.b16 %v8280
        %v8910 = vunpack.c.l.b16 %v8281
        %v8911 = vunpack.c.l.b16 %v8282
        %v8912 = vunpack.c.l.b16 %v8283
        %v8913 = vunpack.c.l.b16 %v8284
        %v8914 = vunpack.c.l.b16 %v8285
        %v8915 = vunpack.c.l.b16 %v8286
        %v8916 = vunpack.c.l.b16 %v8287
        %v8917 = vunpack.c.l.b16 %v8288
        %v8918 = vunpack.c.l.b16 %v8289
        %v8919 = vunpack.c.l.b16 %v8290
        %v8920 = vunpack.c.l.b16 %v8291
        %v8921 = vunpack.c.l.b16 %v8292
        %v8922 = vunpack.c.l.b16 %v8293
        %v8923 = vunpack.c.l.b16 %v8294
        %v8924 = vunpack.c.l.b16 %v8295
        %v8925 = vunpack.c.l.b16 %v8296
        %v8926 = vunpack.c.l.b16 %v8297
        %v8927 = vunpack.c.l.b16 %v8298
        %v8928 = vunpack.c.l.b16 %v8299
        %v8929 = vunpack.c.l.b16 %v8300
        %v8930 = vunpack.c.l.b16 %v8301
        %v8931 = vunpack.c.l.b16 %v8302
        %v8932 = vunpack.c.l.b16 %v8303
        %v8933 = vunpack.c.l.b16 %v8304
        %v8934 = vunpack.c.l.b16 %v8305
        %v8935 = vunpack.c.l.b16 %v8306
        %v8936 = vunpack.c.l.b16 %v8307
        %v8937 = vunpack.c.l.b16 %v8308
        %v8938 = vunpack.c.l.b16 %v8309
        %v8939 = vunpack.c.l.b16 %v8310
        %v8940 = vunpack.c.l.b16 %v8311
        %v8941 = vunpack.c.l.b16 %v8312
        %v8942 = vunpack.c.l.b16 %v8313
        %v8943 = vunpack.c.l.b16 %v8314
        %v8944 = vunpack.c.l.b16 %v8315
        %v8945 = vunpack.c.l.b16 %v8316
        %v8946 = vunpack.c.l.b16 %v8317
        %v8947 = vunpack.c.l.b16 %v8318
        %v8948 = vunpack.c.l.b16 %v8319
        %v8949 = vunpack.c.l.b16 %v8320
        %v8950 = vunpack.c.l.b16 %v8321
        %v8951 = vunpack.c.l.b16 %v8322
        %v8952 = vunpack.c.l.b16 %v8323
        %v8953 = vunpack.c.l.b16 %v8324
        %v8954 = vunpack.c.l.b16 %v8325
        %v8955 = vunpack.c.l.b16 %v8326
        %v8956 = vunpack.c.l.b16 %v8327
        %v8957 = vunpack.c.l.b16 %v8328
        %v8958 = vunpack.c.l.b16 %v8329
        %v8959 = vunpack.c.l.b16 %v8330
        %v8960 = vunpack.c.l.b16 %v8331
        %v8961 = vunpack.c.l.b16 %v8332
        %v8962 = vunpack.c.l.b16 %v8333
        %v8963 = vunpack.c.l.b16 %v8334
        %v8964 = vunpack.c.l.b16 %v8335
        %v8965 = vunpack.c.l.b16 %v8336
        %v8966 = vunpack.c.l.b16 %v8337
        %v8967 = vunpack.c.l.b16 %v8338
        %v8968 = vunpack.c.l.b16 %v8339
        %v8969 = vunpack.c.l.b16 %v8340
        %v8970 = vunpack.c.l.b16 %v8341
        %v8971 = vunpack.c.l.b16 %v8342
        %v8972 = vunpack.c.l.b16 %v8343
        %v8973 = vunpack.c.l.b16 %v8344
        %v8974 = vunpack.c.l.b16 %v8345
        %v8975 = vunpack.c.l.b16 %v8346
        %v8976 = vunpack.c.l.b16 %v8347
        %v8977 = vunpack.c.l.b16 %v8348
        %v8978 = vunpack.c.l.b16 %v8349
        %v8979 = vunpack.c.l.b16 %v8350
        %v8980 = vunpack.c.l.b16 %v8351
        %v8981 = vunpack.c.l.b16 %v8352
        %v8982 = vunpack.c.l.b16 %v8353
        %v8983 = vunpack.c.l.b16 %v8354
        %v8984 = vunpack.c.l.b16 %v8355
        %v8985 = vunpack.c.l.b16 %v8356
        %v8986 = vunpack.c.l.b16 %v8357
        %v8987 = vunpack.c.l.b16 %v8358
        %v8988 = vunpack.c.l.b16 %v8359
        %v8989 = vunpack.c.l.b16 %v8360
        %v8990 = vunpack.c.l.b16 %v8361
        %v8991 = vunpack.c.l.b16 %v8362
        %v8992 = vunpack.c.l.b16 %v8363
        %v8993 = vunpack.c.l.b16 %v8364
        %v8994 = vunpack.c.l.b16 %v8365
        %v8995 = vunpack.c.l.b16 %v8366
        %v8996 = vunpack.c.l.b16 %v8367
        %v8997 = vunpack.c.l.b16 %v8368
        %v8998 = vunpack.c.l.b16 %v8369
        %v8999 = vunpack.c.l.b16 %v8370
        %v9000 = vunpack.c.l.b16 %v8371
        %v9001 = vunpack.c.l.b16 %v8372
        %v9002 = vunpack.c.l.b16 %v8373
        %v9003 = vunpack.c.l.b16 %v8374
        %v9004 = vunpack.c.l.b16 %v8375
        %v9005 = vunpack.c.l.b16 %v8376
        %v9006 = vunpack.c.l.b16 %v8377
        %v9007 = vunpack.c.l.b16 %v8378
        %v9008 = vunpack.c.l.b16 %v8379
        %v9009 = vunpack.c.l.b16 %v8380
        %v9010 = vunpack.c.l.b16 %v8381
        %v9011 = vunpack.c.l.b16 %v8382
        %v9012 = vunpack.c.l.b16 %v8383
        %v9013 = vunpack.c.l.b16 %v8384
        %v9014 = vunpack.c.l.b16 %v8385
        %v9015 = vunpack.c.l.b16 %v8386
        %v9016 = vunpack.c.l.b16 %v8387
        %v9017 = vunpack.c.l.b16 %v8388
        %v9018 = vunpack.c.l.b16 %v8389
        %v9019 = vunpack.c.l.b16 %v8390
        %v9020 = vunpack.c.l.b16 %v8391
        %v9021 = vunpack.c.l.b16 %v8392
        %v9022 = vunpack.c.l.b16 %v8393
        %v9023 = vunpack.c.l.b16 %v8394
        %v9024 = vunpack.c.l.b16 %v8395
        %v9025 = vunpack.c.l.b16 %v8396
        %v9026 = vunpack.c.l.b16 %v8397
        %v9027 = vunpack.c.l.b16 %v8398
        %v9028 = vunpack.c.l.b16 %v8399
        %v9029 = vunpack.c.l.b16 %v8400
        %v9030 = vunpack.c.l.b16 %v8401
        %v9031 = vunpack.c.l.b16 %v8402
        %v9032 = vunpack.c.l.b16 %v8403
        %v9033 = vunpack.c.l.b16 %v8404
        %v9034 = vunpack.c.l.b16 %v8405
        %v9035 = vunpack.c.l.b16 %v8406
        %v9036 = vunpack.c.l.b16 %v8407
        %v9037 = vunpack.c.l.b16 %v8408
        %v9038 = vunpack.c.l.b16 %v8409
        %v9039 = vunpack.c.l.b16 %v8410
        %v9040 = vunpack.c.l.b16 %v8411
        %v9041 = vunpack.c.l.b16 %v8412
        %v9042 = vunpack.c.l.b16 %v8413
        %v9043 = vunpack.c.l.b16 %v8414
        %v9044 = vunpack.c.l.b16 %v8415
        %v9045 = vunpack.c.l.b16 %v8416
        %v9046 = vunpack.c.l.b16 %v8417
        %v9047 = vunpack.c.l.b16 %v8418
        %v9048 = vunpack.c.l.b16 %v8419
        %v9049 = vunpack.c.l.b16 %v8420
        %v9050 = vunpack.c.l.b16 %v8421
        %v9051 = vunpack.c.l.b16 %v8422
        %v9052 = vunpack.c.l.b16 %v8423
        %v9053 = vunpack.c.l.b16 %v8424
        %v9054 = vunpack.c.l.b16 %v8425
        %v9055 = vunpack.c.l.b16 %v8426
        %v9056 = vunpack.c.l.b16 %v8427
        %v9057 = vunpack.c.l.b16 %v8428
        %v9058 = vunpack.c.l.b16 %v8429
        %v9059 = vunpack.c.l.b16 %v8430
        %v9060 = vunpack.c.l.b16 %v8431
        %v9061 = vunpack.c.l.b16 %v8432
        %v9062 = vunpack.c.l.b16 %v8433
        %v9063 = vunpack.c.l.b16 %v8434
        %v9064 = vunpack.c.l.b16 %v8435
        %v9065 = vunpack.c.l.b16 %v8436
        %v9066 = vunpack.c.l.b16 %v8437
        %v9067 = vunpack.c.l.b16 %v8438
        %v9068 = vunpack.c.l.b16 %v8439
        %v9069 = vunpack.c.l.b16 %v8440
        %v9070 = vunpack.c.l.b16 %v8441
        %v9071 = vunpack.c.l.b16 %v8442
        %v9072 = vunpack.c.l.b16 %v8443
        %v9073 = vpack.c.b16 %v8818, %v8817
        %v9074 = vpack.c.b16 %v8820, %v8819
        %v9075 = vpack.c.b16 %v8822, %v8821
        %v9076 = vpack.c.b16 %v8824, %v8823
        %v9077 = vpack.c.b16 %v8826, %v8825
        %v9078 = vpack.c.b16 %v8828, %v8827
        %v9079 = vpack.c.b16 %v8830, %v8829
        %v9080 = vpack.c.b16 %v8832, %v8831
        %v9081 = vpack.c.b16 %v8834, %v8833
        %v9082 = vpack.c.b16 %v8836, %v8835
        %v9083 = vpack.c.b16 %v8838, %v8837
        %v9084 = vpack.c.b16 %v8840, %v8839
        %v9085 = vpack.c.b16 %v8842, %v8841
        %v9086 = vpack.c.b16 %v8844, %v8843
        %v9087 = vpack.c.b16 %v8846, %v8845
        %v9088 = vpack.c.b16 %v8848, %v8847
        %v9089 = vpack.c.b16 %v8850, %v8849
        %v9090 = vpack.c.b16 %v8852, %v8851
        %v9091 = vpack.c.b16 %v8854, %v8853
        %v9092 = vpack.c.b16 %v8856, %v8855
        %v9093 = vpack.c.b16 %v8858, %v8857
        %v9094 = vpack.c.b16 %v8860, %v8859
        %v9095 = vpack.c.b16 %v8862, %v8861
        %v9096 = vpack.c.b16 %v8864, %v8863
        %v9097 = vpack.c.b16 %v8866, %v8865
        %v9098 = vpack.c.b16 %v8868, %v8867
        %v9099 = vpack.c.b16 %v8870, %v8869
        %v9100 = vpack.c.b16 %v8872, %v8871
        %v9101 = vpack.c.b16 %v8874, %v8873
        %v9102 = vpack.c.b16 %v8876, %v8875
        %v9103 = vpack.c.b16 %v8878, %v8877
        %v9104 = vpack.c.b16 %v8880, %v8879
        %v9105 = vpack.c.b16 %v8882, %v8881
        %v9106 = vpack.c.b16 %v8884, %v8883
        %v9107 = vpack.c.b16 %v8886, %v8885
        %v9108 = vpack.c.b16 %v8888, %v8887
        %v9109 = vpack.c.b16 %v8890, %v8889
        %v9110 = vpack.c.b16 %v8892, %v8891
        %v9111 = vpack.c.b16 %v8894, %v8893
        %v9112 = vpack.c.b16 %v8896, %v8895
        %v9113 = vpack.c.b16 %v8898, %v8897
        %v9114 = vpack.c.b16 %v8900, %v8899
        %v9115 = vpack.c.b16 %v8902, %v8901
        %v9116 = vpack.c.b16 %v8904, %v8903
        %v9117 = vpack.c.b16 %v8906, %v8905
        %v9118 = vpack.c.b16 %v8908, %v8907
        %v9119 = vpack.c.b16 %v8910, %v8909
        %v9120 = vpack.c.b16 %v8912, %v8911
        %v9121 = vpack.c.b16 %v8914, %v8913
        %v9122 = vpack.c.b16 %v8916, %v8915
        %v9123 = vpack.c.b16 %v8918, %v8917
        %v9124 = vpack.c.b16 %v8920, %v8919
        %v9125 = vpack.c.b16 %v8922, %v8921
        %v9126 = vpack.c.b16 %v8924, %v8923
        %v9127 = vpack.c.b16 %v8926, %v8925
        %v9128 = vpack.c.b16 %v8928, %v8927
        %v9129 = vpack.c.b16 %v8930, %v8929
        %v9130 = vpack.c.b16 %v8932, %v8931
        %v9131 = vpack.c.b16 %v8934, %v8933
        %v9132 = vpack.c.b16 %v8936, %v8935
        %v9133 = vpack.c.b16 %v8938, %v8937
        %v9134 = vpack.c.b16 %v8940, %v8939
        %v9135 = vpack.c.b16 %v8942, %v8941
        %v9136 = vpack.c.b16 %v8944, %v8943
        %v9137 = vpack.c.b16 %v8946, %v8945
        %v9138 = vpack.c.b16 %v8948, %v8947
        %v9139 = vpack.c.b16 %v8950, %v8949
        %v9140 = vpack.c.b16 %v8952, %v8951
        %v9141 = vpack.c.b16 %v8954, %v8953
        %v9142 = vpack.c.b16 %v8956, %v8955
        %v9143 = vpack.c.b16 %v8958, %v8957
        %v9144 = vpack.c.b16 %v8960, %v8959
        %v9145 = vpack.c.b16 %v8962, %v8961
        %v9146 = vpack.c.b16 %v8964, %v8963
        %v9147 = vpack.c.b16 %v8966, %v8965
        %v9148 = vpack.c.b16 %v8968, %v8967
        %v9149 = vpack.c.b16 %v8970, %v8969
        %v9150 = vpack.c.b16 %v8972, %v8971
        %v9151 = vpack.c.b16 %v8974, %v8973
        %v9152 = vpack.c.b16 %v8976, %v8975
        %v9153 = vpack.c.b16 %v8978, %v8977
        %v9154 = vpack.c.b16 %v8980, %v8979
        %v9155 = vpack.c.b16 %v8982, %v8981
        %v9156 = vpack.c.b16 %v8984, %v8983
        %v9157 = vpack.c.b16 %v8986, %v8985
        %v9158 = vpack.c.b16 %v8988, %v8987
        %v9159 = vpack.c.b16 %v8990, %v8989
        %v9160 = vpack.c.b16 %v8992, %v8991
        %v9161 = vpack.c.b16 %v8994, %v8993
        %v9162 = vpack.c.b16 %v8996, %v8995
        %v9163 = vpack.c.b16 %v8998, %v8997
        %v9164 = vpack.c.b16 %v9000, %v8999
        %v9165 = vpack.c.b16 %v9002, %v9001
        %v9166 = vpack.c.b16 %v9004, %v9003
        %v9167 = vpack.c.b16 %v9006, %v9005
        %v9168 = vpack.c.b16 %v9008, %v9007
        %v9169 = vpack.c.b16 %v9010, %v9009
        %v9170 = vpack.c.b16 %v9012, %v9011
        %v9171 = vpack.c.b16 %v9014, %v9013
        %v9172 = vpack.c.b16 %v9016, %v9015
        %v9173 = vpack.c.b16 %v9018, %v9017
        %v9174 = vpack.c.b16 %v9020, %v9019
        %v9175 = vpack.c.b16 %v9022, %v9021
        %v9176 = vpack.c.b16 %v9024, %v9023
        %v9177 = vpack.c.b16 %v9026, %v9025
        %v9178 = vpack.c.b16 %v9028, %v9027
        %v9179 = vpack.c.b16 %v9030, %v9029
        %v9180 = vpack.c.b16 %v9032, %v9031
        %v9181 = vpack.c.b16 %v9034, %v9033
        %v9182 = vpack.c.b16 %v9036, %v9035
        %v9183 = vpack.c.b16 %v9038, %v9037
        %v9184 = vpack.c.b16 %v9040, %v9039
        %v9185 = vpack.c.b16 %v9042, %v9041
        %v9186 = vpack.c.b16 %v9044, %v9043
        %v9187 = vpack.c.b16 %v9046, %v9045
        %v9188 = vpack.c.b16 %v9048, %v9047
        %v9189 = vpack.c.b16 %v9050, %v9049
        %v9190 = vpack.c.b16 %v9052, %v9051
        %v9191 = vpack.c.b16 %v9054, %v9053
        %v9192 = vpack.c.b16 %v9056, %v9055
        %v9193 = vpack.c.b16 %v9058, %v9057
        %v9194 = vpack.c.b16 %v9060, %v9059
        %v9195 = vpack.c.b16 %v9062, %v9061
        %v9196 = vpack.c.b16 %v9064, %v9063
        %v9197 = vpack.c.b16 %v9066, %v9065
        %v9198 = vpack.c.b16 %v9068, %v9067
        %v9199 = vpack.c.b16 %v9070, %v9069
        %v9200 = vpack.c.b16 %v9072, %v9071
        %9329 = vmatprep.subr.bf16.mxu0 0
        %9330 = vmatpush1.bf16.msra.mxu0 %v9073
        %9331 = vmatprep.subr.bf16.mxu0 0
        %9332 = vmatpush1.bf16.msra.mxu0 %v9074
        %9333 = vmatprep.subr.bf16.mxu0 0
        %9334 = vmatpush1.bf16.msra.mxu0 %v9075
        %9335 = vmatprep.subr.bf16.mxu0 0
        %9336 = vmatpush1.bf16.msra.mxu0 %v9076
        %9337 = vmatprep.subr.bf16.mxu0 0
        %9338 = vmatpush1.bf16.msra.mxu0 %v9077
        %9339 = vmatprep.subr.bf16.mxu0 0
        %9340 = vmatpush1.bf16.msra.mxu0 %v9078
        %9341 = vmatprep.subr.bf16.mxu0 0
        %9342 = vmatpush1.bf16.msra.mxu0 %v9079
        %9343 = vmatprep.subr.bf16.mxu0 0
        %9344 = vmatpush1.bf16.msra.mxu0 %v9080
        %9345 = vmatprep.subr.bf16.mxu0 0
        %9346 = vmatpush1.bf16.msra.mxu0 %v9081
        %9347 = vmatprep.subr.bf16.mxu0 0
        %9348 = vmatpush1.bf16.msra.mxu0 %v9082
        %9349 = vmatprep.subr.bf16.mxu0 0
        %9350 = vmatpush1.bf16.msra.mxu0 %v9083
        %9351 = vmatprep.subr.bf16.mxu0 0
        %9352 = vmatpush1.bf16.msra.mxu0 %v9084
        %9353 = vmatprep.subr.bf16.mxu0 0
        %9354 = vmatpush1.bf16.msra.mxu0 %v9085
        %9355 = vmatprep.subr.bf16.mxu0 0
        %9356 = vmatpush1.bf16.msra.mxu0 %v9086
        %9357 = vmatprep.subr.bf16.mxu0 0
        %9358 = vmatpush1.bf16.msra.mxu0 %v9087
        %9359 = vmatprep.subr.bf16.mxu0 0
        %9360 = vmatpush1.bf16.msra.mxu0 %v9088
        %9361 = vmatprep.mubr.bf16.mxu0 %v8484
        %9362 = vmatmul.mubr.bf16.gmra.mrb[0].mxu0 %v8470
        %v9363 = vpop.f32.mrb[0].mxu0
        %v9364 = vadd.f32 %v8444, %v9363
        %v9365 = vpop.f32.mrb[0].mxu0
        %v9366 = vpop.f32.mrb[0].mxu0
        %v9367 = vpop.f32.mrb[0].mxu0
        %9368 = vdwg.mxu0
        %9369 = vmatprep.subr.bf16.mxu0 0
        %9370 = vmatpush1.bf16.msra.mxu0 %v9089
        %9371 = vmatprep.subr.bf16.mxu0 0
        %9372 = vmatpush1.bf16.msra.mxu0 %v9090
        %9373 = vmatprep.subr.bf16.mxu0 0
        %9374 = vmatpush1.bf16.msra.mxu0 %v9091
        %9375 = vmatprep.subr.bf16.mxu0 0
        %9376 = vmatpush1.bf16.msra.mxu0 %v9092
        %9377 = vmatprep.subr.bf16.mxu0 0
        %9378 = vmatpush1.bf16.msra.mxu0 %v9093
        %9379 = vmatprep.subr.bf16.mxu0 0
        %9380 = vmatpush1.bf16.msra.mxu0 %v9094
        %9381 = vmatprep.subr.bf16.mxu0 0
        %9382 = vmatpush1.bf16.msra.mxu0 %v9095
        %9383 = vmatprep.subr.bf16.mxu0 0
        %9384 = vmatpush1.bf16.msra.mxu0 %v9096
        %9385 = vmatprep.subr.bf16.mxu0 0
        %9386 = vmatpush1.bf16.msra.mxu0 %v9097
        %9387 = vmatprep.subr.bf16.mxu0 0
        %9388 = vmatpush1.bf16.msra.mxu0 %v9098
        %9389 = vmatprep.subr.bf16.mxu0 0
        %9390 = vmatpush1.bf16.msra.mxu0 %v9099
        %9391 = vmatprep.subr.bf16.mxu0 0
        %9392 = vmatpush1.bf16.msra.mxu0 %v9100
        %9393 = vmatprep.subr.bf16.mxu0 0
        %9394 = vmatpush1.bf16.msra.mxu0 %v9101
        %9395 = vmatprep.subr.bf16.mxu0 0
        %9396 = vmatpush1.bf16.msra.mxu0 %v9102
        %9397 = vmatprep.subr.bf16.mxu0 0
        %9398 = vmatpush1.bf16.msra.mxu0 %v9103
        %9399 = vmatprep.subr.bf16.mxu0 0
        %9400 = vmatpush1.bf16.msra.mxu0 %v9104
        %9401 = vmatprep.mubr.bf16.mxu0 %v8494
        %9402 = vmatmul.mubr.bf16.gmra.mrb[0].mxu0 %v8492
        %v9403 = vpop.f32.mrb[0].mxu0
        %v9404 = vadd.f32 %v9364, %v9403
        %v9405 = vpop.f32.mrb[0].mxu0
        %v9406 = vpop.f32.mrb[0].mxu0
        %v9407 = vpop.f32.mrb[0].mxu0
        %9408 = vdwg.mxu0
        %9409 = vmatprep.subr.bf16.mxu0 0
        %9410 = vmatpush1.bf16.msra.mxu0 %v9105
        %9411 = vmatprep.subr.bf16.mxu0 0
        %9412 = vmatpush1.bf16.msra.mxu0 %v9106
        %9413 = vmatprep.subr.bf16.mxu0 0
        %9414 = vmatpush1.bf16.msra.mxu0 %v9107
        %9415 = vmatprep.subr.bf16.mxu0 0
        %9416 = vmatpush1.bf16.msra.mxu0 %v9108
        %9417 = vmatprep.subr.bf16.mxu0 0
        %9418 = vmatpush1.bf16.msra.mxu0 %v9109
        %9419 = vmatprep.subr.bf16.mxu0 0
        %9420 = vmatpush1.bf16.msra.mxu0 %v9110
        %9421 = vmatprep.subr.bf16.mxu0 0
        %9422 = vmatpush1.bf16.msra.mxu0 %v9111
        %9423 = vmatprep.subr.bf16.mxu0 0
        %9424 = vmatpush1.bf16.msra.mxu0 %v9112
        %9425 = vmatprep.subr.bf16.mxu0 0
        %9426 = vmatpush1.bf16.msra.mxu0 %v9113
        %9427 = vmatprep.subr.bf16.mxu0 0
        %9428 = vmatpush1.bf16.msra.mxu0 %v9114
        %9429 = vmatprep.subr.bf16.mxu0 0
        %9430 = vmatpush1.bf16.msra.mxu0 %v9115
        %9431 = vmatprep.subr.bf16.mxu0 0
        %9432 = vmatpush1.bf16.msra.mxu0 %v9116
        %9433 = vmatprep.subr.bf16.mxu0 0
        %9434 = vmatpush1.bf16.msra.mxu0 %v9117
        %9435 = vmatprep.subr.bf16.mxu0 0
        %9436 = vmatpush1.bf16.msra.mxu0 %v9118
        %9437 = vmatprep.subr.bf16.mxu0 0
        %9438 = vmatpush1.bf16.msra.mxu0 %v9119
        %9439 = vmatprep.subr.bf16.mxu0 0
        %9440 = vmatpush1.bf16.msra.mxu0 %v9120
        %9441 = vmatprep.mubr.bf16.mxu0 %v8491
        %9442 = vmatmul.mubr.bf16.gmra.mrb[0].mxu0 %v8477
        %v9443 = vpop.f32.mrb[0].mxu0
        %v9444 = vadd.f32 %v9404, %v9443
        %v9445 = vpop.f32.mrb[0].mxu0
        %v9446 = vpop.f32.mrb[0].mxu0
        %v9447 = vpop.f32.mrb[0].mxu0
        %9448 = vdwg.mxu0
        %9449 = vmatprep.subr.bf16.mxu0 0
        %9450 = vmatpush1.bf16.msra.mxu0 %v9121
        %9451 = vmatprep.subr.bf16.mxu0 0
        %9452 = vmatpush1.bf16.msra.mxu0 %v9122
        %9453 = vmatprep.subr.bf16.mxu0 0
        %9454 = vmatpush1.bf16.msra.mxu0 %v9123
        %9455 = vmatprep.subr.bf16.mxu0 0
        %9456 = vmatpush1.bf16.msra.mxu0 %v9124
        %9457 = vmatprep.subr.bf16.mxu0 0
        %9458 = vmatpush1.bf16.msra.mxu0 %v9125
        %9459 = vmatprep.subr.bf16.mxu0 0
        %9460 = vmatpush1.bf16.msra.mxu0 %v9126
        %9461 = vmatprep.subr.bf16.mxu0 0
        %9462 = vmatpush1.bf16.msra.mxu0 %v9127
        %9463 = vmatprep.subr.bf16.mxu0 0
        %9464 = vmatpush1.bf16.msra.mxu0 %v9128
        %9465 = vmatprep.subr.bf16.mxu0 0
        %9466 = vmatpush1.bf16.msra.mxu0 %v9129
        %9467 = vmatprep.subr.bf16.mxu0 0
        %9468 = vmatpush1.bf16.msra.mxu0 %v9130
        %9469 = vmatprep.subr.bf16.mxu0 0
        %9470 = vmatpush1.bf16.msra.mxu0 %v9131
        %9471 = vmatprep.subr.bf16.mxu0 0
        %9472 = vmatpush1.bf16.msra.mxu0 %v9132
        %9473 = vmatprep.subr.bf16.mxu0 0
        %9474 = vmatpush1.bf16.msra.mxu0 %v9133
        %9475 = vmatprep.subr.bf16.mxu0 0
        %9476 = vmatpush1.bf16.msra.mxu0 %v9134
        %9477 = vmatprep.subr.bf16.mxu0 0
        %9478 = vmatpush1.bf16.msra.mxu0 %v9135
        %9479 = vmatprep.subr.bf16.mxu0 0
        %9480 = vmatpush1.bf16.msra.mxu0 %v9136
        %9481 = vmatprep.mubr.bf16.mxu0 %v8495
        %9482 = vmatmul.mubr.bf16.gmra.mrb[0].mxu0 %v8493
        %v9483 = vpop.f32.mrb[0].mxu0
        %v9484 = vadd.f32 %v9444, %v9483
        %v9485 = vpop.f32.mrb[0].mxu0
        %v9486 = vpop.f32.mrb[0].mxu0
        %v9487 = vpop.f32.mrb[0].mxu0
        %9488 = vdwg.mxu0
        %9489 = vmatprep.subr.bf16.mxu0 0
        %9490 = vmatpush1.bf16.msra.mxu0 %v9137
        %9491 = vmatprep.subr.bf16.mxu0 0
        %9492 = vmatpush1.bf16.msra.mxu0 %v9138
        %9493 = vmatprep.subr.bf16.mxu0 0
        %9494 = vmatpush1.bf16.msra.mxu0 %v9139
        %9495 = vmatprep.subr.bf16.mxu0 0
        %9496 = vmatpush1.bf16.msra.mxu0 %v9140
        %9497 = vmatprep.subr.bf16.mxu0 0
        %9498 = vmatpush1.bf16.msra.mxu0 %v9141
        %9499 = vmatprep.subr.bf16.mxu0 0
        %9500 = vmatpush1.bf16.msra.mxu0 %v9142
        %9501 = vmatprep.subr.bf16.mxu0 0
        %9502 = vmatpush1.bf16.msra.mxu0 %v9143
        %9503 = vmatprep.subr.bf16.mxu0 0
        %9504 = vmatpush1.bf16.msra.mxu0 %v9144
        %9505 = vmatprep.subr.bf16.mxu0 0
        %9506 = vmatpush1.bf16.msra.mxu0 %v9145
        %9507 = vmatprep.subr.bf16.mxu0 0
        %9508 = vmatpush1.bf16.msra.mxu0 %v9146
        %9509 = vmatprep.subr.bf16.mxu0 0
        %9510 = vmatpush1.bf16.msra.mxu0 %v9147
        %9511 = vmatprep.subr.bf16.mxu0 0
        %9512 = vmatpush1.bf16.msra.mxu0 %v9148
        %9513 = vmatprep.subr.bf16.mxu0 0
        %9514 = vmatpush1.bf16.msra.mxu0 %v9149
        %9515 = vmatprep.subr.bf16.mxu0 0
        %9516 = vmatpush1.bf16.msra.mxu0 %v9150
        %9517 = vmatprep.subr.bf16.mxu0 0
        %9518 = vmatpush1.bf16.msra.mxu0 %v9151
        %9519 = vmatprep.subr.bf16.mxu0 0
        %9520 = vmatpush1.bf16.msra.mxu0 %v9152
        %9521 = vmatprep.mubr.bf16.mxu0 %v8533
        %9522 = vmatmul.mubr.bf16.gmra.mrb[0].mxu0 %v8519
        %v9523 = vpop.f32.mrb[0].mxu0
        %v9524 = vadd.f32 %v9484, %v9523
        %v9525 = vpop.f32.mrb[0].mxu0
        %v9526 = vpop.f32.mrb[0].mxu0
        %v9527 = vpop.f32.mrb[0].mxu0
        %9528 = vdwg.mxu0
        %9529 = vmatprep.subr.bf16.mxu0 0
        %9530 = vmatpush1.bf16.msra.mxu0 %v9153
        %9531 = vmatprep.subr.bf16.mxu0 0
        %9532 = vmatpush1.bf16.msra.mxu0 %v9154
        %9533 = vmatprep.subr.bf16.mxu0 0
        %9534 = vmatpush1.bf16.msra.mxu0 %v9155
        %9535 = vmatprep.subr.bf16.mxu0 0
        %9536 = vmatpush1.bf16.msra.mxu0 %v9156
        %9537 = vmatprep.subr.bf16.mxu0 0
        %9538 = vmatpush1.bf16.msra.mxu0 %v9157
        %9539 = vmatprep.subr.bf16.mxu0 0
        %9540 = vmatpush1.bf16.msra.mxu0 %v9158
        %9541 = vmatprep.subr.bf16.mxu0 0
        %9542 = vmatpush1.bf16.msra.mxu0 %v9159
        %9543 = vmatprep.subr.bf16.mxu0 0
        %9544 = vmatpush1.bf16.msra.mxu0 %v9160
        %9545 = vmatprep.subr.bf16.mxu0 0
        %9546 = vmatpush1.bf16.msra.mxu0 %v9161
        %9547 = vmatprep.subr.bf16.mxu0 0
        %9548 = vmatpush1.bf16.msra.mxu0 %v9162
        %9549 = vmatprep.subr.bf16.mxu0 0
        %9550 = vmatpush1.bf16.msra.mxu0 %v9163
        %9551 = vmatprep.subr.bf16.mxu0 0
        %9552 = vmatpush1.bf16.msra.mxu0 %v9164
        %9553 = vmatprep.subr.bf16.mxu0 0
        %9554 = vmatpush1.bf16.msra.mxu0 %v9165
        %9555 = vmatprep.subr.bf16.mxu0 0
        %9556 = vmatpush1.bf16.msra.mxu0 %v9166
        %9557 = vmatprep.subr.bf16.mxu0 0
        %9558 = vmatpush1.bf16.msra.mxu0 %v9167
        %9559 = vmatprep.subr.bf16.mxu0 0
        %9560 = vmatpush1.bf16.msra.mxu0 %v9168
        %9561 = vmatprep.mubr.bf16.mxu0 %v8543
        %9562 = vmatmul.mubr.bf16.gmra.mrb[0].mxu0 %v8541
        %v9563 = vpop.f32.mrb[0].mxu0
        %v9564 = vadd.f32 %v9524, %v9563
        %v9565 = vpop.f32.mrb[0].mxu0
        %v9566 = vpop.f32.mrb[0].mxu0
        %v9567 = vpop.f32.mrb[0].mxu0
        %9568 = vdwg.mxu0
        %9569 = vmatprep.subr.bf16.mxu0 0
        %9570 = vmatpush1.bf16.msra.mxu0 %v9169
        %9571 = vmatprep.subr.bf16.mxu0 0
        %9572 = vmatpush1.bf16.msra.mxu0 %v9170
        %9573 = vmatprep.subr.bf16.mxu0 0
        %9574 = vmatpush1.bf16.msra.mxu0 %v9171
        %9575 = vmatprep.subr.bf16.mxu0 0
        %9576 = vmatpush1.bf16.msra.mxu0 %v9172
        %9577 = vmatprep.subr.bf16.mxu0 0
        %9578 = vmatpush1.bf16.msra.mxu0 %v9173
        %9579 = vmatprep.subr.bf16.mxu0 0
        %9580 = vmatpush1.bf16.msra.mxu0 %v9174
        %9581 = vmatprep.subr.bf16.mxu0 0
        %9582 = vmatpush1.bf16.msra.mxu0 %v9175
        %9583 = vmatprep.subr.bf16.mxu0 0
        %9584 = vmatpush1.bf16.msra.mxu0 %v9176
        %9585 = vmatprep.subr.bf16.mxu0 0
        %9586 = vmatpush1.bf16.msra.mxu0 %v9177
        %9587 = vmatprep.subr.bf16.mxu0 0
        %9588 = vmatpush1.bf16.msra.mxu0 %v9178
        %9589 = vmatprep.subr.bf16.mxu0 0
        %9590 = vmatpush1.bf16.msra.mxu0 %v9179
        %9591 = vmatprep.subr.bf16.mxu0 0
        %9592 = vmatpush1.bf16.msra.mxu0 %v9180
        %9593 = vmatprep.subr.bf16.mxu0 0
        %9594 = vmatpush1.bf16.msra.mxu0 %v9181
        %9595 = vmatprep.subr.bf16.mxu0 0
        %9596 = vmatpush1.bf16.msra.mxu0 %v9182
        %9597 = vmatprep.subr.bf16.mxu0 0
        %9598 = vmatpush1.bf16.msra.mxu0 %v9183
        %9599 = vmatprep.subr.bf16.mxu0 0
        %9600 = vmatpush1.bf16.msra.mxu0 %v9184
        %9601 = vmatprep.mubr.bf16.mxu0 %v8540
        %9602 = vmatmul.mubr.bf16.gmra.mrb[0].mxu0 %v8526
        %v9603 = vpop.f32.mrb[0].mxu0
        %v9604 = vadd.f32 %v9564, %v9603
        %v9605 = vpop.f32.mrb[0].mxu0
        %v9606 = vpop.f32.mrb[0].mxu0
        %v9607 = vpop.f32.mrb[0].mxu0
        %9608 = vdwg.mxu0
        %9609 = vmatprep.subr.bf16.mxu0 0
        %9610 = vmatpush1.bf16.msra.mxu0 %v9185
        %9611 = vmatprep.subr.bf16.mxu0 0
        %9612 = vmatpush1.bf16.msra.mxu0 %v9186
        %9613 = vmatprep.subr.bf16.mxu0 0
        %9614 = vmatpush1.bf16.msra.mxu0 %v9187
        %9615 = vmatprep.subr.bf16.mxu0 0
        %9616 = vmatpush1.bf16.msra.mxu0 %v9188
        %9617 = vmatprep.subr.bf16.mxu0 0
        %9618 = vmatpush1.bf16.msra.mxu0 %v9189
        %9619 = vmatprep.subr.bf16.mxu0 0
        %9620 = vmatpush1.bf16.msra.mxu0 %v9190
        %9621 = vmatprep.subr.bf16.mxu0 0
        %9622 = vmatpush1.bf16.msra.mxu0 %v9191
        %9623 = vmatprep.subr.bf16.mxu0 0
        %9624 = vmatpush1.bf16.msra.mxu0 %v9192
        %9625 = vmatprep.subr.bf16.mxu0 0
        %9626 = vmatpush1.bf16.msra.mxu0 %v9193
        %9627 = vmatprep.subr.bf16.mxu0 0
        %9628 = vmatpush1.bf16.msra.mxu0 %v9194
        %9629 = vmatprep.subr.bf16.mxu0 0
        %9630 = vmatpush1.bf16.msra.mxu0 %v9195
        %9631 = vmatprep.subr.bf16.mxu0 0
        %9632 = vmatpush1.bf16.msra.mxu0 %v9196
        %9633 = vmatprep.subr.bf16.mxu0 0
        %9634 = vmatpush1.bf16.msra.mxu0 %v9197
        %9635 = vmatprep.subr.bf16.mxu0 0
        %9636 = vmatpush1.bf16.msra.mxu0 %v9198
        %9637 = vmatprep.subr.bf16.mxu0 0
        %9638 = vmatpush1.bf16.msra.mxu0 %v9199
        %9639 = vmatprep.subr.bf16.mxu0 0
        %9640 = vmatpush1.bf16.msra.mxu0 %v9200
        %9641 = vmatprep.mubr.bf16.mxu0 %v8544
        %9642 = vmatmul.mubr.bf16.gmra.mrb[0].mxu0 %v8542
        %v9643 = vpop.f32.mrb[0].mxu0
        %v9644 = vadd.f32 %v9604, %v9643
        %v9645 = vpop.f32.mrb[0].mxu0
        %v9646 = vpop.f32.mrb[0].mxu0
        %v9647 = vpop.f32.mrb[0].mxu0
        %9648 = vdwg.mxu0
        %v9649 = vmax.f32 %v9644, 0.0
        %v9650 = vpack.c.bf16 %v9649, %v9649
        %v9651 = vld [vmem:[%s9] sm:$0xf]
        %v9652 = vld [vmem:[%s9 + $0x4] sm:$0xf]
        %v9653 = vld [vmem:[%s9 + $0x8] sm:$0xf]
        %v9654 = vld [vmem:[%s9 + $0xc] sm:$0xf]
        %v9655 = vld [vmem:[%s9 + $0x10] sm:$0xf]
        %v9656 = vld [vmem:[%s9 + $0x14] sm:$0xf]
        %v9657 = vld [vmem:[%s9 + $0x18] sm:$0xf]
        %v9658 = vld [vmem:[%s9 + $0x1c] sm:$0xf]
        %v9659 = vld [vmem:[%s10] sm:$0x1]
        %v9668 = vunpack.c.l.b16 %v9651
        %v9669 = vunpack.c.l.b16 %v9652
        %v9670 = vunpack.c.l.b16 %v9653
        %v9671 = vunpack.c.l.b16 %v9654
        %v9672 = vunpack.c.l.b16 %v9655
        %v9673 = vunpack.c.l.b16 %v9656
        %v9674 = vunpack.c.l.b16 %v9657
        %v9675 = vunpack.c.l.b16 %v9658
        %v9676 = vpack.c.b16 %v9669, %v9668
        %v9677 = vpack.c.b16 %v9671, %v9670
        %v9678 = vpack.c.b16 %v9673, %v9672
        %v9679 = vpack.c.b16 %v9675, %v9674
        %v9685 = vsel %vm6040, %v9650, 0
        %9687 = vmatprep.subr.bf16.mxu0 0
        %9688 = vmatpush1.bf16.msra.mxu0 %v9676
        %9689 = vmatprep.subr.bf16.mxu0 0
        %9690 = vmatpush1.bf16.msra.mxu0 %v9677
        %9691 = vmatprep.subr.bf16.mxu0 0
        %9692 = vmatpush1.bf16.msra.mxu0 %v9678
        %9693 = vmatprep.subr.bf16.mxu0 0
        %9694 = vmatpush1.bf16.msra.mxu0 %v9679
        %9695 = vmatprep.subr.bf16.mxu0 0
        %9696 = vmatpush1.bf16.msra.mxu0 0
        %9697 = vmatprep.subr.bf16.mxu0 0
        %9698 = vmatpush1.bf16.msra.mxu0 0
        %9699 = vmatprep.subr.bf16.mxu0 0
        %9700 = vmatpush1.bf16.msra.mxu0 0
        %9701 = vmatprep.subr.bf16.mxu0 0
        %9702 = vmatpush1.bf16.msra.mxu0 0
        %9703 = vmatprep.subr.bf16.mxu0 0
        %9704 = vmatpush1.bf16.msra.mxu0 0
        %9705 = vmatprep.subr.bf16.mxu0 0
        %9706 = vmatpush1.bf16.msra.mxu0 0
        %9707 = vmatprep.subr.bf16.mxu0 0
        %9708 = vmatpush1.bf16.msra.mxu0 0
        %9709 = vmatprep.subr.bf16.mxu0 0
        %9710 = vmatpush1.bf16.msra.mxu0 0
        %9711 = vmatprep.subr.bf16.mxu0 0
        %9712 = vmatpush1.bf16.msra.mxu0 0
        %9713 = vmatprep.subr.bf16.mxu0 0
        %9714 = vmatpush1.bf16.msra.mxu0 0
        %9715 = vmatprep.subr.bf16.mxu0 0
        %9716 = vmatpush1.bf16.msra.mxu0 0
        %9717 = vmatprep.subr.bf16.mxu0 0
        %9718 = vmatpush1.bf16.msra.mxu0 0
        %9719 = vmatprep.mubr.bf16.mxu0 0
        %9720 = vmatmul.mubr.bf16.gmra.mrb[0].mxu0 %v9685
        %v9721 = vpop.f32.mrb[0].mxu0
        %v9722 = vadd.f32 %v9659, %v9721
        %v9723 = vpop.f32.mrb[0].mxu0
        %v9724 = vpop.f32.mrb[0].mxu0
        %v9725 = vpop.f32.mrb[0].mxu0
        %9726 = vdwg.mxu0
        %9727 = vst [vmem:[%s378] sm:$0x1] %v9722
        %s9728 = sand.u32 %s269, 1
        %s9729 = scalar_lea.sflag [#allocation11], %s9728
        %s9730 = sand.u32 %s269, 1
        %s9731 = scalar_lea.vmem [#allocation10], %s9730
        // Predicated region
        $region65: #{example_model_forward.1} parent=63 // pred_check
          %p9732 = pneg %p279
        $region66: #{example_model_forward.1} parent=63 // pred_check_branch
          %9734 = sbr.rel (%p9732) target = $region68
        $region67: #{example_model_forward.1} parent=63 // pred_region
          %s9736 = ssub.s32 16, 16
          %9737 = vsyncadd %s9729, %s9736
          %s9738 = smul.addr %s25, 16
          %s9739 = scalar_lea.hbm %s11, %s9738
          %s9741 = sshll.u32 %s9731, 4
          %s9742 = int_to_ptr.vmem [resolvable:$true] %s9741
          %9744 = dma.vmem_to_hbm [thread:$0]  %s9742, 16, %s9739, %s9729
        $region68: #{example_model_forward.1} parent=63 // pred_fallthru
          _
      $region64: #{example_model_forward.1} parent=5 // pred_fallthru
        _
      %p9745 = scmp.le.s32.totalorder 2, %s20
      // Predicated region
      $region69: #{example_model_forward.1} parent=5 // pred_check
        %p9746 = pneg %p9745
      $region70: #{example_model_forward.1} parent=5 // pred_check_branch
        %9748 = sbr.rel (%p9746) target = $region72
      $region71: #{example_model_forward.1} parent=5 // pred_region
        %s9749 = ssub.s32 %s20, 2
        // Predicated region
        $region73: #{example_model_forward.1} parent=71 // pred_check
          %p9750 = pneg %p285
        $region74: #{example_model_forward.1} parent=71 // pred_check_branch
          %9752 = sbr.rel (%p9750) target = $region76
        $region75: #{example_model_forward.1} parent=71 // pred_region
          %s9753 = sand.u32 %s270, 1
          %s9754 = scalar_lea.sflag [#allocation11], %s9753
          %s9755 = sand.u32 %s270, 1
          %s9756 = scalar_lea.vmem [#allocation10], %s9755
          %9757 = dma.done %s9754, 16
        $region76: #{example_model_forward.1} parent=71 // pred_fallthru
          _
      $region72: #{example_model_forward.1} parent=5 // pred_fallthru
        _
    $region6: #{example_model_forward.1} parent=1 // loop_footer
      %s24 = sadd.s32 1, %s20
    $region7: #{example_model_forward.1} parent=1 // loop_footer_branch
      %19 = sbr.rel target = $region3
    $region8: #{example_model_forward.1} parent=1 // loop_exit
      _
    %9758 = vsyncpa [#allocation11], 1
    %s9759 = scalar_lea.sflag [#allocation11], 1
    %9760 = vsyncpa %s9759, 1

</llo_original>
